<compile_context>
chip_gen: v7x
topology: tpu7x:2x2x1
jax: 0.10.0
libtpu: 0.0.40
codegen_flags: <defaults>
</compile_context>

<pallas_src>
import numpy as np

import jax
import jax.numpy as jnp
from jax import lax
from jax.experimental import pallas as pl
from jax.experimental.pallas import tpu as pltpu

FUSION_POSITION = '8'
MODAL_FUSION = 'CF'
EPS = 1e-8
MATMUL_DTYPE = jnp.float32   # MXU operand dtype; accumulation is float32 either way.


# ----------------------------------------------------------------------------
# In-kernel helpers
# ----------------------------------------------------------------------------
def _cln_scan(x, gain, bias, scan_steps, inv_cnt, eps=EPS):
    """Cumulative LayerNorm (exact port of cLN.forward) for one (C, T) slice.

    Cumulative sums over time: Hillis-Steele log-step scan on the stacked (2, T)
    step_sum / step_pow rows, using pre-hoisted (offset, mask) pairs.  All
    statistics stay float32.  Normalization = rsqrt on the (1, T) row (EUP) then a
    multiply over (C, T) (VPU) — no (C, T) divide.
    """
    stats = jnp.concatenate(
        [jnp.sum(x, axis=0, keepdims=True),
         jnp.sum(x * x, axis=0, keepdims=True)], axis=0)          # (2, T) f32
    for off, mask in scan_steps:                                  # static unroll
        stats = stats + jnp.where(mask, pltpu.roll(stats, off, axis=1), 0.0)
    cum_sum = stats[0:1]                                          # (1, T)
    cum_pow = stats[1:2]                                          # (1, T)
    cum_mean = cum_sum * inv_cnt
    cum_var = (cum_pow - 2.0 * cum_mean * cum_sum) * inv_cnt + cum_mean * cum_mean
    cum_var = jnp.maximum(cum_var, 0.0)                           # f32 cancellation guard
    inv_std = lax.rsqrt(cum_var + eps)                            # (1, T) on EUP
    return (x - cum_mean) * inv_std * gain + bias


def make_tcn_kernel(dilations, fusion_idx, n_blocks, BN, H, T):
    """Whole TCN stack (all DepthConv1d blocks + CF fusion) for one batch slice."""
    dilations = tuple(int(d) for d in dilations)
    scan_offsets = []
    off = 1
    while off < T:
        scan_offsets.append(off)
        off *= 2
    uniq_d = tuple(sorted(set(dilations)))

    def kernel(x_ref, q_ref, a_ref,
               w1_ref, b1_ref, g1_ref, be1_ref,
               dw_ref, dwb_ref, g2_ref, be2_ref,
               wrs_ref, brs_ref, wfca_ref, wfcq_ref, bfc_ref,
               out_ref, skip_ref):
        # Hoisted iota / counts / masks shared by all cLN calls and depthwise convs.
        t_row = lax.broadcasted_iota(jnp.int32, (1, T), 1)
        inv_cnt = 1.0 / ((t_row.astype(jnp.float32) + 1.0) * float(H))
        scan_steps = tuple((o, t_row >= o) for o in scan_offsets)
        dconv_masks = {d: (t_row >= d, t_row < T - d) for d in uniq_d}

        out = x_ref[0]                                            # (BN, T) f32 residual stream
        q = q_ref[0]                                              # (V,  T) f32
        skip_acc = jnp.zeros((BN, T), jnp.float32)

        for i in range(n_blocks):                                 # static unroll over blocks
            if i == fusion_idx:
                # CF fusion without the sublane concat:
                #   fc(cat(out, q)) = W[:, :BN] @ out + W[:, BN:] @ q + b
                out = (jnp.dot(wfca_ref[...], out.astype(MATMUL_DTYPE),
                               preferred_element_type=jnp.float32)
                       + jnp.dot(wfcq_ref[...], q.astype(MATMUL_DTYPE),
                                 preferred_element_type=jnp.float32)
                       + bfc_ref[...])

            d = dilations[i]
            a1 = a_ref[2 * i]                                     # SMEM scalar PReLU slopes
            a2 = a_ref[2 * i + 1]

            # 1x1 conv (MXU, f32 acc) + PReLU + cLN
            h = (jnp.dot(w1_ref[i], out.astype(MATMUL_DTYPE),
                         preferred_element_type=jnp.float32) + b1_ref[i])      # (H, T)
            h = jnp.where(h >= 0.0, h, a1 * h)
            h = _cln_scan(h, g1_ref[i], be1_ref[i], scan_steps, inv_cnt)

            # dilated depthwise conv: kernel=3, dilation=d, padding=d (length preserving)
            dw = dw_ref[i]                                        # (H, 3)
            m_m, m_p = dconv_masks[d]
            x_m = jnp.where(m_m, pltpu.roll(h, d, axis=1), 0.0)            # h[:, t-d]
            x_p = jnp.where(m_p, pltpu.roll(h, (T - d) % T, axis=1), 0.0)  # h[:, t+d]
            h2 = (dw[:, 0:1] * x_m + dw[:, 1:2] * h + dw[:, 2:3] * x_p
                  + dwb_ref[i])
            h2 = jnp.where(h2 >= 0.0, h2, a2 * h2)
            h2 = _cln_scan(h2, g2_ref[i], be2_ref[i], scan_steps, inv_cnt)

            # merged residual/skip 1x1 conv: single (2*BN, H) x (H, T) MXU dot
            rs = (jnp.dot(wrs_ref[i], h2.astype(MATMUL_DTYPE),
                          preferred_element_type=jnp.float32) + brs_ref[i])    # (2*BN, T)
            out = out + rs[:BN]                                   # output = output + residual
            skip_acc = skip_acc + rs[BN:]                         # skip_connection += skip

        out_ref[0] = out
        skip_ref[0] = skip_acc

    return kernel


# ----------------------------------------------------------------------------
# pallas_call wrapper
# ----------------------------------------------------------------------------
def _full_spec(a):
    nd = a.ndim
    return pl.BlockSpec(a.shape, lambda b, _nd=nd: (0,) * _nd)


def tcn_audio_forward(params, x, query, cache_audio=None):
    """Mirrors TCN_audio.forward (MODAL_FUSION='CF'). Returns (output, cache, skip_conn)."""
    B, BN, T = x.shape
    V = query.shape[1]
    blocks = params['blocks']
    n_blocks = len(blocks)
    dilations = params['dilations']
    H = blocks[0]['w1'].shape[0]
    assert max(int(d) for d in dilations) < T, "dilation must be < time length"

    fusion_idx = int(FUSION_POSITION) if MODAL_FUSION == 'CF' else -1

    f32 = jnp.float32
    md = MATMUL_DTYPE
    # Stacked per-block parameters; matmul weights pre-cast to MATMUL_DTYPE.
    w1_all = jnp.stack([b['w1'] for b in blocks]).astype(md)                       # (NB,H,BN)
    b1_all = jnp.stack([b['b1'].reshape(H, 1) for b in blocks]).astype(f32)
    g1_all = jnp.stack([b['g1'].reshape(H, 1) for b in blocks]).astype(f32)
    be1_all = jnp.stack([b['be1'].reshape(H, 1) for b in blocks]).astype(f32)
    dw_all = jnp.stack([b['dw'] for b in blocks]).astype(f32)                      # (NB,H,3)
    dwb_all = jnp.stack([b['dwb'].reshape(H, 1) for b in blocks]).astype(f32)
    g2_all = jnp.stack([b['g2'].reshape(H, 1) for b in blocks]).astype(f32)
    be2_all = jnp.stack([b['be2'].reshape(H, 1) for b in blocks]).astype(f32)
    wrs_all = jnp.stack([jnp.concatenate([b['wres'], b['wskip']], axis=0)
                         for b in blocks]).astype(md)                              # (NB,2BN,H)
    brs_all = jnp.stack([jnp.concatenate([b['bres'], b['bskip']]).reshape(2 * BN, 1)
                         for b in blocks]).astype(f32)
    # PReLU slopes as SMEM scalars: [a1_0, a2_0, a1_1, a2_1, ...]
    a_all = jnp.stack([jnp.stack([b['a1'].reshape(()), b['a2'].reshape(())])
                       for b in blocks]).reshape(-1).astype(f32)                   # (2*NB,)
    # CF fusion weights pre-split (kernel avoids the sublane concat).
    wfc_a = params['fc_w'][:, :BN].astype(md)                                      # (BN, BN)
    wfc_q = params['fc_w'][:, BN:].astype(md)                                      # (BN, V)
    bfc = params['fc_b'].reshape(BN, 1).astype(f32)

    kernel = make_tcn_kernel(dilations, fusion_idx, n_blocks, BN, H, T)

    args = (x, query, a_all,
            w1_all, b1_all, g1_all, be1_all,
            dw_all, dwb_all, g2_all, be2_all,
            wrs_all, brs_all, wfc_a, wfc_q, bfc)

    in_specs = ([pl.BlockSpec((1, BN, T), lambda b: (b, 0, 0)),
                 pl.BlockSpec((1, V, T), lambda b: (b, 0, 0)),
                 pl.BlockSpec(memory_space=pltpu.MemorySpace.SMEM)]
                + [_full_spec(a) for a in args[3:]])
    out_specs = [pl.BlockSpec((1, BN, T), lambda b: (b, 0, 0)),
                 pl.BlockSpec((1, BN, T), lambda b: (b, 0, 0))]
    out_shape = (jax.ShapeDtypeStruct((B, BN, T), jnp.float32),
                 jax.ShapeDtypeStruct((B, BN, T), jnp.float32))

    out, skip = pl.pallas_call(
        kernel,
        grid=(B,),
        in_specs=in_specs,
        out_specs=out_specs,
        out_shape=out_shape,
        compiler_params=pltpu.CompilerParams(
            dimension_semantics=("parallel",),
            # Explicit scoped-VMEM budget: >= default on all gens (v5e default is
            # only 16 MiB) and <= physical on all gens (v7x has 64 MiB/TC).
            vmem_limit_bytes=32 * 1024 * 1024),
    )(*args)
    return out, cache_audio, skip


# ----------------------------------------------------------------------------
# Deterministic parameter init (shapes from the PyTorch __init__)
# ----------------------------------------------------------------------------
def init_tcn_params(key, BN, H, V, layer, stack, kernel_size=3):
    n_blocks = layer * stack
    keys = jax.random.split(key, n_blocks + 1)

    def nrm(k, shape, fan_in):
        return (jax.random.normal(k, shape, jnp.float32) / np.sqrt(float(fan_in)))

    blocks, dilations = [], []
    bi = 0
    for s in range(stack):
        for i in range(layer):
            d = 2 ** i
            dilations.append(d)
            k = jax.random.split(keys[bi], 4)
            bi += 1
            blocks.append(dict(
                w1=nrm(k[0], (H, BN), BN), b1=jnp.zeros((H,), jnp.float32),
                a1=jnp.full((1, 1), 0.25, jnp.float32),
                g1=jnp.ones((H,), jnp.float32), be1=jnp.zeros((H,), jnp.float32),
                dw=nrm(k[1], (H, kernel_size), kernel_size),
                dwb=jnp.zeros((H,), jnp.float32),
                a2=jnp.full((1, 1), 0.25, jnp.float32),
                g2=jnp.ones((H,), jnp.float32), be2=jnp.zeros((H,), jnp.float32),
                wres=nrm(k[2], (BN, H), H), bres=0.01 * jnp.ones((BN,), jnp.float32),
                wskip=nrm(k[3], (BN, H), H), bskip=0.01 * jnp.ones((BN,), jnp.float32),
            ))
    fc_w = nrm(keys[-1], (BN, BN + V), BN + V)
    fc_b = jnp.zeros((BN,), jnp.float32)
    return dict(blocks=blocks, dilations=dilations, fc_w=fc_w, fc_b=fc_b)


# ----------------------------------------------------------------------------
# Pure-JAX f32 reference (for correctness check)
# ----------------------------------------------------------------------------
def _cln_ref(x, gain, bias, eps=EPS):
    B, C, T = x.shape
    step_sum = x.sum(1)
    step_pow = (x * x).sum(1)
    cum_sum = jnp.cumsum(step_sum, axis=1)
    cum_pow = jnp.cumsum(step_pow, axis=1)
    cnt = jnp.arange(C, C * (T + 1), C, dtype=x.dtype).reshape(1, T)
    cum_mean = cum_sum / cnt
    cum_var = (cum_pow - 2 * cum_mean * cum_sum) / cnt + cum_mean ** 2
    cum_var = jnp.maximum(cum_var, 0.0)   # same cancellation guard as the kernel
    cum_std = jnp.sqrt(cum_var + eps)
    xn = (x - cum_mean[:, None, :]) / cum_std[:, None, :]
    return xn * gain.reshape(1, C, 1) + bias.reshape(1, C, 1)


def _depthconv_ref(x, p, d):
    h = jnp.einsum('oc,bct->bot', p['w1'], x) + p['b1'].reshape(1, -1, 1)
    h = jnp.where(h >= 0, h, p['a1'][0, 0] * h)
    h = _cln_ref(h, p['g1'], p['be1'])
    T = x.shape[2]
    hp = jnp.pad(h, ((0, 0), (0, 0), (d, d)))
    h2 = (p['dw'][:, 0].reshape(1, -1, 1) * hp[:, :, 0:T]
          + p['dw'][:, 1].reshape(1, -1, 1) * hp[:, :, d:d + T]
          + p['dw'][:, 2].reshape(1, -1, 1) * hp[:, :, 2 * d:2 * d + T]
          + p['dwb'].reshape(1, -1, 1))
    h2 = jnp.where(h2 >= 0, h2, p['a2'][0, 0] * h2)
    h2 = _cln_ref(h2, p['g2'], p['be2'])
    res = jnp.einsum('oc,bct->bot', p['wres'], h2) + p['bres'].reshape(1, -1, 1)
    sk = jnp.einsum('oc,bct->bot', p['wskip'], h2) + p['bskip'].reshape(1, -1, 1)
    return res, sk


def _tcn_forward_ref(params, x, query):
    out = x
    skip_conn = jnp.zeros_like(x)
    for i, blk in enumerate(params['blocks']):
        if str(i) in [FUSION_POSITION] and MODAL_FUSION == 'CF':
            cat = jnp.concatenate([out, query], axis=1)
            out = jnp.einsum('oc,bct->bot', params['fc_w'], cat) + params['fc_b'].reshape(1, -1, 1)
        res, sk = _depthconv_ref(out, blk, params['dilations'][i])
        out = out + res
        skip_conn = skip_conn + sk
    return out, skip_conn


# ----------------------------------------------------------------------------
if __name__ == "__main__":
    # T=128 keeps the time axis lane-dense (unmasked vector loads/stores).
    B, BN, H, V, T = 2, 16, 32, 8, 128
    LAYER, STACK = 3, 3   # 9 blocks -> fusion position '8' (last block) is exercised

    key = jax.random.PRNGKey(0)
    kx, kq, kp = jax.random.split(key, 3)
    x = jax.random.normal(kx, (B, BN, T), jnp.float32)
    query = jax.random.normal(kq, (B, V, T), jnp.float32)
    params = init_tcn_params(kp, BN, H, V, LAYER, STACK)

    out, cache, skip = tcn_audio_forward(params, x, query)
    out = jax.block_until_ready(out)
    skip = jax.block_until_ready(skip)

    out_ref, skip_ref = _tcn_forward_ref(params, x, query)
    # All matmul operands are f32 here, so kernel-vs-reference differences are
    # rounding-level; 1e-2 still catches any structural error (O(1) magnitude).
    np.testing.assert_allclose(np.asarray(out), np.asarray(out_ref), rtol=1e-2, atol=1e-2)
    np.testing.assert_allclose(np.asarray(skip), np.asarray(skip_ref), rtol=1e-2, atol=1e-2)

    print("KERNEL_OK")
</pallas_src>

<mosaic_0001>
module attributes {stable_mosaic.version = 11 : i64} {
  func.func @kernel(%arg0: i32, %arg1: memref<1x16x128xf32, #tpu.memory_space<vmem>>, %arg2: memref<1x8x128xf32, #tpu.memory_space<vmem>>, %arg3: memref<18xf32, #tpu.memory_space<smem>>, %arg4: memref<9x32x16xf32, #tpu.memory_space<vmem>>, %arg5: memref<9x32x1xf32, #tpu.memory_space<vmem>>, %arg6: memref<9x32x1xf32, #tpu.memory_space<vmem>>, %arg7: memref<9x32x1xf32, #tpu.memory_space<vmem>>, %arg8: memref<9x32x3xf32, #tpu.memory_space<vmem>>, %arg9: memref<9x32x1xf32, #tpu.memory_space<vmem>>, %arg10: memref<9x32x1xf32, #tpu.memory_space<vmem>>, %arg11: memref<9x32x1xf32, #tpu.memory_space<vmem>>, %arg12: memref<9x32x32xf32, #tpu.memory_space<vmem>>, %arg13: memref<9x32x1xf32, #tpu.memory_space<vmem>>, %arg14: memref<16x16xf32, #tpu.memory_space<vmem>>, %arg15: memref<16x8xf32, #tpu.memory_space<vmem>>, %arg16: memref<16x1xf32, #tpu.memory_space<vmem>>, %arg17: memref<1x16x128xf32, #tpu.memory_space<vmem>>, %arg18: memref<1x16x128xf32, #tpu.memory_space<vmem>>) attributes {dimension_semantics = [#tpu.dimension_semantics<parallel>], iteration_bounds = array<i64: 2>, scalar_prefetch = 0 : i64, scratch_operands = 0 : i64, tpu.core_type = #tpu.core_type<tc>, window_params = [{transform_indices = @transform_0, window_bounds = array<i64: 1, 16, 128>}, {transform_indices = @transform_1, window_bounds = array<i64: 1, 8, 128>}, {transform_indices = @transform_2, window_bounds = array<i64: 18>}, {pipeline_mode = #tpu.pipeline_mode<synchronous>, transform_indices = @transform_3, window_bounds = array<i64: 9, 32, 16>}, {pipeline_mode = #tpu.pipeline_mode<synchronous>, transform_indices = @transform_4, window_bounds = array<i64: 9, 32, 1>}, {pipeline_mode = #tpu.pipeline_mode<synchronous>, transform_indices = @transform_5, window_bounds = array<i64: 9, 32, 1>}, {pipeline_mode = #tpu.pipeline_mode<synchronous>, transform_indices = @transform_6, window_bounds = array<i64: 9, 32, 1>}, {pipeline_mode = #tpu.pipeline_mode<synchronous>, transform_indices = @transform_7, window_bounds = array<i64: 9, 32, 3>}, {pipeline_mode = #tpu.pipeline_mode<synchronous>, transform_indices = @transform_8, window_bounds = array<i64: 9, 32, 1>}, {pipeline_mode = #tpu.pipeline_mode<synchronous>, transform_indices = @transform_9, window_bounds = array<i64: 9, 32, 1>}, {pipeline_mode = #tpu.pipeline_mode<synchronous>, transform_indices = @transform_10, window_bounds = array<i64: 9, 32, 1>}, {pipeline_mode = #tpu.pipeline_mode<synchronous>, transform_indices = @transform_11, window_bounds = array<i64: 9, 32, 32>}, {pipeline_mode = #tpu.pipeline_mode<synchronous>, transform_indices = @transform_12, window_bounds = array<i64: 9, 32, 1>}, {pipeline_mode = #tpu.pipeline_mode<synchronous>, transform_indices = @transform_13, window_bounds = array<i64: 16, 16>}, {pipeline_mode = #tpu.pipeline_mode<synchronous>, transform_indices = @transform_14, window_bounds = array<i64: 16, 8>}, {pipeline_mode = #tpu.pipeline_mode<synchronous>, transform_indices = @transform_15, window_bounds = array<i64: 16, 1>}, {transform_indices = @transform_16, window_bounds = array<i64: 1, 16, 128>}, {transform_indices = @transform_17, window_bounds = array<i64: 1, 16, 128>}]} {
    %0 = tpu.iota {dimensions = array<i32: 1>} : vector<1x128xi32>
    %1 = arith.sitofp %0 : vector<1x128xi32> to vector<1x128xf32>
    %cst = arith.constant 1.000000e+00 : f32
    %2 = vector.broadcast %cst : f32 to vector<1x128xf32>
    %3 = arith.addf %1, %2 : vector<1x128xf32>
    %cst_0 = arith.constant 3.200000e+01 : f32
    %4 = vector.broadcast %cst_0 : f32 to vector<1x128xf32>
    %5 = arith.mulf %3, %4 : vector<1x128xf32>
    %cst_1 = arith.constant 1.000000e+00 : f32
    %6 = vector.broadcast %cst_1 : f32 to vector<1x128xf32>
    %7 = arith.divf %6, %5 : vector<1x128xf32>
    %c1_i32 = arith.constant 1 : i32
    %8 = vector.broadcast %c1_i32 : i32 to vector<1x128xi32>
    %9 = arith.cmpi sge, %0, %8 : vector<1x128xi32>
    %c2_i32 = arith.constant 2 : i32
    %10 = vector.broadcast %c2_i32 : i32 to vector<1x128xi32>
    %11 = arith.cmpi sge, %0, %10 : vector<1x128xi32>
    %c4_i32 = arith.constant 4 : i32
    %12 = vector.broadcast %c4_i32 : i32 to vector<1x128xi32>
    %13 = arith.cmpi sge, %0, %12 : vector<1x128xi32>
    %c8_i32 = arith.constant 8 : i32
    %14 = vector.broadcast %c8_i32 : i32 to vector<1x128xi32>
    %15 = arith.cmpi sge, %0, %14 : vector<1x128xi32>
    %c16_i32 = arith.constant 16 : i32
    %16 = vector.broadcast %c16_i32 : i32 to vector<1x128xi32>
    %17 = arith.cmpi sge, %0, %16 : vector<1x128xi32>
    %c32_i32 = arith.constant 32 : i32
    %18 = vector.broadcast %c32_i32 : i32 to vector<1x128xi32>
    %19 = arith.cmpi sge, %0, %18 : vector<1x128xi32>
    %c64_i32 = arith.constant 64 : i32
    %20 = vector.broadcast %c64_i32 : i32 to vector<1x128xi32>
    %21 = arith.cmpi sge, %0, %20 : vector<1x128xi32>
    %c1_i32_2 = arith.constant 1 : i32
    %22 = vector.broadcast %c1_i32_2 : i32 to vector<1x128xi32>
    %23 = arith.cmpi sge, %0, %22 : vector<1x128xi32>
    %c127_i32 = arith.constant 127 : i32
    %24 = vector.broadcast %c127_i32 : i32 to vector<1x128xi32>
    %25 = arith.cmpi slt, %0, %24 : vector<1x128xi32>
    %c2_i32_3 = arith.constant 2 : i32
    %26 = vector.broadcast %c2_i32_3 : i32 to vector<1x128xi32>
    %27 = arith.cmpi sge, %0, %26 : vector<1x128xi32>
    %c126_i32 = arith.constant 126 : i32
    %28 = vector.broadcast %c126_i32 : i32 to vector<1x128xi32>
    %29 = arith.cmpi slt, %0, %28 : vector<1x128xi32>
    %c4_i32_4 = arith.constant 4 : i32
    %30 = vector.broadcast %c4_i32_4 : i32 to vector<1x128xi32>
    %31 = arith.cmpi sge, %0, %30 : vector<1x128xi32>
    %c124_i32 = arith.constant 124 : i32
    %32 = vector.broadcast %c124_i32 : i32 to vector<1x128xi32>
    %33 = arith.cmpi slt, %0, %32 : vector<1x128xi32>
    %c0 = arith.constant 0 : index
    %c0_5 = arith.constant 0 : index
    %c0_6 = arith.constant 0 : index
    %34 = vector.load %arg1[%c0, %c0_5, %c0_6] : memref<1x16x128xf32, #tpu.memory_space<vmem>>, vector<1x16x128xf32>
    %35 = vector.shape_cast %34 : vector<1x16x128xf32> to vector<16x128xf32>
    %c0_7 = arith.constant 0 : index
    %c0_8 = arith.constant 0 : index
    %c0_9 = arith.constant 0 : index
    %36 = vector.load %arg2[%c0_7, %c0_8, %c0_9] : memref<1x8x128xf32, #tpu.memory_space<vmem>>, vector<1x8x128xf32>
    %37 = vector.shape_cast %36 : vector<1x8x128xf32> to vector<8x128xf32>
    %cst_10 = arith.constant 0.000000e+00 : f32
    %38 = vector.broadcast %cst_10 : f32 to vector<16x128xf32>
    %c0_11 = arith.constant 0 : index
    %39 = memref.load %arg3[%c0_11] : memref<18xf32, #tpu.memory_space<smem>>
    %c1 = arith.constant 1 : index
    %40 = memref.load %arg3[%c1] : memref<18xf32, #tpu.memory_space<smem>>
    %c0_12 = arith.constant 0 : index
    %c0_13 = arith.constant 0 : index
    %c0_14 = arith.constant 0 : index
    %41 = vector.load %arg4[%c0_12, %c0_13, %c0_14] : memref<9x32x16xf32, #tpu.memory_space<vmem>>, vector<1x32x16xf32>
    %42 = vector.shape_cast %41 : vector<1x32x16xf32> to vector<32x16xf32>
    %cst_15 = arith.constant dense<0.000000e+00> : vector<32x128xf32>
    %43 = tpu.matmul %42, %35, %cst_15 {dimension_numbers = #tpu.dot_dimension_numbers<[1], [0], [0], [1], [0, 0, 1, 1], [], []>} : vector<32x16xf32>, vector<16x128xf32>, vector<32x128xf32> -> vector<32x128xf32>
    %c0_16 = arith.constant 0 : index
    %c0_17 = arith.constant 0 : index
    %c0_18 = arith.constant 0 : index
    %44 = vector.load %arg5[%c0_16, %c0_17, %c0_18] : memref<9x32x1xf32, #tpu.memory_space<vmem>>, vector<1x32x1xf32>
    %45 = vector.shape_cast %44 : vector<1x32x1xf32> to vector<32x1xf32>
    %46 = vector.broadcast %45 : vector<32x1xf32> to vector<32x128xf32>
    %47 = arith.addf %43, %46 : vector<32x128xf32>
    %cst_19 = arith.constant 0.000000e+00 : f32
    %48 = vector.broadcast %cst_19 : f32 to vector<32x128xf32>
    %49 = arith.cmpf oge, %47, %48 : vector<32x128xf32>
    %50 = vector.broadcast %39 : f32 to vector<32x128xf32>
    %51 = arith.mulf %50, %47 : vector<32x128xf32>
    %52 = arith.select %49, %47, %51 : vector<32x128xi1>, vector<32x128xf32>
    %c0_20 = arith.constant 0 : index
    %c0_21 = arith.constant 0 : index
    %c0_22 = arith.constant 0 : index
    %53 = vector.load %arg6[%c0_20, %c0_21, %c0_22] : memref<9x32x1xf32, #tpu.memory_space<vmem>>, vector<1x32x1xf32>
    %54 = vector.shape_cast %53 : vector<1x32x1xf32> to vector<32x1xf32>
    %c0_23 = arith.constant 0 : index
    %c0_24 = arith.constant 0 : index
    %c0_25 = arith.constant 0 : index
    %55 = vector.load %arg7[%c0_23, %c0_24, %c0_25] : memref<9x32x1xf32, #tpu.memory_space<vmem>>, vector<1x32x1xf32>
    %56 = vector.shape_cast %55 : vector<1x32x1xf32> to vector<32x1xf32>
    %cst_26 = arith.constant dense<0.000000e+00> : vector<128xf32>
    %57 = vector.multi_reduction <add>, %52, %cst_26 [0] : vector<32x128xf32> to vector<128xf32>
    %58 = vector.shape_cast %57 : vector<128xf32> to vector<1x128xf32>
    %59 = arith.mulf %52, %52 : vector<32x128xf32>
    %cst_27 = arith.constant dense<0.000000e+00> : vector<128xf32>
    %60 = vector.multi_reduction <add>, %59, %cst_27 [0] : vector<32x128xf32> to vector<128xf32>
    %61 = vector.shape_cast %60 : vector<128xf32> to vector<1x128xf32>
    %62 = tpu.concatenate %58, %61 in 0 : vector<1x128xf32>, vector<1x128xf32> -> vector<2x128xf32>
    %c1_i32_28 = arith.constant 1 : i32
    %63 = tpu.dynamic_rotate %62 by %c1_i32_28 dim 1 : vector<2x128xf32>, i32 -> vector<2x128xf32>
    %cst_29 = arith.constant 0.000000e+00 : f32
    %64 = vector.shape_cast %9 : vector<1x128xi1> to vector<1x128xi1>
    %65 = vector.broadcast %64 : vector<1x128xi1> to vector<2x128xi1>
    %66 = vector.broadcast %cst_29 : f32 to vector<2x128xf32>
    %67 = arith.select %65, %63, %66 : vector<2x128xi1>, vector<2x128xf32>
    %68 = arith.addf %62, %67 : vector<2x128xf32>
    %c2_i32_30 = arith.constant 2 : i32
    %69 = tpu.dynamic_rotate %68 by %c2_i32_30 dim 1 : vector<2x128xf32>, i32 -> vector<2x128xf32>
    %cst_31 = arith.constant 0.000000e+00 : f32
    %70 = vector.shape_cast %11 : vector<1x128xi1> to vector<1x128xi1>
    %71 = vector.broadcast %70 : vector<1x128xi1> to vector<2x128xi1>
    %72 = vector.broadcast %cst_31 : f32 to vector<2x128xf32>
    %73 = arith.select %71, %69, %72 : vector<2x128xi1>, vector<2x128xf32>
    %74 = arith.addf %68, %73 : vector<2x128xf32>
    %c4_i32_32 = arith.constant 4 : i32
    %75 = tpu.dynamic_rotate %74 by %c4_i32_32 dim 1 : vector<2x128xf32>, i32 -> vector<2x128xf32>
    %cst_33 = arith.constant 0.000000e+00 : f32
    %76 = vector.shape_cast %13 : vector<1x128xi1> to vector<1x128xi1>
    %77 = vector.broadcast %76 : vector<1x128xi1> to vector<2x128xi1>
    %78 = vector.broadcast %cst_33 : f32 to vector<2x128xf32>
    %79 = arith.select %77, %75, %78 : vector<2x128xi1>, vector<2x128xf32>
    %80 = arith.addf %74, %79 : vector<2x128xf32>
    %c8_i32_34 = arith.constant 8 : i32
    %81 = tpu.dynamic_rotate %80 by %c8_i32_34 dim 1 : vector<2x128xf32>, i32 -> vector<2x128xf32>
    %cst_35 = arith.constant 0.000000e+00 : f32
    %82 = vector.shape_cast %15 : vector<1x128xi1> to vector<1x128xi1>
    %83 = vector.broadcast %82 : vector<1x128xi1> to vector<2x128xi1>
    %84 = vector.broadcast %cst_35 : f32 to vector<2x128xf32>
    %85 = arith.select %83, %81, %84 : vector<2x128xi1>, vector<2x128xf32>
    %86 = arith.addf %80, %85 : vector<2x128xf32>
    %c16_i32_36 = arith.constant 16 : i32
    %87 = tpu.dynamic_rotate %86 by %c16_i32_36 dim 1 : vector<2x128xf32>, i32 -> vector<2x128xf32>
    %cst_37 = arith.constant 0.000000e+00 : f32
    %88 = vector.shape_cast %17 : vector<1x128xi1> to vector<1x128xi1>
    %89 = vector.broadcast %88 : vector<1x128xi1> to vector<2x128xi1>
    %90 = vector.broadcast %cst_37 : f32 to vector<2x128xf32>
    %91 = arith.select %89, %87, %90 : vector<2x128xi1>, vector<2x128xf32>
    %92 = arith.addf %86, %91 : vector<2x128xf32>
    %c32_i32_38 = arith.constant 32 : i32
    %93 = tpu.dynamic_rotate %92 by %c32_i32_38 dim 1 : vector<2x128xf32>, i32 -> vector<2x128xf32>
    %cst_39 = arith.constant 0.000000e+00 : f32
    %94 = vector.shape_cast %19 : vector<1x128xi1> to vector<1x128xi1>
    %95 = vector.broadcast %94 : vector<1x128xi1> to vector<2x128xi1>
    %96 = vector.broadcast %cst_39 : f32 to vector<2x128xf32>
    %97 = arith.select %95, %93, %96 : vector<2x128xi1>, vector<2x128xf32>
    %98 = arith.addf %92, %97 : vector<2x128xf32>
    %c64_i32_40 = arith.constant 64 : i32
    %99 = tpu.dynamic_rotate %98 by %c64_i32_40 dim 1 : vector<2x128xf32>, i32 -> vector<2x128xf32>
    %cst_41 = arith.constant 0.000000e+00 : f32
    %100 = vector.shape_cast %21 : vector<1x128xi1> to vector<1x128xi1>
    %101 = vector.broadcast %100 : vector<1x128xi1> to vector<2x128xi1>
    %102 = vector.broadcast %cst_41 : f32 to vector<2x128xf32>
    %103 = arith.select %101, %99, %102 : vector<2x128xi1>, vector<2x128xf32>
    %104 = arith.addf %98, %103 : vector<2x128xf32>
    %105 = vector.extract_strided_slice %104 {offsets = [0, 0], sizes = [1, 128], strides = [1, 1]} : vector<2x128xf32> to vector<1x128xf32>
    %106 = vector.extract_strided_slice %104 {offsets = [1, 0], sizes = [1, 128], strides = [1, 1]} : vector<2x128xf32> to vector<1x128xf32>
    %107 = arith.mulf %105, %7 : vector<1x128xf32>
    %cst_42 = arith.constant 2.000000e+00 : f32
    %108 = vector.broadcast %cst_42 : f32 to vector<1x128xf32>
    %109 = arith.mulf %108, %107 : vector<1x128xf32>
    %110 = arith.mulf %109, %105 : vector<1x128xf32>
    %111 = arith.subf %106, %110 : vector<1x128xf32>
    %112 = arith.mulf %111, %7 : vector<1x128xf32>
    %113 = arith.mulf %107, %107 : vector<1x128xf32>
    %114 = arith.addf %112, %113 : vector<1x128xf32>
    %cst_43 = arith.constant 0.000000e+00 : f32
    %115 = vector.broadcast %cst_43 : f32 to vector<1x128xf32>
    %116 = arith.maximumf %114, %115 : vector<1x128xf32>
    %cst_44 = arith.constant 9.99999993E-9 : f32
    %117 = vector.broadcast %cst_44 : f32 to vector<1x128xf32>
    %118 = arith.addf %116, %117 : vector<1x128xf32>
    %119 = math.rsqrt %118 : vector<1x128xf32>
    %120 = vector.broadcast %107 : vector<1x128xf32> to vector<32x128xf32>
    %121 = arith.subf %52, %120 : vector<32x128xf32>
    %122 = vector.broadcast %119 : vector<1x128xf32> to vector<32x128xf32>
    %123 = arith.mulf %121, %122 : vector<32x128xf32>
    %124 = vector.broadcast %54 : vector<32x1xf32> to vector<32x128xf32>
    %125 = arith.mulf %123, %124 : vector<32x128xf32>
    %126 = vector.broadcast %56 : vector<32x1xf32> to vector<32x128xf32>
    %127 = arith.addf %125, %126 : vector<32x128xf32>
    %c0_45 = arith.constant 0 : index
    %c0_46 = arith.constant 0 : index
    %c0_47 = arith.constant 0 : index
    %128 = vector.load %arg8[%c0_45, %c0_46, %c0_47] : memref<9x32x3xf32, #tpu.memory_space<vmem>>, vector<1x32x3xf32>
    %129 = vector.shape_cast %128 : vector<1x32x3xf32> to vector<32x3xf32>
    %c1_i32_48 = arith.constant 1 : i32
    %130 = tpu.dynamic_rotate %127 by %c1_i32_48 dim 1 : vector<32x128xf32>, i32 -> vector<32x128xf32>
    %cst_49 = arith.constant 0.000000e+00 : f32
    %131 = vector.shape_cast %23 : vector<1x128xi1> to vector<1x128xi1>
    %132 = vector.broadcast %131 : vector<1x128xi1> to vector<32x128xi1>
    %133 = vector.broadcast %cst_49 : f32 to vector<32x128xf32>
    %134 = arith.select %132, %130, %133 : vector<32x128xi1>, vector<32x128xf32>
    %c127_i32_50 = arith.constant 127 : i32
    %135 = tpu.dynamic_rotate %127 by %c127_i32_50 dim 1 : vector<32x128xf32>, i32 -> vector<32x128xf32>
    %cst_51 = arith.constant 0.000000e+00 : f32
    %136 = vector.shape_cast %25 : vector<1x128xi1> to vector<1x128xi1>
    %137 = vector.broadcast %136 : vector<1x128xi1> to vector<32x128xi1>
    %138 = vector.broadcast %cst_51 : f32 to vector<32x128xf32>
    %139 = arith.select %137, %135, %138 : vector<32x128xi1>, vector<32x128xf32>
    %140 = vector.extract_strided_slice %129 {offsets = [0, 0], sizes = [32, 1], strides = [1, 1]} : vector<32x3xf32> to vector<32x1xf32>
    %141 = vector.broadcast %140 : vector<32x1xf32> to vector<32x128xf32>
    %142 = arith.mulf %141, %134 : vector<32x128xf32>
    %143 = vector.extract_strided_slice %129 {offsets = [0, 1], sizes = [32, 1], strides = [1, 1]} : vector<32x3xf32> to vector<32x1xf32>
    %144 = vector.broadcast %143 : vector<32x1xf32> to vector<32x128xf32>
    %145 = arith.mulf %144, %127 : vector<32x128xf32>
    %146 = arith.addf %142, %145 : vector<32x128xf32>
    %147 = vector.extract_strided_slice %129 {offsets = [0, 2], sizes = [32, 1], strides = [1, 1]} : vector<32x3xf32> to vector<32x1xf32>
    %148 = vector.broadcast %147 : vector<32x1xf32> to vector<32x128xf32>
    %149 = arith.mulf %148, %139 : vector<32x128xf32>
    %150 = arith.addf %146, %149 : vector<32x128xf32>
    %c0_52 = arith.constant 0 : index
    %c0_53 = arith.constant 0 : index
    %c0_54 = arith.constant 0 : index
    %151 = vector.load %arg9[%c0_52, %c0_53, %c0_54] : memref<9x32x1xf32, #tpu.memory_space<vmem>>, vector<1x32x1xf32>
    %152 = vector.shape_cast %151 : vector<1x32x1xf32> to vector<32x1xf32>
    %153 = vector.broadcast %152 : vector<32x1xf32> to vector<32x128xf32>
    %154 = arith.addf %150, %153 : vector<32x128xf32>
    %cst_55 = arith.constant 0.000000e+00 : f32
    %155 = vector.broadcast %cst_55 : f32 to vector<32x128xf32>
    %156 = arith.cmpf oge, %154, %155 : vector<32x128xf32>
    %157 = vector.broadcast %40 : f32 to vector<32x128xf32>
    %158 = arith.mulf %157, %154 : vector<32x128xf32>
    %159 = arith.select %156, %154, %158 : vector<32x128xi1>, vector<32x128xf32>
    %c0_56 = arith.constant 0 : index
    %c0_57 = arith.constant 0 : index
    %c0_58 = arith.constant 0 : index
    %160 = vector.load %arg10[%c0_56, %c0_57, %c0_58] : memref<9x32x1xf32, #tpu.memory_space<vmem>>, vector<1x32x1xf32>
    %161 = vector.shape_cast %160 : vector<1x32x1xf32> to vector<32x1xf32>
    %c0_59 = arith.constant 0 : index
    %c0_60 = arith.constant 0 : index
    %c0_61 = arith.constant 0 : index
    %162 = vector.load %arg11[%c0_59, %c0_60, %c0_61] : memref<9x32x1xf32, #tpu.memory_space<vmem>>, vector<1x32x1xf32>
    %163 = vector.shape_cast %162 : vector<1x32x1xf32> to vector<32x1xf32>
    %cst_62 = arith.constant dense<0.000000e+00> : vector<128xf32>
    %164 = vector.multi_reduction <add>, %159, %cst_62 [0] : vector<32x128xf32> to vector<128xf32>
    %165 = vector.shape_cast %164 : vector<128xf32> to vector<1x128xf32>
    %166 = arith.mulf %159, %159 : vector<32x128xf32>
    %cst_63 = arith.constant dense<0.000000e+00> : vector<128xf32>
    %167 = vector.multi_reduction <add>, %166, %cst_63 [0] : vector<32x128xf32> to vector<128xf32>
    %168 = vector.shape_cast %167 : vector<128xf32> to vector<1x128xf32>
    %169 = tpu.concatenate %165, %168 in 0 : vector<1x128xf32>, vector<1x128xf32> -> vector<2x128xf32>
    %c1_i32_64 = arith.constant 1 : i32
    %170 = tpu.dynamic_rotate %169 by %c1_i32_64 dim 1 : vector<2x128xf32>, i32 -> vector<2x128xf32>
    %cst_65 = arith.constant 0.000000e+00 : f32
    %171 = vector.shape_cast %9 : vector<1x128xi1> to vector<1x128xi1>
    %172 = vector.broadcast %171 : vector<1x128xi1> to vector<2x128xi1>
    %173 = vector.broadcast %cst_65 : f32 to vector<2x128xf32>
    %174 = arith.select %172, %170, %173 : vector<2x128xi1>, vector<2x128xf32>
    %175 = arith.addf %169, %174 : vector<2x128xf32>
    %c2_i32_66 = arith.constant 2 : i32
    %176 = tpu.dynamic_rotate %175 by %c2_i32_66 dim 1 : vector<2x128xf32>, i32 -> vector<2x128xf32>
    %cst_67 = arith.constant 0.000000e+00 : f32
    %177 = vector.shape_cast %11 : vector<1x128xi1> to vector<1x128xi1>
    %178 = vector.broadcast %177 : vector<1x128xi1> to vector<2x128xi1>
    %179 = vector.broadcast %cst_67 : f32 to vector<2x128xf32>
    %180 = arith.select %178, %176, %179 : vector<2x128xi1>, vector<2x128xf32>
    %181 = arith.addf %175, %180 : vector<2x128xf32>
    %c4_i32_68 = arith.constant 4 : i32
    %182 = tpu.dynamic_rotate %181 by %c4_i32_68 dim 1 : vector<2x128xf32>, i32 -> vector<2x128xf32>
    %cst_69 = arith.constant 0.000000e+00 : f32
    %183 = vector.shape_cast %13 : vector<1x128xi1> to vector<1x128xi1>
    %184 = vector.broadcast %183 : vector<1x128xi1> to vector<2x128xi1>
    %185 = vector.broadcast %cst_69 : f32 to vector<2x128xf32>
    %186 = arith.select %184, %182, %185 : vector<2x128xi1>, vector<2x128xf32>
    %187 = arith.addf %181, %186 : vector<2x128xf32>
    %c8_i32_70 = arith.constant 8 : i32
    %188 = tpu.dynamic_rotate %187 by %c8_i32_70 dim 1 : vector<2x128xf32>, i32 -> vector<2x128xf32>
    %cst_71 = arith.constant 0.000000e+00 : f32
    %189 = vector.shape_cast %15 : vector<1x128xi1> to vector<1x128xi1>
    %190 = vector.broadcast %189 : vector<1x128xi1> to vector<2x128xi1>
    %191 = vector.broadcast %cst_71 : f32 to vector<2x128xf32>
    %192 = arith.select %190, %188, %191 : vector<2x128xi1>, vector<2x128xf32>
    %193 = arith.addf %187, %192 : vector<2x128xf32>
    %c16_i32_72 = arith.constant 16 : i32
    %194 = tpu.dynamic_rotate %193 by %c16_i32_72 dim 1 : vector<2x128xf32>, i32 -> vector<2x128xf32>
    %cst_73 = arith.constant 0.000000e+00 : f32
    %195 = vector.shape_cast %17 : vector<1x128xi1> to vector<1x128xi1>
    %196 = vector.broadcast %195 : vector<1x128xi1> to vector<2x128xi1>
    %197 = vector.broadcast %cst_73 : f32 to vector<2x128xf32>
    %198 = arith.select %196, %194, %197 : vector<2x128xi1>, vector<2x128xf32>
    %199 = arith.addf %193, %198 : vector<2x128xf32>
    %c32_i32_74 = arith.constant 32 : i32
    %200 = tpu.dynamic_rotate %199 by %c32_i32_74 dim 1 : vector<2x128xf32>, i32 -> vector<2x128xf32>
    %cst_75 = arith.constant 0.000000e+00 : f32
    %201 = vector.shape_cast %19 : vector<1x128xi1> to vector<1x128xi1>
    %202 = vector.broadcast %201 : vector<1x128xi1> to vector<2x128xi1>
    %203 = vector.broadcast %cst_75 : f32 to vector<2x128xf32>
    %204 = arith.select %202, %200, %203 : vector<2x128xi1>, vector<2x128xf32>
    %205 = arith.addf %199, %204 : vector<2x128xf32>
    %c64_i32_76 = arith.constant 64 : i32
    %206 = tpu.dynamic_rotate %205 by %c64_i32_76 dim 1 : vector<2x128xf32>, i32 -> vector<2x128xf32>
    %cst_77 = arith.constant 0.000000e+00 : f32
    %207 = vector.shape_cast %21 : vector<1x128xi1> to vector<1x128xi1>
    %208 = vector.broadcast %207 : vector<1x128xi1> to vector<2x128xi1>
    %209 = vector.broadcast %cst_77 : f32 to vector<2x128xf32>
    %210 = arith.select %208, %206, %209 : vector<2x128xi1>, vector<2x128xf32>
    %211 = arith.addf %205, %210 : vector<2x128xf32>
    %212 = vector.extract_strided_slice %211 {offsets = [0, 0], sizes = [1, 128], strides = [1, 1]} : vector<2x128xf32> to vector<1x128xf32>
    %213 = vector.extract_strided_slice %211 {offsets = [1, 0], sizes = [1, 128], strides = [1, 1]} : vector<2x128xf32> to vector<1x128xf32>
    %214 = arith.mulf %212, %7 : vector<1x128xf32>
    %cst_78 = arith.constant 2.000000e+00 : f32
    %215 = vector.broadcast %cst_78 : f32 to vector<1x128xf32>
    %216 = arith.mulf %215, %214 : vector<1x128xf32>
    %217 = arith.mulf %216, %212 : vector<1x128xf32>
    %218 = arith.subf %213, %217 : vector<1x128xf32>
    %219 = arith.mulf %218, %7 : vector<1x128xf32>
    %220 = arith.mulf %214, %214 : vector<1x128xf32>
    %221 = arith.addf %219, %220 : vector<1x128xf32>
    %cst_79 = arith.constant 0.000000e+00 : f32
    %222 = vector.broadcast %cst_79 : f32 to vector<1x128xf32>
    %223 = arith.maximumf %221, %222 : vector<1x128xf32>
    %cst_80 = arith.constant 9.99999993E-9 : f32
    %224 = vector.broadcast %cst_80 : f32 to vector<1x128xf32>
    %225 = arith.addf %223, %224 : vector<1x128xf32>
    %226 = math.rsqrt %225 : vector<1x128xf32>
    %227 = vector.broadcast %214 : vector<1x128xf32> to vector<32x128xf32>
    %228 = arith.subf %159, %227 : vector<32x128xf32>
    %229 = vector.broadcast %226 : vector<1x128xf32> to vector<32x128xf32>
    %230 = arith.mulf %228, %229 : vector<32x128xf32>
    %231 = vector.broadcast %161 : vector<32x1xf32> to vector<32x128xf32>
    %232 = arith.mulf %230, %231 : vector<32x128xf32>
    %233 = vector.broadcast %163 : vector<32x1xf32> to vector<32x128xf32>
    %234 = arith.addf %232, %233 : vector<32x128xf32>
    %c0_81 = arith.constant 0 : index
    %c0_82 = arith.constant 0 : index
    %c0_83 = arith.constant 0 : index
    %235 = vector.load %arg12[%c0_81, %c0_82, %c0_83] : memref<9x32x32xf32, #tpu.memory_space<vmem>>, vector<1x32x32xf32>
    %236 = vector.shape_cast %235 : vector<1x32x32xf32> to vector<32x32xf32>
    %cst_84 = arith.constant dense<0.000000e+00> : vector<32x128xf32>
    %237 = tpu.matmul %236, %234, %cst_84 {dimension_numbers = #tpu.dot_dimension_numbers<[1], [0], [0], [1], [0, 0, 1, 1], [], []>} : vector<32x32xf32>, vector<32x128xf32>, vector<32x128xf32> -> vector<32x128xf32>
    %c0_85 = arith.constant 0 : index
    %c0_86 = arith.constant 0 : index
    %c0_87 = arith.constant 0 : index
    %238 = vector.load %arg13[%c0_85, %c0_86, %c0_87] : memref<9x32x1xf32, #tpu.memory_space<vmem>>, vector<1x32x1xf32>
    %239 = vector.shape_cast %238 : vector<1x32x1xf32> to vector<32x1xf32>
    %240 = vector.broadcast %239 : vector<32x1xf32> to vector<32x128xf32>
    %241 = arith.addf %237, %240 : vector<32x128xf32>
    %242 = vector.extract_strided_slice %241 {offsets = [0, 0], sizes = [16, 128], strides = [1, 1]} : vector<32x128xf32> to vector<16x128xf32>
    %243 = arith.addf %35, %242 : vector<16x128xf32>
    %244 = vector.extract_strided_slice %241 {offsets = [16, 0], sizes = [16, 128], strides = [1, 1]} : vector<32x128xf32> to vector<16x128xf32>
    %245 = arith.addf %38, %244 : vector<16x128xf32>
    %c2 = arith.constant 2 : index
    %246 = memref.load %arg3[%c2] : memref<18xf32, #tpu.memory_space<smem>>
    %c3 = arith.constant 3 : index
    %247 = memref.load %arg3[%c3] : memref<18xf32, #tpu.memory_space<smem>>
    %c1_88 = arith.constant 1 : index
    %c0_89 = arith.constant 0 : index
    %c0_90 = arith.constant 0 : index
    %248 = vector.load %arg4[%c1_88, %c0_89, %c0_90] : memref<9x32x16xf32, #tpu.memory_space<vmem>>, vector<1x32x16xf32>
    %249 = vector.shape_cast %248 : vector<1x32x16xf32> to vector<32x16xf32>
    %cst_91 = arith.constant dense<0.000000e+00> : vector<32x128xf32>
    %250 = tpu.matmul %249, %243, %cst_91 {dimension_numbers = #tpu.dot_dimension_numbers<[1], [0], [0], [1], [0, 0, 1, 1], [], []>} : vector<32x16xf32>, vector<16x128xf32>, vector<32x128xf32> -> vector<32x128xf32>
    %c1_92 = arith.constant 1 : index
    %c0_93 = arith.constant 0 : index
    %c0_94 = arith.constant 0 : index
    %251 = vector.load %arg5[%c1_92, %c0_93, %c0_94] : memref<9x32x1xf32, #tpu.memory_space<vmem>>, vector<1x32x1xf32>
    %252 = vector.shape_cast %251 : vector<1x32x1xf32> to vector<32x1xf32>
    %253 = vector.broadcast %252 : vector<32x1xf32> to vector<32x128xf32>
    %254 = arith.addf %250, %253 : vector<32x128xf32>
    %cst_95 = arith.constant 0.000000e+00 : f32
    %255 = vector.broadcast %cst_95 : f32 to vector<32x128xf32>
    %256 = arith.cmpf oge, %254, %255 : vector<32x128xf32>
    %257 = vector.broadcast %246 : f32 to vector<32x128xf32>
    %258 = arith.mulf %257, %254 : vector<32x128xf32>
    %259 = arith.select %256, %254, %258 : vector<32x128xi1>, vector<32x128xf32>
    %c1_96 = arith.constant 1 : index
    %c0_97 = arith.constant 0 : index
    %c0_98 = arith.constant 0 : index
    %260 = vector.load %arg6[%c1_96, %c0_97, %c0_98] : memref<9x32x1xf32, #tpu.memory_space<vmem>>, vector<1x32x1xf32>
    %261 = vector.shape_cast %260 : vector<1x32x1xf32> to vector<32x1xf32>
    %c1_99 = arith.constant 1 : index
    %c0_100 = arith.constant 0 : index
    %c0_101 = arith.constant 0 : index
    %262 = vector.load %arg7[%c1_99, %c0_100, %c0_101] : memref<9x32x1xf32, #tpu.memory_space<vmem>>, vector<1x32x1xf32>
    %263 = vector.shape_cast %262 : vector<1x32x1xf32> to vector<32x1xf32>
    %cst_102 = arith.constant dense<0.000000e+00> : vector<128xf32>
    %264 = vector.multi_reduction <add>, %259, %cst_102 [0] : vector<32x128xf32> to vector<128xf32>
    %265 = vector.shape_cast %264 : vector<128xf32> to vector<1x128xf32>
    %266 = arith.mulf %259, %259 : vector<32x128xf32>
    %cst_103 = arith.constant dense<0.000000e+00> : vector<128xf32>
    %267 = vector.multi_reduction <add>, %266, %cst_103 [0] : vector<32x128xf32> to vector<128xf32>
    %268 = vector.shape_cast %267 : vector<128xf32> to vector<1x128xf32>
    %269 = tpu.concatenate %265, %268 in 0 : vector<1x128xf32>, vector<1x128xf32> -> vector<2x128xf32>
    %c1_i32_104 = arith.constant 1 : i32
    %270 = tpu.dynamic_rotate %269 by %c1_i32_104 dim 1 : vector<2x128xf32>, i32 -> vector<2x128xf32>
    %cst_105 = arith.constant 0.000000e+00 : f32
    %271 = vector.shape_cast %9 : vector<1x128xi1> to vector<1x128xi1>
    %272 = vector.broadcast %271 : vector<1x128xi1> to vector<2x128xi1>
    %273 = vector.broadcast %cst_105 : f32 to vector<2x128xf32>
    %274 = arith.select %272, %270, %273 : vector<2x128xi1>, vector<2x128xf32>
    %275 = arith.addf %269, %274 : vector<2x128xf32>
    %c2_i32_106 = arith.constant 2 : i32
    %276 = tpu.dynamic_rotate %275 by %c2_i32_106 dim 1 : vector<2x128xf32>, i32 -> vector<2x128xf32>
    %cst_107 = arith.constant 0.000000e+00 : f32
    %277 = vector.shape_cast %11 : vector<1x128xi1> to vector<1x128xi1>
    %278 = vector.broadcast %277 : vector<1x128xi1> to vector<2x128xi1>
    %279 = vector.broadcast %cst_107 : f32 to vector<2x128xf32>
    %280 = arith.select %278, %276, %279 : vector<2x128xi1>, vector<2x128xf32>
    %281 = arith.addf %275, %280 : vector<2x128xf32>
    %c4_i32_108 = arith.constant 4 : i32
    %282 = tpu.dynamic_rotate %281 by %c4_i32_108 dim 1 : vector<2x128xf32>, i32 -> vector<2x128xf32>
    %cst_109 = arith.constant 0.000000e+00 : f32
    %283 = vector.shape_cast %13 : vector<1x128xi1> to vector<1x128xi1>
    %284 = vector.broadcast %283 : vector<1x128xi1> to vector<2x128xi1>
    %285 = vector.broadcast %cst_109 : f32 to vector<2x128xf32>
    %286 = arith.select %284, %282, %285 : vector<2x128xi1>, vector<2x128xf32>
    %287 = arith.addf %281, %286 : vector<2x128xf32>
    %c8_i32_110 = arith.constant 8 : i32
    %288 = tpu.dynamic_rotate %287 by %c8_i32_110 dim 1 : vector<2x128xf32>, i32 -> vector<2x128xf32>
    %cst_111 = arith.constant 0.000000e+00 : f32
    %289 = vector.shape_cast %15 : vector<1x128xi1> to vector<1x128xi1>
    %290 = vector.broadcast %289 : vector<1x128xi1> to vector<2x128xi1>
    %291 = vector.broadcast %cst_111 : f32 to vector<2x128xf32>
    %292 = arith.select %290, %288, %291 : vector<2x128xi1>, vector<2x128xf32>
    %293 = arith.addf %287, %292 : vector<2x128xf32>
    %c16_i32_112 = arith.constant 16 : i32
    %294 = tpu.dynamic_rotate %293 by %c16_i32_112 dim 1 : vector<2x128xf32>, i32 -> vector<2x128xf32>
    %cst_113 = arith.constant 0.000000e+00 : f32
    %295 = vector.shape_cast %17 : vector<1x128xi1> to vector<1x128xi1>
    %296 = vector.broadcast %295 : vector<1x128xi1> to vector<2x128xi1>
    %297 = vector.broadcast %cst_113 : f32 to vector<2x128xf32>
    %298 = arith.select %296, %294, %297 : vector<2x128xi1>, vector<2x128xf32>
    %299 = arith.addf %293, %298 : vector<2x128xf32>
    %c32_i32_114 = arith.constant 32 : i32
    %300 = tpu.dynamic_rotate %299 by %c32_i32_114 dim 1 : vector<2x128xf32>, i32 -> vector<2x128xf32>
    %cst_115 = arith.constant 0.000000e+00 : f32
    %301 = vector.shape_cast %19 : vector<1x128xi1> to vector<1x128xi1>
    %302 = vector.broadcast %301 : vector<1x128xi1> to vector<2x128xi1>
    %303 = vector.broadcast %cst_115 : f32 to vector<2x128xf32>
    %304 = arith.select %302, %300, %303 : vector<2x128xi1>, vector<2x128xf32>
    %305 = arith.addf %299, %304 : vector<2x128xf32>
    %c64_i32_116 = arith.constant 64 : i32
    %306 = tpu.dynamic_rotate %305 by %c64_i32_116 dim 1 : vector<2x128xf32>, i32 -> vector<2x128xf32>
    %cst_117 = arith.constant 0.000000e+00 : f32
    %307 = vector.shape_cast %21 : vector<1x128xi1> to vector<1x128xi1>
    %308 = vector.broadcast %307 : vector<1x128xi1> to vector<2x128xi1>
    %309 = vector.broadcast %cst_117 : f32 to vector<2x128xf32>
    %310 = arith.select %308, %306, %309 : vector<2x128xi1>, vector<2x128xf32>
    %311 = arith.addf %305, %310 : vector<2x128xf32>
    %312 = vector.extract_strided_slice %311 {offsets = [0, 0], sizes = [1, 128], strides = [1, 1]} : vector<2x128xf32> to vector<1x128xf32>
    %313 = vector.extract_strided_slice %311 {offsets = [1, 0], sizes = [1, 128], strides = [1, 1]} : vector<2x128xf32> to vector<1x128xf32>
    %314 = arith.mulf %312, %7 : vector<1x128xf32>
    %cst_118 = arith.constant 2.000000e+00 : f32
    %315 = vector.broadcast %cst_118 : f32 to vector<1x128xf32>
    %316 = arith.mulf %315, %314 : vector<1x128xf32>
    %317 = arith.mulf %316, %312 : vector<1x128xf32>
    %318 = arith.subf %313, %317 : vector<1x128xf32>
    %319 = arith.mulf %318, %7 : vector<1x128xf32>
    %320 = arith.mulf %314, %314 : vector<1x128xf32>
    %321 = arith.addf %319, %320 : vector<1x128xf32>
    %cst_119 = arith.constant 0.000000e+00 : f32
    %322 = vector.broadcast %cst_119 : f32 to vector<1x128xf32>
    %323 = arith.maximumf %321, %322 : vector<1x128xf32>
    %cst_120 = arith.constant 9.99999993E-9 : f32
    %324 = vector.broadcast %cst_120 : f32 to vector<1x128xf32>
    %325 = arith.addf %323, %324 : vector<1x128xf32>
    %326 = math.rsqrt %325 : vector<1x128xf32>
    %327 = vector.broadcast %314 : vector<1x128xf32> to vector<32x128xf32>
    %328 = arith.subf %259, %327 : vector<32x128xf32>
    %329 = vector.broadcast %326 : vector<1x128xf32> to vector<32x128xf32>
    %330 = arith.mulf %328, %329 : vector<32x128xf32>
    %331 = vector.broadcast %261 : vector<32x1xf32> to vector<32x128xf32>
    %332 = arith.mulf %330, %331 : vector<32x128xf32>
    %333 = vector.broadcast %263 : vector<32x1xf32> to vector<32x128xf32>
    %334 = arith.addf %332, %333 : vector<32x128xf32>
    %c1_121 = arith.constant 1 : index
    %c0_122 = arith.constant 0 : index
    %c0_123 = arith.constant 0 : index
    %335 = vector.load %arg8[%c1_121, %c0_122, %c0_123] : memref<9x32x3xf32, #tpu.memory_space<vmem>>, vector<1x32x3xf32>
    %336 = vector.shape_cast %335 : vector<1x32x3xf32> to vector<32x3xf32>
    %c2_i32_124 = arith.constant 2 : i32
    %337 = tpu.dynamic_rotate %334 by %c2_i32_124 dim 1 : vector<32x128xf32>, i32 -> vector<32x128xf32>
    %cst_125 = arith.constant 0.000000e+00 : f32
    %338 = vector.shape_cast %27 : vector<1x128xi1> to vector<1x128xi1>
    %339 = vector.broadcast %338 : vector<1x128xi1> to vector<32x128xi1>
    %340 = vector.broadcast %cst_125 : f32 to vector<32x128xf32>
    %341 = arith.select %339, %337, %340 : vector<32x128xi1>, vector<32x128xf32>
    %c126_i32_126 = arith.constant 126 : i32
    %342 = tpu.dynamic_rotate %334 by %c126_i32_126 dim 1 : vector<32x128xf32>, i32 -> vector<32x128xf32>
    %cst_127 = arith.constant 0.000000e+00 : f32
    %343 = vector.shape_cast %29 : vector<1x128xi1> to vector<1x128xi1>
    %344 = vector.broadcast %343 : vector<1x128xi1> to vector<32x128xi1>
    %345 = vector.broadcast %cst_127 : f32 to vector<32x128xf32>
    %346 = arith.select %344, %342, %345 : vector<32x128xi1>, vector<32x128xf32>
    %347 = vector.extract_strided_slice %336 {offsets = [0, 0], sizes = [32, 1], strides = [1, 1]} : vector<32x3xf32> to vector<32x1xf32>
    %348 = vector.broadcast %347 : vector<32x1xf32> to vector<32x128xf32>
    %349 = arith.mulf %348, %341 : vector<32x128xf32>
    %350 = vector.extract_strided_slice %336 {offsets = [0, 1], sizes = [32, 1], strides = [1, 1]} : vector<32x3xf32> to vector<32x1xf32>
    %351 = vector.broadcast %350 : vector<32x1xf32> to vector<32x128xf32>
    %352 = arith.mulf %351, %334 : vector<32x128xf32>
    %353 = arith.addf %349, %352 : vector<32x128xf32>
    %354 = vector.extract_strided_slice %336 {offsets = [0, 2], sizes = [32, 1], strides = [1, 1]} : vector<32x3xf32> to vector<32x1xf32>
    %355 = vector.broadcast %354 : vector<32x1xf32> to vector<32x128xf32>
    %356 = arith.mulf %355, %346 : vector<32x128xf32>
    %357 = arith.addf %353, %356 : vector<32x128xf32>
    %c1_128 = arith.constant 1 : index
    %c0_129 = arith.constant 0 : index
    %c0_130 = arith.constant 0 : index
    %358 = vector.load %arg9[%c1_128, %c0_129, %c0_130] : memref<9x32x1xf32, #tpu.memory_space<vmem>>, vector<1x32x1xf32>
    %359 = vector.shape_cast %358 : vector<1x32x1xf32> to vector<32x1xf32>
    %360 = vector.broadcast %359 : vector<32x1xf32> to vector<32x128xf32>
    %361 = arith.addf %357, %360 : vector<32x128xf32>
    %cst_131 = arith.constant 0.000000e+00 : f32
    %362 = vector.broadcast %cst_131 : f32 to vector<32x128xf32>
    %363 = arith.cmpf oge, %361, %362 : vector<32x128xf32>
    %364 = vector.broadcast %247 : f32 to vector<32x128xf32>
    %365 = arith.mulf %364, %361 : vector<32x128xf32>
    %366 = arith.select %363, %361, %365 : vector<32x128xi1>, vector<32x128xf32>
    %c1_132 = arith.constant 1 : index
    %c0_133 = arith.constant 0 : index
    %c0_134 = arith.constant 0 : index
    %367 = vector.load %arg10[%c1_132, %c0_133, %c0_134] : memref<9x32x1xf32, #tpu.memory_space<vmem>>, vector<1x32x1xf32>
    %368 = vector.shape_cast %367 : vector<1x32x1xf32> to vector<32x1xf32>
    %c1_135 = arith.constant 1 : index
    %c0_136 = arith.constant 0 : index
    %c0_137 = arith.constant 0 : index
    %369 = vector.load %arg11[%c1_135, %c0_136, %c0_137] : memref<9x32x1xf32, #tpu.memory_space<vmem>>, vector<1x32x1xf32>
    %370 = vector.shape_cast %369 : vector<1x32x1xf32> to vector<32x1xf32>
    %cst_138 = arith.constant dense<0.000000e+00> : vector<128xf32>
    %371 = vector.multi_reduction <add>, %366, %cst_138 [0] : vector<32x128xf32> to vector<128xf32>
    %372 = vector.shape_cast %371 : vector<128xf32> to vector<1x128xf32>
    %373 = arith.mulf %366, %366 : vector<32x128xf32>
    %cst_139 = arith.constant dense<0.000000e+00> : vector<128xf32>
    %374 = vector.multi_reduction <add>, %373, %cst_139 [0] : vector<32x128xf32> to vector<128xf32>
    %375 = vector.shape_cast %374 : vector<128xf32> to vector<1x128xf32>
    %376 = tpu.concatenate %372, %375 in 0 : vector<1x128xf32>, vector<1x128xf32> -> vector<2x128xf32>
    %c1_i32_140 = arith.constant 1 : i32
    %377 = tpu.dynamic_rotate %376 by %c1_i32_140 dim 1 : vector<2x128xf32>, i32 -> vector<2x128xf32>
    %cst_141 = arith.constant 0.000000e+00 : f32
    %378 = vector.shape_cast %9 : vector<1x128xi1> to vector<1x128xi1>
    %379 = vector.broadcast %378 : vector<1x128xi1> to vector<2x128xi1>
    %380 = vector.broadcast %cst_141 : f32 to vector<2x128xf32>
    %381 = arith.select %379, %377, %380 : vector<2x128xi1>, vector<2x128xf32>
    %382 = arith.addf %376, %381 : vector<2x128xf32>
    %c2_i32_142 = arith.constant 2 : i32
    %383 = tpu.dynamic_rotate %382 by %c2_i32_142 dim 1 : vector<2x128xf32>, i32 -> vector<2x128xf32>
    %cst_143 = arith.constant 0.000000e+00 : f32
    %384 = vector.shape_cast %11 : vector<1x128xi1> to vector<1x128xi1>
    %385 = vector.broadcast %384 : vector<1x128xi1> to vector<2x128xi1>
    %386 = vector.broadcast %cst_143 : f32 to vector<2x128xf32>
    %387 = arith.select %385, %383, %386 : vector<2x128xi1>, vector<2x128xf32>
    %388 = arith.addf %382, %387 : vector<2x128xf32>
    %c4_i32_144 = arith.constant 4 : i32
    %389 = tpu.dynamic_rotate %388 by %c4_i32_144 dim 1 : vector<2x128xf32>, i32 -> vector<2x128xf32>
    %cst_145 = arith.constant 0.000000e+00 : f32
    %390 = vector.shape_cast %13 : vector<1x128xi1> to vector<1x128xi1>
    %391 = vector.broadcast %390 : vector<1x128xi1> to vector<2x128xi1>
    %392 = vector.broadcast %cst_145 : f32 to vector<2x128xf32>
    %393 = arith.select %391, %389, %392 : vector<2x128xi1>, vector<2x128xf32>
    %394 = arith.addf %388, %393 : vector<2x128xf32>
    %c8_i32_146 = arith.constant 8 : i32
    %395 = tpu.dynamic_rotate %394 by %c8_i32_146 dim 1 : vector<2x128xf32>, i32 -> vector<2x128xf32>
    %cst_147 = arith.constant 0.000000e+00 : f32
    %396 = vector.shape_cast %15 : vector<1x128xi1> to vector<1x128xi1>
    %397 = vector.broadcast %396 : vector<1x128xi1> to vector<2x128xi1>
    %398 = vector.broadcast %cst_147 : f32 to vector<2x128xf32>
    %399 = arith.select %397, %395, %398 : vector<2x128xi1>, vector<2x128xf32>
    %400 = arith.addf %394, %399 : vector<2x128xf32>
    %c16_i32_148 = arith.constant 16 : i32
    %401 = tpu.dynamic_rotate %400 by %c16_i32_148 dim 1 : vector<2x128xf32>, i32 -> vector<2x128xf32>
    %cst_149 = arith.constant 0.000000e+00 : f32
    %402 = vector.shape_cast %17 : vector<1x128xi1> to vector<1x128xi1>
    %403 = vector.broadcast %402 : vector<1x128xi1> to vector<2x128xi1>
    %404 = vector.broadcast %cst_149 : f32 to vector<2x128xf32>
    %405 = arith.select %403, %401, %404 : vector<2x128xi1>, vector<2x128xf32>
    %406 = arith.addf %400, %405 : vector<2x128xf32>
    %c32_i32_150 = arith.constant 32 : i32
    %407 = tpu.dynamic_rotate %406 by %c32_i32_150 dim 1 : vector<2x128xf32>, i32 -> vector<2x128xf32>
    %cst_151 = arith.constant 0.000000e+00 : f32
    %408 = vector.shape_cast %19 : vector<1x128xi1> to vector<1x128xi1>
    %409 = vector.broadcast %408 : vector<1x128xi1> to vector<2x128xi1>
    %410 = vector.broadcast %cst_151 : f32 to vector<2x128xf32>
    %411 = arith.select %409, %407, %410 : vector<2x128xi1>, vector<2x128xf32>
    %412 = arith.addf %406, %411 : vector<2x128xf32>
    %c64_i32_152 = arith.constant 64 : i32
    %413 = tpu.dynamic_rotate %412 by %c64_i32_152 dim 1 : vector<2x128xf32>, i32 -> vector<2x128xf32>
    %cst_153 = arith.constant 0.000000e+00 : f32
    %414 = vector.shape_cast %21 : vector<1x128xi1> to vector<1x128xi1>
    %415 = vector.broadcast %414 : vector<1x128xi1> to vector<2x128xi1>
    %416 = vector.broadcast %cst_153 : f32 to vector<2x128xf32>
    %417 = arith.select %415, %413, %416 : vector<2x128xi1>, vector<2x128xf32>
    %418 = arith.addf %412, %417 : vector<2x128xf32>
    %419 = vector.extract_strided_slice %418 {offsets = [0, 0], sizes = [1, 128], strides = [1, 1]} : vector<2x128xf32> to vector<1x128xf32>
    %420 = vector.extract_strided_slice %418 {offsets = [1, 0], sizes = [1, 128], strides = [1, 1]} : vector<2x128xf32> to vector<1x128xf32>
    %421 = arith.mulf %419, %7 : vector<1x128xf32>
    %cst_154 = arith.constant 2.000000e+00 : f32
    %422 = vector.broadcast %cst_154 : f32 to vector<1x128xf32>
    %423 = arith.mulf %422, %421 : vector<1x128xf32>
    %424 = arith.mulf %423, %419 : vector<1x128xf32>
    %425 = arith.subf %420, %424 : vector<1x128xf32>
    %426 = arith.mulf %425, %7 : vector<1x128xf32>
    %427 = arith.mulf %421, %421 : vector<1x128xf32>
    %428 = arith.addf %426, %427 : vector<1x128xf32>
    %cst_155 = arith.constant 0.000000e+00 : f32
    %429 = vector.broadcast %cst_155 : f32 to vector<1x128xf32>
    %430 = arith.maximumf %428, %429 : vector<1x128xf32>
    %cst_156 = arith.constant 9.99999993E-9 : f32
    %431 = vector.broadcast %cst_156 : f32 to vector<1x128xf32>
    %432 = arith.addf %430, %431 : vector<1x128xf32>
    %433 = math.rsqrt %432 : vector<1x128xf32>
    %434 = vector.broadcast %421 : vector<1x128xf32> to vector<32x128xf32>
    %435 = arith.subf %366, %434 : vector<32x128xf32>
    %436 = vector.broadcast %433 : vector<1x128xf32> to vector<32x128xf32>
    %437 = arith.mulf %435, %436 : vector<32x128xf32>
    %438 = vector.broadcast %368 : vector<32x1xf32> to vector<32x128xf32>
    %439 = arith.mulf %437, %438 : vector<32x128xf32>
    %440 = vector.broadcast %370 : vector<32x1xf32> to vector<32x128xf32>
    %441 = arith.addf %439, %440 : vector<32x128xf32>
    %c1_157 = arith.constant 1 : index
    %c0_158 = arith.constant 0 : index
    %c0_159 = arith.constant 0 : index
    %442 = vector.load %arg12[%c1_157, %c0_158, %c0_159] : memref<9x32x32xf32, #tpu.memory_space<vmem>>, vector<1x32x32xf32>
    %443 = vector.shape_cast %442 : vector<1x32x32xf32> to vector<32x32xf32>
    %cst_160 = arith.constant dense<0.000000e+00> : vector<32x128xf32>
    %444 = tpu.matmul %443, %441, %cst_160 {dimension_numbers = #tpu.dot_dimension_numbers<[1], [0], [0], [1], [0, 0, 1, 1], [], []>} : vector<32x32xf32>, vector<32x128xf32>, vector<32x128xf32> -> vector<32x128xf32>
    %c1_161 = arith.constant 1 : index
    %c0_162 = arith.constant 0 : index
    %c0_163 = arith.constant 0 : index
    %445 = vector.load %arg13[%c1_161, %c0_162, %c0_163] : memref<9x32x1xf32, #tpu.memory_space<vmem>>, vector<1x32x1xf32>
    %446 = vector.shape_cast %445 : vector<1x32x1xf32> to vector<32x1xf32>
    %447 = vector.broadcast %446 : vector<32x1xf32> to vector<32x128xf32>
    %448 = arith.addf %444, %447 : vector<32x128xf32>
    %449 = vector.extract_strided_slice %448 {offsets = [0, 0], sizes = [16, 128], strides = [1, 1]} : vector<32x128xf32> to vector<16x128xf32>
    %450 = arith.addf %243, %449 : vector<16x128xf32>
    %451 = vector.extract_strided_slice %448 {offsets = [16, 0], sizes = [16, 128], strides = [1, 1]} : vector<32x128xf32> to vector<16x128xf32>
    %452 = arith.addf %245, %451 : vector<16x128xf32>
    %c4 = arith.constant 4 : index
    %453 = memref.load %arg3[%c4] : memref<18xf32, #tpu.memory_space<smem>>
    %c5 = arith.constant 5 : index
    %454 = memref.load %arg3[%c5] : memref<18xf32, #tpu.memory_space<smem>>
    %c2_164 = arith.constant 2 : index
    %c0_165 = arith.constant 0 : index
    %c0_166 = arith.constant 0 : index
    %455 = vector.load %arg4[%c2_164, %c0_165, %c0_166] : memref<9x32x16xf32, #tpu.memory_space<vmem>>, vector<1x32x16xf32>
    %456 = vector.shape_cast %455 : vector<1x32x16xf32> to vector<32x16xf32>
    %cst_167 = arith.constant dense<0.000000e+00> : vector<32x128xf32>
    %457 = tpu.matmul %456, %450, %cst_167 {dimension_numbers = #tpu.dot_dimension_numbers<[1], [0], [0], [1], [0, 0, 1, 1], [], []>} : vector<32x16xf32>, vector<16x128xf32>, vector<32x128xf32> -> vector<32x128xf32>
    %c2_168 = arith.constant 2 : index
    %c0_169 = arith.constant 0 : index
    %c0_170 = arith.constant 0 : index
    %458 = vector.load %arg5[%c2_168, %c0_169, %c0_170] : memref<9x32x1xf32, #tpu.memory_space<vmem>>, vector<1x32x1xf32>
    %459 = vector.shape_cast %458 : vector<1x32x1xf32> to vector<32x1xf32>
    %460 = vector.broadcast %459 : vector<32x1xf32> to vector<32x128xf32>
    %461 = arith.addf %457, %460 : vector<32x128xf32>
    %cst_171 = arith.constant 0.000000e+00 : f32
    %462 = vector.broadcast %cst_171 : f32 to vector<32x128xf32>
    %463 = arith.cmpf oge, %461, %462 : vector<32x128xf32>
    %464 = vector.broadcast %453 : f32 to vector<32x128xf32>
    %465 = arith.mulf %464, %461 : vector<32x128xf32>
    %466 = arith.select %463, %461, %465 : vector<32x128xi1>, vector<32x128xf32>
    %c2_172 = arith.constant 2 : index
    %c0_173 = arith.constant 0 : index
    %c0_174 = arith.constant 0 : index
    %467 = vector.load %arg6[%c2_172, %c0_173, %c0_174] : memref<9x32x1xf32, #tpu.memory_space<vmem>>, vector<1x32x1xf32>
    %468 = vector.shape_cast %467 : vector<1x32x1xf32> to vector<32x1xf32>
    %c2_175 = arith.constant 2 : index
    %c0_176 = arith.constant 0 : index
    %c0_177 = arith.constant 0 : index
    %469 = vector.load %arg7[%c2_175, %c0_176, %c0_177] : memref<9x32x1xf32, #tpu.memory_space<vmem>>, vector<1x32x1xf32>
    %470 = vector.shape_cast %469 : vector<1x32x1xf32> to vector<32x1xf32>
    %cst_178 = arith.constant dense<0.000000e+00> : vector<128xf32>
    %471 = vector.multi_reduction <add>, %466, %cst_178 [0] : vector<32x128xf32> to vector<128xf32>
    %472 = vector.shape_cast %471 : vector<128xf32> to vector<1x128xf32>
    %473 = arith.mulf %466, %466 : vector<32x128xf32>
    %cst_179 = arith.constant dense<0.000000e+00> : vector<128xf32>
    %474 = vector.multi_reduction <add>, %473, %cst_179 [0] : vector<32x128xf32> to vector<128xf32>
    %475 = vector.shape_cast %474 : vector<128xf32> to vector<1x128xf32>
    %476 = tpu.concatenate %472, %475 in 0 : vector<1x128xf32>, vector<1x128xf32> -> vector<2x128xf32>
    %c1_i32_180 = arith.constant 1 : i32
    %477 = tpu.dynamic_rotate %476 by %c1_i32_180 dim 1 : vector<2x128xf32>, i32 -> vector<2x128xf32>
    %cst_181 = arith.constant 0.000000e+00 : f32
    %478 = vector.shape_cast %9 : vector<1x128xi1> to vector<1x128xi1>
    %479 = vector.broadcast %478 : vector<1x128xi1> to vector<2x128xi1>
    %480 = vector.broadcast %cst_181 : f32 to vector<2x128xf32>
    %481 = arith.select %479, %477, %480 : vector<2x128xi1>, vector<2x128xf32>
    %482 = arith.addf %476, %481 : vector<2x128xf32>
    %c2_i32_182 = arith.constant 2 : i32
    %483 = tpu.dynamic_rotate %482 by %c2_i32_182 dim 1 : vector<2x128xf32>, i32 -> vector<2x128xf32>
    %cst_183 = arith.constant 0.000000e+00 : f32
    %484 = vector.shape_cast %11 : vector<1x128xi1> to vector<1x128xi1>
    %485 = vector.broadcast %484 : vector<1x128xi1> to vector<2x128xi1>
    %486 = vector.broadcast %cst_183 : f32 to vector<2x128xf32>
    %487 = arith.select %485, %483, %486 : vector<2x128xi1>, vector<2x128xf32>
    %488 = arith.addf %482, %487 : vector<2x128xf32>
    %c4_i32_184 = arith.constant 4 : i32
    %489 = tpu.dynamic_rotate %488 by %c4_i32_184 dim 1 : vector<2x128xf32>, i32 -> vector<2x128xf32>
    %cst_185 = arith.constant 0.000000e+00 : f32
    %490 = vector.shape_cast %13 : vector<1x128xi1> to vector<1x128xi1>
    %491 = vector.broadcast %490 : vector<1x128xi1> to vector<2x128xi1>
    %492 = vector.broadcast %cst_185 : f32 to vector<2x128xf32>
    %493 = arith.select %491, %489, %492 : vector<2x128xi1>, vector<2x128xf32>
    %494 = arith.addf %488, %493 : vector<2x128xf32>
    %c8_i32_186 = arith.constant 8 : i32
    %495 = tpu.dynamic_rotate %494 by %c8_i32_186 dim 1 : vector<2x128xf32>, i32 -> vector<2x128xf32>
    %cst_187 = arith.constant 0.000000e+00 : f32
    %496 = vector.shape_cast %15 : vector<1x128xi1> to vector<1x128xi1>
    %497 = vector.broadcast %496 : vector<1x128xi1> to vector<2x128xi1>
    %498 = vector.broadcast %cst_187 : f32 to vector<2x128xf32>
    %499 = arith.select %497, %495, %498 : vector<2x128xi1>, vector<2x128xf32>
    %500 = arith.addf %494, %499 : vector<2x128xf32>
    %c16_i32_188 = arith.constant 16 : i32
    %501 = tpu.dynamic_rotate %500 by %c16_i32_188 dim 1 : vector<2x128xf32>, i32 -> vector<2x128xf32>
    %cst_189 = arith.constant 0.000000e+00 : f32
    %502 = vector.shape_cast %17 : vector<1x128xi1> to vector<1x128xi1>
    %503 = vector.broadcast %502 : vector<1x128xi1> to vector<2x128xi1>
    %504 = vector.broadcast %cst_189 : f32 to vector<2x128xf32>
    %505 = arith.select %503, %501, %504 : vector<2x128xi1>, vector<2x128xf32>
    %506 = arith.addf %500, %505 : vector<2x128xf32>
    %c32_i32_190 = arith.constant 32 : i32
    %507 = tpu.dynamic_rotate %506 by %c32_i32_190 dim 1 : vector<2x128xf32>, i32 -> vector<2x128xf32>
    %cst_191 = arith.constant 0.000000e+00 : f32
    %508 = vector.shape_cast %19 : vector<1x128xi1> to vector<1x128xi1>
    %509 = vector.broadcast %508 : vector<1x128xi1> to vector<2x128xi1>
    %510 = vector.broadcast %cst_191 : f32 to vector<2x128xf32>
    %511 = arith.select %509, %507, %510 : vector<2x128xi1>, vector<2x128xf32>
    %512 = arith.addf %506, %511 : vector<2x128xf32>
    %c64_i32_192 = arith.constant 64 : i32
    %513 = tpu.dynamic_rotate %512 by %c64_i32_192 dim 1 : vector<2x128xf32>, i32 -> vector<2x128xf32>
    %cst_193 = arith.constant 0.000000e+00 : f32
    %514 = vector.shape_cast %21 : vector<1x128xi1> to vector<1x128xi1>
    %515 = vector.broadcast %514 : vector<1x128xi1> to vector<2x128xi1>
    %516 = vector.broadcast %cst_193 : f32 to vector<2x128xf32>
    %517 = arith.select %515, %513, %516 : vector<2x128xi1>, vector<2x128xf32>
    %518 = arith.addf %512, %517 : vector<2x128xf32>
    %519 = vector.extract_strided_slice %518 {offsets = [0, 0], sizes = [1, 128], strides = [1, 1]} : vector<2x128xf32> to vector<1x128xf32>
    %520 = vector.extract_strided_slice %518 {offsets = [1, 0], sizes = [1, 128], strides = [1, 1]} : vector<2x128xf32> to vector<1x128xf32>
    %521 = arith.mulf %519, %7 : vector<1x128xf32>
    %cst_194 = arith.constant 2.000000e+00 : f32
    %522 = vector.broadcast %cst_194 : f32 to vector<1x128xf32>
    %523 = arith.mulf %522, %521 : vector<1x128xf32>
    %524 = arith.mulf %523, %519 : vector<1x128xf32>
    %525 = arith.subf %520, %524 : vector<1x128xf32>
    %526 = arith.mulf %525, %7 : vector<1x128xf32>
    %527 = arith.mulf %521, %521 : vector<1x128xf32>
    %528 = arith.addf %526, %527 : vector<1x128xf32>
    %cst_195 = arith.constant 0.000000e+00 : f32
    %529 = vector.broadcast %cst_195 : f32 to vector<1x128xf32>
    %530 = arith.maximumf %528, %529 : vector<1x128xf32>
    %cst_196 = arith.constant 9.99999993E-9 : f32
    %531 = vector.broadcast %cst_196 : f32 to vector<1x128xf32>
    %532 = arith.addf %530, %531 : vector<1x128xf32>
    %533 = math.rsqrt %532 : vector<1x128xf32>
    %534 = vector.broadcast %521 : vector<1x128xf32> to vector<32x128xf32>
    %535 = arith.subf %466, %534 : vector<32x128xf32>
    %536 = vector.broadcast %533 : vector<1x128xf32> to vector<32x128xf32>
    %537 = arith.mulf %535, %536 : vector<32x128xf32>
    %538 = vector.broadcast %468 : vector<32x1xf32> to vector<32x128xf32>
    %539 = arith.mulf %537, %538 : vector<32x128xf32>
    %540 = vector.broadcast %470 : vector<32x1xf32> to vector<32x128xf32>
    %541 = arith.addf %539, %540 : vector<32x128xf32>
    %c2_197 = arith.constant 2 : index
    %c0_198 = arith.constant 0 : index
    %c0_199 = arith.constant 0 : index
    %542 = vector.load %arg8[%c2_197, %c0_198, %c0_199] : memref<9x32x3xf32, #tpu.memory_space<vmem>>, vector<1x32x3xf32>
    %543 = vector.shape_cast %542 : vector<1x32x3xf32> to vector<32x3xf32>
    %c4_i32_200 = arith.constant 4 : i32
    %544 = tpu.dynamic_rotate %541 by %c4_i32_200 dim 1 : vector<32x128xf32>, i32 -> vector<32x128xf32>
    %cst_201 = arith.constant 0.000000e+00 : f32
    %545 = vector.shape_cast %31 : vector<1x128xi1> to vector<1x128xi1>
    %546 = vector.broadcast %545 : vector<1x128xi1> to vector<32x128xi1>
    %547 = vector.broadcast %cst_201 : f32 to vector<32x128xf32>
    %548 = arith.select %546, %544, %547 : vector<32x128xi1>, vector<32x128xf32>
    %c124_i32_202 = arith.constant 124 : i32
    %549 = tpu.dynamic_rotate %541 by %c124_i32_202 dim 1 : vector<32x128xf32>, i32 -> vector<32x128xf32>
    %cst_203 = arith.constant 0.000000e+00 : f32
    %550 = vector.shape_cast %33 : vector<1x128xi1> to vector<1x128xi1>
    %551 = vector.broadcast %550 : vector<1x128xi1> to vector<32x128xi1>
    %552 = vector.broadcast %cst_203 : f32 to vector<32x128xf32>
    %553 = arith.select %551, %549, %552 : vector<32x128xi1>, vector<32x128xf32>
    %554 = vector.extract_strided_slice %543 {offsets = [0, 0], sizes = [32, 1], strides = [1, 1]} : vector<32x3xf32> to vector<32x1xf32>
    %555 = vector.broadcast %554 : vector<32x1xf32> to vector<32x128xf32>
    %556 = arith.mulf %555, %548 : vector<32x128xf32>
    %557 = vector.extract_strided_slice %543 {offsets = [0, 1], sizes = [32, 1], strides = [1, 1]} : vector<32x3xf32> to vector<32x1xf32>
    %558 = vector.broadcast %557 : vector<32x1xf32> to vector<32x128xf32>
    %559 = arith.mulf %558, %541 : vector<32x128xf32>
    %560 = arith.addf %556, %559 : vector<32x128xf32>
    %561 = vector.extract_strided_slice %543 {offsets = [0, 2], sizes = [32, 1], strides = [1, 1]} : vector<32x3xf32> to vector<32x1xf32>
    %562 = vector.broadcast %561 : vector<32x1xf32> to vector<32x128xf32>
    %563 = arith.mulf %562, %553 : vector<32x128xf32>
    %564 = arith.addf %560, %563 : vector<32x128xf32>
    %c2_204 = arith.constant 2 : index
    %c0_205 = arith.constant 0 : index
    %c0_206 = arith.constant 0 : index
    %565 = vector.load %arg9[%c2_204, %c0_205, %c0_206] : memref<9x32x1xf32, #tpu.memory_space<vmem>>, vector<1x32x1xf32>
    %566 = vector.shape_cast %565 : vector<1x32x1xf32> to vector<32x1xf32>
    %567 = vector.broadcast %566 : vector<32x1xf32> to vector<32x128xf32>
    %568 = arith.addf %564, %567 : vector<32x128xf32>
    %cst_207 = arith.constant 0.000000e+00 : f32
    %569 = vector.broadcast %cst_207 : f32 to vector<32x128xf32>
    %570 = arith.cmpf oge, %568, %569 : vector<32x128xf32>
    %571 = vector.broadcast %454 : f32 to vector<32x128xf32>
    %572 = arith.mulf %571, %568 : vector<32x128xf32>
    %573 = arith.select %570, %568, %572 : vector<32x128xi1>, vector<32x128xf32>
    %c2_208 = arith.constant 2 : index
    %c0_209 = arith.constant 0 : index
    %c0_210 = arith.constant 0 : index
    %574 = vector.load %arg10[%c2_208, %c0_209, %c0_210] : memref<9x32x1xf32, #tpu.memory_space<vmem>>, vector<1x32x1xf32>
    %575 = vector.shape_cast %574 : vector<1x32x1xf32> to vector<32x1xf32>
    %c2_211 = arith.constant 2 : index
    %c0_212 = arith.constant 0 : index
    %c0_213 = arith.constant 0 : index
    %576 = vector.load %arg11[%c2_211, %c0_212, %c0_213] : memref<9x32x1xf32, #tpu.memory_space<vmem>>, vector<1x32x1xf32>
    %577 = vector.shape_cast %576 : vector<1x32x1xf32> to vector<32x1xf32>
    %cst_214 = arith.constant dense<0.000000e+00> : vector<128xf32>
    %578 = vector.multi_reduction <add>, %573, %cst_214 [0] : vector<32x128xf32> to vector<128xf32>
    %579 = vector.shape_cast %578 : vector<128xf32> to vector<1x128xf32>
    %580 = arith.mulf %573, %573 : vector<32x128xf32>
    %cst_215 = arith.constant dense<0.000000e+00> : vector<128xf32>
    %581 = vector.multi_reduction <add>, %580, %cst_215 [0] : vector<32x128xf32> to vector<128xf32>
    %582 = vector.shape_cast %581 : vector<128xf32> to vector<1x128xf32>
    %583 = tpu.concatenate %579, %582 in 0 : vector<1x128xf32>, vector<1x128xf32> -> vector<2x128xf32>
    %c1_i32_216 = arith.constant 1 : i32
    %584 = tpu.dynamic_rotate %583 by %c1_i32_216 dim 1 : vector<2x128xf32>, i32 -> vector<2x128xf32>
    %cst_217 = arith.constant 0.000000e+00 : f32
    %585 = vector.shape_cast %9 : vector<1x128xi1> to vector<1x128xi1>
    %586 = vector.broadcast %585 : vector<1x128xi1> to vector<2x128xi1>
    %587 = vector.broadcast %cst_217 : f32 to vector<2x128xf32>
    %588 = arith.select %586, %584, %587 : vector<2x128xi1>, vector<2x128xf32>
    %589 = arith.addf %583, %588 : vector<2x128xf32>
    %c2_i32_218 = arith.constant 2 : i32
    %590 = tpu.dynamic_rotate %589 by %c2_i32_218 dim 1 : vector<2x128xf32>, i32 -> vector<2x128xf32>
    %cst_219 = arith.constant 0.000000e+00 : f32
    %591 = vector.shape_cast %11 : vector<1x128xi1> to vector<1x128xi1>
    %592 = vector.broadcast %591 : vector<1x128xi1> to vector<2x128xi1>
    %593 = vector.broadcast %cst_219 : f32 to vector<2x128xf32>
    %594 = arith.select %592, %590, %593 : vector<2x128xi1>, vector<2x128xf32>
    %595 = arith.addf %589, %594 : vector<2x128xf32>
    %c4_i32_220 = arith.constant 4 : i32
    %596 = tpu.dynamic_rotate %595 by %c4_i32_220 dim 1 : vector<2x128xf32>, i32 -> vector<2x128xf32>
    %cst_221 = arith.constant 0.000000e+00 : f32
    %597 = vector.shape_cast %13 : vector<1x128xi1> to vector<1x128xi1>
    %598 = vector.broadcast %597 : vector<1x128xi1> to vector<2x128xi1>
    %599 = vector.broadcast %cst_221 : f32 to vector<2x128xf32>
    %600 = arith.select %598, %596, %599 : vector<2x128xi1>, vector<2x128xf32>
    %601 = arith.addf %595, %600 : vector<2x128xf32>
    %c8_i32_222 = arith.constant 8 : i32
    %602 = tpu.dynamic_rotate %601 by %c8_i32_222 dim 1 : vector<2x128xf32>, i32 -> vector<2x128xf32>
    %cst_223 = arith.constant 0.000000e+00 : f32
    %603 = vector.shape_cast %15 : vector<1x128xi1> to vector<1x128xi1>
    %604 = vector.broadcast %603 : vector<1x128xi1> to vector<2x128xi1>
    %605 = vector.broadcast %cst_223 : f32 to vector<2x128xf32>
    %606 = arith.select %604, %602, %605 : vector<2x128xi1>, vector<2x128xf32>
    %607 = arith.addf %601, %606 : vector<2x128xf32>
    %c16_i32_224 = arith.constant 16 : i32
    %608 = tpu.dynamic_rotate %607 by %c16_i32_224 dim 1 : vector<2x128xf32>, i32 -> vector<2x128xf32>
    %cst_225 = arith.constant 0.000000e+00 : f32
    %609 = vector.shape_cast %17 : vector<1x128xi1> to vector<1x128xi1>
    %610 = vector.broadcast %609 : vector<1x128xi1> to vector<2x128xi1>
    %611 = vector.broadcast %cst_225 : f32 to vector<2x128xf32>
    %612 = arith.select %610, %608, %611 : vector<2x128xi1>, vector<2x128xf32>
    %613 = arith.addf %607, %612 : vector<2x128xf32>
    %c32_i32_226 = arith.constant 32 : i32
    %614 = tpu.dynamic_rotate %613 by %c32_i32_226 dim 1 : vector<2x128xf32>, i32 -> vector<2x128xf32>
    %cst_227 = arith.constant 0.000000e+00 : f32
    %615 = vector.shape_cast %19 : vector<1x128xi1> to vector<1x128xi1>
    %616 = vector.broadcast %615 : vector<1x128xi1> to vector<2x128xi1>
    %617 = vector.broadcast %cst_227 : f32 to vector<2x128xf32>
    %618 = arith.select %616, %614, %617 : vector<2x128xi1>, vector<2x128xf32>
    %619 = arith.addf %613, %618 : vector<2x128xf32>
    %c64_i32_228 = arith.constant 64 : i32
    %620 = tpu.dynamic_rotate %619 by %c64_i32_228 dim 1 : vector<2x128xf32>, i32 -> vector<2x128xf32>
    %cst_229 = arith.constant 0.000000e+00 : f32
    %621 = vector.shape_cast %21 : vector<1x128xi1> to vector<1x128xi1>
    %622 = vector.broadcast %621 : vector<1x128xi1> to vector<2x128xi1>
    %623 = vector.broadcast %cst_229 : f32 to vector<2x128xf32>
    %624 = arith.select %622, %620, %623 : vector<2x128xi1>, vector<2x128xf32>
    %625 = arith.addf %619, %624 : vector<2x128xf32>
    %626 = vector.extract_strided_slice %625 {offsets = [0, 0], sizes = [1, 128], strides = [1, 1]} : vector<2x128xf32> to vector<1x128xf32>
    %627 = vector.extract_strided_slice %625 {offsets = [1, 0], sizes = [1, 128], strides = [1, 1]} : vector<2x128xf32> to vector<1x128xf32>
    %628 = arith.mulf %626, %7 : vector<1x128xf32>
    %cst_230 = arith.constant 2.000000e+00 : f32
    %629 = vector.broadcast %cst_230 : f32 to vector<1x128xf32>
    %630 = arith.mulf %629, %628 : vector<1x128xf32>
    %631 = arith.mulf %630, %626 : vector<1x128xf32>
    %632 = arith.subf %627, %631 : vector<1x128xf32>
    %633 = arith.mulf %632, %7 : vector<1x128xf32>
    %634 = arith.mulf %628, %628 : vector<1x128xf32>
    %635 = arith.addf %633, %634 : vector<1x128xf32>
    %cst_231 = arith.constant 0.000000e+00 : f32
    %636 = vector.broadcast %cst_231 : f32 to vector<1x128xf32>
    %637 = arith.maximumf %635, %636 : vector<1x128xf32>
    %cst_232 = arith.constant 9.99999993E-9 : f32
    %638 = vector.broadcast %cst_232 : f32 to vector<1x128xf32>
    %639 = arith.addf %637, %638 : vector<1x128xf32>
    %640 = math.rsqrt %639 : vector<1x128xf32>
    %641 = vector.broadcast %628 : vector<1x128xf32> to vector<32x128xf32>
    %642 = arith.subf %573, %641 : vector<32x128xf32>
    %643 = vector.broadcast %640 : vector<1x128xf32> to vector<32x128xf32>
    %644 = arith.mulf %642, %643 : vector<32x128xf32>
    %645 = vector.broadcast %575 : vector<32x1xf32> to vector<32x128xf32>
    %646 = arith.mulf %644, %645 : vector<32x128xf32>
    %647 = vector.broadcast %577 : vector<32x1xf32> to vector<32x128xf32>
    %648 = arith.addf %646, %647 : vector<32x128xf32>
    %c2_233 = arith.constant 2 : index
    %c0_234 = arith.constant 0 : index
    %c0_235 = arith.constant 0 : index
    %649 = vector.load %arg12[%c2_233, %c0_234, %c0_235] : memref<9x32x32xf32, #tpu.memory_space<vmem>>, vector<1x32x32xf32>
    %650 = vector.shape_cast %649 : vector<1x32x32xf32> to vector<32x32xf32>
    %cst_236 = arith.constant dense<0.000000e+00> : vector<32x128xf32>
    %651 = tpu.matmul %650, %648, %cst_236 {dimension_numbers = #tpu.dot_dimension_numbers<[1], [0], [0], [1], [0, 0, 1, 1], [], []>} : vector<32x32xf32>, vector<32x128xf32>, vector<32x128xf32> -> vector<32x128xf32>
    %c2_237 = arith.constant 2 : index
    %c0_238 = arith.constant 0 : index
    %c0_239 = arith.constant 0 : index
    %652 = vector.load %arg13[%c2_237, %c0_238, %c0_239] : memref<9x32x1xf32, #tpu.memory_space<vmem>>, vector<1x32x1xf32>
    %653 = vector.shape_cast %652 : vector<1x32x1xf32> to vector<32x1xf32>
    %654 = vector.broadcast %653 : vector<32x1xf32> to vector<32x128xf32>
    %655 = arith.addf %651, %654 : vector<32x128xf32>
    %656 = vector.extract_strided_slice %655 {offsets = [0, 0], sizes = [16, 128], strides = [1, 1]} : vector<32x128xf32> to vector<16x128xf32>
    %657 = arith.addf %450, %656 : vector<16x128xf32>
    %658 = vector.extract_strided_slice %655 {offsets = [16, 0], sizes = [16, 128], strides = [1, 1]} : vector<32x128xf32> to vector<16x128xf32>
    %659 = arith.addf %452, %658 : vector<16x128xf32>
    %c6 = arith.constant 6 : index
    %660 = memref.load %arg3[%c6] : memref<18xf32, #tpu.memory_space<smem>>
    %c7 = arith.constant 7 : index
    %661 = memref.load %arg3[%c7] : memref<18xf32, #tpu.memory_space<smem>>
    %c3_240 = arith.constant 3 : index
    %c0_241 = arith.constant 0 : index
    %c0_242 = arith.constant 0 : index
    %662 = vector.load %arg4[%c3_240, %c0_241, %c0_242] : memref<9x32x16xf32, #tpu.memory_space<vmem>>, vector<1x32x16xf32>
    %663 = vector.shape_cast %662 : vector<1x32x16xf32> to vector<32x16xf32>
    %cst_243 = arith.constant dense<0.000000e+00> : vector<32x128xf32>
    %664 = tpu.matmul %663, %657, %cst_243 {dimension_numbers = #tpu.dot_dimension_numbers<[1], [0], [0], [1], [0, 0, 1, 1], [], []>} : vector<32x16xf32>, vector<16x128xf32>, vector<32x128xf32> -> vector<32x128xf32>
    %c3_244 = arith.constant 3 : index
    %c0_245 = arith.constant 0 : index
    %c0_246 = arith.constant 0 : index
    %665 = vector.load %arg5[%c3_244, %c0_245, %c0_246] : memref<9x32x1xf32, #tpu.memory_space<vmem>>, vector<1x32x1xf32>
    %666 = vector.shape_cast %665 : vector<1x32x1xf32> to vector<32x1xf32>
    %667 = vector.broadcast %666 : vector<32x1xf32> to vector<32x128xf32>
    %668 = arith.addf %664, %667 : vector<32x128xf32>
    %cst_247 = arith.constant 0.000000e+00 : f32
    %669 = vector.broadcast %cst_247 : f32 to vector<32x128xf32>
    %670 = arith.cmpf oge, %668, %669 : vector<32x128xf32>
    %671 = vector.broadcast %660 : f32 to vector<32x128xf32>
    %672 = arith.mulf %671, %668 : vector<32x128xf32>
    %673 = arith.select %670, %668, %672 : vector<32x128xi1>, vector<32x128xf32>
    %c3_248 = arith.constant 3 : index
    %c0_249 = arith.constant 0 : index
    %c0_250 = arith.constant 0 : index
    %674 = vector.load %arg6[%c3_248, %c0_249, %c0_250] : memref<9x32x1xf32, #tpu.memory_space<vmem>>, vector<1x32x1xf32>
    %675 = vector.shape_cast %674 : vector<1x32x1xf32> to vector<32x1xf32>
    %c3_251 = arith.constant 3 : index
    %c0_252 = arith.constant 0 : index
    %c0_253 = arith.constant 0 : index
    %676 = vector.load %arg7[%c3_251, %c0_252, %c0_253] : memref<9x32x1xf32, #tpu.memory_space<vmem>>, vector<1x32x1xf32>
    %677 = vector.shape_cast %676 : vector<1x32x1xf32> to vector<32x1xf32>
    %cst_254 = arith.constant dense<0.000000e+00> : vector<128xf32>
    %678 = vector.multi_reduction <add>, %673, %cst_254 [0] : vector<32x128xf32> to vector<128xf32>
    %679 = vector.shape_cast %678 : vector<128xf32> to vector<1x128xf32>
    %680 = arith.mulf %673, %673 : vector<32x128xf32>
    %cst_255 = arith.constant dense<0.000000e+00> : vector<128xf32>
    %681 = vector.multi_reduction <add>, %680, %cst_255 [0] : vector<32x128xf32> to vector<128xf32>
    %682 = vector.shape_cast %681 : vector<128xf32> to vector<1x128xf32>
    %683 = tpu.concatenate %679, %682 in 0 : vector<1x128xf32>, vector<1x128xf32> -> vector<2x128xf32>
    %c1_i32_256 = arith.constant 1 : i32
    %684 = tpu.dynamic_rotate %683 by %c1_i32_256 dim 1 : vector<2x128xf32>, i32 -> vector<2x128xf32>
    %cst_257 = arith.constant 0.000000e+00 : f32
    %685 = vector.shape_cast %9 : vector<1x128xi1> to vector<1x128xi1>
    %686 = vector.broadcast %685 : vector<1x128xi1> to vector<2x128xi1>
    %687 = vector.broadcast %cst_257 : f32 to vector<2x128xf32>
    %688 = arith.select %686, %684, %687 : vector<2x128xi1>, vector<2x128xf32>
    %689 = arith.addf %683, %688 : vector<2x128xf32>
    %c2_i32_258 = arith.constant 2 : i32
    %690 = tpu.dynamic_rotate %689 by %c2_i32_258 dim 1 : vector<2x128xf32>, i32 -> vector<2x128xf32>
    %cst_259 = arith.constant 0.000000e+00 : f32
    %691 = vector.shape_cast %11 : vector<1x128xi1> to vector<1x128xi1>
    %692 = vector.broadcast %691 : vector<1x128xi1> to vector<2x128xi1>
    %693 = vector.broadcast %cst_259 : f32 to vector<2x128xf32>
    %694 = arith.select %692, %690, %693 : vector<2x128xi1>, vector<2x128xf32>
    %695 = arith.addf %689, %694 : vector<2x128xf32>
    %c4_i32_260 = arith.constant 4 : i32
    %696 = tpu.dynamic_rotate %695 by %c4_i32_260 dim 1 : vector<2x128xf32>, i32 -> vector<2x128xf32>
    %cst_261 = arith.constant 0.000000e+00 : f32
    %697 = vector.shape_cast %13 : vector<1x128xi1> to vector<1x128xi1>
    %698 = vector.broadcast %697 : vector<1x128xi1> to vector<2x128xi1>
    %699 = vector.broadcast %cst_261 : f32 to vector<2x128xf32>
    %700 = arith.select %698, %696, %699 : vector<2x128xi1>, vector<2x128xf32>
    %701 = arith.addf %695, %700 : vector<2x128xf32>
    %c8_i32_262 = arith.constant 8 : i32
    %702 = tpu.dynamic_rotate %701 by %c8_i32_262 dim 1 : vector<2x128xf32>, i32 -> vector<2x128xf32>
    %cst_263 = arith.constant 0.000000e+00 : f32
    %703 = vector.shape_cast %15 : vector<1x128xi1> to vector<1x128xi1>
    %704 = vector.broadcast %703 : vector<1x128xi1> to vector<2x128xi1>
    %705 = vector.broadcast %cst_263 : f32 to vector<2x128xf32>
    %706 = arith.select %704, %702, %705 : vector<2x128xi1>, vector<2x128xf32>
    %707 = arith.addf %701, %706 : vector<2x128xf32>
    %c16_i32_264 = arith.constant 16 : i32
    %708 = tpu.dynamic_rotate %707 by %c16_i32_264 dim 1 : vector<2x128xf32>, i32 -> vector<2x128xf32>
    %cst_265 = arith.constant 0.000000e+00 : f32
    %709 = vector.shape_cast %17 : vector<1x128xi1> to vector<1x128xi1>
    %710 = vector.broadcast %709 : vector<1x128xi1> to vector<2x128xi1>
    %711 = vector.broadcast %cst_265 : f32 to vector<2x128xf32>
    %712 = arith.select %710, %708, %711 : vector<2x128xi1>, vector<2x128xf32>
    %713 = arith.addf %707, %712 : vector<2x128xf32>
    %c32_i32_266 = arith.constant 32 : i32
    %714 = tpu.dynamic_rotate %713 by %c32_i32_266 dim 1 : vector<2x128xf32>, i32 -> vector<2x128xf32>
    %cst_267 = arith.constant 0.000000e+00 : f32
    %715 = vector.shape_cast %19 : vector<1x128xi1> to vector<1x128xi1>
    %716 = vector.broadcast %715 : vector<1x128xi1> to vector<2x128xi1>
    %717 = vector.broadcast %cst_267 : f32 to vector<2x128xf32>
    %718 = arith.select %716, %714, %717 : vector<2x128xi1>, vector<2x128xf32>
    %719 = arith.addf %713, %718 : vector<2x128xf32>
    %c64_i32_268 = arith.constant 64 : i32
    %720 = tpu.dynamic_rotate %719 by %c64_i32_268 dim 1 : vector<2x128xf32>, i32 -> vector<2x128xf32>
    %cst_269 = arith.constant 0.000000e+00 : f32
    %721 = vector.shape_cast %21 : vector<1x128xi1> to vector<1x128xi1>
    %722 = vector.broadcast %721 : vector<1x128xi1> to vector<2x128xi1>
    %723 = vector.broadcast %cst_269 : f32 to vector<2x128xf32>
    %724 = arith.select %722, %720, %723 : vector<2x128xi1>, vector<2x128xf32>
    %725 = arith.addf %719, %724 : vector<2x128xf32>
    %726 = vector.extract_strided_slice %725 {offsets = [0, 0], sizes = [1, 128], strides = [1, 1]} : vector<2x128xf32> to vector<1x128xf32>
    %727 = vector.extract_strided_slice %725 {offsets = [1, 0], sizes = [1, 128], strides = [1, 1]} : vector<2x128xf32> to vector<1x128xf32>
    %728 = arith.mulf %726, %7 : vector<1x128xf32>
    %cst_270 = arith.constant 2.000000e+00 : f32
    %729 = vector.broadcast %cst_270 : f32 to vector<1x128xf32>
    %730 = arith.mulf %729, %728 : vector<1x128xf32>
    %731 = arith.mulf %730, %726 : vector<1x128xf32>
    %732 = arith.subf %727, %731 : vector<1x128xf32>
    %733 = arith.mulf %732, %7 : vector<1x128xf32>
    %734 = arith.mulf %728, %728 : vector<1x128xf32>
    %735 = arith.addf %733, %734 : vector<1x128xf32>
    %cst_271 = arith.constant 0.000000e+00 : f32
    %736 = vector.broadcast %cst_271 : f32 to vector<1x128xf32>
    %737 = arith.maximumf %735, %736 : vector<1x128xf32>
    %cst_272 = arith.constant 9.99999993E-9 : f32
    %738 = vector.broadcast %cst_272 : f32 to vector<1x128xf32>
    %739 = arith.addf %737, %738 : vector<1x128xf32>
    %740 = math.rsqrt %739 : vector<1x128xf32>
    %741 = vector.broadcast %728 : vector<1x128xf32> to vector<32x128xf32>
    %742 = arith.subf %673, %741 : vector<32x128xf32>
    %743 = vector.broadcast %740 : vector<1x128xf32> to vector<32x128xf32>
    %744 = arith.mulf %742, %743 : vector<32x128xf32>
    %745 = vector.broadcast %675 : vector<32x1xf32> to vector<32x128xf32>
    %746 = arith.mulf %744, %745 : vector<32x128xf32>
    %747 = vector.broadcast %677 : vector<32x1xf32> to vector<32x128xf32>
    %748 = arith.addf %746, %747 : vector<32x128xf32>
    %c3_273 = arith.constant 3 : index
    %c0_274 = arith.constant 0 : index
    %c0_275 = arith.constant 0 : index
    %749 = vector.load %arg8[%c3_273, %c0_274, %c0_275] : memref<9x32x3xf32, #tpu.memory_space<vmem>>, vector<1x32x3xf32>
    %750 = vector.shape_cast %749 : vector<1x32x3xf32> to vector<32x3xf32>
    %c1_i32_276 = arith.constant 1 : i32
    %751 = tpu.dynamic_rotate %748 by %c1_i32_276 dim 1 : vector<32x128xf32>, i32 -> vector<32x128xf32>
    %cst_277 = arith.constant 0.000000e+00 : f32
    %752 = vector.shape_cast %23 : vector<1x128xi1> to vector<1x128xi1>
    %753 = vector.broadcast %752 : vector<1x128xi1> to vector<32x128xi1>
    %754 = vector.broadcast %cst_277 : f32 to vector<32x128xf32>
    %755 = arith.select %753, %751, %754 : vector<32x128xi1>, vector<32x128xf32>
    %c127_i32_278 = arith.constant 127 : i32
    %756 = tpu.dynamic_rotate %748 by %c127_i32_278 dim 1 : vector<32x128xf32>, i32 -> vector<32x128xf32>
    %cst_279 = arith.constant 0.000000e+00 : f32
    %757 = vector.shape_cast %25 : vector<1x128xi1> to vector<1x128xi1>
    %758 = vector.broadcast %757 : vector<1x128xi1> to vector<32x128xi1>
    %759 = vector.broadcast %cst_279 : f32 to vector<32x128xf32>
    %760 = arith.select %758, %756, %759 : vector<32x128xi1>, vector<32x128xf32>
    %761 = vector.extract_strided_slice %750 {offsets = [0, 0], sizes = [32, 1], strides = [1, 1]} : vector<32x3xf32> to vector<32x1xf32>
    %762 = vector.broadcast %761 : vector<32x1xf32> to vector<32x128xf32>
    %763 = arith.mulf %762, %755 : vector<32x128xf32>
    %764 = vector.extract_strided_slice %750 {offsets = [0, 1], sizes = [32, 1], strides = [1, 1]} : vector<32x3xf32> to vector<32x1xf32>
    %765 = vector.broadcast %764 : vector<32x1xf32> to vector<32x128xf32>
    %766 = arith.mulf %765, %748 : vector<32x128xf32>
    %767 = arith.addf %763, %766 : vector<32x128xf32>
    %768 = vector.extract_strided_slice %750 {offsets = [0, 2], sizes = [32, 1], strides = [1, 1]} : vector<32x3xf32> to vector<32x1xf32>
    %769 = vector.broadcast %768 : vector<32x1xf32> to vector<32x128xf32>
    %770 = arith.mulf %769, %760 : vector<32x128xf32>
    %771 = arith.addf %767, %770 : vector<32x128xf32>
    %c3_280 = arith.constant 3 : index
    %c0_281 = arith.constant 0 : index
    %c0_282 = arith.constant 0 : index
    %772 = vector.load %arg9[%c3_280, %c0_281, %c0_282] : memref<9x32x1xf32, #tpu.memory_space<vmem>>, vector<1x32x1xf32>
    %773 = vector.shape_cast %772 : vector<1x32x1xf32> to vector<32x1xf32>
    %774 = vector.broadcast %773 : vector<32x1xf32> to vector<32x128xf32>
    %775 = arith.addf %771, %774 : vector<32x128xf32>
    %cst_283 = arith.constant 0.000000e+00 : f32
    %776 = vector.broadcast %cst_283 : f32 to vector<32x128xf32>
    %777 = arith.cmpf oge, %775, %776 : vector<32x128xf32>
    %778 = vector.broadcast %661 : f32 to vector<32x128xf32>
    %779 = arith.mulf %778, %775 : vector<32x128xf32>
    %780 = arith.select %777, %775, %779 : vector<32x128xi1>, vector<32x128xf32>
    %c3_284 = arith.constant 3 : index
    %c0_285 = arith.constant 0 : index
    %c0_286 = arith.constant 0 : index
    %781 = vector.load %arg10[%c3_284, %c0_285, %c0_286] : memref<9x32x1xf32, #tpu.memory_space<vmem>>, vector<1x32x1xf32>
    %782 = vector.shape_cast %781 : vector<1x32x1xf32> to vector<32x1xf32>
    %c3_287 = arith.constant 3 : index
    %c0_288 = arith.constant 0 : index
    %c0_289 = arith.constant 0 : index
    %783 = vector.load %arg11[%c3_287, %c0_288, %c0_289] : memref<9x32x1xf32, #tpu.memory_space<vmem>>, vector<1x32x1xf32>
    %784 = vector.shape_cast %783 : vector<1x32x1xf32> to vector<32x1xf32>
    %cst_290 = arith.constant dense<0.000000e+00> : vector<128xf32>
    %785 = vector.multi_reduction <add>, %780, %cst_290 [0] : vector<32x128xf32> to vector<128xf32>
    %786 = vector.shape_cast %785 : vector<128xf32> to vector<1x128xf32>
    %787 = arith.mulf %780, %780 : vector<32x128xf32>
    %cst_291 = arith.constant dense<0.000000e+00> : vector<128xf32>
    %788 = vector.multi_reduction <add>, %787, %cst_291 [0] : vector<32x128xf32> to vector<128xf32>
    %789 = vector.shape_cast %788 : vector<128xf32> to vector<1x128xf32>
    %790 = tpu.concatenate %786, %789 in 0 : vector<1x128xf32>, vector<1x128xf32> -> vector<2x128xf32>
    %c1_i32_292 = arith.constant 1 : i32
    %791 = tpu.dynamic_rotate %790 by %c1_i32_292 dim 1 : vector<2x128xf32>, i32 -> vector<2x128xf32>
    %cst_293 = arith.constant 0.000000e+00 : f32
    %792 = vector.shape_cast %9 : vector<1x128xi1> to vector<1x128xi1>
    %793 = vector.broadcast %792 : vector<1x128xi1> to vector<2x128xi1>
    %794 = vector.broadcast %cst_293 : f32 to vector<2x128xf32>
    %795 = arith.select %793, %791, %794 : vector<2x128xi1>, vector<2x128xf32>
    %796 = arith.addf %790, %795 : vector<2x128xf32>
    %c2_i32_294 = arith.constant 2 : i32
    %797 = tpu.dynamic_rotate %796 by %c2_i32_294 dim 1 : vector<2x128xf32>, i32 -> vector<2x128xf32>
    %cst_295 = arith.constant 0.000000e+00 : f32
    %798 = vector.shape_cast %11 : vector<1x128xi1> to vector<1x128xi1>
    %799 = vector.broadcast %798 : vector<1x128xi1> to vector<2x128xi1>
    %800 = vector.broadcast %cst_295 : f32 to vector<2x128xf32>
    %801 = arith.select %799, %797, %800 : vector<2x128xi1>, vector<2x128xf32>
    %802 = arith.addf %796, %801 : vector<2x128xf32>
    %c4_i32_296 = arith.constant 4 : i32
    %803 = tpu.dynamic_rotate %802 by %c4_i32_296 dim 1 : vector<2x128xf32>, i32 -> vector<2x128xf32>
    %cst_297 = arith.constant 0.000000e+00 : f32
    %804 = vector.shape_cast %13 : vector<1x128xi1> to vector<1x128xi1>
    %805 = vector.broadcast %804 : vector<1x128xi1> to vector<2x128xi1>
    %806 = vector.broadcast %cst_297 : f32 to vector<2x128xf32>
    %807 = arith.select %805, %803, %806 : vector<2x128xi1>, vector<2x128xf32>
    %808 = arith.addf %802, %807 : vector<2x128xf32>
    %c8_i32_298 = arith.constant 8 : i32
    %809 = tpu.dynamic_rotate %808 by %c8_i32_298 dim 1 : vector<2x128xf32>, i32 -> vector<2x128xf32>
    %cst_299 = arith.constant 0.000000e+00 : f32
    %810 = vector.shape_cast %15 : vector<1x128xi1> to vector<1x128xi1>
    %811 = vector.broadcast %810 : vector<1x128xi1> to vector<2x128xi1>
    %812 = vector.broadcast %cst_299 : f32 to vector<2x128xf32>
    %813 = arith.select %811, %809, %812 : vector<2x128xi1>, vector<2x128xf32>
    %814 = arith.addf %808, %813 : vector<2x128xf32>
    %c16_i32_300 = arith.constant 16 : i32
    %815 = tpu.dynamic_rotate %814 by %c16_i32_300 dim 1 : vector<2x128xf32>, i32 -> vector<2x128xf32>
    %cst_301 = arith.constant 0.000000e+00 : f32
    %816 = vector.shape_cast %17 : vector<1x128xi1> to vector<1x128xi1>
    %817 = vector.broadcast %816 : vector<1x128xi1> to vector<2x128xi1>
    %818 = vector.broadcast %cst_301 : f32 to vector<2x128xf32>
    %819 = arith.select %817, %815, %818 : vector<2x128xi1>, vector<2x128xf32>
    %820 = arith.addf %814, %819 : vector<2x128xf32>
    %c32_i32_302 = arith.constant 32 : i32
    %821 = tpu.dynamic_rotate %820 by %c32_i32_302 dim 1 : vector<2x128xf32>, i32 -> vector<2x128xf32>
    %cst_303 = arith.constant 0.000000e+00 : f32
    %822 = vector.shape_cast %19 : vector<1x128xi1> to vector<1x128xi1>
    %823 = vector.broadcast %822 : vector<1x128xi1> to vector<2x128xi1>
    %824 = vector.broadcast %cst_303 : f32 to vector<2x128xf32>
    %825 = arith.select %823, %821, %824 : vector<2x128xi1>, vector<2x128xf32>
    %826 = arith.addf %820, %825 : vector<2x128xf32>
    %c64_i32_304 = arith.constant 64 : i32
    %827 = tpu.dynamic_rotate %826 by %c64_i32_304 dim 1 : vector<2x128xf32>, i32 -> vector<2x128xf32>
    %cst_305 = arith.constant 0.000000e+00 : f32
    %828 = vector.shape_cast %21 : vector<1x128xi1> to vector<1x128xi1>
    %829 = vector.broadcast %828 : vector<1x128xi1> to vector<2x128xi1>
    %830 = vector.broadcast %cst_305 : f32 to vector<2x128xf32>
    %831 = arith.select %829, %827, %830 : vector<2x128xi1>, vector<2x128xf32>
    %832 = arith.addf %826, %831 : vector<2x128xf32>
    %833 = vector.extract_strided_slice %832 {offsets = [0, 0], sizes = [1, 128], strides = [1, 1]} : vector<2x128xf32> to vector<1x128xf32>
    %834 = vector.extract_strided_slice %832 {offsets = [1, 0], sizes = [1, 128], strides = [1, 1]} : vector<2x128xf32> to vector<1x128xf32>
    %835 = arith.mulf %833, %7 : vector<1x128xf32>
    %cst_306 = arith.constant 2.000000e+00 : f32
    %836 = vector.broadcast %cst_306 : f32 to vector<1x128xf32>
    %837 = arith.mulf %836, %835 : vector<1x128xf32>
    %838 = arith.mulf %837, %833 : vector<1x128xf32>
    %839 = arith.subf %834, %838 : vector<1x128xf32>
    %840 = arith.mulf %839, %7 : vector<1x128xf32>
    %841 = arith.mulf %835, %835 : vector<1x128xf32>
    %842 = arith.addf %840, %841 : vector<1x128xf32>
    %cst_307 = arith.constant 0.000000e+00 : f32
    %843 = vector.broadcast %cst_307 : f32 to vector<1x128xf32>
    %844 = arith.maximumf %842, %843 : vector<1x128xf32>
    %cst_308 = arith.constant 9.99999993E-9 : f32
    %845 = vector.broadcast %cst_308 : f32 to vector<1x128xf32>
    %846 = arith.addf %844, %845 : vector<1x128xf32>
    %847 = math.rsqrt %846 : vector<1x128xf32>
    %848 = vector.broadcast %835 : vector<1x128xf32> to vector<32x128xf32>
    %849 = arith.subf %780, %848 : vector<32x128xf32>
    %850 = vector.broadcast %847 : vector<1x128xf32> to vector<32x128xf32>
    %851 = arith.mulf %849, %850 : vector<32x128xf32>
    %852 = vector.broadcast %782 : vector<32x1xf32> to vector<32x128xf32>
    %853 = arith.mulf %851, %852 : vector<32x128xf32>
    %854 = vector.broadcast %784 : vector<32x1xf32> to vector<32x128xf32>
    %855 = arith.addf %853, %854 : vector<32x128xf32>
    %c3_309 = arith.constant 3 : index
    %c0_310 = arith.constant 0 : index
    %c0_311 = arith.constant 0 : index
    %856 = vector.load %arg12[%c3_309, %c0_310, %c0_311] : memref<9x32x32xf32, #tpu.memory_space<vmem>>, vector<1x32x32xf32>
    %857 = vector.shape_cast %856 : vector<1x32x32xf32> to vector<32x32xf32>
    %cst_312 = arith.constant dense<0.000000e+00> : vector<32x128xf32>
    %858 = tpu.matmul %857, %855, %cst_312 {dimension_numbers = #tpu.dot_dimension_numbers<[1], [0], [0], [1], [0, 0, 1, 1], [], []>} : vector<32x32xf32>, vector<32x128xf32>, vector<32x128xf32> -> vector<32x128xf32>
    %c3_313 = arith.constant 3 : index
    %c0_314 = arith.constant 0 : index
    %c0_315 = arith.constant 0 : index
    %859 = vector.load %arg13[%c3_313, %c0_314, %c0_315] : memref<9x32x1xf32, #tpu.memory_space<vmem>>, vector<1x32x1xf32>
    %860 = vector.shape_cast %859 : vector<1x32x1xf32> to vector<32x1xf32>
    %861 = vector.broadcast %860 : vector<32x1xf32> to vector<32x128xf32>
    %862 = arith.addf %858, %861 : vector<32x128xf32>
    %863 = vector.extract_strided_slice %862 {offsets = [0, 0], sizes = [16, 128], strides = [1, 1]} : vector<32x128xf32> to vector<16x128xf32>
    %864 = arith.addf %657, %863 : vector<16x128xf32>
    %865 = vector.extract_strided_slice %862 {offsets = [16, 0], sizes = [16, 128], strides = [1, 1]} : vector<32x128xf32> to vector<16x128xf32>
    %866 = arith.addf %659, %865 : vector<16x128xf32>
    %c8 = arith.constant 8 : index
    %867 = memref.load %arg3[%c8] : memref<18xf32, #tpu.memory_space<smem>>
    %c9 = arith.constant 9 : index
    %868 = memref.load %arg3[%c9] : memref<18xf32, #tpu.memory_space<smem>>
    %c4_316 = arith.constant 4 : index
    %c0_317 = arith.constant 0 : index
    %c0_318 = arith.constant 0 : index
    %869 = vector.load %arg4[%c4_316, %c0_317, %c0_318] : memref<9x32x16xf32, #tpu.memory_space<vmem>>, vector<1x32x16xf32>
    %870 = vector.shape_cast %869 : vector<1x32x16xf32> to vector<32x16xf32>
    %cst_319 = arith.constant dense<0.000000e+00> : vector<32x128xf32>
    %871 = tpu.matmul %870, %864, %cst_319 {dimension_numbers = #tpu.dot_dimension_numbers<[1], [0], [0], [1], [0, 0, 1, 1], [], []>} : vector<32x16xf32>, vector<16x128xf32>, vector<32x128xf32> -> vector<32x128xf32>
    %c4_320 = arith.constant 4 : index
    %c0_321 = arith.constant 0 : index
    %c0_322 = arith.constant 0 : index
    %872 = vector.load %arg5[%c4_320, %c0_321, %c0_322] : memref<9x32x1xf32, #tpu.memory_space<vmem>>, vector<1x32x1xf32>
    %873 = vector.shape_cast %872 : vector<1x32x1xf32> to vector<32x1xf32>
    %874 = vector.broadcast %873 : vector<32x1xf32> to vector<32x128xf32>
    %875 = arith.addf %871, %874 : vector<32x128xf32>
    %cst_323 = arith.constant 0.000000e+00 : f32
    %876 = vector.broadcast %cst_323 : f32 to vector<32x128xf32>
    %877 = arith.cmpf oge, %875, %876 : vector<32x128xf32>
    %878 = vector.broadcast %867 : f32 to vector<32x128xf32>
    %879 = arith.mulf %878, %875 : vector<32x128xf32>
    %880 = arith.select %877, %875, %879 : vector<32x128xi1>, vector<32x128xf32>
    %c4_324 = arith.constant 4 : index
    %c0_325 = arith.constant 0 : index
    %c0_326 = arith.constant 0 : index
    %881 = vector.load %arg6[%c4_324, %c0_325, %c0_326] : memref<9x32x1xf32, #tpu.memory_space<vmem>>, vector<1x32x1xf32>
    %882 = vector.shape_cast %881 : vector<1x32x1xf32> to vector<32x1xf32>
    %c4_327 = arith.constant 4 : index
    %c0_328 = arith.constant 0 : index
    %c0_329 = arith.constant 0 : index
    %883 = vector.load %arg7[%c4_327, %c0_328, %c0_329] : memref<9x32x1xf32, #tpu.memory_space<vmem>>, vector<1x32x1xf32>
    %884 = vector.shape_cast %883 : vector<1x32x1xf32> to vector<32x1xf32>
    %cst_330 = arith.constant dense<0.000000e+00> : vector<128xf32>
    %885 = vector.multi_reduction <add>, %880, %cst_330 [0] : vector<32x128xf32> to vector<128xf32>
    %886 = vector.shape_cast %885 : vector<128xf32> to vector<1x128xf32>
    %887 = arith.mulf %880, %880 : vector<32x128xf32>
    %cst_331 = arith.constant dense<0.000000e+00> : vector<128xf32>
    %888 = vector.multi_reduction <add>, %887, %cst_331 [0] : vector<32x128xf32> to vector<128xf32>
    %889 = vector.shape_cast %888 : vector<128xf32> to vector<1x128xf32>
    %890 = tpu.concatenate %886, %889 in 0 : vector<1x128xf32>, vector<1x128xf32> -> vector<2x128xf32>
    %c1_i32_332 = arith.constant 1 : i32
    %891 = tpu.dynamic_rotate %890 by %c1_i32_332 dim 1 : vector<2x128xf32>, i32 -> vector<2x128xf32>
    %cst_333 = arith.constant 0.000000e+00 : f32
    %892 = vector.shape_cast %9 : vector<1x128xi1> to vector<1x128xi1>
    %893 = vector.broadcast %892 : vector<1x128xi1> to vector<2x128xi1>
    %894 = vector.broadcast %cst_333 : f32 to vector<2x128xf32>
    %895 = arith.select %893, %891, %894 : vector<2x128xi1>, vector<2x128xf32>
    %896 = arith.addf %890, %895 : vector<2x128xf32>
    %c2_i32_334 = arith.constant 2 : i32
    %897 = tpu.dynamic_rotate %896 by %c2_i32_334 dim 1 : vector<2x128xf32>, i32 -> vector<2x128xf32>
    %cst_335 = arith.constant 0.000000e+00 : f32
    %898 = vector.shape_cast %11 : vector<1x128xi1> to vector<1x128xi1>
    %899 = vector.broadcast %898 : vector<1x128xi1> to vector<2x128xi1>
    %900 = vector.broadcast %cst_335 : f32 to vector<2x128xf32>
    %901 = arith.select %899, %897, %900 : vector<2x128xi1>, vector<2x128xf32>
    %902 = arith.addf %896, %901 : vector<2x128xf32>
    %c4_i32_336 = arith.constant 4 : i32
    %903 = tpu.dynamic_rotate %902 by %c4_i32_336 dim 1 : vector<2x128xf32>, i32 -> vector<2x128xf32>
    %cst_337 = arith.constant 0.000000e+00 : f32
    %904 = vector.shape_cast %13 : vector<1x128xi1> to vector<1x128xi1>
    %905 = vector.broadcast %904 : vector<1x128xi1> to vector<2x128xi1>
    %906 = vector.broadcast %cst_337 : f32 to vector<2x128xf32>
    %907 = arith.select %905, %903, %906 : vector<2x128xi1>, vector<2x128xf32>
    %908 = arith.addf %902, %907 : vector<2x128xf32>
    %c8_i32_338 = arith.constant 8 : i32
    %909 = tpu.dynamic_rotate %908 by %c8_i32_338 dim 1 : vector<2x128xf32>, i32 -> vector<2x128xf32>
    %cst_339 = arith.constant 0.000000e+00 : f32
    %910 = vector.shape_cast %15 : vector<1x128xi1> to vector<1x128xi1>
    %911 = vector.broadcast %910 : vector<1x128xi1> to vector<2x128xi1>
    %912 = vector.broadcast %cst_339 : f32 to vector<2x128xf32>
    %913 = arith.select %911, %909, %912 : vector<2x128xi1>, vector<2x128xf32>
    %914 = arith.addf %908, %913 : vector<2x128xf32>
    %c16_i32_340 = arith.constant 16 : i32
    %915 = tpu.dynamic_rotate %914 by %c16_i32_340 dim 1 : vector<2x128xf32>, i32 -> vector<2x128xf32>
    %cst_341 = arith.constant 0.000000e+00 : f32
    %916 = vector.shape_cast %17 : vector<1x128xi1> to vector<1x128xi1>
    %917 = vector.broadcast %916 : vector<1x128xi1> to vector<2x128xi1>
    %918 = vector.broadcast %cst_341 : f32 to vector<2x128xf32>
    %919 = arith.select %917, %915, %918 : vector<2x128xi1>, vector<2x128xf32>
    %920 = arith.addf %914, %919 : vector<2x128xf32>
    %c32_i32_342 = arith.constant 32 : i32
    %921 = tpu.dynamic_rotate %920 by %c32_i32_342 dim 1 : vector<2x128xf32>, i32 -> vector<2x128xf32>
    %cst_343 = arith.constant 0.000000e+00 : f32
    %922 = vector.shape_cast %19 : vector<1x128xi1> to vector<1x128xi1>
    %923 = vector.broadcast %922 : vector<1x128xi1> to vector<2x128xi1>
    %924 = vector.broadcast %cst_343 : f32 to vector<2x128xf32>
    %925 = arith.select %923, %921, %924 : vector<2x128xi1>, vector<2x128xf32>
    %926 = arith.addf %920, %925 : vector<2x128xf32>
    %c64_i32_344 = arith.constant 64 : i32
    %927 = tpu.dynamic_rotate %926 by %c64_i32_344 dim 1 : vector<2x128xf32>, i32 -> vector<2x128xf32>
    %cst_345 = arith.constant 0.000000e+00 : f32
    %928 = vector.shape_cast %21 : vector<1x128xi1> to vector<1x128xi1>
    %929 = vector.broadcast %928 : vector<1x128xi1> to vector<2x128xi1>
    %930 = vector.broadcast %cst_345 : f32 to vector<2x128xf32>
    %931 = arith.select %929, %927, %930 : vector<2x128xi1>, vector<2x128xf32>
    %932 = arith.addf %926, %931 : vector<2x128xf32>
    %933 = vector.extract_strided_slice %932 {offsets = [0, 0], sizes = [1, 128], strides = [1, 1]} : vector<2x128xf32> to vector<1x128xf32>
    %934 = vector.extract_strided_slice %932 {offsets = [1, 0], sizes = [1, 128], strides = [1, 1]} : vector<2x128xf32> to vector<1x128xf32>
    %935 = arith.mulf %933, %7 : vector<1x128xf32>
    %cst_346 = arith.constant 2.000000e+00 : f32
    %936 = vector.broadcast %cst_346 : f32 to vector<1x128xf32>
    %937 = arith.mulf %936, %935 : vector<1x128xf32>
    %938 = arith.mulf %937, %933 : vector<1x128xf32>
    %939 = arith.subf %934, %938 : vector<1x128xf32>
    %940 = arith.mulf %939, %7 : vector<1x128xf32>
    %941 = arith.mulf %935, %935 : vector<1x128xf32>
    %942 = arith.addf %940, %941 : vector<1x128xf32>
    %cst_347 = arith.constant 0.000000e+00 : f32
    %943 = vector.broadcast %cst_347 : f32 to vector<1x128xf32>
    %944 = arith.maximumf %942, %943 : vector<1x128xf32>
    %cst_348 = arith.constant 9.99999993E-9 : f32
    %945 = vector.broadcast %cst_348 : f32 to vector<1x128xf32>
    %946 = arith.addf %944, %945 : vector<1x128xf32>
    %947 = math.rsqrt %946 : vector<1x128xf32>
    %948 = vector.broadcast %935 : vector<1x128xf32> to vector<32x128xf32>
    %949 = arith.subf %880, %948 : vector<32x128xf32>
    %950 = vector.broadcast %947 : vector<1x128xf32> to vector<32x128xf32>
    %951 = arith.mulf %949, %950 : vector<32x128xf32>
    %952 = vector.broadcast %882 : vector<32x1xf32> to vector<32x128xf32>
    %953 = arith.mulf %951, %952 : vector<32x128xf32>
    %954 = vector.broadcast %884 : vector<32x1xf32> to vector<32x128xf32>
    %955 = arith.addf %953, %954 : vector<32x128xf32>
    %c4_349 = arith.constant 4 : index
    %c0_350 = arith.constant 0 : index
    %c0_351 = arith.constant 0 : index
    %956 = vector.load %arg8[%c4_349, %c0_350, %c0_351] : memref<9x32x3xf32, #tpu.memory_space<vmem>>, vector<1x32x3xf32>
    %957 = vector.shape_cast %956 : vector<1x32x3xf32> to vector<32x3xf32>
    %c2_i32_352 = arith.constant 2 : i32
    %958 = tpu.dynamic_rotate %955 by %c2_i32_352 dim 1 : vector<32x128xf32>, i32 -> vector<32x128xf32>
    %cst_353 = arith.constant 0.000000e+00 : f32
    %959 = vector.shape_cast %27 : vector<1x128xi1> to vector<1x128xi1>
    %960 = vector.broadcast %959 : vector<1x128xi1> to vector<32x128xi1>
    %961 = vector.broadcast %cst_353 : f32 to vector<32x128xf32>
    %962 = arith.select %960, %958, %961 : vector<32x128xi1>, vector<32x128xf32>
    %c126_i32_354 = arith.constant 126 : i32
    %963 = tpu.dynamic_rotate %955 by %c126_i32_354 dim 1 : vector<32x128xf32>, i32 -> vector<32x128xf32>
    %cst_355 = arith.constant 0.000000e+00 : f32
    %964 = vector.shape_cast %29 : vector<1x128xi1> to vector<1x128xi1>
    %965 = vector.broadcast %964 : vector<1x128xi1> to vector<32x128xi1>
    %966 = vector.broadcast %cst_355 : f32 to vector<32x128xf32>
    %967 = arith.select %965, %963, %966 : vector<32x128xi1>, vector<32x128xf32>
    %968 = vector.extract_strided_slice %957 {offsets = [0, 0], sizes = [32, 1], strides = [1, 1]} : vector<32x3xf32> to vector<32x1xf32>
    %969 = vector.broadcast %968 : vector<32x1xf32> to vector<32x128xf32>
    %970 = arith.mulf %969, %962 : vector<32x128xf32>
    %971 = vector.extract_strided_slice %957 {offsets = [0, 1], sizes = [32, 1], strides = [1, 1]} : vector<32x3xf32> to vector<32x1xf32>
    %972 = vector.broadcast %971 : vector<32x1xf32> to vector<32x128xf32>
    %973 = arith.mulf %972, %955 : vector<32x128xf32>
    %974 = arith.addf %970, %973 : vector<32x128xf32>
    %975 = vector.extract_strided_slice %957 {offsets = [0, 2], sizes = [32, 1], strides = [1, 1]} : vector<32x3xf32> to vector<32x1xf32>
    %976 = vector.broadcast %975 : vector<32x1xf32> to vector<32x128xf32>
    %977 = arith.mulf %976, %967 : vector<32x128xf32>
    %978 = arith.addf %974, %977 : vector<32x128xf32>
    %c4_356 = arith.constant 4 : index
    %c0_357 = arith.constant 0 : index
    %c0_358 = arith.constant 0 : index
    %979 = vector.load %arg9[%c4_356, %c0_357, %c0_358] : memref<9x32x1xf32, #tpu.memory_space<vmem>>, vector<1x32x1xf32>
    %980 = vector.shape_cast %979 : vector<1x32x1xf32> to vector<32x1xf32>
    %981 = vector.broadcast %980 : vector<32x1xf32> to vector<32x128xf32>
    %982 = arith.addf %978, %981 : vector<32x128xf32>
    %cst_359 = arith.constant 0.000000e+00 : f32
    %983 = vector.broadcast %cst_359 : f32 to vector<32x128xf32>
    %984 = arith.cmpf oge, %982, %983 : vector<32x128xf32>
    %985 = vector.broadcast %868 : f32 to vector<32x128xf32>
    %986 = arith.mulf %985, %982 : vector<32x128xf32>
    %987 = arith.select %984, %982, %986 : vector<32x128xi1>, vector<32x128xf32>
    %c4_360 = arith.constant 4 : index
    %c0_361 = arith.constant 0 : index
    %c0_362 = arith.constant 0 : index
    %988 = vector.load %arg10[%c4_360, %c0_361, %c0_362] : memref<9x32x1xf32, #tpu.memory_space<vmem>>, vector<1x32x1xf32>
    %989 = vector.shape_cast %988 : vector<1x32x1xf32> to vector<32x1xf32>
    %c4_363 = arith.constant 4 : index
    %c0_364 = arith.constant 0 : index
    %c0_365 = arith.constant 0 : index
    %990 = vector.load %arg11[%c4_363, %c0_364, %c0_365] : memref<9x32x1xf32, #tpu.memory_space<vmem>>, vector<1x32x1xf32>
    %991 = vector.shape_cast %990 : vector<1x32x1xf32> to vector<32x1xf32>
    %cst_366 = arith.constant dense<0.000000e+00> : vector<128xf32>
    %992 = vector.multi_reduction <add>, %987, %cst_366 [0] : vector<32x128xf32> to vector<128xf32>
    %993 = vector.shape_cast %992 : vector<128xf32> to vector<1x128xf32>
    %994 = arith.mulf %987, %987 : vector<32x128xf32>
    %cst_367 = arith.constant dense<0.000000e+00> : vector<128xf32>
    %995 = vector.multi_reduction <add>, %994, %cst_367 [0] : vector<32x128xf32> to vector<128xf32>
    %996 = vector.shape_cast %995 : vector<128xf32> to vector<1x128xf32>
    %997 = tpu.concatenate %993, %996 in 0 : vector<1x128xf32>, vector<1x128xf32> -> vector<2x128xf32>
    %c1_i32_368 = arith.constant 1 : i32
    %998 = tpu.dynamic_rotate %997 by %c1_i32_368 dim 1 : vector<2x128xf32>, i32 -> vector<2x128xf32>
    %cst_369 = arith.constant 0.000000e+00 : f32
    %999 = vector.shape_cast %9 : vector<1x128xi1> to vector<1x128xi1>
    %1000 = vector.broadcast %999 : vector<1x128xi1> to vector<2x128xi1>
    %1001 = vector.broadcast %cst_369 : f32 to vector<2x128xf32>
    %1002 = arith.select %1000, %998, %1001 : vector<2x128xi1>, vector<2x128xf32>
    %1003 = arith.addf %997, %1002 : vector<2x128xf32>
    %c2_i32_370 = arith.constant 2 : i32
    %1004 = tpu.dynamic_rotate %1003 by %c2_i32_370 dim 1 : vector<2x128xf32>, i32 -> vector<2x128xf32>
    %cst_371 = arith.constant 0.000000e+00 : f32
    %1005 = vector.shape_cast %11 : vector<1x128xi1> to vector<1x128xi1>
    %1006 = vector.broadcast %1005 : vector<1x128xi1> to vector<2x128xi1>
    %1007 = vector.broadcast %cst_371 : f32 to vector<2x128xf32>
    %1008 = arith.select %1006, %1004, %1007 : vector<2x128xi1>, vector<2x128xf32>
    %1009 = arith.addf %1003, %1008 : vector<2x128xf32>
    %c4_i32_372 = arith.constant 4 : i32
    %1010 = tpu.dynamic_rotate %1009 by %c4_i32_372 dim 1 : vector<2x128xf32>, i32 -> vector<2x128xf32>
    %cst_373 = arith.constant 0.000000e+00 : f32
    %1011 = vector.shape_cast %13 : vector<1x128xi1> to vector<1x128xi1>
    %1012 = vector.broadcast %1011 : vector<1x128xi1> to vector<2x128xi1>
    %1013 = vector.broadcast %cst_373 : f32 to vector<2x128xf32>
    %1014 = arith.select %1012, %1010, %1013 : vector<2x128xi1>, vector<2x128xf32>
    %1015 = arith.addf %1009, %1014 : vector<2x128xf32>
    %c8_i32_374 = arith.constant 8 : i32
    %1016 = tpu.dynamic_rotate %1015 by %c8_i32_374 dim 1 : vector<2x128xf32>, i32 -> vector<2x128xf32>
    %cst_375 = arith.constant 0.000000e+00 : f32
    %1017 = vector.shape_cast %15 : vector<1x128xi1> to vector<1x128xi1>
    %1018 = vector.broadcast %1017 : vector<1x128xi1> to vector<2x128xi1>
    %1019 = vector.broadcast %cst_375 : f32 to vector<2x128xf32>
    %1020 = arith.select %1018, %1016, %1019 : vector<2x128xi1>, vector<2x128xf32>
    %1021 = arith.addf %1015, %1020 : vector<2x128xf32>
    %c16_i32_376 = arith.constant 16 : i32
    %1022 = tpu.dynamic_rotate %1021 by %c16_i32_376 dim 1 : vector<2x128xf32>, i32 -> vector<2x128xf32>
    %cst_377 = arith.constant 0.000000e+00 : f32
    %1023 = vector.shape_cast %17 : vector<1x128xi1> to vector<1x128xi1>
    %1024 = vector.broadcast %1023 : vector<1x128xi1> to vector<2x128xi1>
    %1025 = vector.broadcast %cst_377 : f32 to vector<2x128xf32>
    %1026 = arith.select %1024, %1022, %1025 : vector<2x128xi1>, vector<2x128xf32>
    %1027 = arith.addf %1021, %1026 : vector<2x128xf32>
    %c32_i32_378 = arith.constant 32 : i32
    %1028 = tpu.dynamic_rotate %1027 by %c32_i32_378 dim 1 : vector<2x128xf32>, i32 -> vector<2x128xf32>
    %cst_379 = arith.constant 0.000000e+00 : f32
    %1029 = vector.shape_cast %19 : vector<1x128xi1> to vector<1x128xi1>
    %1030 = vector.broadcast %1029 : vector<1x128xi1> to vector<2x128xi1>
    %1031 = vector.broadcast %cst_379 : f32 to vector<2x128xf32>
    %1032 = arith.select %1030, %1028, %1031 : vector<2x128xi1>, vector<2x128xf32>
    %1033 = arith.addf %1027, %1032 : vector<2x128xf32>
    %c64_i32_380 = arith.constant 64 : i32
    %1034 = tpu.dynamic_rotate %1033 by %c64_i32_380 dim 1 : vector<2x128xf32>, i32 -> vector<2x128xf32>
    %cst_381 = arith.constant 0.000000e+00 : f32
    %1035 = vector.shape_cast %21 : vector<1x128xi1> to vector<1x128xi1>
    %1036 = vector.broadcast %1035 : vector<1x128xi1> to vector<2x128xi1>
    %1037 = vector.broadcast %cst_381 : f32 to vector<2x128xf32>
    %1038 = arith.select %1036, %1034, %1037 : vector<2x128xi1>, vector<2x128xf32>
    %1039 = arith.addf %1033, %1038 : vector<2x128xf32>
    %1040 = vector.extract_strided_slice %1039 {offsets = [0, 0], sizes = [1, 128], strides = [1, 1]} : vector<2x128xf32> to vector<1x128xf32>
    %1041 = vector.extract_strided_slice %1039 {offsets = [1, 0], sizes = [1, 128], strides = [1, 1]} : vector<2x128xf32> to vector<1x128xf32>
    %1042 = arith.mulf %1040, %7 : vector<1x128xf32>
    %cst_382 = arith.constant 2.000000e+00 : f32
    %1043 = vector.broadcast %cst_382 : f32 to vector<1x128xf32>
    %1044 = arith.mulf %1043, %1042 : vector<1x128xf32>
    %1045 = arith.mulf %1044, %1040 : vector<1x128xf32>
    %1046 = arith.subf %1041, %1045 : vector<1x128xf32>
    %1047 = arith.mulf %1046, %7 : vector<1x128xf32>
    %1048 = arith.mulf %1042, %1042 : vector<1x128xf32>
    %1049 = arith.addf %1047, %1048 : vector<1x128xf32>
    %cst_383 = arith.constant 0.000000e+00 : f32
    %1050 = vector.broadcast %cst_383 : f32 to vector<1x128xf32>
    %1051 = arith.maximumf %1049, %1050 : vector<1x128xf32>
    %cst_384 = arith.constant 9.99999993E-9 : f32
    %1052 = vector.broadcast %cst_384 : f32 to vector<1x128xf32>
    %1053 = arith.addf %1051, %1052 : vector<1x128xf32>
    %1054 = math.rsqrt %1053 : vector<1x128xf32>
    %1055 = vector.broadcast %1042 : vector<1x128xf32> to vector<32x128xf32>
    %1056 = arith.subf %987, %1055 : vector<32x128xf32>
    %1057 = vector.broadcast %1054 : vector<1x128xf32> to vector<32x128xf32>
    %1058 = arith.mulf %1056, %1057 : vector<32x128xf32>
    %1059 = vector.broadcast %989 : vector<32x1xf32> to vector<32x128xf32>
    %1060 = arith.mulf %1058, %1059 : vector<32x128xf32>
    %1061 = vector.broadcast %991 : vector<32x1xf32> to vector<32x128xf32>
    %1062 = arith.addf %1060, %1061 : vector<32x128xf32>
    %c4_385 = arith.constant 4 : index
    %c0_386 = arith.constant 0 : index
    %c0_387 = arith.constant 0 : index
    %1063 = vector.load %arg12[%c4_385, %c0_386, %c0_387] : memref<9x32x32xf32, #tpu.memory_space<vmem>>, vector<1x32x32xf32>
    %1064 = vector.shape_cast %1063 : vector<1x32x32xf32> to vector<32x32xf32>
    %cst_388 = arith.constant dense<0.000000e+00> : vector<32x128xf32>
    %1065 = tpu.matmul %1064, %1062, %cst_388 {dimension_numbers = #tpu.dot_dimension_numbers<[1], [0], [0], [1], [0, 0, 1, 1], [], []>} : vector<32x32xf32>, vector<32x128xf32>, vector<32x128xf32> -> vector<32x128xf32>
    %c4_389 = arith.constant 4 : index
    %c0_390 = arith.constant 0 : index
    %c0_391 = arith.constant 0 : index
    %1066 = vector.load %arg13[%c4_389, %c0_390, %c0_391] : memref<9x32x1xf32, #tpu.memory_space<vmem>>, vector<1x32x1xf32>
    %1067 = vector.shape_cast %1066 : vector<1x32x1xf32> to vector<32x1xf32>
    %1068 = vector.broadcast %1067 : vector<32x1xf32> to vector<32x128xf32>
    %1069 = arith.addf %1065, %1068 : vector<32x128xf32>
    %1070 = vector.extract_strided_slice %1069 {offsets = [0, 0], sizes = [16, 128], strides = [1, 1]} : vector<32x128xf32> to vector<16x128xf32>
    %1071 = arith.addf %864, %1070 : vector<16x128xf32>
    %1072 = vector.extract_strided_slice %1069 {offsets = [16, 0], sizes = [16, 128], strides = [1, 1]} : vector<32x128xf32> to vector<16x128xf32>
    %1073 = arith.addf %866, %1072 : vector<16x128xf32>
    %c10 = arith.constant 10 : index
    %1074 = memref.load %arg3[%c10] : memref<18xf32, #tpu.memory_space<smem>>
    %c11 = arith.constant 11 : index
    %1075 = memref.load %arg3[%c11] : memref<18xf32, #tpu.memory_space<smem>>
    %c5_392 = arith.constant 5 : index
    %c0_393 = arith.constant 0 : index
    %c0_394 = arith.constant 0 : index
    %1076 = vector.load %arg4[%c5_392, %c0_393, %c0_394] : memref<9x32x16xf32, #tpu.memory_space<vmem>>, vector<1x32x16xf32>
    %1077 = vector.shape_cast %1076 : vector<1x32x16xf32> to vector<32x16xf32>
    %cst_395 = arith.constant dense<0.000000e+00> : vector<32x128xf32>
    %1078 = tpu.matmul %1077, %1071, %cst_395 {dimension_numbers = #tpu.dot_dimension_numbers<[1], [0], [0], [1], [0, 0, 1, 1], [], []>} : vector<32x16xf32>, vector<16x128xf32>, vector<32x128xf32> -> vector<32x128xf32>
    %c5_396 = arith.constant 5 : index
    %c0_397 = arith.constant 0 : index
    %c0_398 = arith.constant 0 : index
    %1079 = vector.load %arg5[%c5_396, %c0_397, %c0_398] : memref<9x32x1xf32, #tpu.memory_space<vmem>>, vector<1x32x1xf32>
    %1080 = vector.shape_cast %1079 : vector<1x32x1xf32> to vector<32x1xf32>
    %1081 = vector.broadcast %1080 : vector<32x1xf32> to vector<32x128xf32>
    %1082 = arith.addf %1078, %1081 : vector<32x128xf32>
    %cst_399 = arith.constant 0.000000e+00 : f32
    %1083 = vector.broadcast %cst_399 : f32 to vector<32x128xf32>
    %1084 = arith.cmpf oge, %1082, %1083 : vector<32x128xf32>
    %1085 = vector.broadcast %1074 : f32 to vector<32x128xf32>
    %1086 = arith.mulf %1085, %1082 : vector<32x128xf32>
    %1087 = arith.select %1084, %1082, %1086 : vector<32x128xi1>, vector<32x128xf32>
    %c5_400 = arith.constant 5 : index
    %c0_401 = arith.constant 0 : index
    %c0_402 = arith.constant 0 : index
    %1088 = vector.load %arg6[%c5_400, %c0_401, %c0_402] : memref<9x32x1xf32, #tpu.memory_space<vmem>>, vector<1x32x1xf32>
    %1089 = vector.shape_cast %1088 : vector<1x32x1xf32> to vector<32x1xf32>
    %c5_403 = arith.constant 5 : index
    %c0_404 = arith.constant 0 : index
    %c0_405 = arith.constant 0 : index
    %1090 = vector.load %arg7[%c5_403, %c0_404, %c0_405] : memref<9x32x1xf32, #tpu.memory_space<vmem>>, vector<1x32x1xf32>
    %1091 = vector.shape_cast %1090 : vector<1x32x1xf32> to vector<32x1xf32>
    %cst_406 = arith.constant dense<0.000000e+00> : vector<128xf32>
    %1092 = vector.multi_reduction <add>, %1087, %cst_406 [0] : vector<32x128xf32> to vector<128xf32>
    %1093 = vector.shape_cast %1092 : vector<128xf32> to vector<1x128xf32>
    %1094 = arith.mulf %1087, %1087 : vector<32x128xf32>
    %cst_407 = arith.constant dense<0.000000e+00> : vector<128xf32>
    %1095 = vector.multi_reduction <add>, %1094, %cst_407 [0] : vector<32x128xf32> to vector<128xf32>
    %1096 = vector.shape_cast %1095 : vector<128xf32> to vector<1x128xf32>
    %1097 = tpu.concatenate %1093, %1096 in 0 : vector<1x128xf32>, vector<1x128xf32> -> vector<2x128xf32>
    %c1_i32_408 = arith.constant 1 : i32
    %1098 = tpu.dynamic_rotate %1097 by %c1_i32_408 dim 1 : vector<2x128xf32>, i32 -> vector<2x128xf32>
    %cst_409 = arith.constant 0.000000e+00 : f32
    %1099 = vector.shape_cast %9 : vector<1x128xi1> to vector<1x128xi1>
    %1100 = vector.broadcast %1099 : vector<1x128xi1> to vector<2x128xi1>
    %1101 = vector.broadcast %cst_409 : f32 to vector<2x128xf32>
    %1102 = arith.select %1100, %1098, %1101 : vector<2x128xi1>, vector<2x128xf32>
    %1103 = arith.addf %1097, %1102 : vector<2x128xf32>
    %c2_i32_410 = arith.constant 2 : i32
    %1104 = tpu.dynamic_rotate %1103 by %c2_i32_410 dim 1 : vector<2x128xf32>, i32 -> vector<2x128xf32>
    %cst_411 = arith.constant 0.000000e+00 : f32
    %1105 = vector.shape_cast %11 : vector<1x128xi1> to vector<1x128xi1>
    %1106 = vector.broadcast %1105 : vector<1x128xi1> to vector<2x128xi1>
    %1107 = vector.broadcast %cst_411 : f32 to vector<2x128xf32>
    %1108 = arith.select %1106, %1104, %1107 : vector<2x128xi1>, vector<2x128xf32>
    %1109 = arith.addf %1103, %1108 : vector<2x128xf32>
    %c4_i32_412 = arith.constant 4 : i32
    %1110 = tpu.dynamic_rotate %1109 by %c4_i32_412 dim 1 : vector<2x128xf32>, i32 -> vector<2x128xf32>
    %cst_413 = arith.constant 0.000000e+00 : f32
    %1111 = vector.shape_cast %13 : vector<1x128xi1> to vector<1x128xi1>
    %1112 = vector.broadcast %1111 : vector<1x128xi1> to vector<2x128xi1>
    %1113 = vector.broadcast %cst_413 : f32 to vector<2x128xf32>
    %1114 = arith.select %1112, %1110, %1113 : vector<2x128xi1>, vector<2x128xf32>
    %1115 = arith.addf %1109, %1114 : vector<2x128xf32>
    %c8_i32_414 = arith.constant 8 : i32
    %1116 = tpu.dynamic_rotate %1115 by %c8_i32_414 dim 1 : vector<2x128xf32>, i32 -> vector<2x128xf32>
    %cst_415 = arith.constant 0.000000e+00 : f32
    %1117 = vector.shape_cast %15 : vector<1x128xi1> to vector<1x128xi1>
    %1118 = vector.broadcast %1117 : vector<1x128xi1> to vector<2x128xi1>
    %1119 = vector.broadcast %cst_415 : f32 to vector<2x128xf32>
    %1120 = arith.select %1118, %1116, %1119 : vector<2x128xi1>, vector<2x128xf32>
    %1121 = arith.addf %1115, %1120 : vector<2x128xf32>
    %c16_i32_416 = arith.constant 16 : i32
    %1122 = tpu.dynamic_rotate %1121 by %c16_i32_416 dim 1 : vector<2x128xf32>, i32 -> vector<2x128xf32>
    %cst_417 = arith.constant 0.000000e+00 : f32
    %1123 = vector.shape_cast %17 : vector<1x128xi1> to vector<1x128xi1>
    %1124 = vector.broadcast %1123 : vector<1x128xi1> to vector<2x128xi1>
    %1125 = vector.broadcast %cst_417 : f32 to vector<2x128xf32>
    %1126 = arith.select %1124, %1122, %1125 : vector<2x128xi1>, vector<2x128xf32>
    %1127 = arith.addf %1121, %1126 : vector<2x128xf32>
    %c32_i32_418 = arith.constant 32 : i32
    %1128 = tpu.dynamic_rotate %1127 by %c32_i32_418 dim 1 : vector<2x128xf32>, i32 -> vector<2x128xf32>
    %cst_419 = arith.constant 0.000000e+00 : f32
    %1129 = vector.shape_cast %19 : vector<1x128xi1> to vector<1x128xi1>
    %1130 = vector.broadcast %1129 : vector<1x128xi1> to vector<2x128xi1>
    %1131 = vector.broadcast %cst_419 : f32 to vector<2x128xf32>
    %1132 = arith.select %1130, %1128, %1131 : vector<2x128xi1>, vector<2x128xf32>
    %1133 = arith.addf %1127, %1132 : vector<2x128xf32>
    %c64_i32_420 = arith.constant 64 : i32
    %1134 = tpu.dynamic_rotate %1133 by %c64_i32_420 dim 1 : vector<2x128xf32>, i32 -> vector<2x128xf32>
    %cst_421 = arith.constant 0.000000e+00 : f32
    %1135 = vector.shape_cast %21 : vector<1x128xi1> to vector<1x128xi1>
    %1136 = vector.broadcast %1135 : vector<1x128xi1> to vector<2x128xi1>
    %1137 = vector.broadcast %cst_421 : f32 to vector<2x128xf32>
    %1138 = arith.select %1136, %1134, %1137 : vector<2x128xi1>, vector<2x128xf32>
    %1139 = arith.addf %1133, %1138 : vector<2x128xf32>
    %1140 = vector.extract_strided_slice %1139 {offsets = [0, 0], sizes = [1, 128], strides = [1, 1]} : vector<2x128xf32> to vector<1x128xf32>
    %1141 = vector.extract_strided_slice %1139 {offsets = [1, 0], sizes = [1, 128], strides = [1, 1]} : vector<2x128xf32> to vector<1x128xf32>
    %1142 = arith.mulf %1140, %7 : vector<1x128xf32>
    %cst_422 = arith.constant 2.000000e+00 : f32
    %1143 = vector.broadcast %cst_422 : f32 to vector<1x128xf32>
    %1144 = arith.mulf %1143, %1142 : vector<1x128xf32>
    %1145 = arith.mulf %1144, %1140 : vector<1x128xf32>
    %1146 = arith.subf %1141, %1145 : vector<1x128xf32>
    %1147 = arith.mulf %1146, %7 : vector<1x128xf32>
    %1148 = arith.mulf %1142, %1142 : vector<1x128xf32>
    %1149 = arith.addf %1147, %1148 : vector<1x128xf32>
    %cst_423 = arith.constant 0.000000e+00 : f32
    %1150 = vector.broadcast %cst_423 : f32 to vector<1x128xf32>
    %1151 = arith.maximumf %1149, %1150 : vector<1x128xf32>
    %cst_424 = arith.constant 9.99999993E-9 : f32
    %1152 = vector.broadcast %cst_424 : f32 to vector<1x128xf32>
    %1153 = arith.addf %1151, %1152 : vector<1x128xf32>
    %1154 = math.rsqrt %1153 : vector<1x128xf32>
    %1155 = vector.broadcast %1142 : vector<1x128xf32> to vector<32x128xf32>
    %1156 = arith.subf %1087, %1155 : vector<32x128xf32>
    %1157 = vector.broadcast %1154 : vector<1x128xf32> to vector<32x128xf32>
    %1158 = arith.mulf %1156, %1157 : vector<32x128xf32>
    %1159 = vector.broadcast %1089 : vector<32x1xf32> to vector<32x128xf32>
    %1160 = arith.mulf %1158, %1159 : vector<32x128xf32>
    %1161 = vector.broadcast %1091 : vector<32x1xf32> to vector<32x128xf32>
    %1162 = arith.addf %1160, %1161 : vector<32x128xf32>
    %c5_425 = arith.constant 5 : index
    %c0_426 = arith.constant 0 : index
    %c0_427 = arith.constant 0 : index
    %1163 = vector.load %arg8[%c5_425, %c0_426, %c0_427] : memref<9x32x3xf32, #tpu.memory_space<vmem>>, vector<1x32x3xf32>
    %1164 = vector.shape_cast %1163 : vector<1x32x3xf32> to vector<32x3xf32>
    %c4_i32_428 = arith.constant 4 : i32
    %1165 = tpu.dynamic_rotate %1162 by %c4_i32_428 dim 1 : vector<32x128xf32>, i32 -> vector<32x128xf32>
    %cst_429 = arith.constant 0.000000e+00 : f32
    %1166 = vector.shape_cast %31 : vector<1x128xi1> to vector<1x128xi1>
    %1167 = vector.broadcast %1166 : vector<1x128xi1> to vector<32x128xi1>
    %1168 = vector.broadcast %cst_429 : f32 to vector<32x128xf32>
    %1169 = arith.select %1167, %1165, %1168 : vector<32x128xi1>, vector<32x128xf32>
    %c124_i32_430 = arith.constant 124 : i32
    %1170 = tpu.dynamic_rotate %1162 by %c124_i32_430 dim 1 : vector<32x128xf32>, i32 -> vector<32x128xf32>
    %cst_431 = arith.constant 0.000000e+00 : f32
    %1171 = vector.shape_cast %33 : vector<1x128xi1> to vector<1x128xi1>
    %1172 = vector.broadcast %1171 : vector<1x128xi1> to vector<32x128xi1>
    %1173 = vector.broadcast %cst_431 : f32 to vector<32x128xf32>
    %1174 = arith.select %1172, %1170, %1173 : vector<32x128xi1>, vector<32x128xf32>
    %1175 = vector.extract_strided_slice %1164 {offsets = [0, 0], sizes = [32, 1], strides = [1, 1]} : vector<32x3xf32> to vector<32x1xf32>
    %1176 = vector.broadcast %1175 : vector<32x1xf32> to vector<32x128xf32>
    %1177 = arith.mulf %1176, %1169 : vector<32x128xf32>
    %1178 = vector.extract_strided_slice %1164 {offsets = [0, 1], sizes = [32, 1], strides = [1, 1]} : vector<32x3xf32> to vector<32x1xf32>
    %1179 = vector.broadcast %1178 : vector<32x1xf32> to vector<32x128xf32>
    %1180 = arith.mulf %1179, %1162 : vector<32x128xf32>
    %1181 = arith.addf %1177, %1180 : vector<32x128xf32>
    %1182 = vector.extract_strided_slice %1164 {offsets = [0, 2], sizes = [32, 1], strides = [1, 1]} : vector<32x3xf32> to vector<32x1xf32>
    %1183 = vector.broadcast %1182 : vector<32x1xf32> to vector<32x128xf32>
    %1184 = arith.mulf %1183, %1174 : vector<32x128xf32>
    %1185 = arith.addf %1181, %1184 : vector<32x128xf32>
    %c5_432 = arith.constant 5 : index
    %c0_433 = arith.constant 0 : index
    %c0_434 = arith.constant 0 : index
    %1186 = vector.load %arg9[%c5_432, %c0_433, %c0_434] : memref<9x32x1xf32, #tpu.memory_space<vmem>>, vector<1x32x1xf32>
    %1187 = vector.shape_cast %1186 : vector<1x32x1xf32> to vector<32x1xf32>
    %1188 = vector.broadcast %1187 : vector<32x1xf32> to vector<32x128xf32>
    %1189 = arith.addf %1185, %1188 : vector<32x128xf32>
    %cst_435 = arith.constant 0.000000e+00 : f32
    %1190 = vector.broadcast %cst_435 : f32 to vector<32x128xf32>
    %1191 = arith.cmpf oge, %1189, %1190 : vector<32x128xf32>
    %1192 = vector.broadcast %1075 : f32 to vector<32x128xf32>
    %1193 = arith.mulf %1192, %1189 : vector<32x128xf32>
    %1194 = arith.select %1191, %1189, %1193 : vector<32x128xi1>, vector<32x128xf32>
    %c5_436 = arith.constant 5 : index
    %c0_437 = arith.constant 0 : index
    %c0_438 = arith.constant 0 : index
    %1195 = vector.load %arg10[%c5_436, %c0_437, %c0_438] : memref<9x32x1xf32, #tpu.memory_space<vmem>>, vector<1x32x1xf32>
    %1196 = vector.shape_cast %1195 : vector<1x32x1xf32> to vector<32x1xf32>
    %c5_439 = arith.constant 5 : index
    %c0_440 = arith.constant 0 : index
    %c0_441 = arith.constant 0 : index
    %1197 = vector.load %arg11[%c5_439, %c0_440, %c0_441] : memref<9x32x1xf32, #tpu.memory_space<vmem>>, vector<1x32x1xf32>
    %1198 = vector.shape_cast %1197 : vector<1x32x1xf32> to vector<32x1xf32>
    %cst_442 = arith.constant dense<0.000000e+00> : vector<128xf32>
    %1199 = vector.multi_reduction <add>, %1194, %cst_442 [0] : vector<32x128xf32> to vector<128xf32>
    %1200 = vector.shape_cast %1199 : vector<128xf32> to vector<1x128xf32>
    %1201 = arith.mulf %1194, %1194 : vector<32x128xf32>
    %cst_443 = arith.constant dense<0.000000e+00> : vector<128xf32>
    %1202 = vector.multi_reduction <add>, %1201, %cst_443 [0] : vector<32x128xf32> to vector<128xf32>
    %1203 = vector.shape_cast %1202 : vector<128xf32> to vector<1x128xf32>
    %1204 = tpu.concatenate %1200, %1203 in 0 : vector<1x128xf32>, vector<1x128xf32> -> vector<2x128xf32>
    %c1_i32_444 = arith.constant 1 : i32
    %1205 = tpu.dynamic_rotate %1204 by %c1_i32_444 dim 1 : vector<2x128xf32>, i32 -> vector<2x128xf32>
    %cst_445 = arith.constant 0.000000e+00 : f32
    %1206 = vector.shape_cast %9 : vector<1x128xi1> to vector<1x128xi1>
    %1207 = vector.broadcast %1206 : vector<1x128xi1> to vector<2x128xi1>
    %1208 = vector.broadcast %cst_445 : f32 to vector<2x128xf32>
    %1209 = arith.select %1207, %1205, %1208 : vector<2x128xi1>, vector<2x128xf32>
    %1210 = arith.addf %1204, %1209 : vector<2x128xf32>
    %c2_i32_446 = arith.constant 2 : i32
    %1211 = tpu.dynamic_rotate %1210 by %c2_i32_446 dim 1 : vector<2x128xf32>, i32 -> vector<2x128xf32>
    %cst_447 = arith.constant 0.000000e+00 : f32
    %1212 = vector.shape_cast %11 : vector<1x128xi1> to vector<1x128xi1>
    %1213 = vector.broadcast %1212 : vector<1x128xi1> to vector<2x128xi1>
    %1214 = vector.broadcast %cst_447 : f32 to vector<2x128xf32>
    %1215 = arith.select %1213, %1211, %1214 : vector<2x128xi1>, vector<2x128xf32>
    %1216 = arith.addf %1210, %1215 : vector<2x128xf32>
    %c4_i32_448 = arith.constant 4 : i32
    %1217 = tpu.dynamic_rotate %1216 by %c4_i32_448 dim 1 : vector<2x128xf32>, i32 -> vector<2x128xf32>
    %cst_449 = arith.constant 0.000000e+00 : f32
    %1218 = vector.shape_cast %13 : vector<1x128xi1> to vector<1x128xi1>
    %1219 = vector.broadcast %1218 : vector<1x128xi1> to vector<2x128xi1>
    %1220 = vector.broadcast %cst_449 : f32 to vector<2x128xf32>
    %1221 = arith.select %1219, %1217, %1220 : vector<2x128xi1>, vector<2x128xf32>
    %1222 = arith.addf %1216, %1221 : vector<2x128xf32>
    %c8_i32_450 = arith.constant 8 : i32
    %1223 = tpu.dynamic_rotate %1222 by %c8_i32_450 dim 1 : vector<2x128xf32>, i32 -> vector<2x128xf32>
    %cst_451 = arith.constant 0.000000e+00 : f32
    %1224 = vector.shape_cast %15 : vector<1x128xi1> to vector<1x128xi1>
    %1225 = vector.broadcast %1224 : vector<1x128xi1> to vector<2x128xi1>
    %1226 = vector.broadcast %cst_451 : f32 to vector<2x128xf32>
    %1227 = arith.select %1225, %1223, %1226 : vector<2x128xi1>, vector<2x128xf32>
    %1228 = arith.addf %1222, %1227 : vector<2x128xf32>
    %c16_i32_452 = arith.constant 16 : i32
    %1229 = tpu.dynamic_rotate %1228 by %c16_i32_452 dim 1 : vector<2x128xf32>, i32 -> vector<2x128xf32>
    %cst_453 = arith.constant 0.000000e+00 : f32
    %1230 = vector.shape_cast %17 : vector<1x128xi1> to vector<1x128xi1>
    %1231 = vector.broadcast %1230 : vector<1x128xi1> to vector<2x128xi1>
    %1232 = vector.broadcast %cst_453 : f32 to vector<2x128xf32>
    %1233 = arith.select %1231, %1229, %1232 : vector<2x128xi1>, vector<2x128xf32>
    %1234 = arith.addf %1228, %1233 : vector<2x128xf32>
    %c32_i32_454 = arith.constant 32 : i32
    %1235 = tpu.dynamic_rotate %1234 by %c32_i32_454 dim 1 : vector<2x128xf32>, i32 -> vector<2x128xf32>
    %cst_455 = arith.constant 0.000000e+00 : f32
    %1236 = vector.shape_cast %19 : vector<1x128xi1> to vector<1x128xi1>
    %1237 = vector.broadcast %1236 : vector<1x128xi1> to vector<2x128xi1>
    %1238 = vector.broadcast %cst_455 : f32 to vector<2x128xf32>
    %1239 = arith.select %1237, %1235, %1238 : vector<2x128xi1>, vector<2x128xf32>
    %1240 = arith.addf %1234, %1239 : vector<2x128xf32>
    %c64_i32_456 = arith.constant 64 : i32
    %1241 = tpu.dynamic_rotate %1240 by %c64_i32_456 dim 1 : vector<2x128xf32>, i32 -> vector<2x128xf32>
    %cst_457 = arith.constant 0.000000e+00 : f32
    %1242 = vector.shape_cast %21 : vector<1x128xi1> to vector<1x128xi1>
    %1243 = vector.broadcast %1242 : vector<1x128xi1> to vector<2x128xi1>
    %1244 = vector.broadcast %cst_457 : f32 to vector<2x128xf32>
    %1245 = arith.select %1243, %1241, %1244 : vector<2x128xi1>, vector<2x128xf32>
    %1246 = arith.addf %1240, %1245 : vector<2x128xf32>
    %1247 = vector.extract_strided_slice %1246 {offsets = [0, 0], sizes = [1, 128], strides = [1, 1]} : vector<2x128xf32> to vector<1x128xf32>
    %1248 = vector.extract_strided_slice %1246 {offsets = [1, 0], sizes = [1, 128], strides = [1, 1]} : vector<2x128xf32> to vector<1x128xf32>
    %1249 = arith.mulf %1247, %7 : vector<1x128xf32>
    %cst_458 = arith.constant 2.000000e+00 : f32
    %1250 = vector.broadcast %cst_458 : f32 to vector<1x128xf32>
    %1251 = arith.mulf %1250, %1249 : vector<1x128xf32>
    %1252 = arith.mulf %1251, %1247 : vector<1x128xf32>
    %1253 = arith.subf %1248, %1252 : vector<1x128xf32>
    %1254 = arith.mulf %1253, %7 : vector<1x128xf32>
    %1255 = arith.mulf %1249, %1249 : vector<1x128xf32>
    %1256 = arith.addf %1254, %1255 : vector<1x128xf32>
    %cst_459 = arith.constant 0.000000e+00 : f32
    %1257 = vector.broadcast %cst_459 : f32 to vector<1x128xf32>
    %1258 = arith.maximumf %1256, %1257 : vector<1x128xf32>
    %cst_460 = arith.constant 9.99999993E-9 : f32
    %1259 = vector.broadcast %cst_460 : f32 to vector<1x128xf32>
    %1260 = arith.addf %1258, %1259 : vector<1x128xf32>
    %1261 = math.rsqrt %1260 : vector<1x128xf32>
    %1262 = vector.broadcast %1249 : vector<1x128xf32> to vector<32x128xf32>
    %1263 = arith.subf %1194, %1262 : vector<32x128xf32>
    %1264 = vector.broadcast %1261 : vector<1x128xf32> to vector<32x128xf32>
    %1265 = arith.mulf %1263, %1264 : vector<32x128xf32>
    %1266 = vector.broadcast %1196 : vector<32x1xf32> to vector<32x128xf32>
    %1267 = arith.mulf %1265, %1266 : vector<32x128xf32>
    %1268 = vector.broadcast %1198 : vector<32x1xf32> to vector<32x128xf32>
    %1269 = arith.addf %1267, %1268 : vector<32x128xf32>
    %c5_461 = arith.constant 5 : index
    %c0_462 = arith.constant 0 : index
    %c0_463 = arith.constant 0 : index
    %1270 = vector.load %arg12[%c5_461, %c0_462, %c0_463] : memref<9x32x32xf32, #tpu.memory_space<vmem>>, vector<1x32x32xf32>
    %1271 = vector.shape_cast %1270 : vector<1x32x32xf32> to vector<32x32xf32>
    %cst_464 = arith.constant dense<0.000000e+00> : vector<32x128xf32>
    %1272 = tpu.matmul %1271, %1269, %cst_464 {dimension_numbers = #tpu.dot_dimension_numbers<[1], [0], [0], [1], [0, 0, 1, 1], [], []>} : vector<32x32xf32>, vector<32x128xf32>, vector<32x128xf32> -> vector<32x128xf32>
    %c5_465 = arith.constant 5 : index
    %c0_466 = arith.constant 0 : index
    %c0_467 = arith.constant 0 : index
    %1273 = vector.load %arg13[%c5_465, %c0_466, %c0_467] : memref<9x32x1xf32, #tpu.memory_space<vmem>>, vector<1x32x1xf32>
    %1274 = vector.shape_cast %1273 : vector<1x32x1xf32> to vector<32x1xf32>
    %1275 = vector.broadcast %1274 : vector<32x1xf32> to vector<32x128xf32>
    %1276 = arith.addf %1272, %1275 : vector<32x128xf32>
    %1277 = vector.extract_strided_slice %1276 {offsets = [0, 0], sizes = [16, 128], strides = [1, 1]} : vector<32x128xf32> to vector<16x128xf32>
    %1278 = arith.addf %1071, %1277 : vector<16x128xf32>
    %1279 = vector.extract_strided_slice %1276 {offsets = [16, 0], sizes = [16, 128], strides = [1, 1]} : vector<32x128xf32> to vector<16x128xf32>
    %1280 = arith.addf %1073, %1279 : vector<16x128xf32>
    %c12 = arith.constant 12 : index
    %1281 = memref.load %arg3[%c12] : memref<18xf32, #tpu.memory_space<smem>>
    %c13 = arith.constant 13 : index
    %1282 = memref.load %arg3[%c13] : memref<18xf32, #tpu.memory_space<smem>>
    %c6_468 = arith.constant 6 : index
    %c0_469 = arith.constant 0 : index
    %c0_470 = arith.constant 0 : index
    %1283 = vector.load %arg4[%c6_468, %c0_469, %c0_470] : memref<9x32x16xf32, #tpu.memory_space<vmem>>, vector<1x32x16xf32>
    %1284 = vector.shape_cast %1283 : vector<1x32x16xf32> to vector<32x16xf32>
    %cst_471 = arith.constant dense<0.000000e+00> : vector<32x128xf32>
    %1285 = tpu.matmul %1284, %1278, %cst_471 {dimension_numbers = #tpu.dot_dimension_numbers<[1], [0], [0], [1], [0, 0, 1, 1], [], []>} : vector<32x16xf32>, vector<16x128xf32>, vector<32x128xf32> -> vector<32x128xf32>
    %c6_472 = arith.constant 6 : index
    %c0_473 = arith.constant 0 : index
    %c0_474 = arith.constant 0 : index
    %1286 = vector.load %arg5[%c6_472, %c0_473, %c0_474] : memref<9x32x1xf32, #tpu.memory_space<vmem>>, vector<1x32x1xf32>
    %1287 = vector.shape_cast %1286 : vector<1x32x1xf32> to vector<32x1xf32>
    %1288 = vector.broadcast %1287 : vector<32x1xf32> to vector<32x128xf32>
    %1289 = arith.addf %1285, %1288 : vector<32x128xf32>
    %cst_475 = arith.constant 0.000000e+00 : f32
    %1290 = vector.broadcast %cst_475 : f32 to vector<32x128xf32>
    %1291 = arith.cmpf oge, %1289, %1290 : vector<32x128xf32>
    %1292 = vector.broadcast %1281 : f32 to vector<32x128xf32>
    %1293 = arith.mulf %1292, %1289 : vector<32x128xf32>
    %1294 = arith.select %1291, %1289, %1293 : vector<32x128xi1>, vector<32x128xf32>
    %c6_476 = arith.constant 6 : index
    %c0_477 = arith.constant 0 : index
    %c0_478 = arith.constant 0 : index
    %1295 = vector.load %arg6[%c6_476, %c0_477, %c0_478] : memref<9x32x1xf32, #tpu.memory_space<vmem>>, vector<1x32x1xf32>
    %1296 = vector.shape_cast %1295 : vector<1x32x1xf32> to vector<32x1xf32>
    %c6_479 = arith.constant 6 : index
    %c0_480 = arith.constant 0 : index
    %c0_481 = arith.constant 0 : index
    %1297 = vector.load %arg7[%c6_479, %c0_480, %c0_481] : memref<9x32x1xf32, #tpu.memory_space<vmem>>, vector<1x32x1xf32>
    %1298 = vector.shape_cast %1297 : vector<1x32x1xf32> to vector<32x1xf32>
    %cst_482 = arith.constant dense<0.000000e+00> : vector<128xf32>
    %1299 = vector.multi_reduction <add>, %1294, %cst_482 [0] : vector<32x128xf32> to vector<128xf32>
    %1300 = vector.shape_cast %1299 : vector<128xf32> to vector<1x128xf32>
    %1301 = arith.mulf %1294, %1294 : vector<32x128xf32>
    %cst_483 = arith.constant dense<0.000000e+00> : vector<128xf32>
    %1302 = vector.multi_reduction <add>, %1301, %cst_483 [0] : vector<32x128xf32> to vector<128xf32>
    %1303 = vector.shape_cast %1302 : vector<128xf32> to vector<1x128xf32>
    %1304 = tpu.concatenate %1300, %1303 in 0 : vector<1x128xf32>, vector<1x128xf32> -> vector<2x128xf32>
    %c1_i32_484 = arith.constant 1 : i32
    %1305 = tpu.dynamic_rotate %1304 by %c1_i32_484 dim 1 : vector<2x128xf32>, i32 -> vector<2x128xf32>
    %cst_485 = arith.constant 0.000000e+00 : f32
    %1306 = vector.shape_cast %9 : vector<1x128xi1> to vector<1x128xi1>
    %1307 = vector.broadcast %1306 : vector<1x128xi1> to vector<2x128xi1>
    %1308 = vector.broadcast %cst_485 : f32 to vector<2x128xf32>
    %1309 = arith.select %1307, %1305, %1308 : vector<2x128xi1>, vector<2x128xf32>
    %1310 = arith.addf %1304, %1309 : vector<2x128xf32>
    %c2_i32_486 = arith.constant 2 : i32
    %1311 = tpu.dynamic_rotate %1310 by %c2_i32_486 dim 1 : vector<2x128xf32>, i32 -> vector<2x128xf32>
    %cst_487 = arith.constant 0.000000e+00 : f32
    %1312 = vector.shape_cast %11 : vector<1x128xi1> to vector<1x128xi1>
    %1313 = vector.broadcast %1312 : vector<1x128xi1> to vector<2x128xi1>
    %1314 = vector.broadcast %cst_487 : f32 to vector<2x128xf32>
    %1315 = arith.select %1313, %1311, %1314 : vector<2x128xi1>, vector<2x128xf32>
    %1316 = arith.addf %1310, %1315 : vector<2x128xf32>
    %c4_i32_488 = arith.constant 4 : i32
    %1317 = tpu.dynamic_rotate %1316 by %c4_i32_488 dim 1 : vector<2x128xf32>, i32 -> vector<2x128xf32>
    %cst_489 = arith.constant 0.000000e+00 : f32
    %1318 = vector.shape_cast %13 : vector<1x128xi1> to vector<1x128xi1>
    %1319 = vector.broadcast %1318 : vector<1x128xi1> to vector<2x128xi1>
    %1320 = vector.broadcast %cst_489 : f32 to vector<2x128xf32>
    %1321 = arith.select %1319, %1317, %1320 : vector<2x128xi1>, vector<2x128xf32>
    %1322 = arith.addf %1316, %1321 : vector<2x128xf32>
    %c8_i32_490 = arith.constant 8 : i32
    %1323 = tpu.dynamic_rotate %1322 by %c8_i32_490 dim 1 : vector<2x128xf32>, i32 -> vector<2x128xf32>
    %cst_491 = arith.constant 0.000000e+00 : f32
    %1324 = vector.shape_cast %15 : vector<1x128xi1> to vector<1x128xi1>
    %1325 = vector.broadcast %1324 : vector<1x128xi1> to vector<2x128xi1>
    %1326 = vector.broadcast %cst_491 : f32 to vector<2x128xf32>
    %1327 = arith.select %1325, %1323, %1326 : vector<2x128xi1>, vector<2x128xf32>
    %1328 = arith.addf %1322, %1327 : vector<2x128xf32>
    %c16_i32_492 = arith.constant 16 : i32
    %1329 = tpu.dynamic_rotate %1328 by %c16_i32_492 dim 1 : vector<2x128xf32>, i32 -> vector<2x128xf32>
    %cst_493 = arith.constant 0.000000e+00 : f32
    %1330 = vector.shape_cast %17 : vector<1x128xi1> to vector<1x128xi1>
    %1331 = vector.broadcast %1330 : vector<1x128xi1> to vector<2x128xi1>
    %1332 = vector.broadcast %cst_493 : f32 to vector<2x128xf32>
    %1333 = arith.select %1331, %1329, %1332 : vector<2x128xi1>, vector<2x128xf32>
    %1334 = arith.addf %1328, %1333 : vector<2x128xf32>
    %c32_i32_494 = arith.constant 32 : i32
    %1335 = tpu.dynamic_rotate %1334 by %c32_i32_494 dim 1 : vector<2x128xf32>, i32 -> vector<2x128xf32>
    %cst_495 = arith.constant 0.000000e+00 : f32
    %1336 = vector.shape_cast %19 : vector<1x128xi1> to vector<1x128xi1>
    %1337 = vector.broadcast %1336 : vector<1x128xi1> to vector<2x128xi1>
    %1338 = vector.broadcast %cst_495 : f32 to vector<2x128xf32>
    %1339 = arith.select %1337, %1335, %1338 : vector<2x128xi1>, vector<2x128xf32>
    %1340 = arith.addf %1334, %1339 : vector<2x128xf32>
    %c64_i32_496 = arith.constant 64 : i32
    %1341 = tpu.dynamic_rotate %1340 by %c64_i32_496 dim 1 : vector<2x128xf32>, i32 -> vector<2x128xf32>
    %cst_497 = arith.constant 0.000000e+00 : f32
    %1342 = vector.shape_cast %21 : vector<1x128xi1> to vector<1x128xi1>
    %1343 = vector.broadcast %1342 : vector<1x128xi1> to vector<2x128xi1>
    %1344 = vector.broadcast %cst_497 : f32 to vector<2x128xf32>
    %1345 = arith.select %1343, %1341, %1344 : vector<2x128xi1>, vector<2x128xf32>
    %1346 = arith.addf %1340, %1345 : vector<2x128xf32>
    %1347 = vector.extract_strided_slice %1346 {offsets = [0, 0], sizes = [1, 128], strides = [1, 1]} : vector<2x128xf32> to vector<1x128xf32>
    %1348 = vector.extract_strided_slice %1346 {offsets = [1, 0], sizes = [1, 128], strides = [1, 1]} : vector<2x128xf32> to vector<1x128xf32>
    %1349 = arith.mulf %1347, %7 : vector<1x128xf32>
    %cst_498 = arith.constant 2.000000e+00 : f32
    %1350 = vector.broadcast %cst_498 : f32 to vector<1x128xf32>
    %1351 = arith.mulf %1350, %1349 : vector<1x128xf32>
    %1352 = arith.mulf %1351, %1347 : vector<1x128xf32>
    %1353 = arith.subf %1348, %1352 : vector<1x128xf32>
    %1354 = arith.mulf %1353, %7 : vector<1x128xf32>
    %1355 = arith.mulf %1349, %1349 : vector<1x128xf32>
    %1356 = arith.addf %1354, %1355 : vector<1x128xf32>
    %cst_499 = arith.constant 0.000000e+00 : f32
    %1357 = vector.broadcast %cst_499 : f32 to vector<1x128xf32>
    %1358 = arith.maximumf %1356, %1357 : vector<1x128xf32>
    %cst_500 = arith.constant 9.99999993E-9 : f32
    %1359 = vector.broadcast %cst_500 : f32 to vector<1x128xf32>
    %1360 = arith.addf %1358, %1359 : vector<1x128xf32>
    %1361 = math.rsqrt %1360 : vector<1x128xf32>
    %1362 = vector.broadcast %1349 : vector<1x128xf32> to vector<32x128xf32>
    %1363 = arith.subf %1294, %1362 : vector<32x128xf32>
    %1364 = vector.broadcast %1361 : vector<1x128xf32> to vector<32x128xf32>
    %1365 = arith.mulf %1363, %1364 : vector<32x128xf32>
    %1366 = vector.broadcast %1296 : vector<32x1xf32> to vector<32x128xf32>
    %1367 = arith.mulf %1365, %1366 : vector<32x128xf32>
    %1368 = vector.broadcast %1298 : vector<32x1xf32> to vector<32x128xf32>
    %1369 = arith.addf %1367, %1368 : vector<32x128xf32>
    %c6_501 = arith.constant 6 : index
    %c0_502 = arith.constant 0 : index
    %c0_503 = arith.constant 0 : index
    %1370 = vector.load %arg8[%c6_501, %c0_502, %c0_503] : memref<9x32x3xf32, #tpu.memory_space<vmem>>, vector<1x32x3xf32>
    %1371 = vector.shape_cast %1370 : vector<1x32x3xf32> to vector<32x3xf32>
    %c1_i32_504 = arith.constant 1 : i32
    %1372 = tpu.dynamic_rotate %1369 by %c1_i32_504 dim 1 : vector<32x128xf32>, i32 -> vector<32x128xf32>
    %cst_505 = arith.constant 0.000000e+00 : f32
    %1373 = vector.shape_cast %23 : vector<1x128xi1> to vector<1x128xi1>
    %1374 = vector.broadcast %1373 : vector<1x128xi1> to vector<32x128xi1>
    %1375 = vector.broadcast %cst_505 : f32 to vector<32x128xf32>
    %1376 = arith.select %1374, %1372, %1375 : vector<32x128xi1>, vector<32x128xf32>
    %c127_i32_506 = arith.constant 127 : i32
    %1377 = tpu.dynamic_rotate %1369 by %c127_i32_506 dim 1 : vector<32x128xf32>, i32 -> vector<32x128xf32>
    %cst_507 = arith.constant 0.000000e+00 : f32
    %1378 = vector.shape_cast %25 : vector<1x128xi1> to vector<1x128xi1>
    %1379 = vector.broadcast %1378 : vector<1x128xi1> to vector<32x128xi1>
    %1380 = vector.broadcast %cst_507 : f32 to vector<32x128xf32>
    %1381 = arith.select %1379, %1377, %1380 : vector<32x128xi1>, vector<32x128xf32>
    %1382 = vector.extract_strided_slice %1371 {offsets = [0, 0], sizes = [32, 1], strides = [1, 1]} : vector<32x3xf32> to vector<32x1xf32>
    %1383 = vector.broadcast %1382 : vector<32x1xf32> to vector<32x128xf32>
    %1384 = arith.mulf %1383, %1376 : vector<32x128xf32>
    %1385 = vector.extract_strided_slice %1371 {offsets = [0, 1], sizes = [32, 1], strides = [1, 1]} : vector<32x3xf32> to vector<32x1xf32>
    %1386 = vector.broadcast %1385 : vector<32x1xf32> to vector<32x128xf32>
    %1387 = arith.mulf %1386, %1369 : vector<32x128xf32>
    %1388 = arith.addf %1384, %1387 : vector<32x128xf32>
    %1389 = vector.extract_strided_slice %1371 {offsets = [0, 2], sizes = [32, 1], strides = [1, 1]} : vector<32x3xf32> to vector<32x1xf32>
    %1390 = vector.broadcast %1389 : vector<32x1xf32> to vector<32x128xf32>
    %1391 = arith.mulf %1390, %1381 : vector<32x128xf32>
    %1392 = arith.addf %1388, %1391 : vector<32x128xf32>
    %c6_508 = arith.constant 6 : index
    %c0_509 = arith.constant 0 : index
    %c0_510 = arith.constant 0 : index
    %1393 = vector.load %arg9[%c6_508, %c0_509, %c0_510] : memref<9x32x1xf32, #tpu.memory_space<vmem>>, vector<1x32x1xf32>
    %1394 = vector.shape_cast %1393 : vector<1x32x1xf32> to vector<32x1xf32>
    %1395 = vector.broadcast %1394 : vector<32x1xf32> to vector<32x128xf32>
    %1396 = arith.addf %1392, %1395 : vector<32x128xf32>
    %cst_511 = arith.constant 0.000000e+00 : f32
    %1397 = vector.broadcast %cst_511 : f32 to vector<32x128xf32>
    %1398 = arith.cmpf oge, %1396, %1397 : vector<32x128xf32>
    %1399 = vector.broadcast %1282 : f32 to vector<32x128xf32>
    %1400 = arith.mulf %1399, %1396 : vector<32x128xf32>
    %1401 = arith.select %1398, %1396, %1400 : vector<32x128xi1>, vector<32x128xf32>
    %c6_512 = arith.constant 6 : index
    %c0_513 = arith.constant 0 : index
    %c0_514 = arith.constant 0 : index
    %1402 = vector.load %arg10[%c6_512, %c0_513, %c0_514] : memref<9x32x1xf32, #tpu.memory_space<vmem>>, vector<1x32x1xf32>
    %1403 = vector.shape_cast %1402 : vector<1x32x1xf32> to vector<32x1xf32>
    %c6_515 = arith.constant 6 : index
    %c0_516 = arith.constant 0 : index
    %c0_517 = arith.constant 0 : index
    %1404 = vector.load %arg11[%c6_515, %c0_516, %c0_517] : memref<9x32x1xf32, #tpu.memory_space<vmem>>, vector<1x32x1xf32>
    %1405 = vector.shape_cast %1404 : vector<1x32x1xf32> to vector<32x1xf32>
    %cst_518 = arith.constant dense<0.000000e+00> : vector<128xf32>
    %1406 = vector.multi_reduction <add>, %1401, %cst_518 [0] : vector<32x128xf32> to vector<128xf32>
    %1407 = vector.shape_cast %1406 : vector<128xf32> to vector<1x128xf32>
    %1408 = arith.mulf %1401, %1401 : vector<32x128xf32>
    %cst_519 = arith.constant dense<0.000000e+00> : vector<128xf32>
    %1409 = vector.multi_reduction <add>, %1408, %cst_519 [0] : vector<32x128xf32> to vector<128xf32>
    %1410 = vector.shape_cast %1409 : vector<128xf32> to vector<1x128xf32>
    %1411 = tpu.concatenate %1407, %1410 in 0 : vector<1x128xf32>, vector<1x128xf32> -> vector<2x128xf32>
    %c1_i32_520 = arith.constant 1 : i32
    %1412 = tpu.dynamic_rotate %1411 by %c1_i32_520 dim 1 : vector<2x128xf32>, i32 -> vector<2x128xf32>
    %cst_521 = arith.constant 0.000000e+00 : f32
    %1413 = vector.shape_cast %9 : vector<1x128xi1> to vector<1x128xi1>
    %1414 = vector.broadcast %1413 : vector<1x128xi1> to vector<2x128xi1>
    %1415 = vector.broadcast %cst_521 : f32 to vector<2x128xf32>
    %1416 = arith.select %1414, %1412, %1415 : vector<2x128xi1>, vector<2x128xf32>
    %1417 = arith.addf %1411, %1416 : vector<2x128xf32>
    %c2_i32_522 = arith.constant 2 : i32
    %1418 = tpu.dynamic_rotate %1417 by %c2_i32_522 dim 1 : vector<2x128xf32>, i32 -> vector<2x128xf32>
    %cst_523 = arith.constant 0.000000e+00 : f32
    %1419 = vector.shape_cast %11 : vector<1x128xi1> to vector<1x128xi1>
    %1420 = vector.broadcast %1419 : vector<1x128xi1> to vector<2x128xi1>
    %1421 = vector.broadcast %cst_523 : f32 to vector<2x128xf32>
    %1422 = arith.select %1420, %1418, %1421 : vector<2x128xi1>, vector<2x128xf32>
    %1423 = arith.addf %1417, %1422 : vector<2x128xf32>
    %c4_i32_524 = arith.constant 4 : i32
    %1424 = tpu.dynamic_rotate %1423 by %c4_i32_524 dim 1 : vector<2x128xf32>, i32 -> vector<2x128xf32>
    %cst_525 = arith.constant 0.000000e+00 : f32
    %1425 = vector.shape_cast %13 : vector<1x128xi1> to vector<1x128xi1>
    %1426 = vector.broadcast %1425 : vector<1x128xi1> to vector<2x128xi1>
    %1427 = vector.broadcast %cst_525 : f32 to vector<2x128xf32>
    %1428 = arith.select %1426, %1424, %1427 : vector<2x128xi1>, vector<2x128xf32>
    %1429 = arith.addf %1423, %1428 : vector<2x128xf32>
    %c8_i32_526 = arith.constant 8 : i32
    %1430 = tpu.dynamic_rotate %1429 by %c8_i32_526 dim 1 : vector<2x128xf32>, i32 -> vector<2x128xf32>
    %cst_527 = arith.constant 0.000000e+00 : f32
    %1431 = vector.shape_cast %15 : vector<1x128xi1> to vector<1x128xi1>
    %1432 = vector.broadcast %1431 : vector<1x128xi1> to vector<2x128xi1>
    %1433 = vector.broadcast %cst_527 : f32 to vector<2x128xf32>
    %1434 = arith.select %1432, %1430, %1433 : vector<2x128xi1>, vector<2x128xf32>
    %1435 = arith.addf %1429, %1434 : vector<2x128xf32>
    %c16_i32_528 = arith.constant 16 : i32
    %1436 = tpu.dynamic_rotate %1435 by %c16_i32_528 dim 1 : vector<2x128xf32>, i32 -> vector<2x128xf32>
    %cst_529 = arith.constant 0.000000e+00 : f32
    %1437 = vector.shape_cast %17 : vector<1x128xi1> to vector<1x128xi1>
    %1438 = vector.broadcast %1437 : vector<1x128xi1> to vector<2x128xi1>
    %1439 = vector.broadcast %cst_529 : f32 to vector<2x128xf32>
    %1440 = arith.select %1438, %1436, %1439 : vector<2x128xi1>, vector<2x128xf32>
    %1441 = arith.addf %1435, %1440 : vector<2x128xf32>
    %c32_i32_530 = arith.constant 32 : i32
    %1442 = tpu.dynamic_rotate %1441 by %c32_i32_530 dim 1 : vector<2x128xf32>, i32 -> vector<2x128xf32>
    %cst_531 = arith.constant 0.000000e+00 : f32
    %1443 = vector.shape_cast %19 : vector<1x128xi1> to vector<1x128xi1>
    %1444 = vector.broadcast %1443 : vector<1x128xi1> to vector<2x128xi1>
    %1445 = vector.broadcast %cst_531 : f32 to vector<2x128xf32>
    %1446 = arith.select %1444, %1442, %1445 : vector<2x128xi1>, vector<2x128xf32>
    %1447 = arith.addf %1441, %1446 : vector<2x128xf32>
    %c64_i32_532 = arith.constant 64 : i32
    %1448 = tpu.dynamic_rotate %1447 by %c64_i32_532 dim 1 : vector<2x128xf32>, i32 -> vector<2x128xf32>
    %cst_533 = arith.constant 0.000000e+00 : f32
    %1449 = vector.shape_cast %21 : vector<1x128xi1> to vector<1x128xi1>
    %1450 = vector.broadcast %1449 : vector<1x128xi1> to vector<2x128xi1>
    %1451 = vector.broadcast %cst_533 : f32 to vector<2x128xf32>
    %1452 = arith.select %1450, %1448, %1451 : vector<2x128xi1>, vector<2x128xf32>
    %1453 = arith.addf %1447, %1452 : vector<2x128xf32>
    %1454 = vector.extract_strided_slice %1453 {offsets = [0, 0], sizes = [1, 128], strides = [1, 1]} : vector<2x128xf32> to vector<1x128xf32>
    %1455 = vector.extract_strided_slice %1453 {offsets = [1, 0], sizes = [1, 128], strides = [1, 1]} : vector<2x128xf32> to vector<1x128xf32>
    %1456 = arith.mulf %1454, %7 : vector<1x128xf32>
    %cst_534 = arith.constant 2.000000e+00 : f32
    %1457 = vector.broadcast %cst_534 : f32 to vector<1x128xf32>
    %1458 = arith.mulf %1457, %1456 : vector<1x128xf32>
    %1459 = arith.mulf %1458, %1454 : vector<1x128xf32>
    %1460 = arith.subf %1455, %1459 : vector<1x128xf32>
    %1461 = arith.mulf %1460, %7 : vector<1x128xf32>
    %1462 = arith.mulf %1456, %1456 : vector<1x128xf32>
    %1463 = arith.addf %1461, %1462 : vector<1x128xf32>
    %cst_535 = arith.constant 0.000000e+00 : f32
    %1464 = vector.broadcast %cst_535 : f32 to vector<1x128xf32>
    %1465 = arith.maximumf %1463, %1464 : vector<1x128xf32>
    %cst_536 = arith.constant 9.99999993E-9 : f32
    %1466 = vector.broadcast %cst_536 : f32 to vector<1x128xf32>
    %1467 = arith.addf %1465, %1466 : vector<1x128xf32>
    %1468 = math.rsqrt %1467 : vector<1x128xf32>
    %1469 = vector.broadcast %1456 : vector<1x128xf32> to vector<32x128xf32>
    %1470 = arith.subf %1401, %1469 : vector<32x128xf32>
    %1471 = vector.broadcast %1468 : vector<1x128xf32> to vector<32x128xf32>
    %1472 = arith.mulf %1470, %1471 : vector<32x128xf32>
    %1473 = vector.broadcast %1403 : vector<32x1xf32> to vector<32x128xf32>
    %1474 = arith.mulf %1472, %1473 : vector<32x128xf32>
    %1475 = vector.broadcast %1405 : vector<32x1xf32> to vector<32x128xf32>
    %1476 = arith.addf %1474, %1475 : vector<32x128xf32>
    %c6_537 = arith.constant 6 : index
    %c0_538 = arith.constant 0 : index
    %c0_539 = arith.constant 0 : index
    %1477 = vector.load %arg12[%c6_537, %c0_538, %c0_539] : memref<9x32x32xf32, #tpu.memory_space<vmem>>, vector<1x32x32xf32>
    %1478 = vector.shape_cast %1477 : vector<1x32x32xf32> to vector<32x32xf32>
    %cst_540 = arith.constant dense<0.000000e+00> : vector<32x128xf32>
    %1479 = tpu.matmul %1478, %1476, %cst_540 {dimension_numbers = #tpu.dot_dimension_numbers<[1], [0], [0], [1], [0, 0, 1, 1], [], []>} : vector<32x32xf32>, vector<32x128xf32>, vector<32x128xf32> -> vector<32x128xf32>
    %c6_541 = arith.constant 6 : index
    %c0_542 = arith.constant 0 : index
    %c0_543 = arith.constant 0 : index
    %1480 = vector.load %arg13[%c6_541, %c0_542, %c0_543] : memref<9x32x1xf32, #tpu.memory_space<vmem>>, vector<1x32x1xf32>
    %1481 = vector.shape_cast %1480 : vector<1x32x1xf32> to vector<32x1xf32>
    %1482 = vector.broadcast %1481 : vector<32x1xf32> to vector<32x128xf32>
    %1483 = arith.addf %1479, %1482 : vector<32x128xf32>
    %1484 = vector.extract_strided_slice %1483 {offsets = [0, 0], sizes = [16, 128], strides = [1, 1]} : vector<32x128xf32> to vector<16x128xf32>
    %1485 = arith.addf %1278, %1484 : vector<16x128xf32>
    %1486 = vector.extract_strided_slice %1483 {offsets = [16, 0], sizes = [16, 128], strides = [1, 1]} : vector<32x128xf32> to vector<16x128xf32>
    %1487 = arith.addf %1280, %1486 : vector<16x128xf32>
    %c14 = arith.constant 14 : index
    %1488 = memref.load %arg3[%c14] : memref<18xf32, #tpu.memory_space<smem>>
    %c15 = arith.constant 15 : index
    %1489 = memref.load %arg3[%c15] : memref<18xf32, #tpu.memory_space<smem>>
    %c7_544 = arith.constant 7 : index
    %c0_545 = arith.constant 0 : index
    %c0_546 = arith.constant 0 : index
    %1490 = vector.load %arg4[%c7_544, %c0_545, %c0_546] : memref<9x32x16xf32, #tpu.memory_space<vmem>>, vector<1x32x16xf32>
    %1491 = vector.shape_cast %1490 : vector<1x32x16xf32> to vector<32x16xf32>
    %cst_547 = arith.constant dense<0.000000e+00> : vector<32x128xf32>
    %1492 = tpu.matmul %1491, %1485, %cst_547 {dimension_numbers = #tpu.dot_dimension_numbers<[1], [0], [0], [1], [0, 0, 1, 1], [], []>} : vector<32x16xf32>, vector<16x128xf32>, vector<32x128xf32> -> vector<32x128xf32>
    %c7_548 = arith.constant 7 : index
    %c0_549 = arith.constant 0 : index
    %c0_550 = arith.constant 0 : index
    %1493 = vector.load %arg5[%c7_548, %c0_549, %c0_550] : memref<9x32x1xf32, #tpu.memory_space<vmem>>, vector<1x32x1xf32>
    %1494 = vector.shape_cast %1493 : vector<1x32x1xf32> to vector<32x1xf32>
    %1495 = vector.broadcast %1494 : vector<32x1xf32> to vector<32x128xf32>
    %1496 = arith.addf %1492, %1495 : vector<32x128xf32>
    %cst_551 = arith.constant 0.000000e+00 : f32
    %1497 = vector.broadcast %cst_551 : f32 to vector<32x128xf32>
    %1498 = arith.cmpf oge, %1496, %1497 : vector<32x128xf32>
    %1499 = vector.broadcast %1488 : f32 to vector<32x128xf32>
    %1500 = arith.mulf %1499, %1496 : vector<32x128xf32>
    %1501 = arith.select %1498, %1496, %1500 : vector<32x128xi1>, vector<32x128xf32>
    %c7_552 = arith.constant 7 : index
    %c0_553 = arith.constant 0 : index
    %c0_554 = arith.constant 0 : index
    %1502 = vector.load %arg6[%c7_552, %c0_553, %c0_554] : memref<9x32x1xf32, #tpu.memory_space<vmem>>, vector<1x32x1xf32>
    %1503 = vector.shape_cast %1502 : vector<1x32x1xf32> to vector<32x1xf32>
    %c7_555 = arith.constant 7 : index
    %c0_556 = arith.constant 0 : index
    %c0_557 = arith.constant 0 : index
    %1504 = vector.load %arg7[%c7_555, %c0_556, %c0_557] : memref<9x32x1xf32, #tpu.memory_space<vmem>>, vector<1x32x1xf32>
    %1505 = vector.shape_cast %1504 : vector<1x32x1xf32> to vector<32x1xf32>
    %cst_558 = arith.constant dense<0.000000e+00> : vector<128xf32>
    %1506 = vector.multi_reduction <add>, %1501, %cst_558 [0] : vector<32x128xf32> to vector<128xf32>
    %1507 = vector.shape_cast %1506 : vector<128xf32> to vector<1x128xf32>
    %1508 = arith.mulf %1501, %1501 : vector<32x128xf32>
    %cst_559 = arith.constant dense<0.000000e+00> : vector<128xf32>
    %1509 = vector.multi_reduction <add>, %1508, %cst_559 [0] : vector<32x128xf32> to vector<128xf32>
    %1510 = vector.shape_cast %1509 : vector<128xf32> to vector<1x128xf32>
    %1511 = tpu.concatenate %1507, %1510 in 0 : vector<1x128xf32>, vector<1x128xf32> -> vector<2x128xf32>
    %c1_i32_560 = arith.constant 1 : i32
    %1512 = tpu.dynamic_rotate %1511 by %c1_i32_560 dim 1 : vector<2x128xf32>, i32 -> vector<2x128xf32>
    %cst_561 = arith.constant 0.000000e+00 : f32
    %1513 = vector.shape_cast %9 : vector<1x128xi1> to vector<1x128xi1>
    %1514 = vector.broadcast %1513 : vector<1x128xi1> to vector<2x128xi1>
    %1515 = vector.broadcast %cst_561 : f32 to vector<2x128xf32>
    %1516 = arith.select %1514, %1512, %1515 : vector<2x128xi1>, vector<2x128xf32>
    %1517 = arith.addf %1511, %1516 : vector<2x128xf32>
    %c2_i32_562 = arith.constant 2 : i32
    %1518 = tpu.dynamic_rotate %1517 by %c2_i32_562 dim 1 : vector<2x128xf32>, i32 -> vector<2x128xf32>
    %cst_563 = arith.constant 0.000000e+00 : f32
    %1519 = vector.shape_cast %11 : vector<1x128xi1> to vector<1x128xi1>
    %1520 = vector.broadcast %1519 : vector<1x128xi1> to vector<2x128xi1>
    %1521 = vector.broadcast %cst_563 : f32 to vector<2x128xf32>
    %1522 = arith.select %1520, %1518, %1521 : vector<2x128xi1>, vector<2x128xf32>
    %1523 = arith.addf %1517, %1522 : vector<2x128xf32>
    %c4_i32_564 = arith.constant 4 : i32
    %1524 = tpu.dynamic_rotate %1523 by %c4_i32_564 dim 1 : vector<2x128xf32>, i32 -> vector<2x128xf32>
    %cst_565 = arith.constant 0.000000e+00 : f32
    %1525 = vector.shape_cast %13 : vector<1x128xi1> to vector<1x128xi1>
    %1526 = vector.broadcast %1525 : vector<1x128xi1> to vector<2x128xi1>
    %1527 = vector.broadcast %cst_565 : f32 to vector<2x128xf32>
    %1528 = arith.select %1526, %1524, %1527 : vector<2x128xi1>, vector<2x128xf32>
    %1529 = arith.addf %1523, %1528 : vector<2x128xf32>
    %c8_i32_566 = arith.constant 8 : i32
    %1530 = tpu.dynamic_rotate %1529 by %c8_i32_566 dim 1 : vector<2x128xf32>, i32 -> vector<2x128xf32>
    %cst_567 = arith.constant 0.000000e+00 : f32
    %1531 = vector.shape_cast %15 : vector<1x128xi1> to vector<1x128xi1>
    %1532 = vector.broadcast %1531 : vector<1x128xi1> to vector<2x128xi1>
    %1533 = vector.broadcast %cst_567 : f32 to vector<2x128xf32>
    %1534 = arith.select %1532, %1530, %1533 : vector<2x128xi1>, vector<2x128xf32>
    %1535 = arith.addf %1529, %1534 : vector<2x128xf32>
    %c16_i32_568 = arith.constant 16 : i32
    %1536 = tpu.dynamic_rotate %1535 by %c16_i32_568 dim 1 : vector<2x128xf32>, i32 -> vector<2x128xf32>
    %cst_569 = arith.constant 0.000000e+00 : f32
    %1537 = vector.shape_cast %17 : vector<1x128xi1> to vector<1x128xi1>
    %1538 = vector.broadcast %1537 : vector<1x128xi1> to vector<2x128xi1>
    %1539 = vector.broadcast %cst_569 : f32 to vector<2x128xf32>
    %1540 = arith.select %1538, %1536, %1539 : vector<2x128xi1>, vector<2x128xf32>
    %1541 = arith.addf %1535, %1540 : vector<2x128xf32>
    %c32_i32_570 = arith.constant 32 : i32
    %1542 = tpu.dynamic_rotate %1541 by %c32_i32_570 dim 1 : vector<2x128xf32>, i32 -> vector<2x128xf32>
    %cst_571 = arith.constant 0.000000e+00 : f32
    %1543 = vector.shape_cast %19 : vector<1x128xi1> to vector<1x128xi1>
    %1544 = vector.broadcast %1543 : vector<1x128xi1> to vector<2x128xi1>
    %1545 = vector.broadcast %cst_571 : f32 to vector<2x128xf32>
    %1546 = arith.select %1544, %1542, %1545 : vector<2x128xi1>, vector<2x128xf32>
    %1547 = arith.addf %1541, %1546 : vector<2x128xf32>
    %c64_i32_572 = arith.constant 64 : i32
    %1548 = tpu.dynamic_rotate %1547 by %c64_i32_572 dim 1 : vector<2x128xf32>, i32 -> vector<2x128xf32>
    %cst_573 = arith.constant 0.000000e+00 : f32
    %1549 = vector.shape_cast %21 : vector<1x128xi1> to vector<1x128xi1>
    %1550 = vector.broadcast %1549 : vector<1x128xi1> to vector<2x128xi1>
    %1551 = vector.broadcast %cst_573 : f32 to vector<2x128xf32>
    %1552 = arith.select %1550, %1548, %1551 : vector<2x128xi1>, vector<2x128xf32>
    %1553 = arith.addf %1547, %1552 : vector<2x128xf32>
    %1554 = vector.extract_strided_slice %1553 {offsets = [0, 0], sizes = [1, 128], strides = [1, 1]} : vector<2x128xf32> to vector<1x128xf32>
    %1555 = vector.extract_strided_slice %1553 {offsets = [1, 0], sizes = [1, 128], strides = [1, 1]} : vector<2x128xf32> to vector<1x128xf32>
    %1556 = arith.mulf %1554, %7 : vector<1x128xf32>
    %cst_574 = arith.constant 2.000000e+00 : f32
    %1557 = vector.broadcast %cst_574 : f32 to vector<1x128xf32>
    %1558 = arith.mulf %1557, %1556 : vector<1x128xf32>
    %1559 = arith.mulf %1558, %1554 : vector<1x128xf32>
    %1560 = arith.subf %1555, %1559 : vector<1x128xf32>
    %1561 = arith.mulf %1560, %7 : vector<1x128xf32>
    %1562 = arith.mulf %1556, %1556 : vector<1x128xf32>
    %1563 = arith.addf %1561, %1562 : vector<1x128xf32>
    %cst_575 = arith.constant 0.000000e+00 : f32
    %1564 = vector.broadcast %cst_575 : f32 to vector<1x128xf32>
    %1565 = arith.maximumf %1563, %1564 : vector<1x128xf32>
    %cst_576 = arith.constant 9.99999993E-9 : f32
    %1566 = vector.broadcast %cst_576 : f32 to vector<1x128xf32>
    %1567 = arith.addf %1565, %1566 : vector<1x128xf32>
    %1568 = math.rsqrt %1567 : vector<1x128xf32>
    %1569 = vector.broadcast %1556 : vector<1x128xf32> to vector<32x128xf32>
    %1570 = arith.subf %1501, %1569 : vector<32x128xf32>
    %1571 = vector.broadcast %1568 : vector<1x128xf32> to vector<32x128xf32>
    %1572 = arith.mulf %1570, %1571 : vector<32x128xf32>
    %1573 = vector.broadcast %1503 : vector<32x1xf32> to vector<32x128xf32>
    %1574 = arith.mulf %1572, %1573 : vector<32x128xf32>
    %1575 = vector.broadcast %1505 : vector<32x1xf32> to vector<32x128xf32>
    %1576 = arith.addf %1574, %1575 : vector<32x128xf32>
    %c7_577 = arith.constant 7 : index
    %c0_578 = arith.constant 0 : index
    %c0_579 = arith.constant 0 : index
    %1577 = vector.load %arg8[%c7_577, %c0_578, %c0_579] : memref<9x32x3xf32, #tpu.memory_space<vmem>>, vector<1x32x3xf32>
    %1578 = vector.shape_cast %1577 : vector<1x32x3xf32> to vector<32x3xf32>
    %c2_i32_580 = arith.constant 2 : i32
    %1579 = tpu.dynamic_rotate %1576 by %c2_i32_580 dim 1 : vector<32x128xf32>, i32 -> vector<32x128xf32>
    %cst_581 = arith.constant 0.000000e+00 : f32
    %1580 = vector.shape_cast %27 : vector<1x128xi1> to vector<1x128xi1>
    %1581 = vector.broadcast %1580 : vector<1x128xi1> to vector<32x128xi1>
    %1582 = vector.broadcast %cst_581 : f32 to vector<32x128xf32>
    %1583 = arith.select %1581, %1579, %1582 : vector<32x128xi1>, vector<32x128xf32>
    %c126_i32_582 = arith.constant 126 : i32
    %1584 = tpu.dynamic_rotate %1576 by %c126_i32_582 dim 1 : vector<32x128xf32>, i32 -> vector<32x128xf32>
    %cst_583 = arith.constant 0.000000e+00 : f32
    %1585 = vector.shape_cast %29 : vector<1x128xi1> to vector<1x128xi1>
    %1586 = vector.broadcast %1585 : vector<1x128xi1> to vector<32x128xi1>
    %1587 = vector.broadcast %cst_583 : f32 to vector<32x128xf32>
    %1588 = arith.select %1586, %1584, %1587 : vector<32x128xi1>, vector<32x128xf32>
    %1589 = vector.extract_strided_slice %1578 {offsets = [0, 0], sizes = [32, 1], strides = [1, 1]} : vector<32x3xf32> to vector<32x1xf32>
    %1590 = vector.broadcast %1589 : vector<32x1xf32> to vector<32x128xf32>
    %1591 = arith.mulf %1590, %1583 : vector<32x128xf32>
    %1592 = vector.extract_strided_slice %1578 {offsets = [0, 1], sizes = [32, 1], strides = [1, 1]} : vector<32x3xf32> to vector<32x1xf32>
    %1593 = vector.broadcast %1592 : vector<32x1xf32> to vector<32x128xf32>
    %1594 = arith.mulf %1593, %1576 : vector<32x128xf32>
    %1595 = arith.addf %1591, %1594 : vector<32x128xf32>
    %1596 = vector.extract_strided_slice %1578 {offsets = [0, 2], sizes = [32, 1], strides = [1, 1]} : vector<32x3xf32> to vector<32x1xf32>
    %1597 = vector.broadcast %1596 : vector<32x1xf32> to vector<32x128xf32>
    %1598 = arith.mulf %1597, %1588 : vector<32x128xf32>
    %1599 = arith.addf %1595, %1598 : vector<32x128xf32>
    %c7_584 = arith.constant 7 : index
    %c0_585 = arith.constant 0 : index
    %c0_586 = arith.constant 0 : index
    %1600 = vector.load %arg9[%c7_584, %c0_585, %c0_586] : memref<9x32x1xf32, #tpu.memory_space<vmem>>, vector<1x32x1xf32>
    %1601 = vector.shape_cast %1600 : vector<1x32x1xf32> to vector<32x1xf32>
    %1602 = vector.broadcast %1601 : vector<32x1xf32> to vector<32x128xf32>
    %1603 = arith.addf %1599, %1602 : vector<32x128xf32>
    %cst_587 = arith.constant 0.000000e+00 : f32
    %1604 = vector.broadcast %cst_587 : f32 to vector<32x128xf32>
    %1605 = arith.cmpf oge, %1603, %1604 : vector<32x128xf32>
    %1606 = vector.broadcast %1489 : f32 to vector<32x128xf32>
    %1607 = arith.mulf %1606, %1603 : vector<32x128xf32>
    %1608 = arith.select %1605, %1603, %1607 : vector<32x128xi1>, vector<32x128xf32>
    %c7_588 = arith.constant 7 : index
    %c0_589 = arith.constant 0 : index
    %c0_590 = arith.constant 0 : index
    %1609 = vector.load %arg10[%c7_588, %c0_589, %c0_590] : memref<9x32x1xf32, #tpu.memory_space<vmem>>, vector<1x32x1xf32>
    %1610 = vector.shape_cast %1609 : vector<1x32x1xf32> to vector<32x1xf32>
    %c7_591 = arith.constant 7 : index
    %c0_592 = arith.constant 0 : index
    %c0_593 = arith.constant 0 : index
    %1611 = vector.load %arg11[%c7_591, %c0_592, %c0_593] : memref<9x32x1xf32, #tpu.memory_space<vmem>>, vector<1x32x1xf32>
    %1612 = vector.shape_cast %1611 : vector<1x32x1xf32> to vector<32x1xf32>
    %cst_594 = arith.constant dense<0.000000e+00> : vector<128xf32>
    %1613 = vector.multi_reduction <add>, %1608, %cst_594 [0] : vector<32x128xf32> to vector<128xf32>
    %1614 = vector.shape_cast %1613 : vector<128xf32> to vector<1x128xf32>
    %1615 = arith.mulf %1608, %1608 : vector<32x128xf32>
    %cst_595 = arith.constant dense<0.000000e+00> : vector<128xf32>
    %1616 = vector.multi_reduction <add>, %1615, %cst_595 [0] : vector<32x128xf32> to vector<128xf32>
    %1617 = vector.shape_cast %1616 : vector<128xf32> to vector<1x128xf32>
    %1618 = tpu.concatenate %1614, %1617 in 0 : vector<1x128xf32>, vector<1x128xf32> -> vector<2x128xf32>
    %c1_i32_596 = arith.constant 1 : i32
    %1619 = tpu.dynamic_rotate %1618 by %c1_i32_596 dim 1 : vector<2x128xf32>, i32 -> vector<2x128xf32>
    %cst_597 = arith.constant 0.000000e+00 : f32
    %1620 = vector.shape_cast %9 : vector<1x128xi1> to vector<1x128xi1>
    %1621 = vector.broadcast %1620 : vector<1x128xi1> to vector<2x128xi1>
    %1622 = vector.broadcast %cst_597 : f32 to vector<2x128xf32>
    %1623 = arith.select %1621, %1619, %1622 : vector<2x128xi1>, vector<2x128xf32>
    %1624 = arith.addf %1618, %1623 : vector<2x128xf32>
    %c2_i32_598 = arith.constant 2 : i32
    %1625 = tpu.dynamic_rotate %1624 by %c2_i32_598 dim 1 : vector<2x128xf32>, i32 -> vector<2x128xf32>
    %cst_599 = arith.constant 0.000000e+00 : f32
    %1626 = vector.shape_cast %11 : vector<1x128xi1> to vector<1x128xi1>
    %1627 = vector.broadcast %1626 : vector<1x128xi1> to vector<2x128xi1>
    %1628 = vector.broadcast %cst_599 : f32 to vector<2x128xf32>
    %1629 = arith.select %1627, %1625, %1628 : vector<2x128xi1>, vector<2x128xf32>
    %1630 = arith.addf %1624, %1629 : vector<2x128xf32>
    %c4_i32_600 = arith.constant 4 : i32
    %1631 = tpu.dynamic_rotate %1630 by %c4_i32_600 dim 1 : vector<2x128xf32>, i32 -> vector<2x128xf32>
    %cst_601 = arith.constant 0.000000e+00 : f32
    %1632 = vector.shape_cast %13 : vector<1x128xi1> to vector<1x128xi1>
    %1633 = vector.broadcast %1632 : vector<1x128xi1> to vector<2x128xi1>
    %1634 = vector.broadcast %cst_601 : f32 to vector<2x128xf32>
    %1635 = arith.select %1633, %1631, %1634 : vector<2x128xi1>, vector<2x128xf32>
    %1636 = arith.addf %1630, %1635 : vector<2x128xf32>
    %c8_i32_602 = arith.constant 8 : i32
    %1637 = tpu.dynamic_rotate %1636 by %c8_i32_602 dim 1 : vector<2x128xf32>, i32 -> vector<2x128xf32>
    %cst_603 = arith.constant 0.000000e+00 : f32
    %1638 = vector.shape_cast %15 : vector<1x128xi1> to vector<1x128xi1>
    %1639 = vector.broadcast %1638 : vector<1x128xi1> to vector<2x128xi1>
    %1640 = vector.broadcast %cst_603 : f32 to vector<2x128xf32>
    %1641 = arith.select %1639, %1637, %1640 : vector<2x128xi1>, vector<2x128xf32>
    %1642 = arith.addf %1636, %1641 : vector<2x128xf32>
    %c16_i32_604 = arith.constant 16 : i32
    %1643 = tpu.dynamic_rotate %1642 by %c16_i32_604 dim 1 : vector<2x128xf32>, i32 -> vector<2x128xf32>
    %cst_605 = arith.constant 0.000000e+00 : f32
    %1644 = vector.shape_cast %17 : vector<1x128xi1> to vector<1x128xi1>
    %1645 = vector.broadcast %1644 : vector<1x128xi1> to vector<2x128xi1>
    %1646 = vector.broadcast %cst_605 : f32 to vector<2x128xf32>
    %1647 = arith.select %1645, %1643, %1646 : vector<2x128xi1>, vector<2x128xf32>
    %1648 = arith.addf %1642, %1647 : vector<2x128xf32>
    %c32_i32_606 = arith.constant 32 : i32
    %1649 = tpu.dynamic_rotate %1648 by %c32_i32_606 dim 1 : vector<2x128xf32>, i32 -> vector<2x128xf32>
    %cst_607 = arith.constant 0.000000e+00 : f32
    %1650 = vector.shape_cast %19 : vector<1x128xi1> to vector<1x128xi1>
    %1651 = vector.broadcast %1650 : vector<1x128xi1> to vector<2x128xi1>
    %1652 = vector.broadcast %cst_607 : f32 to vector<2x128xf32>
    %1653 = arith.select %1651, %1649, %1652 : vector<2x128xi1>, vector<2x128xf32>
    %1654 = arith.addf %1648, %1653 : vector<2x128xf32>
    %c64_i32_608 = arith.constant 64 : i32
    %1655 = tpu.dynamic_rotate %1654 by %c64_i32_608 dim 1 : vector<2x128xf32>, i32 -> vector<2x128xf32>
    %cst_609 = arith.constant 0.000000e+00 : f32
    %1656 = vector.shape_cast %21 : vector<1x128xi1> to vector<1x128xi1>
    %1657 = vector.broadcast %1656 : vector<1x128xi1> to vector<2x128xi1>
    %1658 = vector.broadcast %cst_609 : f32 to vector<2x128xf32>
    %1659 = arith.select %1657, %1655, %1658 : vector<2x128xi1>, vector<2x128xf32>
    %1660 = arith.addf %1654, %1659 : vector<2x128xf32>
    %1661 = vector.extract_strided_slice %1660 {offsets = [0, 0], sizes = [1, 128], strides = [1, 1]} : vector<2x128xf32> to vector<1x128xf32>
    %1662 = vector.extract_strided_slice %1660 {offsets = [1, 0], sizes = [1, 128], strides = [1, 1]} : vector<2x128xf32> to vector<1x128xf32>
    %1663 = arith.mulf %1661, %7 : vector<1x128xf32>
    %cst_610 = arith.constant 2.000000e+00 : f32
    %1664 = vector.broadcast %cst_610 : f32 to vector<1x128xf32>
    %1665 = arith.mulf %1664, %1663 : vector<1x128xf32>
    %1666 = arith.mulf %1665, %1661 : vector<1x128xf32>
    %1667 = arith.subf %1662, %1666 : vector<1x128xf32>
    %1668 = arith.mulf %1667, %7 : vector<1x128xf32>
    %1669 = arith.mulf %1663, %1663 : vector<1x128xf32>
    %1670 = arith.addf %1668, %1669 : vector<1x128xf32>
    %cst_611 = arith.constant 0.000000e+00 : f32
    %1671 = vector.broadcast %cst_611 : f32 to vector<1x128xf32>
    %1672 = arith.maximumf %1670, %1671 : vector<1x128xf32>
    %cst_612 = arith.constant 9.99999993E-9 : f32
    %1673 = vector.broadcast %cst_612 : f32 to vector<1x128xf32>
    %1674 = arith.addf %1672, %1673 : vector<1x128xf32>
    %1675 = math.rsqrt %1674 : vector<1x128xf32>
    %1676 = vector.broadcast %1663 : vector<1x128xf32> to vector<32x128xf32>
    %1677 = arith.subf %1608, %1676 : vector<32x128xf32>
    %1678 = vector.broadcast %1675 : vector<1x128xf32> to vector<32x128xf32>
    %1679 = arith.mulf %1677, %1678 : vector<32x128xf32>
    %1680 = vector.broadcast %1610 : vector<32x1xf32> to vector<32x128xf32>
    %1681 = arith.mulf %1679, %1680 : vector<32x128xf32>
    %1682 = vector.broadcast %1612 : vector<32x1xf32> to vector<32x128xf32>
    %1683 = arith.addf %1681, %1682 : vector<32x128xf32>
    %c7_613 = arith.constant 7 : index
    %c0_614 = arith.constant 0 : index
    %c0_615 = arith.constant 0 : index
    %1684 = vector.load %arg12[%c7_613, %c0_614, %c0_615] : memref<9x32x32xf32, #tpu.memory_space<vmem>>, vector<1x32x32xf32>
    %1685 = vector.shape_cast %1684 : vector<1x32x32xf32> to vector<32x32xf32>
    %cst_616 = arith.constant dense<0.000000e+00> : vector<32x128xf32>
    %1686 = tpu.matmul %1685, %1683, %cst_616 {dimension_numbers = #tpu.dot_dimension_numbers<[1], [0], [0], [1], [0, 0, 1, 1], [], []>} : vector<32x32xf32>, vector<32x128xf32>, vector<32x128xf32> -> vector<32x128xf32>
    %c7_617 = arith.constant 7 : index
    %c0_618 = arith.constant 0 : index
    %c0_619 = arith.constant 0 : index
    %1687 = vector.load %arg13[%c7_617, %c0_618, %c0_619] : memref<9x32x1xf32, #tpu.memory_space<vmem>>, vector<1x32x1xf32>
    %1688 = vector.shape_cast %1687 : vector<1x32x1xf32> to vector<32x1xf32>
    %1689 = vector.broadcast %1688 : vector<32x1xf32> to vector<32x128xf32>
    %1690 = arith.addf %1686, %1689 : vector<32x128xf32>
    %1691 = vector.extract_strided_slice %1690 {offsets = [0, 0], sizes = [16, 128], strides = [1, 1]} : vector<32x128xf32> to vector<16x128xf32>
    %1692 = arith.addf %1485, %1691 : vector<16x128xf32>
    %1693 = vector.extract_strided_slice %1690 {offsets = [16, 0], sizes = [16, 128], strides = [1, 1]} : vector<32x128xf32> to vector<16x128xf32>
    %1694 = arith.addf %1487, %1693 : vector<16x128xf32>
    %c0_620 = arith.constant 0 : index
    %c0_621 = arith.constant 0 : index
    %1695 = vector.load %arg14[%c0_620, %c0_621] : memref<16x16xf32, #tpu.memory_space<vmem>>, vector<16x16xf32>
    %cst_622 = arith.constant dense<0.000000e+00> : vector<16x128xf32>
    %1696 = tpu.matmul %1695, %1692, %cst_622 {dimension_numbers = #tpu.dot_dimension_numbers<[1], [0], [0], [1], [0, 0, 1, 1], [], []>} : vector<16x16xf32>, vector<16x128xf32>, vector<16x128xf32> -> vector<16x128xf32>
    %c0_623 = arith.constant 0 : index
    %c0_624 = arith.constant 0 : index
    %1697 = vector.load %arg15[%c0_623, %c0_624] : memref<16x8xf32, #tpu.memory_space<vmem>>, vector<16x8xf32>
    %cst_625 = arith.constant dense<0.000000e+00> : vector<16x128xf32>
    %1698 = tpu.matmul %1697, %37, %cst_625 {dimension_numbers = #tpu.dot_dimension_numbers<[1], [0], [0], [1], [0, 0, 1, 1], [], []>} : vector<16x8xf32>, vector<8x128xf32>, vector<16x128xf32> -> vector<16x128xf32>
    %1699 = arith.addf %1696, %1698 : vector<16x128xf32>
    %c0_626 = arith.constant 0 : index
    %c0_627 = arith.constant 0 : index
    %1700 = vector.load %arg16[%c0_626, %c0_627] : memref<16x1xf32, #tpu.memory_space<vmem>>, vector<16x1xf32>
    %1701 = vector.broadcast %1700 : vector<16x1xf32> to vector<16x128xf32>
    %1702 = arith.addf %1699, %1701 : vector<16x128xf32>
    %c16 = arith.constant 16 : index
    %1703 = memref.load %arg3[%c16] : memref<18xf32, #tpu.memory_space<smem>>
    %c17 = arith.constant 17 : index
    %1704 = memref.load %arg3[%c17] : memref<18xf32, #tpu.memory_space<smem>>
    %c8_628 = arith.constant 8 : index
    %c0_629 = arith.constant 0 : index
    %c0_630 = arith.constant 0 : index
    %1705 = vector.load %arg4[%c8_628, %c0_629, %c0_630] : memref<9x32x16xf32, #tpu.memory_space<vmem>>, vector<1x32x16xf32>
    %1706 = vector.shape_cast %1705 : vector<1x32x16xf32> to vector<32x16xf32>
    %cst_631 = arith.constant dense<0.000000e+00> : vector<32x128xf32>
    %1707 = tpu.matmul %1706, %1702, %cst_631 {dimension_numbers = #tpu.dot_dimension_numbers<[1], [0], [0], [1], [0, 0, 1, 1], [], []>} : vector<32x16xf32>, vector<16x128xf32>, vector<32x128xf32> -> vector<32x128xf32>
    %c8_632 = arith.constant 8 : index
    %c0_633 = arith.constant 0 : index
    %c0_634 = arith.constant 0 : index
    %1708 = vector.load %arg5[%c8_632, %c0_633, %c0_634] : memref<9x32x1xf32, #tpu.memory_space<vmem>>, vector<1x32x1xf32>
    %1709 = vector.shape_cast %1708 : vector<1x32x1xf32> to vector<32x1xf32>
    %1710 = vector.broadcast %1709 : vector<32x1xf32> to vector<32x128xf32>
    %1711 = arith.addf %1707, %1710 : vector<32x128xf32>
    %cst_635 = arith.constant 0.000000e+00 : f32
    %1712 = vector.broadcast %cst_635 : f32 to vector<32x128xf32>
    %1713 = arith.cmpf oge, %1711, %1712 : vector<32x128xf32>
    %1714 = vector.broadcast %1703 : f32 to vector<32x128xf32>
    %1715 = arith.mulf %1714, %1711 : vector<32x128xf32>
    %1716 = arith.select %1713, %1711, %1715 : vector<32x128xi1>, vector<32x128xf32>
    %c8_636 = arith.constant 8 : index
    %c0_637 = arith.constant 0 : index
    %c0_638 = arith.constant 0 : index
    %1717 = vector.load %arg6[%c8_636, %c0_637, %c0_638] : memref<9x32x1xf32, #tpu.memory_space<vmem>>, vector<1x32x1xf32>
    %1718 = vector.shape_cast %1717 : vector<1x32x1xf32> to vector<32x1xf32>
    %c8_639 = arith.constant 8 : index
    %c0_640 = arith.constant 0 : index
    %c0_641 = arith.constant 0 : index
    %1719 = vector.load %arg7[%c8_639, %c0_640, %c0_641] : memref<9x32x1xf32, #tpu.memory_space<vmem>>, vector<1x32x1xf32>
    %1720 = vector.shape_cast %1719 : vector<1x32x1xf32> to vector<32x1xf32>
    %cst_642 = arith.constant dense<0.000000e+00> : vector<128xf32>
    %1721 = vector.multi_reduction <add>, %1716, %cst_642 [0] : vector<32x128xf32> to vector<128xf32>
    %1722 = vector.shape_cast %1721 : vector<128xf32> to vector<1x128xf32>
    %1723 = arith.mulf %1716, %1716 : vector<32x128xf32>
    %cst_643 = arith.constant dense<0.000000e+00> : vector<128xf32>
    %1724 = vector.multi_reduction <add>, %1723, %cst_643 [0] : vector<32x128xf32> to vector<128xf32>
    %1725 = vector.shape_cast %1724 : vector<128xf32> to vector<1x128xf32>
    %1726 = tpu.concatenate %1722, %1725 in 0 : vector<1x128xf32>, vector<1x128xf32> -> vector<2x128xf32>
    %c1_i32_644 = arith.constant 1 : i32
    %1727 = tpu.dynamic_rotate %1726 by %c1_i32_644 dim 1 : vector<2x128xf32>, i32 -> vector<2x128xf32>
    %cst_645 = arith.constant 0.000000e+00 : f32
    %1728 = vector.shape_cast %9 : vector<1x128xi1> to vector<1x128xi1>
    %1729 = vector.broadcast %1728 : vector<1x128xi1> to vector<2x128xi1>
    %1730 = vector.broadcast %cst_645 : f32 to vector<2x128xf32>
    %1731 = arith.select %1729, %1727, %1730 : vector<2x128xi1>, vector<2x128xf32>
    %1732 = arith.addf %1726, %1731 : vector<2x128xf32>
    %c2_i32_646 = arith.constant 2 : i32
    %1733 = tpu.dynamic_rotate %1732 by %c2_i32_646 dim 1 : vector<2x128xf32>, i32 -> vector<2x128xf32>
    %cst_647 = arith.constant 0.000000e+00 : f32
    %1734 = vector.shape_cast %11 : vector<1x128xi1> to vector<1x128xi1>
    %1735 = vector.broadcast %1734 : vector<1x128xi1> to vector<2x128xi1>
    %1736 = vector.broadcast %cst_647 : f32 to vector<2x128xf32>
    %1737 = arith.select %1735, %1733, %1736 : vector<2x128xi1>, vector<2x128xf32>
    %1738 = arith.addf %1732, %1737 : vector<2x128xf32>
    %c4_i32_648 = arith.constant 4 : i32
    %1739 = tpu.dynamic_rotate %1738 by %c4_i32_648 dim 1 : vector<2x128xf32>, i32 -> vector<2x128xf32>
    %cst_649 = arith.constant 0.000000e+00 : f32
    %1740 = vector.shape_cast %13 : vector<1x128xi1> to vector<1x128xi1>
    %1741 = vector.broadcast %1740 : vector<1x128xi1> to vector<2x128xi1>
    %1742 = vector.broadcast %cst_649 : f32 to vector<2x128xf32>
    %1743 = arith.select %1741, %1739, %1742 : vector<2x128xi1>, vector<2x128xf32>
    %1744 = arith.addf %1738, %1743 : vector<2x128xf32>
    %c8_i32_650 = arith.constant 8 : i32
    %1745 = tpu.dynamic_rotate %1744 by %c8_i32_650 dim 1 : vector<2x128xf32>, i32 -> vector<2x128xf32>
    %cst_651 = arith.constant 0.000000e+00 : f32
    %1746 = vector.shape_cast %15 : vector<1x128xi1> to vector<1x128xi1>
    %1747 = vector.broadcast %1746 : vector<1x128xi1> to vector<2x128xi1>
    %1748 = vector.broadcast %cst_651 : f32 to vector<2x128xf32>
    %1749 = arith.select %1747, %1745, %1748 : vector<2x128xi1>, vector<2x128xf32>
    %1750 = arith.addf %1744, %1749 : vector<2x128xf32>
    %c16_i32_652 = arith.constant 16 : i32
    %1751 = tpu.dynamic_rotate %1750 by %c16_i32_652 dim 1 : vector<2x128xf32>, i32 -> vector<2x128xf32>
    %cst_653 = arith.constant 0.000000e+00 : f32
    %1752 = vector.shape_cast %17 : vector<1x128xi1> to vector<1x128xi1>
    %1753 = vector.broadcast %1752 : vector<1x128xi1> to vector<2x128xi1>
    %1754 = vector.broadcast %cst_653 : f32 to vector<2x128xf32>
    %1755 = arith.select %1753, %1751, %1754 : vector<2x128xi1>, vector<2x128xf32>
    %1756 = arith.addf %1750, %1755 : vector<2x128xf32>
    %c32_i32_654 = arith.constant 32 : i32
    %1757 = tpu.dynamic_rotate %1756 by %c32_i32_654 dim 1 : vector<2x128xf32>, i32 -> vector<2x128xf32>
    %cst_655 = arith.constant 0.000000e+00 : f32
    %1758 = vector.shape_cast %19 : vector<1x128xi1> to vector<1x128xi1>
    %1759 = vector.broadcast %1758 : vector<1x128xi1> to vector<2x128xi1>
    %1760 = vector.broadcast %cst_655 : f32 to vector<2x128xf32>
    %1761 = arith.select %1759, %1757, %1760 : vector<2x128xi1>, vector<2x128xf32>
    %1762 = arith.addf %1756, %1761 : vector<2x128xf32>
    %c64_i32_656 = arith.constant 64 : i32
    %1763 = tpu.dynamic_rotate %1762 by %c64_i32_656 dim 1 : vector<2x128xf32>, i32 -> vector<2x128xf32>
    %cst_657 = arith.constant 0.000000e+00 : f32
    %1764 = vector.shape_cast %21 : vector<1x128xi1> to vector<1x128xi1>
    %1765 = vector.broadcast %1764 : vector<1x128xi1> to vector<2x128xi1>
    %1766 = vector.broadcast %cst_657 : f32 to vector<2x128xf32>
    %1767 = arith.select %1765, %1763, %1766 : vector<2x128xi1>, vector<2x128xf32>
    %1768 = arith.addf %1762, %1767 : vector<2x128xf32>
    %1769 = vector.extract_strided_slice %1768 {offsets = [0, 0], sizes = [1, 128], strides = [1, 1]} : vector<2x128xf32> to vector<1x128xf32>
    %1770 = vector.extract_strided_slice %1768 {offsets = [1, 0], sizes = [1, 128], strides = [1, 1]} : vector<2x128xf32> to vector<1x128xf32>
    %1771 = arith.mulf %1769, %7 : vector<1x128xf32>
    %cst_658 = arith.constant 2.000000e+00 : f32
    %1772 = vector.broadcast %cst_658 : f32 to vector<1x128xf32>
    %1773 = arith.mulf %1772, %1771 : vector<1x128xf32>
    %1774 = arith.mulf %1773, %1769 : vector<1x128xf32>
    %1775 = arith.subf %1770, %1774 : vector<1x128xf32>
    %1776 = arith.mulf %1775, %7 : vector<1x128xf32>
    %1777 = arith.mulf %1771, %1771 : vector<1x128xf32>
    %1778 = arith.addf %1776, %1777 : vector<1x128xf32>
    %cst_659 = arith.constant 0.000000e+00 : f32
    %1779 = vector.broadcast %cst_659 : f32 to vector<1x128xf32>
    %1780 = arith.maximumf %1778, %1779 : vector<1x128xf32>
    %cst_660 = arith.constant 9.99999993E-9 : f32
    %1781 = vector.broadcast %cst_660 : f32 to vector<1x128xf32>
    %1782 = arith.addf %1780, %1781 : vector<1x128xf32>
    %1783 = math.rsqrt %1782 : vector<1x128xf32>
    %1784 = vector.broadcast %1771 : vector<1x128xf32> to vector<32x128xf32>
    %1785 = arith.subf %1716, %1784 : vector<32x128xf32>
    %1786 = vector.broadcast %1783 : vector<1x128xf32> to vector<32x128xf32>
    %1787 = arith.mulf %1785, %1786 : vector<32x128xf32>
    %1788 = vector.broadcast %1718 : vector<32x1xf32> to vector<32x128xf32>
    %1789 = arith.mulf %1787, %1788 : vector<32x128xf32>
    %1790 = vector.broadcast %1720 : vector<32x1xf32> to vector<32x128xf32>
    %1791 = arith.addf %1789, %1790 : vector<32x128xf32>
    %c8_661 = arith.constant 8 : index
    %c0_662 = arith.constant 0 : index
    %c0_663 = arith.constant 0 : index
    %1792 = vector.load %arg8[%c8_661, %c0_662, %c0_663] : memref<9x32x3xf32, #tpu.memory_space<vmem>>, vector<1x32x3xf32>
    %1793 = vector.shape_cast %1792 : vector<1x32x3xf32> to vector<32x3xf32>
    %c4_i32_664 = arith.constant 4 : i32
    %1794 = tpu.dynamic_rotate %1791 by %c4_i32_664 dim 1 : vector<32x128xf32>, i32 -> vector<32x128xf32>
    %cst_665 = arith.constant 0.000000e+00 : f32
    %1795 = vector.shape_cast %31 : vector<1x128xi1> to vector<1x128xi1>
    %1796 = vector.broadcast %1795 : vector<1x128xi1> to vector<32x128xi1>
    %1797 = vector.broadcast %cst_665 : f32 to vector<32x128xf32>
    %1798 = arith.select %1796, %1794, %1797 : vector<32x128xi1>, vector<32x128xf32>
    %c124_i32_666 = arith.constant 124 : i32
    %1799 = tpu.dynamic_rotate %1791 by %c124_i32_666 dim 1 : vector<32x128xf32>, i32 -> vector<32x128xf32>
    %cst_667 = arith.constant 0.000000e+00 : f32
    %1800 = vector.shape_cast %33 : vector<1x128xi1> to vector<1x128xi1>
    %1801 = vector.broadcast %1800 : vector<1x128xi1> to vector<32x128xi1>
    %1802 = vector.broadcast %cst_667 : f32 to vector<32x128xf32>
    %1803 = arith.select %1801, %1799, %1802 : vector<32x128xi1>, vector<32x128xf32>
    %1804 = vector.extract_strided_slice %1793 {offsets = [0, 0], sizes = [32, 1], strides = [1, 1]} : vector<32x3xf32> to vector<32x1xf32>
    %1805 = vector.broadcast %1804 : vector<32x1xf32> to vector<32x128xf32>
    %1806 = arith.mulf %1805, %1798 : vector<32x128xf32>
    %1807 = vector.extract_strided_slice %1793 {offsets = [0, 1], sizes = [32, 1], strides = [1, 1]} : vector<32x3xf32> to vector<32x1xf32>
    %1808 = vector.broadcast %1807 : vector<32x1xf32> to vector<32x128xf32>
    %1809 = arith.mulf %1808, %1791 : vector<32x128xf32>
    %1810 = arith.addf %1806, %1809 : vector<32x128xf32>
    %1811 = vector.extract_strided_slice %1793 {offsets = [0, 2], sizes = [32, 1], strides = [1, 1]} : vector<32x3xf32> to vector<32x1xf32>
    %1812 = vector.broadcast %1811 : vector<32x1xf32> to vector<32x128xf32>
    %1813 = arith.mulf %1812, %1803 : vector<32x128xf32>
    %1814 = arith.addf %1810, %1813 : vector<32x128xf32>
    %c8_668 = arith.constant 8 : index
    %c0_669 = arith.constant 0 : index
    %c0_670 = arith.constant 0 : index
    %1815 = vector.load %arg9[%c8_668, %c0_669, %c0_670] : memref<9x32x1xf32, #tpu.memory_space<vmem>>, vector<1x32x1xf32>
    %1816 = vector.shape_cast %1815 : vector<1x32x1xf32> to vector<32x1xf32>
    %1817 = vector.broadcast %1816 : vector<32x1xf32> to vector<32x128xf32>
    %1818 = arith.addf %1814, %1817 : vector<32x128xf32>
    %cst_671 = arith.constant 0.000000e+00 : f32
    %1819 = vector.broadcast %cst_671 : f32 to vector<32x128xf32>
    %1820 = arith.cmpf oge, %1818, %1819 : vector<32x128xf32>
    %1821 = vector.broadcast %1704 : f32 to vector<32x128xf32>
    %1822 = arith.mulf %1821, %1818 : vector<32x128xf32>
    %1823 = arith.select %1820, %1818, %1822 : vector<32x128xi1>, vector<32x128xf32>
    %c8_672 = arith.constant 8 : index
    %c0_673 = arith.constant 0 : index
    %c0_674 = arith.constant 0 : index
    %1824 = vector.load %arg10[%c8_672, %c0_673, %c0_674] : memref<9x32x1xf32, #tpu.memory_space<vmem>>, vector<1x32x1xf32>
    %1825 = vector.shape_cast %1824 : vector<1x32x1xf32> to vector<32x1xf32>
    %c8_675 = arith.constant 8 : index
    %c0_676 = arith.constant 0 : index
    %c0_677 = arith.constant 0 : index
    %1826 = vector.load %arg11[%c8_675, %c0_676, %c0_677] : memref<9x32x1xf32, #tpu.memory_space<vmem>>, vector<1x32x1xf32>
    %1827 = vector.shape_cast %1826 : vector<1x32x1xf32> to vector<32x1xf32>
    %cst_678 = arith.constant dense<0.000000e+00> : vector<128xf32>
    %1828 = vector.multi_reduction <add>, %1823, %cst_678 [0] : vector<32x128xf32> to vector<128xf32>
    %1829 = vector.shape_cast %1828 : vector<128xf32> to vector<1x128xf32>
    %1830 = arith.mulf %1823, %1823 : vector<32x128xf32>
    %cst_679 = arith.constant dense<0.000000e+00> : vector<128xf32>
    %1831 = vector.multi_reduction <add>, %1830, %cst_679 [0] : vector<32x128xf32> to vector<128xf32>
    %1832 = vector.shape_cast %1831 : vector<128xf32> to vector<1x128xf32>
    %1833 = tpu.concatenate %1829, %1832 in 0 : vector<1x128xf32>, vector<1x128xf32> -> vector<2x128xf32>
    %c1_i32_680 = arith.constant 1 : i32
    %1834 = tpu.dynamic_rotate %1833 by %c1_i32_680 dim 1 : vector<2x128xf32>, i32 -> vector<2x128xf32>
    %cst_681 = arith.constant 0.000000e+00 : f32
    %1835 = vector.shape_cast %9 : vector<1x128xi1> to vector<1x128xi1>
    %1836 = vector.broadcast %1835 : vector<1x128xi1> to vector<2x128xi1>
    %1837 = vector.broadcast %cst_681 : f32 to vector<2x128xf32>
    %1838 = arith.select %1836, %1834, %1837 : vector<2x128xi1>, vector<2x128xf32>
    %1839 = arith.addf %1833, %1838 : vector<2x128xf32>
    %c2_i32_682 = arith.constant 2 : i32
    %1840 = tpu.dynamic_rotate %1839 by %c2_i32_682 dim 1 : vector<2x128xf32>, i32 -> vector<2x128xf32>
    %cst_683 = arith.constant 0.000000e+00 : f32
    %1841 = vector.shape_cast %11 : vector<1x128xi1> to vector<1x128xi1>
    %1842 = vector.broadcast %1841 : vector<1x128xi1> to vector<2x128xi1>
    %1843 = vector.broadcast %cst_683 : f32 to vector<2x128xf32>
    %1844 = arith.select %1842, %1840, %1843 : vector<2x128xi1>, vector<2x128xf32>
    %1845 = arith.addf %1839, %1844 : vector<2x128xf32>
    %c4_i32_684 = arith.constant 4 : i32
    %1846 = tpu.dynamic_rotate %1845 by %c4_i32_684 dim 1 : vector<2x128xf32>, i32 -> vector<2x128xf32>
    %cst_685 = arith.constant 0.000000e+00 : f32
    %1847 = vector.shape_cast %13 : vector<1x128xi1> to vector<1x128xi1>
    %1848 = vector.broadcast %1847 : vector<1x128xi1> to vector<2x128xi1>
    %1849 = vector.broadcast %cst_685 : f32 to vector<2x128xf32>
    %1850 = arith.select %1848, %1846, %1849 : vector<2x128xi1>, vector<2x128xf32>
    %1851 = arith.addf %1845, %1850 : vector<2x128xf32>
    %c8_i32_686 = arith.constant 8 : i32
    %1852 = tpu.dynamic_rotate %1851 by %c8_i32_686 dim 1 : vector<2x128xf32>, i32 -> vector<2x128xf32>
    %cst_687 = arith.constant 0.000000e+00 : f32
    %1853 = vector.shape_cast %15 : vector<1x128xi1> to vector<1x128xi1>
    %1854 = vector.broadcast %1853 : vector<1x128xi1> to vector<2x128xi1>
    %1855 = vector.broadcast %cst_687 : f32 to vector<2x128xf32>
    %1856 = arith.select %1854, %1852, %1855 : vector<2x128xi1>, vector<2x128xf32>
    %1857 = arith.addf %1851, %1856 : vector<2x128xf32>
    %c16_i32_688 = arith.constant 16 : i32
    %1858 = tpu.dynamic_rotate %1857 by %c16_i32_688 dim 1 : vector<2x128xf32>, i32 -> vector<2x128xf32>
    %cst_689 = arith.constant 0.000000e+00 : f32
    %1859 = vector.shape_cast %17 : vector<1x128xi1> to vector<1x128xi1>
    %1860 = vector.broadcast %1859 : vector<1x128xi1> to vector<2x128xi1>
    %1861 = vector.broadcast %cst_689 : f32 to vector<2x128xf32>
    %1862 = arith.select %1860, %1858, %1861 : vector<2x128xi1>, vector<2x128xf32>
    %1863 = arith.addf %1857, %1862 : vector<2x128xf32>
    %c32_i32_690 = arith.constant 32 : i32
    %1864 = tpu.dynamic_rotate %1863 by %c32_i32_690 dim 1 : vector<2x128xf32>, i32 -> vector<2x128xf32>
    %cst_691 = arith.constant 0.000000e+00 : f32
    %1865 = vector.shape_cast %19 : vector<1x128xi1> to vector<1x128xi1>
    %1866 = vector.broadcast %1865 : vector<1x128xi1> to vector<2x128xi1>
    %1867 = vector.broadcast %cst_691 : f32 to vector<2x128xf32>
    %1868 = arith.select %1866, %1864, %1867 : vector<2x128xi1>, vector<2x128xf32>
    %1869 = arith.addf %1863, %1868 : vector<2x128xf32>
    %c64_i32_692 = arith.constant 64 : i32
    %1870 = tpu.dynamic_rotate %1869 by %c64_i32_692 dim 1 : vector<2x128xf32>, i32 -> vector<2x128xf32>
    %cst_693 = arith.constant 0.000000e+00 : f32
    %1871 = vector.shape_cast %21 : vector<1x128xi1> to vector<1x128xi1>
    %1872 = vector.broadcast %1871 : vector<1x128xi1> to vector<2x128xi1>
    %1873 = vector.broadcast %cst_693 : f32 to vector<2x128xf32>
    %1874 = arith.select %1872, %1870, %1873 : vector<2x128xi1>, vector<2x128xf32>
    %1875 = arith.addf %1869, %1874 : vector<2x128xf32>
    %1876 = vector.extract_strided_slice %1875 {offsets = [0, 0], sizes = [1, 128], strides = [1, 1]} : vector<2x128xf32> to vector<1x128xf32>
    %1877 = vector.extract_strided_slice %1875 {offsets = [1, 0], sizes = [1, 128], strides = [1, 1]} : vector<2x128xf32> to vector<1x128xf32>
    %1878 = arith.mulf %1876, %7 : vector<1x128xf32>
    %cst_694 = arith.constant 2.000000e+00 : f32
    %1879 = vector.broadcast %cst_694 : f32 to vector<1x128xf32>
    %1880 = arith.mulf %1879, %1878 : vector<1x128xf32>
    %1881 = arith.mulf %1880, %1876 : vector<1x128xf32>
    %1882 = arith.subf %1877, %1881 : vector<1x128xf32>
    %1883 = arith.mulf %1882, %7 : vector<1x128xf32>
    %1884 = arith.mulf %1878, %1878 : vector<1x128xf32>
    %1885 = arith.addf %1883, %1884 : vector<1x128xf32>
    %cst_695 = arith.constant 0.000000e+00 : f32
    %1886 = vector.broadcast %cst_695 : f32 to vector<1x128xf32>
    %1887 = arith.maximumf %1885, %1886 : vector<1x128xf32>
    %cst_696 = arith.constant 9.99999993E-9 : f32
    %1888 = vector.broadcast %cst_696 : f32 to vector<1x128xf32>
    %1889 = arith.addf %1887, %1888 : vector<1x128xf32>
    %1890 = math.rsqrt %1889 : vector<1x128xf32>
    %1891 = vector.broadcast %1878 : vector<1x128xf32> to vector<32x128xf32>
    %1892 = arith.subf %1823, %1891 : vector<32x128xf32>
    %1893 = vector.broadcast %1890 : vector<1x128xf32> to vector<32x128xf32>
    %1894 = arith.mulf %1892, %1893 : vector<32x128xf32>
    %1895 = vector.broadcast %1825 : vector<32x1xf32> to vector<32x128xf32>
    %1896 = arith.mulf %1894, %1895 : vector<32x128xf32>
    %1897 = vector.broadcast %1827 : vector<32x1xf32> to vector<32x128xf32>
    %1898 = arith.addf %1896, %1897 : vector<32x128xf32>
    %c8_697 = arith.constant 8 : index
    %c0_698 = arith.constant 0 : index
    %c0_699 = arith.constant 0 : index
    %1899 = vector.load %arg12[%c8_697, %c0_698, %c0_699] : memref<9x32x32xf32, #tpu.memory_space<vmem>>, vector<1x32x32xf32>
    %1900 = vector.shape_cast %1899 : vector<1x32x32xf32> to vector<32x32xf32>
    %cst_700 = arith.constant dense<0.000000e+00> : vector<32x128xf32>
    %1901 = tpu.matmul %1900, %1898, %cst_700 {dimension_numbers = #tpu.dot_dimension_numbers<[1], [0], [0], [1], [0, 0, 1, 1], [], []>} : vector<32x32xf32>, vector<32x128xf32>, vector<32x128xf32> -> vector<32x128xf32>
    %c8_701 = arith.constant 8 : index
    %c0_702 = arith.constant 0 : index
    %c0_703 = arith.constant 0 : index
    %1902 = vector.load %arg13[%c8_701, %c0_702, %c0_703] : memref<9x32x1xf32, #tpu.memory_space<vmem>>, vector<1x32x1xf32>
    %1903 = vector.shape_cast %1902 : vector<1x32x1xf32> to vector<32x1xf32>
    %1904 = vector.broadcast %1903 : vector<32x1xf32> to vector<32x128xf32>
    %1905 = arith.addf %1901, %1904 : vector<32x128xf32>
    %1906 = vector.extract_strided_slice %1905 {offsets = [0, 0], sizes = [16, 128], strides = [1, 1]} : vector<32x128xf32> to vector<16x128xf32>
    %1907 = arith.addf %1702, %1906 : vector<16x128xf32>
    %1908 = vector.extract_strided_slice %1905 {offsets = [16, 0], sizes = [16, 128], strides = [1, 1]} : vector<32x128xf32> to vector<16x128xf32>
    %1909 = arith.addf %1694, %1908 : vector<16x128xf32>
    %c0_704 = arith.constant 0 : index
    %c0_705 = arith.constant 0 : index
    %c0_706 = arith.constant 0 : index
    %1910 = vector.load %arg17[%c0_704, %c0_705, %c0_706] : memref<1x16x128xf32, #tpu.memory_space<vmem>>, vector<1x16x128xf32>
    %1911 = vector.shape_cast %1910 : vector<1x16x128xf32> to vector<16x128xf32>
    %1912 = vector.shape_cast %1907 : vector<16x128xf32> to vector<1x16x128xf32>
    tpu.vector_store %arg17[%c0_704, %c0_705, %c0_706], %1912 {strides = array<i32>} : memref<1x16x128xf32, #tpu.memory_space<vmem>>, vector<1x16x128xf32>,
    %c0_707 = arith.constant 0 : index
    %c0_708 = arith.constant 0 : index
    %c0_709 = arith.constant 0 : index
    %1913 = vector.load %arg18[%c0_707, %c0_708, %c0_709] : memref<1x16x128xf32, #tpu.memory_space<vmem>>, vector<1x16x128xf32>
    %1914 = vector.shape_cast %1913 : vector<1x16x128xf32> to vector<16x128xf32>
    %1915 = vector.shape_cast %1909 : vector<16x128xf32> to vector<1x16x128xf32>
    tpu.vector_store %arg18[%c0_707, %c0_708, %c0_709], %1915 {strides = array<i32>} : memref<1x16x128xf32, #tpu.memory_space<vmem>>, vector<1x16x128xf32>,
    return
  }
  func.func @transform_0(%arg0: i32) -> (i32, i32, i32) {
    %c0_i32 = arith.constant 0 : i32
    %c0_i32_0 = arith.constant 0 : i32
    %c0_i32_1 = arith.constant 0 : i32
    return %arg0, %c0_i32, %c0_i32_0 : i32, i32, i32
  }
  func.func @transform_1(%arg0: i32) -> (i32, i32, i32) {
    %c0_i32 = arith.constant 0 : i32
    %c0_i32_0 = arith.constant 0 : i32
    %c0_i32_1 = arith.constant 0 : i32
    return %arg0, %c0_i32, %c0_i32_0 : i32, i32, i32
  }
  func.func @transform_2(%arg0: i32) -> i32 {
    %c0_i32 = arith.constant 0 : i32
    %c0_i32_0 = arith.constant 0 : i32
    return %c0_i32 : i32
  }
  func.func @transform_3(%arg0: i32) -> (i32, i32, i32) {
    %c0_i32 = arith.constant 0 : i32
    %c0_i32_0 = arith.constant 0 : i32
    %c0_i32_1 = arith.constant 0 : i32
    %c0_i32_2 = arith.constant 0 : i32
    return %c0_i32, %c0_i32_0, %c0_i32_1 : i32, i32, i32
  }
  func.func @transform_4(%arg0: i32) -> (i32, i32, i32) {
    %c0_i32 = arith.constant 0 : i32
    %c0_i32_0 = arith.constant 0 : i32
    %c0_i32_1 = arith.constant 0 : i32
    %c0_i32_2 = arith.constant 0 : i32
    return %c0_i32, %c0_i32_0, %c0_i32_1 : i32, i32, i32
  }
  func.func @transform_5(%arg0: i32) -> (i32, i32, i32) {
    %c0_i32 = arith.constant 0 : i32
    %c0_i32_0 = arith.constant 0 : i32
    %c0_i32_1 = arith.constant 0 : i32
    %c0_i32_2 = arith.constant 0 : i32
    return %c0_i32, %c0_i32_0, %c0_i32_1 : i32, i32, i32
  }
  func.func @transform_6(%arg0: i32) -> (i32, i32, i32) {
    %c0_i32 = arith.constant 0 : i32
    %c0_i32_0 = arith.constant 0 : i32
    %c0_i32_1 = arith.constant 0 : i32
    %c0_i32_2 = arith.constant 0 : i32
    return %c0_i32, %c0_i32_0, %c0_i32_1 : i32, i32, i32
  }
  func.func @transform_7(%arg0: i32) -> (i32, i32, i32) {
    %c0_i32 = arith.constant 0 : i32
    %c0_i32_0 = arith.constant 0 : i32
    %c0_i32_1 = arith.constant 0 : i32
    %c0_i32_2 = arith.constant 0 : i32
    return %c0_i32, %c0_i32_0, %c0_i32_1 : i32, i32, i32
  }
  func.func @transform_8(%arg0: i32) -> (i32, i32, i32) {
    %c0_i32 = arith.constant 0 : i32
    %c0_i32_0 = arith.constant 0 : i32
    %c0_i32_1 = arith.constant 0 : i32
    %c0_i32_2 = arith.constant 0 : i32
    return %c0_i32, %c0_i32_0, %c0_i32_1 : i32, i32, i32
  }
  func.func @transform_9(%arg0: i32) -> (i32, i32, i32) {
    %c0_i32 = arith.constant 0 : i32
    %c0_i32_0 = arith.constant 0 : i32
    %c0_i32_1 = arith.constant 0 : i32
    %c0_i32_2 = arith.constant 0 : i32
    return %c0_i32, %c0_i32_0, %c0_i32_1 : i32, i32, i32
  }
  func.func @transform_10(%arg0: i32) -> (i32, i32, i32) {
    %c0_i32 = arith.constant 0 : i32
    %c0_i32_0 = arith.constant 0 : i32
    %c0_i32_1 = arith.constant 0 : i32
    %c0_i32_2 = arith.constant 0 : i32
    return %c0_i32, %c0_i32_0, %c0_i32_1 : i32, i32, i32
  }
  func.func @transform_11(%arg0: i32) -> (i32, i32, i32) {
    %c0_i32 = arith.constant 0 : i32
    %c0_i32_0 = arith.constant 0 : i32
    %c0_i32_1 = arith.constant 0 : i32
    %c0_i32_2 = arith.constant 0 : i32
    return %c0_i32, %c0_i32_0, %c0_i32_1 : i32, i32, i32
  }
  func.func @transform_12(%arg0: i32) -> (i32, i32, i32) {
    %c0_i32 = arith.constant 0 : i32
    %c0_i32_0 = arith.constant 0 : i32
    %c0_i32_1 = arith.constant 0 : i32
    %c0_i32_2 = arith.constant 0 : i32
    return %c0_i32, %c0_i32_0, %c0_i32_1 : i32, i32, i32
  }
  func.func @transform_13(%arg0: i32) -> (i32, i32) {
    %c0_i32 = arith.constant 0 : i32
    %c0_i32_0 = arith.constant 0 : i32
    %c0_i32_1 = arith.constant 0 : i32
    return %c0_i32, %c0_i32_0 : i32, i32
  }
  func.func @transform_14(%arg0: i32) -> (i32, i32) {
    %c0_i32 = arith.constant 0 : i32
    %c0_i32_0 = arith.constant 0 : i32
    %c0_i32_1 = arith.constant 0 : i32
    return %c0_i32, %c0_i32_0 : i32, i32
  }
  func.func @transform_15(%arg0: i32) -> (i32, i32) {
    %c0_i32 = arith.constant 0 : i32
    %c0_i32_0 = arith.constant 0 : i32
    %c0_i32_1 = arith.constant 0 : i32
    return %c0_i32, %c0_i32_0 : i32, i32
  }
  func.func @transform_16(%arg0: i32) -> (i32, i32, i32) {
    %c0_i32 = arith.constant 0 : i32
    %c0_i32_0 = arith.constant 0 : i32
    %c0_i32_1 = arith.constant 0 : i32
    return %arg0, %c0_i32, %c0_i32_0 : i32, i32, i32
  }
  func.func @transform_17(%arg0: i32) -> (i32, i32, i32) {
    %c0_i32 = arith.constant 0 : i32
    %c0_i32_0 = arith.constant 0 : i32
    %c0_i32_1 = arith.constant 0 : i32
    return %arg0, %c0_i32, %c0_i32_0 : i32, i32, i32
  }
}

</mosaic_0001>

<llo_original>
// kernel: tpu_custom_call.1
$region0: #{tpu_custom_call.1}
  #allocation0 [shape = 'u32[]', space=smem, size = 0x4, offset = 0x4, fixed_abs, tag = 'smem constant byte address 0x4 - core index']
  #allocation1 [shape = 'u32[144,128]{1,0:T(1,128)}', space=vmem, size = 0x12000, scoped, tag = 'internal scratch']
  %s0 = inlined_call_operand.vmem [shape: f32[2,16,128], index: 0, kind: input, shape index: {}]
  %s1 = inlined_call_operand.vmem [shape: f32[2,8,128], index: 1, kind: input, shape index: {}]
  %s2 = inlined_call_operand.vmem [shape: f32[18], index: 2, kind: input, shape index: {}]
  %s3 = inlined_call_operand.vmem [shape: f32[9,32,16], index: 3, kind: input, shape index: {}]
  %s4 = inlined_call_operand.vmem [shape: f32[9,32,1], index: 4, kind: input, shape index: {}]
  %s5 = inlined_call_operand.vmem [shape: f32[9,32,1], index: 5, kind: input, shape index: {}]
  %s6 = inlined_call_operand.vmem [shape: f32[9,32,1], index: 6, kind: input, shape index: {}]
  %s7 = inlined_call_operand.vmem [shape: f32[9,32,3], index: 7, kind: input, shape index: {}]
  %s8 = inlined_call_operand.vmem [shape: f32[9,32,1], index: 8, kind: input, shape index: {}]
  %s9 = inlined_call_operand.vmem [shape: f32[9,32,1], index: 9, kind: input, shape index: {}]
  %s10 = inlined_call_operand.vmem [shape: f32[9,32,1], index: 10, kind: input, shape index: {}]
  %s11 = inlined_call_operand.vmem [shape: f32[9,32,32], index: 11, kind: input, shape index: {}]
  %s12 = inlined_call_operand.vmem [shape: f32[9,32,1], index: 12, kind: input, shape index: {}]
  %s13 = inlined_call_operand.vmem [shape: f32[16,16], index: 13, kind: input, shape index: {}]
  %s14 = inlined_call_operand.vmem [shape: f32[16,8], index: 14, kind: input, shape index: {}]
  %s15 = inlined_call_operand.vmem [shape: f32[16,1], index: 15, kind: input, shape index: {}]
  %s16 = inlined_call_operand.hbm [shape: f32[2,16,128], index: 16, kind: output, shape index: {0}]
  %s17 = inlined_call_operand.hbm [shape: f32[2,16,128], index: 17, kind: output, shape index: {1}]
  %18 = xla_tuple %s16, %s17
  %s19 = sld [smem:[#allocation0]]
  $region109: #{tpu_custom_call.1} parent=0
    _
  %s21 = ssub.s32 1, %s19
  %s22 = scalar_select 0, %s21, %s19
  $region1: #{tpu_custom_call.1} parent=0
    #allocation2 [shape = 'u8[512]{0}', space=smem, size = 0x200, scoped, tag = 'input window, operand 2, single buffered']
    #allocation3 [shape = 's32[2]{0}', space=sflag, size = 0x8, scoped, tag = 'scoped memory for tpu_custom_call.1']
    #allocation4 [shape = 's32[2]{0}', space=sflag, size = 0x8, scoped, tag = 'scoped memory for tpu_custom_call.1']
    #allocation5 [shape = 'u8[16384]{0}', space=vmem, size = 0x4000, scoped, tag = 'output window, operand 0']
    #allocation6 [shape = 'u8[16384]{0}', space=vmem, size = 0x4000, scoped, tag = 'output window, operand 1']
    #allocation7 [shape = 's32[2]{0}', space=sflag, size = 0x8, scoped, tag = 'scoped memory for tpu_custom_call.1']
    %23 = vsyncpa [#allocation4], 0
    %24 = vsyncpa [#allocation3], 0
    %s25 = scalar_lea.sflag [#allocation3], 1
    %26 = vsyncpa %s25, 0
    %27 = vsyncpa [#allocation7], 0
    %s28 = scalar_lea.sflag [#allocation7], 1
    %29 = vsyncpa %s28, 0
    loop: start=0, step=1, limit=4
    $region2: #{tpu_custom_call.1} parent=1 // loop_pre_header
      _
    $region3: #{tpu_custom_call.1} parent=1 // loop_header
      %s31 = sphi 0, %s35
      %p32 = scmp.ge.s32.totalorder %s31, 4
      %s41 = sphi 0, %s43
      %s44 = sphi 0, %s41
      %s45 = sphi 0, %s44
      %s61 = sphi 0, %s45
      %s67 = sphi 0, %s69
      %s70 = sphi 0, %s67
      %s71 = sphi 0, %s70
      %s87 = sphi 0, %s71
      %s91 = sphi 0, %s91
      %s93 = sphi 0, %s91
      %s94 = sphi 0, %s93
      %s108 = sphi 0, %s94
      %s112 = sphi 0, %s112
      %s114 = sphi 0, %s112
      %s115 = sphi 0, %s114
      %s129 = sphi 0, %s115
      %s133 = sphi 0, %s133
      %s135 = sphi 0, %s133
      %s136 = sphi 0, %s135
      %s150 = sphi 0, %s136
      %s154 = sphi 0, %s154
      %s156 = sphi 0, %s154
      %s157 = sphi 0, %s156
      %s171 = sphi 0, %s157
      %s175 = sphi 0, %s175
      %s177 = sphi 0, %s175
      %s178 = sphi 0, %s177
      %s192 = sphi 0, %s178
      %s196 = sphi 0, %s196
      %s198 = sphi 0, %s196
      %s199 = sphi 0, %s198
      %s213 = sphi 0, %s199
      %s217 = sphi 0, %s217
      %s219 = sphi 0, %s217
      %s220 = sphi 0, %s219
      %s234 = sphi 0, %s220
      %s238 = sphi 0, %s238
      %s240 = sphi 0, %s238
      %s241 = sphi 0, %s240
      %s255 = sphi 0, %s241
      %s259 = sphi 0, %s259
      %s261 = sphi 0, %s259
      %s262 = sphi 0, %s261
      %s276 = sphi 0, %s262
      %s280 = sphi 0, %s280
      %s282 = sphi 0, %s280
      %s283 = sphi 0, %s282
      %s297 = sphi 0, %s283
      %s301 = sphi 0, %s301
      %s303 = sphi 0, %s301
      %s304 = sphi 0, %s303
      %s318 = sphi 0, %s304
      %s322 = sphi 0, %s322
      %s324 = sphi 0, %s322
      %s325 = sphi 0, %s324
      %s339 = sphi 0, %s325
      %s343 = sphi 0, %s343
      %s345 = sphi 0, %s343
      %s346 = sphi 0, %s345
      %s360 = sphi 0, %s346
      %s364 = sphi 0, %s364
      %s366 = sphi 0, %s364
      %s367 = sphi 0, %s366
      %s381 = sphi 0, %s367
      %s387 = sphi 0, %s389
      %s390 = sphi 0, %s387
      %s391 = sphi 0, %s390
      %s407 = sphi 0, %s391
      %s413 = sphi 0, %s415
      %s416 = sphi 0, %s413
      %s417 = sphi 0, %s416
      %s433 = sphi 0, %s417
    $region4: #{tpu_custom_call.1} parent=1 // loop_header_branch
      %34 = sbr.rel (%p32) target = $region8
    $region5: #{tpu_custom_call.1} parent=1 // loop_body
      %s36 = ssub.s32 %s31, 1
      %s37 = ssub.s32 %s31, 2
      %s38 = sadd.s32 %s31, 1
      %s39 = ssub.s32 %s31, %s38
      %p40 = scmp.eq.s32.totalorder %s39, 0
      %s42 = sadd.s32 %s41, 1
      %s43 = scalar_select %p40, %s41, %s42
      %p46 = pneg %p40
      %p47 = scmp.eq.s32.totalorder %s31, 1
      %p48 = por %p46, %p47
      %p49 = scmp.ne.s32.totalorder %s41, %s44
      %p50 = scmp.eq.s32.totalorder %s31, 0
      %p51 = por %p49, %p50
      %p52 = scmp.ne.s32.totalorder %s41, %s44
      %p53 = scmp.eq.s32.totalorder %s36, 1
      %p54 = por %p52, %p53
      %p55 = scmp.ne.s32.totalorder %s44, %s45
      %p56 = scmp.eq.s32.totalorder %s36, 0
      %p57 = por %p55, %p56
      %p58 = scmp.ne.s32.totalorder %s44, %s45
      %p59 = scmp.eq.s32.totalorder %s37, 1
      %p60 = por %p58, %p59
      %p62 = scmp.ne.s32.totalorder %s45, %s61
      %p63 = scmp.eq.s32.totalorder %s37, 0
      %p64 = por %p62, %p63
      %s65 = ssub.s32 %s31, %s38
      %p66 = scmp.eq.s32.totalorder %s65, 0
      %s68 = sadd.s32 %s67, 1
      %s69 = scalar_select %p66, %s67, %s68
      %p72 = pneg %p66
      %p73 = scmp.eq.s32.totalorder %s31, 1
      %p74 = por %p72, %p73
      %p75 = scmp.ne.s32.totalorder %s67, %s70
      %p76 = scmp.eq.s32.totalorder %s31, 0
      %p77 = por %p75, %p76
      %p78 = scmp.ne.s32.totalorder %s67, %s70
      %p79 = scmp.eq.s32.totalorder %s36, 1
      %p80 = por %p78, %p79
      %p81 = scmp.ne.s32.totalorder %s70, %s71
      %p82 = scmp.eq.s32.totalorder %s36, 0
      %p83 = por %p81, %p82
      %p84 = scmp.ne.s32.totalorder %s70, %s71
      %p85 = scmp.eq.s32.totalorder %s37, 1
      %p86 = por %p84, %p85
      %p88 = scmp.ne.s32.totalorder %s71, %s87
      %p89 = scmp.eq.s32.totalorder %s37, 0
      %p90 = por %p88, %p89
      %s92 = sadd.s32 %s91, 1
      %p95 = scmp.eq.s32.totalorder %s31, 1
      %p96 = scmp.ne.s32.totalorder %s91, %s93
      %p97 = scmp.eq.s32.totalorder %s31, 0
      %p98 = por %p96, %p97
      %p99 = scmp.ne.s32.totalorder %s91, %s93
      %p100 = scmp.eq.s32.totalorder %s36, 1
      %p101 = por %p99, %p100
      %p102 = scmp.ne.s32.totalorder %s93, %s94
      %p103 = scmp.eq.s32.totalorder %s36, 0
      %p104 = por %p102, %p103
      %p105 = scmp.ne.s32.totalorder %s93, %s94
      %p106 = scmp.eq.s32.totalorder %s37, 1
      %p107 = por %p105, %p106
      %p109 = scmp.ne.s32.totalorder %s94, %s108
      %p110 = scmp.eq.s32.totalorder %s37, 0
      %p111 = por %p109, %p110
      %s113 = sadd.s32 %s112, 1
      %p116 = scmp.eq.s32.totalorder %s31, 1
      %p117 = scmp.ne.s32.totalorder %s112, %s114
      %p118 = scmp.eq.s32.totalorder %s31, 0
      %p119 = por %p117, %p118
      %p120 = scmp.ne.s32.totalorder %s112, %s114
      %p121 = scmp.eq.s32.totalorder %s36, 1
      %p122 = por %p120, %p121
      %p123 = scmp.ne.s32.totalorder %s114, %s115
      %p124 = scmp.eq.s32.totalorder %s36, 0
      %p125 = por %p123, %p124
      %p126 = scmp.ne.s32.totalorder %s114, %s115
      %p127 = scmp.eq.s32.totalorder %s37, 1
      %p128 = por %p126, %p127
      %p130 = scmp.ne.s32.totalorder %s115, %s129
      %p131 = scmp.eq.s32.totalorder %s37, 0
      %p132 = por %p130, %p131
      %s134 = sadd.s32 %s133, 1
      %p137 = scmp.eq.s32.totalorder %s31, 1
      %p138 = scmp.ne.s32.totalorder %s133, %s135
      %p139 = scmp.eq.s32.totalorder %s31, 0
      %p140 = por %p138, %p139
      %p141 = scmp.ne.s32.totalorder %s133, %s135
      %p142 = scmp.eq.s32.totalorder %s36, 1
      %p143 = por %p141, %p142
      %p144 = scmp.ne.s32.totalorder %s135, %s136
      %p145 = scmp.eq.s32.totalorder %s36, 0
      %p146 = por %p144, %p145
      %p147 = scmp.ne.s32.totalorder %s135, %s136
      %p148 = scmp.eq.s32.totalorder %s37, 1
      %p149 = por %p147, %p148
      %p151 = scmp.ne.s32.totalorder %s136, %s150
      %p152 = scmp.eq.s32.totalorder %s37, 0
      %p153 = por %p151, %p152
      %s155 = sadd.s32 %s154, 1
      %p158 = scmp.eq.s32.totalorder %s31, 1
      %p159 = scmp.ne.s32.totalorder %s154, %s156
      %p160 = scmp.eq.s32.totalorder %s31, 0
      %p161 = por %p159, %p160
      %p162 = scmp.ne.s32.totalorder %s154, %s156
      %p163 = scmp.eq.s32.totalorder %s36, 1
      %p164 = por %p162, %p163
      %p165 = scmp.ne.s32.totalorder %s156, %s157
      %p166 = scmp.eq.s32.totalorder %s36, 0
      %p167 = por %p165, %p166
      %p168 = scmp.ne.s32.totalorder %s156, %s157
      %p169 = scmp.eq.s32.totalorder %s37, 1
      %p170 = por %p168, %p169
      %p172 = scmp.ne.s32.totalorder %s157, %s171
      %p173 = scmp.eq.s32.totalorder %s37, 0
      %p174 = por %p172, %p173
      %s176 = sadd.s32 %s175, 1
      %p179 = scmp.eq.s32.totalorder %s31, 1
      %p180 = scmp.ne.s32.totalorder %s175, %s177
      %p181 = scmp.eq.s32.totalorder %s31, 0
      %p182 = por %p180, %p181
      %p183 = scmp.ne.s32.totalorder %s175, %s177
      %p184 = scmp.eq.s32.totalorder %s36, 1
      %p185 = por %p183, %p184
      %p186 = scmp.ne.s32.totalorder %s177, %s178
      %p187 = scmp.eq.s32.totalorder %s36, 0
      %p188 = por %p186, %p187
      %p189 = scmp.ne.s32.totalorder %s177, %s178
      %p190 = scmp.eq.s32.totalorder %s37, 1
      %p191 = por %p189, %p190
      %p193 = scmp.ne.s32.totalorder %s178, %s192
      %p194 = scmp.eq.s32.totalorder %s37, 0
      %p195 = por %p193, %p194
      %s197 = sadd.s32 %s196, 1
      %p200 = scmp.eq.s32.totalorder %s31, 1
      %p201 = scmp.ne.s32.totalorder %s196, %s198
      %p202 = scmp.eq.s32.totalorder %s31, 0
      %p203 = por %p201, %p202
      %p204 = scmp.ne.s32.totalorder %s196, %s198
      %p205 = scmp.eq.s32.totalorder %s36, 1
      %p206 = por %p204, %p205
      %p207 = scmp.ne.s32.totalorder %s198, %s199
      %p208 = scmp.eq.s32.totalorder %s36, 0
      %p209 = por %p207, %p208
      %p210 = scmp.ne.s32.totalorder %s198, %s199
      %p211 = scmp.eq.s32.totalorder %s37, 1
      %p212 = por %p210, %p211
      %p214 = scmp.ne.s32.totalorder %s199, %s213
      %p215 = scmp.eq.s32.totalorder %s37, 0
      %p216 = por %p214, %p215
      %s218 = sadd.s32 %s217, 1
      %p221 = scmp.eq.s32.totalorder %s31, 1
      %p222 = scmp.ne.s32.totalorder %s217, %s219
      %p223 = scmp.eq.s32.totalorder %s31, 0
      %p224 = por %p222, %p223
      %p225 = scmp.ne.s32.totalorder %s217, %s219
      %p226 = scmp.eq.s32.totalorder %s36, 1
      %p227 = por %p225, %p226
      %p228 = scmp.ne.s32.totalorder %s219, %s220
      %p229 = scmp.eq.s32.totalorder %s36, 0
      %p230 = por %p228, %p229
      %p231 = scmp.ne.s32.totalorder %s219, %s220
      %p232 = scmp.eq.s32.totalorder %s37, 1
      %p233 = por %p231, %p232
      %p235 = scmp.ne.s32.totalorder %s220, %s234
      %p236 = scmp.eq.s32.totalorder %s37, 0
      %p237 = por %p235, %p236
      %s239 = sadd.s32 %s238, 1
      %p242 = scmp.eq.s32.totalorder %s31, 1
      %p243 = scmp.ne.s32.totalorder %s238, %s240
      %p244 = scmp.eq.s32.totalorder %s31, 0
      %p245 = por %p243, %p244
      %p246 = scmp.ne.s32.totalorder %s238, %s240
      %p247 = scmp.eq.s32.totalorder %s36, 1
      %p248 = por %p246, %p247
      %p249 = scmp.ne.s32.totalorder %s240, %s241
      %p250 = scmp.eq.s32.totalorder %s36, 0
      %p251 = por %p249, %p250
      %p252 = scmp.ne.s32.totalorder %s240, %s241
      %p253 = scmp.eq.s32.totalorder %s37, 1
      %p254 = por %p252, %p253
      %p256 = scmp.ne.s32.totalorder %s241, %s255
      %p257 = scmp.eq.s32.totalorder %s37, 0
      %p258 = por %p256, %p257
      %s260 = sadd.s32 %s259, 1
      %p263 = scmp.eq.s32.totalorder %s31, 1
      %p264 = scmp.ne.s32.totalorder %s259, %s261
      %p265 = scmp.eq.s32.totalorder %s31, 0
      %p266 = por %p264, %p265
      %p267 = scmp.ne.s32.totalorder %s259, %s261
      %p268 = scmp.eq.s32.totalorder %s36, 1
      %p269 = por %p267, %p268
      %p270 = scmp.ne.s32.totalorder %s261, %s262
      %p271 = scmp.eq.s32.totalorder %s36, 0
      %p272 = por %p270, %p271
      %p273 = scmp.ne.s32.totalorder %s261, %s262
      %p274 = scmp.eq.s32.totalorder %s37, 1
      %p275 = por %p273, %p274
      %p277 = scmp.ne.s32.totalorder %s262, %s276
      %p278 = scmp.eq.s32.totalorder %s37, 0
      %p279 = por %p277, %p278
      %s281 = sadd.s32 %s280, 1
      %p284 = scmp.eq.s32.totalorder %s31, 1
      %p285 = scmp.ne.s32.totalorder %s280, %s282
      %p286 = scmp.eq.s32.totalorder %s31, 0
      %p287 = por %p285, %p286
      %p288 = scmp.ne.s32.totalorder %s280, %s282
      %p289 = scmp.eq.s32.totalorder %s36, 1
      %p290 = por %p288, %p289
      %p291 = scmp.ne.s32.totalorder %s282, %s283
      %p292 = scmp.eq.s32.totalorder %s36, 0
      %p293 = por %p291, %p292
      %p294 = scmp.ne.s32.totalorder %s282, %s283
      %p295 = scmp.eq.s32.totalorder %s37, 1
      %p296 = por %p294, %p295
      %p298 = scmp.ne.s32.totalorder %s283, %s297
      %p299 = scmp.eq.s32.totalorder %s37, 0
      %p300 = por %p298, %p299
      %s302 = sadd.s32 %s301, 1
      %p305 = scmp.eq.s32.totalorder %s31, 1
      %p306 = scmp.ne.s32.totalorder %s301, %s303
      %p307 = scmp.eq.s32.totalorder %s31, 0
      %p308 = por %p306, %p307
      %p309 = scmp.ne.s32.totalorder %s301, %s303
      %p310 = scmp.eq.s32.totalorder %s36, 1
      %p311 = por %p309, %p310
      %p312 = scmp.ne.s32.totalorder %s303, %s304
      %p313 = scmp.eq.s32.totalorder %s36, 0
      %p314 = por %p312, %p313
      %p315 = scmp.ne.s32.totalorder %s303, %s304
      %p316 = scmp.eq.s32.totalorder %s37, 1
      %p317 = por %p315, %p316
      %p319 = scmp.ne.s32.totalorder %s304, %s318
      %p320 = scmp.eq.s32.totalorder %s37, 0
      %p321 = por %p319, %p320
      %s323 = sadd.s32 %s322, 1
      %p326 = scmp.eq.s32.totalorder %s31, 1
      %p327 = scmp.ne.s32.totalorder %s322, %s324
      %p328 = scmp.eq.s32.totalorder %s31, 0
      %p329 = por %p327, %p328
      %p330 = scmp.ne.s32.totalorder %s322, %s324
      %p331 = scmp.eq.s32.totalorder %s36, 1
      %p332 = por %p330, %p331
      %p333 = scmp.ne.s32.totalorder %s324, %s325
      %p334 = scmp.eq.s32.totalorder %s36, 0
      %p335 = por %p333, %p334
      %p336 = scmp.ne.s32.totalorder %s324, %s325
      %p337 = scmp.eq.s32.totalorder %s37, 1
      %p338 = por %p336, %p337
      %p340 = scmp.ne.s32.totalorder %s325, %s339
      %p341 = scmp.eq.s32.totalorder %s37, 0
      %p342 = por %p340, %p341
      %s344 = sadd.s32 %s343, 1
      %p347 = scmp.eq.s32.totalorder %s31, 1
      %p348 = scmp.ne.s32.totalorder %s343, %s345
      %p349 = scmp.eq.s32.totalorder %s31, 0
      %p350 = por %p348, %p349
      %p351 = scmp.ne.s32.totalorder %s343, %s345
      %p352 = scmp.eq.s32.totalorder %s36, 1
      %p353 = por %p351, %p352
      %p354 = scmp.ne.s32.totalorder %s345, %s346
      %p355 = scmp.eq.s32.totalorder %s36, 0
      %p356 = por %p354, %p355
      %p357 = scmp.ne.s32.totalorder %s345, %s346
      %p358 = scmp.eq.s32.totalorder %s37, 1
      %p359 = por %p357, %p358
      %p361 = scmp.ne.s32.totalorder %s346, %s360
      %p362 = scmp.eq.s32.totalorder %s37, 0
      %p363 = por %p361, %p362
      %s365 = sadd.s32 %s364, 1
      %p368 = scmp.eq.s32.totalorder %s31, 1
      %p369 = scmp.ne.s32.totalorder %s364, %s366
      %p370 = scmp.eq.s32.totalorder %s31, 0
      %p371 = por %p369, %p370
      %p372 = scmp.ne.s32.totalorder %s364, %s366
      %p373 = scmp.eq.s32.totalorder %s36, 1
      %p374 = por %p372, %p373
      %p375 = scmp.ne.s32.totalorder %s366, %s367
      %p376 = scmp.eq.s32.totalorder %s36, 0
      %p377 = por %p375, %p376
      %p378 = scmp.ne.s32.totalorder %s366, %s367
      %p379 = scmp.eq.s32.totalorder %s37, 1
      %p380 = por %p378, %p379
      %p382 = scmp.ne.s32.totalorder %s367, %s381
      %p383 = scmp.eq.s32.totalorder %s37, 0
      %p384 = por %p382, %p383
      %s385 = ssub.s32 %s31, %s38
      %p386 = scmp.eq.s32.totalorder %s385, 0
      %s388 = sadd.s32 %s387, 1
      %s389 = scalar_select %p386, %s387, %s388
      %p392 = pneg %p386
      %p393 = scmp.eq.s32.totalorder %s31, 1
      %p394 = por %p392, %p393
      %p395 = scmp.ne.s32.totalorder %s387, %s390
      %p396 = scmp.eq.s32.totalorder %s31, 0
      %p397 = por %p395, %p396
      %p398 = scmp.ne.s32.totalorder %s387, %s390
      %p399 = scmp.eq.s32.totalorder %s36, 1
      %p400 = por %p398, %p399
      %p401 = scmp.ne.s32.totalorder %s390, %s391
      %p402 = scmp.eq.s32.totalorder %s36, 0
      %p403 = por %p401, %p402
      %p404 = scmp.ne.s32.totalorder %s390, %s391
      %p405 = scmp.eq.s32.totalorder %s37, 1
      %p406 = por %p404, %p405
      %p408 = scmp.ne.s32.totalorder %s391, %s407
      %p409 = scmp.eq.s32.totalorder %s37, 0
      %p410 = por %p408, %p409
      %s411 = ssub.s32 %s31, %s38
      %p412 = scmp.eq.s32.totalorder %s411, 0
      %s414 = sadd.s32 %s413, 1
      %s415 = scalar_select %p412, %s413, %s414
      %p418 = pneg %p412
      %p419 = scmp.eq.s32.totalorder %s31, 1
      %p420 = por %p418, %p419
      %p421 = scmp.ne.s32.totalorder %s413, %s416
      %p422 = scmp.eq.s32.totalorder %s31, 0
      %p423 = por %p421, %p422
      %p424 = scmp.ne.s32.totalorder %s413, %s416
      %p425 = scmp.eq.s32.totalorder %s36, 1
      %p426 = por %p424, %p425
      %p427 = scmp.ne.s32.totalorder %s416, %s417
      %p428 = scmp.eq.s32.totalorder %s36, 0
      %p429 = por %p427, %p428
      %p430 = scmp.ne.s32.totalorder %s416, %s417
      %p431 = scmp.eq.s32.totalorder %s37, 1
      %p432 = por %p430, %p431
      %p434 = scmp.ne.s32.totalorder %s417, %s433
      %p435 = scmp.eq.s32.totalorder %s37, 0
      %p436 = por %p434, %p435
      %p437 = scmp.le.s32.totalorder 1, %s31
      %p438 = scmp.lt.s32.totalorder %s31, 3
      %p439 = pnand %p437, %p438
      %p440 = pneg %p439
      // Predicated region
      $region9: #{tpu_custom_call.1} parent=5 // pred_check
        _
      $region10: #{tpu_custom_call.1} parent=5 // pred_check_branch
        %442 = sbr.rel (%p439) target = $region12
      $region11: #{tpu_custom_call.1} parent=5 // pred_region
        %s443 = ssub.s32 %s31, 1
        // Predicated region
        $region13: #{tpu_custom_call.1} parent=11 // pred_check
          %p444 = pneg %p104
        $region14: #{tpu_custom_call.1} parent=11 // pred_check_branch
          %446 = sbr.rel (%p444) target = $region16
        $region15: #{tpu_custom_call.1} parent=11 // pred_region
          %s448 = ssub.s32 16, 16
          %449 = vsyncadd [#allocation4], %s448
          %s451 = sshll.u32 %s2, 4
          %s452 = int_to_ptr.vmem [resolvable:$true] %s451
          %454 = dma.vmem_to_smem %s452, 16, [#allocation2], [#allocation4]
        $region16: #{tpu_custom_call.1} parent=11 // pred_fallthru
          _
        // Predicated region
        $region17: #{tpu_custom_call.1} parent=11 // pred_check
          %p455 = pneg %p125
        $region18: #{tpu_custom_call.1} parent=11 // pred_check_branch
          %457 = sbr.rel (%p455) target = $region20
        $region19: #{tpu_custom_call.1} parent=11 // pred_region
          _
        $region20: #{tpu_custom_call.1} parent=11 // pred_fallthru
          _
        // Predicated region
        $region21: #{tpu_custom_call.1} parent=11 // pred_check
          %p458 = pneg %p146
        $region22: #{tpu_custom_call.1} parent=11 // pred_check_branch
          %460 = sbr.rel (%p458) target = $region24
        $region23: #{tpu_custom_call.1} parent=11 // pred_region
          _
        $region24: #{tpu_custom_call.1} parent=11 // pred_fallthru
          _
        // Predicated region
        $region25: #{tpu_custom_call.1} parent=11 // pred_check
          %p461 = pneg %p167
        $region26: #{tpu_custom_call.1} parent=11 // pred_check_branch
          %463 = sbr.rel (%p461) target = $region28
        $region27: #{tpu_custom_call.1} parent=11 // pred_region
          _
        $region28: #{tpu_custom_call.1} parent=11 // pred_fallthru
          _
        // Predicated region
        $region29: #{tpu_custom_call.1} parent=11 // pred_check
          %p464 = pneg %p188
        $region30: #{tpu_custom_call.1} parent=11 // pred_check_branch
          %466 = sbr.rel (%p464) target = $region32
        $region31: #{tpu_custom_call.1} parent=11 // pred_region
          _
        $region32: #{tpu_custom_call.1} parent=11 // pred_fallthru
          _
        // Predicated region
        $region33: #{tpu_custom_call.1} parent=11 // pred_check
          %p467 = pneg %p209
        $region34: #{tpu_custom_call.1} parent=11 // pred_check_branch
          %469 = sbr.rel (%p467) target = $region36
        $region35: #{tpu_custom_call.1} parent=11 // pred_region
          _
        $region36: #{tpu_custom_call.1} parent=11 // pred_fallthru
          _
        // Predicated region
        $region37: #{tpu_custom_call.1} parent=11 // pred_check
          %p470 = pneg %p230
        $region38: #{tpu_custom_call.1} parent=11 // pred_check_branch
          %472 = sbr.rel (%p470) target = $region40
        $region39: #{tpu_custom_call.1} parent=11 // pred_region
          _
        $region40: #{tpu_custom_call.1} parent=11 // pred_fallthru
          _
        // Predicated region
        $region41: #{tpu_custom_call.1} parent=11 // pred_check
          %p473 = pneg %p251
        $region42: #{tpu_custom_call.1} parent=11 // pred_check_branch
          %475 = sbr.rel (%p473) target = $region44
        $region43: #{tpu_custom_call.1} parent=11 // pred_region
          _
        $region44: #{tpu_custom_call.1} parent=11 // pred_fallthru
          _
        // Predicated region
        $region45: #{tpu_custom_call.1} parent=11 // pred_check
          %p476 = pneg %p272
        $region46: #{tpu_custom_call.1} parent=11 // pred_check_branch
          %478 = sbr.rel (%p476) target = $region48
        $region47: #{tpu_custom_call.1} parent=11 // pred_region
          _
        $region48: #{tpu_custom_call.1} parent=11 // pred_fallthru
          _
        // Predicated region
        $region49: #{tpu_custom_call.1} parent=11 // pred_check
          %p479 = pneg %p293
        $region50: #{tpu_custom_call.1} parent=11 // pred_check_branch
          %481 = sbr.rel (%p479) target = $region52
        $region51: #{tpu_custom_call.1} parent=11 // pred_region
          _
        $region52: #{tpu_custom_call.1} parent=11 // pred_fallthru
          _
        // Predicated region
        $region53: #{tpu_custom_call.1} parent=11 // pred_check
          %p482 = pneg %p314
        $region54: #{tpu_custom_call.1} parent=11 // pred_check_branch
          %484 = sbr.rel (%p482) target = $region56
        $region55: #{tpu_custom_call.1} parent=11 // pred_region
          _
        $region56: #{tpu_custom_call.1} parent=11 // pred_fallthru
          _
        // Predicated region
        $region57: #{tpu_custom_call.1} parent=11 // pred_check
          %p485 = pneg %p335
        $region58: #{tpu_custom_call.1} parent=11 // pred_check_branch
          %487 = sbr.rel (%p485) target = $region60
        $region59: #{tpu_custom_call.1} parent=11 // pred_region
          _
        $region60: #{tpu_custom_call.1} parent=11 // pred_fallthru
          _
        // Predicated region
        $region61: #{tpu_custom_call.1} parent=11 // pred_check
          %p488 = pneg %p356
        $region62: #{tpu_custom_call.1} parent=11 // pred_check_branch
          %490 = sbr.rel (%p488) target = $region64
        $region63: #{tpu_custom_call.1} parent=11 // pred_region
          _
        $region64: #{tpu_custom_call.1} parent=11 // pred_fallthru
          _
        // Predicated region
        $region65: #{tpu_custom_call.1} parent=11 // pred_check
          %p491 = pneg %p377
        $region66: #{tpu_custom_call.1} parent=11 // pred_check_branch
          %493 = sbr.rel (%p491) target = $region68
        $region67: #{tpu_custom_call.1} parent=11 // pred_region
          _
        $region68: #{tpu_custom_call.1} parent=11 // pred_fallthru
          _
      $region12: #{tpu_custom_call.1} parent=5 // pred_fallthru
        _
      %p494 = scmp.lt.s32.totalorder %s31, 2
      // Predicated region
      $region69: #{tpu_custom_call.1} parent=5 // pred_check
        %p495 = pneg %p494
      $region70: #{tpu_custom_call.1} parent=5 // pred_check_branch
        %497 = sbr.rel (%p495) target = $region72
      $region71: #{tpu_custom_call.1} parent=5 // pred_region
        // Predicated region
        $region73: #{tpu_custom_call.1} parent=71 // pred_check
          %p498 = pneg %p51
        $region74: #{tpu_custom_call.1} parent=71 // pred_check_branch
          %500 = sbr.rel (%p498) target = $region76
        $region75: #{tpu_custom_call.1} parent=71 // pred_region
          %p501 = scmp.lt.s32.totalorder %s31, 1
          %s502 = scalar_select %p501, %s31, 1
          %s503 = smul.addr %s502, 2
          %s504 = smul.addr %s503, 8
          %s505 = scalar_lea.vmem %s0, %s504
        $region76: #{tpu_custom_call.1} parent=71 // pred_fallthru
          _
        // Predicated region
        $region77: #{tpu_custom_call.1} parent=71 // pred_check
          %p506 = pneg %p77
        $region78: #{tpu_custom_call.1} parent=71 // pred_check_branch
          %508 = sbr.rel (%p506) target = $region80
        $region79: #{tpu_custom_call.1} parent=71 // pred_region
          %p509 = scmp.lt.s32.totalorder %s31, 1
          %s510 = scalar_select %p509, %s31, 1
          %s511 = smul.addr %s510, 8
          %s512 = scalar_lea.vmem %s1, %s511
        $region80: #{tpu_custom_call.1} parent=71 // pred_fallthru
          _
      $region72: #{tpu_custom_call.1} parent=5 // pred_fallthru
        _
      %p513 = scmp.le.s32.totalorder 1, %s31
      %p514 = scmp.lt.s32.totalorder %s31, 3
      %p515 = pnand %p513, %p514
      %p516 = pneg %p515
      // Predicated region
      $region81: #{tpu_custom_call.1} parent=5 // pred_check
        _
      $region82: #{tpu_custom_call.1} parent=5 // pred_check_branch
        %518 = sbr.rel (%p515) target = $region84
      $region83: #{tpu_custom_call.1} parent=5 // pred_region
        %s519 = ssub.s32 %s31, 1
        // Predicated region
        $region85: #{tpu_custom_call.1} parent=83 // pred_check
          %p520 = pneg %p104
        $region86: #{tpu_custom_call.1} parent=83 // pred_check_branch
          %522 = sbr.rel (%p520) target = $region88
        $region87: #{tpu_custom_call.1} parent=83 // pred_region
          %523 = dma.done [#allocation4], 16
        $region88: #{tpu_custom_call.1} parent=83 // pred_fallthru
          _
        %524 = sfence
        %p525 = scmp.lt.s32.totalorder %s36, 1
        %s526 = scalar_select %p525, %s36, 1
        %s527 = smul.addr %s526, 2
        %s528 = smul.addr %s527, 8
        %s529 = scalar_lea.vmem %s0, %s528
        %p530 = pneg %p57
        %p531 = pneg %p54
        %p532 = scmp.lt.s32.totalorder %s36, 1
        %s533 = scalar_select %p532, %s36, 1
        %s534 = smul.addr %s533, 8
        %s535 = scalar_lea.vmem %s1, %s534
        %p536 = pneg %p83
        %p537 = pneg %p80
        %p538 = pneg %p104
        %p539 = pneg %p101
        %p540 = pneg %p125
        %p541 = pneg %p122
        %p542 = pneg %p146
        %p543 = pneg %p143
        %p544 = pneg %p167
        %p545 = pneg %p164
        %p546 = pneg %p188
        %p547 = pneg %p185
        %p548 = pneg %p209
        %p549 = pneg %p206
        %p550 = pneg %p230
        %p551 = pneg %p227
        %p552 = pneg %p251
        %p553 = pneg %p248
        %p554 = pneg %p272
        %p555 = pneg %p269
        %p556 = pneg %p293
        %p557 = pneg %p290
        %p558 = pneg %p314
        %p559 = pneg %p311
        %p560 = pneg %p335
        %p561 = pneg %p332
        %p562 = pneg %p356
        %p563 = pneg %p353
        %p564 = pneg %p377
        %p565 = pneg %p374
        %p566 = pneg %p403
        %p567 = pneg %p400
        %s568 = sand.u32 %s390, 1
        %s569 = scalar_lea.sflag [#allocation3], %s568
        %s570 = sand.u32 %s390, 1
        %s571 = smul.addr %s570, 16
        %s572 = scalar_lea.vmem [#allocation5], %s571
        %p573 = pneg %p429
        %p574 = pneg %p426
        %s575 = sand.u32 %s416, 1
        %s576 = scalar_lea.sflag [#allocation7], %s575
        %s577 = sand.u32 %s416, 1
        %s578 = smul.addr %s577, 16
        %s579 = scalar_lea.vmem [#allocation6], %s578
        %p580 = scmp.lt.s32.totalorder %s36, 1
        %s581 = scalar_select %p580, %s36, 1
        %s582 = smul.addr %s581, 2
        %s583 = smul.addr %s582, 8
        %s584 = scalar_lea.vmem %s0, %s583
        %p585 = scmp.lt.s32.totalorder %s36, 1
        %s586 = scalar_select %p585, %s36, 1
        %s587 = smul.addr %s586, 8
        %s588 = scalar_lea.vmem %s1, %s587
        %v589 = vlaneseq
        %v590 = vand.u32 %v589, 127
        %v591 = vcvt.s32.f32 %v590
        %v592 = vadd.f32 %v591, 1.0
        %v593 = vmul.f32 %v592, 32.0
        %v594 = vrcp.pop %v593
        %v595 = vmul.f32 1.0, %v594
        %vm596 = vcmp.ge.s32.totalorder %v590, 1
        %vm597 = vcmp.ge.s32.totalorder %v590, 2
        %vm598 = vcmp.ge.s32.totalorder %v590, 4
        %vm599 = vcmp.ge.s32.totalorder %v590, 8
        %vm600 = vcmp.ge.s32.totalorder %v590, 16
        %vm601 = vcmp.ge.s32.totalorder %v590, 32
        %vm602 = vcmp.ge.s32.totalorder %v590, 64
        %vm603 = vcmp.lt.s32.totalorder %v590, 127
        %vm604 = vcmp.lt.s32.totalorder %v590, 126
        %vm605 = vcmp.lt.s32.totalorder %v590, 124
        %v606 = vld [vmem:[%s584] sm:$0xff]
        %v607 = vld [vmem:[%s584 + $0x8] sm:$0xff]
        %v608 = vld [vmem:[%s588] sm:$0xff]
        %s609 = sld [smem:[#allocation2]]
        %s610 = sld [smem:[#allocation2 + $0x1]]
        %v611 = vld [vmem:[%s3] sm:$0xff]
        %v612 = vld [vmem:[%s3 + $0x8] sm:$0xff]
        %v613 = vld [vmem:[%s3 + $0x10] sm:$0xff]
        %v614 = vld [vmem:[%s3 + $0x18] sm:$0xff]
        %v615 = vld [vmem:[%s4] sm:$0xff]
        %v616 = vld [vmem:[%s4 + $0x8] sm:$0xff]
        %v617 = vld [vmem:[%s4 + $0x10] sm:$0xff]
        %v618 = vld [vmem:[%s4 + $0x18] sm:$0xff]
        %620 = vset.pattern.permute.xlu0 0
        %621 = vperm.xlu0 %620, %v615
        %v622 = vpop.permute.xlu0 %621
        %625 = vset.pattern.permute.xlu0 0
        %626 = vperm.xlu0 %625, %v616
        %v627 = vpop.permute.xlu0 %626
        %630 = vset.pattern.permute.xlu0 0
        %631 = vperm.xlu0 %630, %v617
        %v632 = vpop.permute.xlu0 %631
        %635 = vset.pattern.permute.xlu0 0
        %636 = vperm.xlu0 %635, %v618
        %v637 = vpop.permute.xlu0 %636
        %vm639 = vcmask 130048
        %v641 = vsel %vm639, %v611, 0
        %v644 = vsel %vm639, %v612, 0
        %v647 = vsel %vm639, %v613, 0
        %v650 = vsel %vm639, %v614, 0
        %652 = vmatprep.subr.mxu0 0.0
        %653 = vmatpush1.msra.mxu0 %v606
        %654 = vmatprep.subr.mxu0 0.0
        %655 = vmatpush1.msra.mxu0 %v607
        %656 = vmatprep.subr.mxu0 0.0
        %657 = vmatpush1.msra.mxu0 0.0
        %658 = vmatprep.subr.mxu0 0.0
        %659 = vmatpush1.msra.mxu0 0.0
        %660 = vmatprep.subr.mxu0 0.0
        %661 = vmatpush1.msra.mxu0 0.0
        %662 = vmatprep.subr.mxu0 0.0
        %663 = vmatpush1.msra.mxu0 0.0
        %664 = vmatprep.subr.mxu0 0.0
        %665 = vmatpush1.msra.mxu0 0.0
        %666 = vmatprep.subr.mxu0 0.0
        %667 = vmatpush1.msra.mxu0 0.0
        %668 = vmatprep.subr.mxu0 0.0
        %669 = vmatpush1.msra.mxu0 0.0
        %670 = vmatprep.subr.mxu0 0.0
        %671 = vmatpush1.msra.mxu0 0.0
        %672 = vmatprep.subr.mxu0 0.0
        %673 = vmatpush1.msra.mxu0 0.0
        %674 = vmatprep.subr.mxu0 0.0
        %675 = vmatpush1.msra.mxu0 0.0
        %676 = vmatprep.subr.mxu0 0.0
        %677 = vmatpush1.msra.mxu0 0.0
        %678 = vmatprep.subr.mxu0 0.0
        %679 = vmatpush1.msra.mxu0 0.0
        %680 = vmatprep.subr.mxu0 0.0
        %681 = vmatpush1.msra.mxu0 0.0
        %682 = vmatprep.subr.mxu0 0.0
        %683 = vmatpush1.msra.mxu0 0.0
        %684 = vmatprep.subr.mxu0 0.0
        %685 = vmatpush1.msra.mxu0 0.0
        %686 = vmatprep.subr.mxu0 0.0
        %687 = vmatpush1.msra.mxu0 0.0
        %688 = vmatprep.subr.mxu0 0.0
        %689 = vmatpush1.msra.mxu0 0.0
        %690 = vmatprep.subr.mxu0 0.0
        %691 = vmatpush1.msra.mxu0 0.0
        %692 = vmatprep.subr.mxu0 0.0
        %693 = vmatpush1.msra.mxu0 0.0
        %694 = vmatprep.subr.mxu0 0.0
        %695 = vmatpush1.msra.mxu0 0.0
        %696 = vmatprep.subr.mxu0 0.0
        %697 = vmatpush1.msra.mxu0 0.0
        %698 = vmatprep.subr.mxu0 0.0
        %699 = vmatpush1.msra.mxu0 0.0
        %700 = vmatprep.subr.mxu0 0.0
        %701 = vmatpush1.msra.mxu0 0.0
        %702 = vmatprep.subr.mxu0 0.0
        %703 = vmatpush1.msra.mxu0 0.0
        %704 = vmatprep.subr.mxu0 0.0
        %705 = vmatpush1.msra.mxu0 0.0
        %706 = vmatprep.subr.mxu0 0.0
        %707 = vmatpush1.msra.mxu0 0.0
        %708 = vmatprep.subr.mxu0 0.0
        %709 = vmatpush1.msra.mxu0 0.0
        %710 = vmatprep.subr.mxu0 0.0
        %711 = vmatpush1.msra.mxu0 0.0
        %712 = vmatprep.subr.mxu0 0.0
        %713 = vmatpush1.msra.mxu0 0.0
        %714 = vmatprep.subr.mxu0 0.0
        %715 = vmatpush1.msra.mxu0 0.0
        %716 = vmatprep.mubr.f32.mxu0 0.0
        %717 = vmatmul.mubr.f32.gmra.mrb[0].mxu0 %v641
        %v718 = vpop.f32.mrb[0].mxu0
        %v719 = vadd.f32 %v622, %v718
        %v720 = vpop.f32.mrb[0].mxu0
        %721 = vmatprep.mubr.f32.mxu0 0.0
        %722 = vmatmul.mubr.f32.gmra.mrb[0].mxu0 %v644
        %v723 = vpop.f32.mrb[0].mxu0
        %v724 = vadd.f32 %v627, %v723
        %v725 = vpop.f32.mrb[0].mxu0
        %726 = vmatprep.mubr.f32.mxu0 0.0
        %727 = vmatmul.mubr.f32.gmra.mrb[0].mxu0 %v647
        %v728 = vpop.f32.mrb[0].mxu0
        %v729 = vadd.f32 %v632, %v728
        %v730 = vpop.f32.mrb[0].mxu0
        %731 = vmatprep.mubr.f32.mxu0 0.0
        %732 = vmatmul.mubr.f32.gmra.mrb[0].mxu0 %v650
        %v733 = vpop.f32.mrb[0].mxu0
        %v734 = vadd.f32 %v637, %v733
        %v735 = vpop.f32.mrb[0].mxu0
        %736 = vdwg.mxu0
        %vm737 = vcmp.ge.f32.partialorder %v719, 0.0
        %vm738 = vcmp.ge.f32.partialorder %v724, 0.0
        %vm739 = vcmp.ge.f32.partialorder %v729, 0.0
        %vm740 = vcmp.ge.f32.partialorder %v734, 0.0
        %v741 = vstv %s609
        %v742 = vmul.f32 %v741, %v719
        %v743 = vmul.f32 %v741, %v724
        %v744 = vmul.f32 %v741, %v729
        %v745 = vmul.f32 %v741, %v734
        %v746 = vsel %vm737, %v719, %v742
        %v747 = vsel %vm738, %v724, %v743
        %v748 = vsel %vm739, %v729, %v744
        %v749 = vsel %vm740, %v734, %v745
        %v750 = vld [vmem:[%s5] sm:$0xff]
        %v751 = vld [vmem:[%s5 + $0x8] sm:$0xff]
        %v752 = vld [vmem:[%s5 + $0x10] sm:$0xff]
        %v753 = vld [vmem:[%s5 + $0x18] sm:$0xff]
        %v754 = vld [vmem:[%s6] sm:$0xff]
        %v755 = vld [vmem:[%s6 + $0x8] sm:$0xff]
        %v756 = vld [vmem:[%s6 + $0x10] sm:$0xff]
        %v757 = vld [vmem:[%s6 + $0x18] sm:$0xff]
        %v758 = vadd.f32 %v746, %v747
        %v759 = vadd.f32 %v758, %v748
        %v760 = vadd.f32 %v759, %v749
        %v761 = vrot.slane %v760, 4
        %v762 = vadd.f32 %v760, %v761
        %v763 = vrot.slane %v762, 2
        %v764 = vadd.f32 %v762, %v763
        %v765 = vrot.slane %v764, 1
        %v766 = vadd.f32 %v764, %v765
        %v767 = vmul.f32 %v746, %v746
        %v768 = vmul.f32 %v747, %v747
        %v769 = vmul.f32 %v748, %v748
        %v770 = vmul.f32 %v749, %v749
        %v771 = vadd.f32 %v767, %v768
        %v772 = vadd.f32 %v771, %v769
        %v773 = vadd.f32 %v772, %v770
        %v774 = vrot.slane %v773, 4
        %v775 = vadd.f32 %v773, %v774
        %v776 = vrot.slane %v775, 2
        %v777 = vadd.f32 %v775, %v776
        %v778 = vrot.slane %v777, 1
        %v779 = vadd.f32 %v777, %v778
        %vm780 = vcmask 1040384
        %v781 = vsel %vm780, %v766, %v779
        %782 = vrot.lane.b32.xlu0 %v781, 1
        %v783 = vpop.permute.xlu0 %782
        %v784 = vsel %vm596, 1, 0
        %vm785 = vcmp.eq.s32.totalorder %v784, 1
        %v786 = vsel %vm785, %v783, 0.0
        %v787 = vadd.f32 %v781, %v786
        %788 = vrot.lane.b32.xlu0 %v787, 2
        %v789 = vpop.permute.xlu0 %788
        %v790 = vsel %vm597, 1, 0
        %vm791 = vcmp.eq.s32.totalorder %v790, 1
        %v792 = vsel %vm791, %v789, 0.0
        %v793 = vadd.f32 %v787, %v792
        %794 = vrot.lane.b32.xlu0 %v793, 4
        %v795 = vpop.permute.xlu0 %794
        %v796 = vsel %vm598, 1, 0
        %vm797 = vcmp.eq.s32.totalorder %v796, 1
        %v798 = vsel %vm797, %v795, 0.0
        %v799 = vadd.f32 %v793, %v798
        %800 = vrot.lane.b32.xlu0 %v799, 8
        %v801 = vpop.permute.xlu0 %800
        %v802 = vsel %vm599, 1, 0
        %vm803 = vcmp.eq.s32.totalorder %v802, 1
        %v804 = vsel %vm803, %v801, 0.0
        %v805 = vadd.f32 %v799, %v804
        %806 = vrot.lane.b32.xlu0 %v805, 16
        %v807 = vpop.permute.xlu0 %806
        %v808 = vsel %vm600, 1, 0
        %vm809 = vcmp.eq.s32.totalorder %v808, 1
        %v810 = vsel %vm809, %v807, 0.0
        %v811 = vadd.f32 %v805, %v810
        %812 = vrot.lane.b32.xlu0 %v811, 32
        %v813 = vpop.permute.xlu0 %812
        %v814 = vsel %vm601, 1, 0
        %vm815 = vcmp.eq.s32.totalorder %v814, 1
        %v816 = vsel %vm815, %v813, 0.0
        %v817 = vadd.f32 %v811, %v816
        %818 = vrot.lane.b32.xlu0 %v817, 64
        %v819 = vpop.permute.xlu0 %818
        %v820 = vsel %vm602, 1, 0
        %vm821 = vcmp.eq.s32.totalorder %v820, 1
        %v822 = vsel %vm821, %v819, 0.0
        %v823 = vadd.f32 %v817, %v822
        %v824 = vmul.f32 %v823, %v595
        %v825 = vmul.f32 %v824, 2.0
        %v826 = vmul.f32 %v825, %v823
        %v828 = vrot.slane %v826, 7
        %v830 = vsub.f32 %v823, %v828
        %v831 = vmul.f32 %v830, %v595
        %v832 = vmul.f32 %v824, %v824
        %v834 = vrot.slane %v832, 7
        %v836 = vadd.f32 %v831, %v834
        %v837 = vmax.f32 %v836, 0.0
        %v838 = vadd.f32 %v837, 1e-08
        %v839 = vrsqrt.pop %v838
        %v840 = vlaneseq
        %v841 = vshrl.u32 %v840, 7
        %v842 = vsub.s32 0, %v841
        %v843 = vrot.slane %v824, %v842
        %v844 = vsub.f32 %v746, %v843
        %v845 = vsub.f32 %v747, %v843
        %v846 = vsub.f32 %v748, %v843
        %v847 = vsub.f32 %v749, %v843
        %v848 = vlaneseq
        %v849 = vshrl.u32 %v848, 7
        %v850 = vsub.s32 1, %v849
        %v851 = vrot.slane %v839, %v850
        %v852 = vmul.f32 %v844, %v851
        %v853 = vmul.f32 %v845, %v851
        %v854 = vmul.f32 %v846, %v851
        %v855 = vmul.f32 %v847, %v851
        %857 = vset.pattern.permute.xlu0 0
        %858 = vperm.xlu0 %857, %v750
        %v859 = vpop.permute.xlu0 %858
        %862 = vset.pattern.permute.xlu0 0
        %863 = vperm.xlu0 %862, %v751
        %v864 = vpop.permute.xlu0 %863
        %867 = vset.pattern.permute.xlu0 0
        %868 = vperm.xlu0 %867, %v752
        %v869 = vpop.permute.xlu0 %868
        %872 = vset.pattern.permute.xlu0 0
        %873 = vperm.xlu0 %872, %v753
        %v874 = vpop.permute.xlu0 %873
        %v876 = vmul.f32 %v852, %v859
        %v877 = vmul.f32 %v853, %v864
        %v878 = vmul.f32 %v854, %v869
        %v879 = vmul.f32 %v855, %v874
        %881 = vset.pattern.permute.xlu0 0
        %882 = vperm.xlu0 %881, %v754
        %v883 = vpop.permute.xlu0 %882
        %886 = vset.pattern.permute.xlu0 0
        %887 = vperm.xlu0 %886, %v755
        %v888 = vpop.permute.xlu0 %887
        %891 = vset.pattern.permute.xlu0 0
        %892 = vperm.xlu0 %891, %v756
        %v893 = vpop.permute.xlu0 %892
        %896 = vset.pattern.permute.xlu0 0
        %897 = vperm.xlu0 %896, %v757
        %v898 = vpop.permute.xlu0 %897
        %v900 = vadd.f32 %v876, %v883
        %v901 = vadd.f32 %v877, %v888
        %v902 = vadd.f32 %v878, %v893
        %v903 = vadd.f32 %v879, %v898
        %v904 = vld [vmem:[%s7] sm:$0xff]
        %v905 = vld [vmem:[%s7 + $0x8] sm:$0xff]
        %v906 = vld [vmem:[%s7 + $0x10] sm:$0xff]
        %v907 = vld [vmem:[%s7 + $0x18] sm:$0xff]
        %908 = vrot.lane.b32.xlu0 %v900, 1
        %v909 = vpop.permute.xlu0 %908
        %910 = vrot.lane.b32.xlu0 %v901, 1
        %v911 = vpop.permute.xlu0 %910
        %912 = vrot.lane.b32.xlu0 %v902, 1
        %v913 = vpop.permute.xlu0 %912
        %914 = vrot.lane.b32.xlu0 %v903, 1
        %v915 = vpop.permute.xlu0 %914
        %v916 = vsel %vm785, %v909, 0.0
        %v917 = vsel %vm785, %v911, 0.0
        %v918 = vsel %vm785, %v913, 0.0
        %v919 = vsel %vm785, %v915, 0.0
        %920 = vrot.lane.b32.xlu0 %v900, 127
        %v921 = vpop.permute.xlu0 %920
        %922 = vrot.lane.b32.xlu0 %v901, 127
        %v923 = vpop.permute.xlu0 %922
        %924 = vrot.lane.b32.xlu0 %v902, 127
        %v925 = vpop.permute.xlu0 %924
        %926 = vrot.lane.b32.xlu0 %v903, 127
        %v927 = vpop.permute.xlu0 %926
        %v928 = vsel %vm603, 1, 0
        %vm929 = vcmp.eq.s32.totalorder %v928, 1
        %v930 = vsel %vm929, %v921, 0.0
        %v931 = vsel %vm929, %v923, 0.0
        %v932 = vsel %vm929, %v925, 0.0
        %v933 = vsel %vm929, %v927, 0.0
        %935 = vset.pattern.permute.xlu0 0
        %936 = vperm.xlu0 %935, %v904
        %v937 = vpop.permute.xlu0 %936
        %940 = vset.pattern.permute.xlu0 0
        %941 = vperm.xlu0 %940, %v905
        %v942 = vpop.permute.xlu0 %941
        %945 = vset.pattern.permute.xlu0 0
        %946 = vperm.xlu0 %945, %v906
        %v947 = vpop.permute.xlu0 %946
        %950 = vset.pattern.permute.xlu0 0
        %951 = vperm.xlu0 %950, %v907
        %v952 = vpop.permute.xlu0 %951
        %v954 = vmul.f32 %v937, %v916
        %v955 = vmul.f32 %v942, %v917
        %v956 = vmul.f32 %v947, %v918
        %v957 = vmul.f32 %v952, %v919
        %958 = vset.pattern.permute.xlu0 1
        %959 = vperm.xlu0 %958, %v904
        %v960 = vpop.permute.xlu0 %959
        %962 = vset.pattern.permute.xlu0 1
        %963 = vperm.xlu0 %962, %v905
        %v964 = vpop.permute.xlu0 %963
        %966 = vset.pattern.permute.xlu0 1
        %967 = vperm.xlu0 %966, %v906
        %v968 = vpop.permute.xlu0 %967
        %970 = vset.pattern.permute.xlu0 1
        %971 = vperm.xlu0 %970, %v907
        %v972 = vpop.permute.xlu0 %971
        %v974 = vmul.f32 %v960, %v900
        %v975 = vmul.f32 %v964, %v901
        %v976 = vmul.f32 %v968, %v902
        %v977 = vmul.f32 %v972, %v903
        %v978 = vadd.f32 %v954, %v974
        %v979 = vadd.f32 %v955, %v975
        %v980 = vadd.f32 %v956, %v976
        %v981 = vadd.f32 %v957, %v977
        %982 = vset.pattern.permute.xlu0 2
        %983 = vperm.xlu0 %982, %v904
        %v984 = vpop.permute.xlu0 %983
        %986 = vset.pattern.permute.xlu0 2
        %987 = vperm.xlu0 %986, %v905
        %v988 = vpop.permute.xlu0 %987
        %990 = vset.pattern.permute.xlu0 2
        %991 = vperm.xlu0 %990, %v906
        %v992 = vpop.permute.xlu0 %991
        %994 = vset.pattern.permute.xlu0 2
        %995 = vperm.xlu0 %994, %v907
        %v996 = vpop.permute.xlu0 %995
        %v998 = vmul.f32 %v984, %v930
        %v999 = vmul.f32 %v988, %v931
        %v1000 = vmul.f32 %v992, %v932
        %v1001 = vmul.f32 %v996, %v933
        %v1002 = vadd.f32 %v978, %v998
        %v1003 = vadd.f32 %v979, %v999
        %v1004 = vadd.f32 %v980, %v1000
        %v1005 = vadd.f32 %v981, %v1001
        %v1006 = vld [vmem:[%s8] sm:$0xff]
        %v1007 = vld [vmem:[%s8 + $0x8] sm:$0xff]
        %v1008 = vld [vmem:[%s8 + $0x10] sm:$0xff]
        %v1009 = vld [vmem:[%s8 + $0x18] sm:$0xff]
        %1011 = vset.pattern.permute.xlu0 0
        %1012 = vperm.xlu0 %1011, %v1006
        %v1013 = vpop.permute.xlu0 %1012
        %1016 = vset.pattern.permute.xlu0 0
        %1017 = vperm.xlu0 %1016, %v1007
        %v1018 = vpop.permute.xlu0 %1017
        %1021 = vset.pattern.permute.xlu0 0
        %1022 = vperm.xlu0 %1021, %v1008
        %v1023 = vpop.permute.xlu0 %1022
        %1026 = vset.pattern.permute.xlu0 0
        %1027 = vperm.xlu0 %1026, %v1009
        %v1028 = vpop.permute.xlu0 %1027
        %v1030 = vadd.f32 %v1002, %v1013
        %v1031 = vadd.f32 %v1003, %v1018
        %v1032 = vadd.f32 %v1004, %v1023
        %v1033 = vadd.f32 %v1005, %v1028
        %vm1034 = vcmp.ge.f32.partialorder %v1030, 0.0
        %vm1035 = vcmp.ge.f32.partialorder %v1031, 0.0
        %vm1036 = vcmp.ge.f32.partialorder %v1032, 0.0
        %vm1037 = vcmp.ge.f32.partialorder %v1033, 0.0
        %v1038 = vstv %s610
        %v1039 = vmul.f32 %v1038, %v1030
        %v1040 = vmul.f32 %v1038, %v1031
        %v1041 = vmul.f32 %v1038, %v1032
        %v1042 = vmul.f32 %v1038, %v1033
        %v1043 = vsel %vm1034, %v1030, %v1039
        %v1044 = vsel %vm1035, %v1031, %v1040
        %v1045 = vsel %vm1036, %v1032, %v1041
        %v1046 = vsel %vm1037, %v1033, %v1042
        %v1047 = vld [vmem:[%s9] sm:$0xff]
        %v1048 = vld [vmem:[%s9 + $0x8] sm:$0xff]
        %v1049 = vld [vmem:[%s9 + $0x10] sm:$0xff]
        %v1050 = vld [vmem:[%s9 + $0x18] sm:$0xff]
        %v1051 = vld [vmem:[%s10] sm:$0xff]
        %v1052 = vld [vmem:[%s10 + $0x8] sm:$0xff]
        %v1053 = vld [vmem:[%s10 + $0x10] sm:$0xff]
        %v1054 = vld [vmem:[%s10 + $0x18] sm:$0xff]
        %v1055 = vadd.f32 %v1043, %v1044
        %v1056 = vadd.f32 %v1055, %v1045
        %v1057 = vadd.f32 %v1056, %v1046
        %v1058 = vrot.slane %v1057, 4
        %v1059 = vadd.f32 %v1057, %v1058
        %v1060 = vrot.slane %v1059, 2
        %v1061 = vadd.f32 %v1059, %v1060
        %v1062 = vrot.slane %v1061, 1
        %v1063 = vadd.f32 %v1061, %v1062
        %v1064 = vmul.f32 %v1043, %v1043
        %v1065 = vmul.f32 %v1044, %v1044
        %v1066 = vmul.f32 %v1045, %v1045
        %v1067 = vmul.f32 %v1046, %v1046
        %v1068 = vadd.f32 %v1064, %v1065
        %v1069 = vadd.f32 %v1068, %v1066
        %v1070 = vadd.f32 %v1069, %v1067
        %v1071 = vrot.slane %v1070, 4
        %v1072 = vadd.f32 %v1070, %v1071
        %v1073 = vrot.slane %v1072, 2
        %v1074 = vadd.f32 %v1072, %v1073
        %v1075 = vrot.slane %v1074, 1
        %v1076 = vadd.f32 %v1074, %v1075
        %v1077 = vsel %vm780, %v1063, %v1076
        %1078 = vrot.lane.b32.xlu0 %v1077, 1
        %v1079 = vpop.permute.xlu0 %1078
        %v1080 = vsel %vm785, %v1079, 0.0
        %v1081 = vadd.f32 %v1077, %v1080
        %1082 = vrot.lane.b32.xlu0 %v1081, 2
        %v1083 = vpop.permute.xlu0 %1082
        %v1084 = vsel %vm791, %v1083, 0.0
        %v1085 = vadd.f32 %v1081, %v1084
        %1086 = vrot.lane.b32.xlu0 %v1085, 4
        %v1087 = vpop.permute.xlu0 %1086
        %v1088 = vsel %vm797, %v1087, 0.0
        %v1089 = vadd.f32 %v1085, %v1088
        %1090 = vrot.lane.b32.xlu0 %v1089, 8
        %v1091 = vpop.permute.xlu0 %1090
        %v1092 = vsel %vm803, %v1091, 0.0
        %v1093 = vadd.f32 %v1089, %v1092
        %1094 = vrot.lane.b32.xlu0 %v1093, 16
        %v1095 = vpop.permute.xlu0 %1094
        %v1096 = vsel %vm809, %v1095, 0.0
        %v1097 = vadd.f32 %v1093, %v1096
        %1098 = vrot.lane.b32.xlu0 %v1097, 32
        %v1099 = vpop.permute.xlu0 %1098
        %v1100 = vsel %vm815, %v1099, 0.0
        %v1101 = vadd.f32 %v1097, %v1100
        %1102 = vrot.lane.b32.xlu0 %v1101, 64
        %v1103 = vpop.permute.xlu0 %1102
        %v1104 = vsel %vm821, %v1103, 0.0
        %v1105 = vadd.f32 %v1101, %v1104
        %v1106 = vmul.f32 %v1105, %v595
        %v1107 = vmul.f32 %v1106, 2.0
        %v1108 = vmul.f32 %v1107, %v1105
        %v1110 = vrot.slane %v1108, 7
        %v1112 = vsub.f32 %v1105, %v1110
        %v1113 = vmul.f32 %v1112, %v595
        %v1114 = vmul.f32 %v1106, %v1106
        %v1116 = vrot.slane %v1114, 7
        %v1118 = vadd.f32 %v1113, %v1116
        %v1119 = vmax.f32 %v1118, 0.0
        %v1120 = vadd.f32 %v1119, 1e-08
        %v1121 = vrsqrt.pop %v1120
        %v1122 = vlaneseq
        %v1123 = vshrl.u32 %v1122, 7
        %v1124 = vsub.s32 0, %v1123
        %v1125 = vrot.slane %v1106, %v1124
        %v1126 = vsub.f32 %v1043, %v1125
        %v1127 = vsub.f32 %v1044, %v1125
        %v1128 = vsub.f32 %v1045, %v1125
        %v1129 = vsub.f32 %v1046, %v1125
        %v1130 = vlaneseq
        %v1131 = vshrl.u32 %v1130, 7
        %v1132 = vsub.s32 1, %v1131
        %v1133 = vrot.slane %v1121, %v1132
        %v1134 = vmul.f32 %v1126, %v1133
        %v1135 = vmul.f32 %v1127, %v1133
        %v1136 = vmul.f32 %v1128, %v1133
        %v1137 = vmul.f32 %v1129, %v1133
        %1139 = vset.pattern.permute.xlu0 0
        %1140 = vperm.xlu0 %1139, %v1047
        %v1141 = vpop.permute.xlu0 %1140
        %1144 = vset.pattern.permute.xlu0 0
        %1145 = vperm.xlu0 %1144, %v1048
        %v1146 = vpop.permute.xlu0 %1145
        %1149 = vset.pattern.permute.xlu0 0
        %1150 = vperm.xlu0 %1149, %v1049
        %v1151 = vpop.permute.xlu0 %1150
        %1154 = vset.pattern.permute.xlu0 0
        %1155 = vperm.xlu0 %1154, %v1050
        %v1156 = vpop.permute.xlu0 %1155
        %v1158 = vmul.f32 %v1134, %v1141
        %v1159 = vmul.f32 %v1135, %v1146
        %v1160 = vmul.f32 %v1136, %v1151
        %v1161 = vmul.f32 %v1137, %v1156
        %1163 = vset.pattern.permute.xlu0 0
        %1164 = vperm.xlu0 %1163, %v1051
        %v1165 = vpop.permute.xlu0 %1164
        %1168 = vset.pattern.permute.xlu0 0
        %1169 = vperm.xlu0 %1168, %v1052
        %v1170 = vpop.permute.xlu0 %1169
        %1173 = vset.pattern.permute.xlu0 0
        %1174 = vperm.xlu0 %1173, %v1053
        %v1175 = vpop.permute.xlu0 %1174
        %1178 = vset.pattern.permute.xlu0 0
        %1179 = vperm.xlu0 %1178, %v1054
        %v1180 = vpop.permute.xlu0 %1179
        %v1182 = vadd.f32 %v1158, %v1165
        %v1183 = vadd.f32 %v1159, %v1170
        %v1184 = vadd.f32 %v1160, %v1175
        %v1185 = vadd.f32 %v1161, %v1180
        %v1186 = vld [vmem:[%s11] sm:$0xff]
        %v1187 = vld [vmem:[%s11 + $0x8] sm:$0xff]
        %v1188 = vld [vmem:[%s11 + $0x10] sm:$0xff]
        %v1189 = vld [vmem:[%s11 + $0x18] sm:$0xff]
        %v1190 = vld [vmem:[%s12] sm:$0xff]
        %v1191 = vld [vmem:[%s12 + $0x8] sm:$0xff]
        %v1192 = vld [vmem:[%s12 + $0x10] sm:$0xff]
        %v1193 = vld [vmem:[%s12 + $0x18] sm:$0xff]
        %1195 = vset.pattern.permute.xlu0 0
        %1196 = vperm.xlu0 %1195, %v1190
        %v1197 = vpop.permute.xlu0 %1196
        %1200 = vset.pattern.permute.xlu0 0
        %1201 = vperm.xlu0 %1200, %v1191
        %v1202 = vpop.permute.xlu0 %1201
        %1205 = vset.pattern.permute.xlu0 0
        %1206 = vperm.xlu0 %1205, %v1192
        %v1207 = vpop.permute.xlu0 %1206
        %1210 = vset.pattern.permute.xlu0 0
        %1211 = vperm.xlu0 %1210, %v1193
        %v1212 = vpop.permute.xlu0 %1211
        %vm1214 = vcmask 261120
        %v1216 = vsel %vm1214, %v1186, 0
        %v1219 = vsel %vm1214, %v1187, 0
        %v1222 = vsel %vm1214, %v1188, 0
        %v1225 = vsel %vm1214, %v1189, 0
        %1227 = vmatprep.subr.mxu0 0.0
        %1228 = vmatpush1.msra.mxu0 %v1182
        %1229 = vmatprep.subr.mxu0 0.0
        %1230 = vmatpush1.msra.mxu0 %v1183
        %1231 = vmatprep.subr.mxu0 0.0
        %1232 = vmatpush1.msra.mxu0 %v1184
        %1233 = vmatprep.subr.mxu0 0.0
        %1234 = vmatpush1.msra.mxu0 %v1185
        %1235 = vmatprep.subr.mxu0 0.0
        %1236 = vmatpush1.msra.mxu0 0.0
        %1237 = vmatprep.subr.mxu0 0.0
        %1238 = vmatpush1.msra.mxu0 0.0
        %1239 = vmatprep.subr.mxu0 0.0
        %1240 = vmatpush1.msra.mxu0 0.0
        %1241 = vmatprep.subr.mxu0 0.0
        %1242 = vmatpush1.msra.mxu0 0.0
        %1243 = vmatprep.subr.mxu0 0.0
        %1244 = vmatpush1.msra.mxu0 0.0
        %1245 = vmatprep.subr.mxu0 0.0
        %1246 = vmatpush1.msra.mxu0 0.0
        %1247 = vmatprep.subr.mxu0 0.0
        %1248 = vmatpush1.msra.mxu0 0.0
        %1249 = vmatprep.subr.mxu0 0.0
        %1250 = vmatpush1.msra.mxu0 0.0
        %1251 = vmatprep.subr.mxu0 0.0
        %1252 = vmatpush1.msra.mxu0 0.0
        %1253 = vmatprep.subr.mxu0 0.0
        %1254 = vmatpush1.msra.mxu0 0.0
        %1255 = vmatprep.subr.mxu0 0.0
        %1256 = vmatpush1.msra.mxu0 0.0
        %1257 = vmatprep.subr.mxu0 0.0
        %1258 = vmatpush1.msra.mxu0 0.0
        %1259 = vmatprep.subr.mxu0 0.0
        %1260 = vmatpush1.msra.mxu0 0.0
        %1261 = vmatprep.subr.mxu0 0.0
        %1262 = vmatpush1.msra.mxu0 0.0
        %1263 = vmatprep.subr.mxu0 0.0
        %1264 = vmatpush1.msra.mxu0 0.0
        %1265 = vmatprep.subr.mxu0 0.0
        %1266 = vmatpush1.msra.mxu0 0.0
        %1267 = vmatprep.subr.mxu0 0.0
        %1268 = vmatpush1.msra.mxu0 0.0
        %1269 = vmatprep.subr.mxu0 0.0
        %1270 = vmatpush1.msra.mxu0 0.0
        %1271 = vmatprep.subr.mxu0 0.0
        %1272 = vmatpush1.msra.mxu0 0.0
        %1273 = vmatprep.subr.mxu0 0.0
        %1274 = vmatpush1.msra.mxu0 0.0
        %1275 = vmatprep.subr.mxu0 0.0
        %1276 = vmatpush1.msra.mxu0 0.0
        %1277 = vmatprep.subr.mxu0 0.0
        %1278 = vmatpush1.msra.mxu0 0.0
        %1279 = vmatprep.subr.mxu0 0.0
        %1280 = vmatpush1.msra.mxu0 0.0
        %1281 = vmatprep.subr.mxu0 0.0
        %1282 = vmatpush1.msra.mxu0 0.0
        %1283 = vmatprep.subr.mxu0 0.0
        %1284 = vmatpush1.msra.mxu0 0.0
        %1285 = vmatprep.subr.mxu0 0.0
        %1286 = vmatpush1.msra.mxu0 0.0
        %1287 = vmatprep.subr.mxu0 0.0
        %1288 = vmatpush1.msra.mxu0 0.0
        %1289 = vmatprep.subr.mxu0 0.0
        %1290 = vmatpush1.msra.mxu0 0.0
        %1291 = vmatprep.mubr.f32.mxu0 0.0
        %1292 = vmatmul.mubr.f32.gmra.mrb[0].mxu0 %v1216
        %v1293 = vpop.f32.mrb[0].mxu0
        %v1294 = vadd.f32 %v1197, %v1293
        %v1295 = vpop.f32.mrb[0].mxu0
        %1296 = vmatprep.mubr.f32.mxu0 0.0
        %1297 = vmatmul.mubr.f32.gmra.mrb[0].mxu0 %v1219
        %v1298 = vpop.f32.mrb[0].mxu0
        %v1299 = vadd.f32 %v1202, %v1298
        %v1300 = vpop.f32.mrb[0].mxu0
        %1301 = vmatprep.mubr.f32.mxu0 0.0
        %1302 = vmatmul.mubr.f32.gmra.mrb[0].mxu0 %v1222
        %v1303 = vpop.f32.mrb[0].mxu0
        %v1304 = vadd.f32 %v1207, %v1303
        %v1305 = vpop.f32.mrb[0].mxu0
        %1306 = vmatprep.mubr.f32.mxu0 0.0
        %1307 = vmatmul.mubr.f32.gmra.mrb[0].mxu0 %v1225
        %v1308 = vpop.f32.mrb[0].mxu0
        %v1309 = vadd.f32 %v1212, %v1308
        %v1310 = vpop.f32.mrb[0].mxu0
        %1311 = vdwg.mxu0
        %v1312 = vadd.f32 %v606, %v1294
        %v1313 = vadd.f32 %v607, %v1299
        %v1314 = vadd.f32 %v1304, 0.0
        %v1315 = vadd.f32 %v1309, 0.0
        %s1316 = sld [smem:[#allocation2 + $0x2]]
        %s1317 = sld [smem:[#allocation2 + $0x3]]
        %s1318 = scalar_lea.vmem %s3, 32
        %v1319 = vld [vmem:[%s1318] sm:$0xff]
        %v1320 = vld [vmem:[%s1318 + $0x8] sm:$0xff]
        %v1321 = vld [vmem:[%s1318 + $0x10] sm:$0xff]
        %v1322 = vld [vmem:[%s1318 + $0x18] sm:$0xff]
        %s1323 = scalar_lea.vmem %s4, 32
        %v1324 = vld [vmem:[%s1323] sm:$0xff]
        %v1325 = vld [vmem:[%s1323 + $0x8] sm:$0xff]
        %v1326 = vld [vmem:[%s1323 + $0x10] sm:$0xff]
        %v1327 = vld [vmem:[%s1323 + $0x18] sm:$0xff]
        %1329 = vset.pattern.permute.xlu0 0
        %1330 = vperm.xlu0 %1329, %v1324
        %v1331 = vpop.permute.xlu0 %1330
        %1334 = vset.pattern.permute.xlu0 0
        %1335 = vperm.xlu0 %1334, %v1325
        %v1336 = vpop.permute.xlu0 %1335
        %1339 = vset.pattern.permute.xlu0 0
        %1340 = vperm.xlu0 %1339, %v1326
        %v1341 = vpop.permute.xlu0 %1340
        %1344 = vset.pattern.permute.xlu0 0
        %1345 = vperm.xlu0 %1344, %v1327
        %v1346 = vpop.permute.xlu0 %1345
        %v1349 = vsel %vm639, %v1319, 0
        %v1352 = vsel %vm639, %v1320, 0
        %v1355 = vsel %vm639, %v1321, 0
        %v1358 = vsel %vm639, %v1322, 0
        %1360 = vmatprep.subr.mxu0 0.0
        %1361 = vmatpush1.msra.mxu0 %v1312
        %1362 = vmatprep.subr.mxu0 0.0
        %1363 = vmatpush1.msra.mxu0 %v1313
        %1364 = vmatprep.subr.mxu0 0.0
        %1365 = vmatpush1.msra.mxu0 0.0
        %1366 = vmatprep.subr.mxu0 0.0
        %1367 = vmatpush1.msra.mxu0 0.0
        %1368 = vmatprep.subr.mxu0 0.0
        %1369 = vmatpush1.msra.mxu0 0.0
        %1370 = vmatprep.subr.mxu0 0.0
        %1371 = vmatpush1.msra.mxu0 0.0
        %1372 = vmatprep.subr.mxu0 0.0
        %1373 = vmatpush1.msra.mxu0 0.0
        %1374 = vmatprep.subr.mxu0 0.0
        %1375 = vmatpush1.msra.mxu0 0.0
        %1376 = vmatprep.subr.mxu0 0.0
        %1377 = vmatpush1.msra.mxu0 0.0
        %1378 = vmatprep.subr.mxu0 0.0
        %1379 = vmatpush1.msra.mxu0 0.0
        %1380 = vmatprep.subr.mxu0 0.0
        %1381 = vmatpush1.msra.mxu0 0.0
        %1382 = vmatprep.subr.mxu0 0.0
        %1383 = vmatpush1.msra.mxu0 0.0
        %1384 = vmatprep.subr.mxu0 0.0
        %1385 = vmatpush1.msra.mxu0 0.0
        %1386 = vmatprep.subr.mxu0 0.0
        %1387 = vmatpush1.msra.mxu0 0.0
        %1388 = vmatprep.subr.mxu0 0.0
        %1389 = vmatpush1.msra.mxu0 0.0
        %1390 = vmatprep.subr.mxu0 0.0
        %1391 = vmatpush1.msra.mxu0 0.0
        %1392 = vmatprep.subr.mxu0 0.0
        %1393 = vmatpush1.msra.mxu0 0.0
        %1394 = vmatprep.subr.mxu0 0.0
        %1395 = vmatpush1.msra.mxu0 0.0
        %1396 = vmatprep.subr.mxu0 0.0
        %1397 = vmatpush1.msra.mxu0 0.0
        %1398 = vmatprep.subr.mxu0 0.0
        %1399 = vmatpush1.msra.mxu0 0.0
        %1400 = vmatprep.subr.mxu0 0.0
        %1401 = vmatpush1.msra.mxu0 0.0
        %1402 = vmatprep.subr.mxu0 0.0
        %1403 = vmatpush1.msra.mxu0 0.0
        %1404 = vmatprep.subr.mxu0 0.0
        %1405 = vmatpush1.msra.mxu0 0.0
        %1406 = vmatprep.subr.mxu0 0.0
        %1407 = vmatpush1.msra.mxu0 0.0
        %1408 = vmatprep.subr.mxu0 0.0
        %1409 = vmatpush1.msra.mxu0 0.0
        %1410 = vmatprep.subr.mxu0 0.0
        %1411 = vmatpush1.msra.mxu0 0.0
        %1412 = vmatprep.subr.mxu0 0.0
        %1413 = vmatpush1.msra.mxu0 0.0
        %1414 = vmatprep.subr.mxu0 0.0
        %1415 = vmatpush1.msra.mxu0 0.0
        %1416 = vmatprep.subr.mxu0 0.0
        %1417 = vmatpush1.msra.mxu0 0.0
        %1418 = vmatprep.subr.mxu0 0.0
        %1419 = vmatpush1.msra.mxu0 0.0
        %1420 = vmatprep.subr.mxu0 0.0
        %1421 = vmatpush1.msra.mxu0 0.0
        %1422 = vmatprep.subr.mxu0 0.0
        %1423 = vmatpush1.msra.mxu0 0.0
        %1424 = vmatprep.mubr.f32.mxu0 0.0
        %1425 = vmatmul.mubr.f32.gmra.mrb[0].mxu0 %v1349
        %v1426 = vpop.f32.mrb[0].mxu0
        %v1427 = vadd.f32 %v1331, %v1426
        %v1428 = vpop.f32.mrb[0].mxu0
        %1429 = vmatprep.mubr.f32.mxu0 0.0
        %1430 = vmatmul.mubr.f32.gmra.mrb[0].mxu0 %v1352
        %v1431 = vpop.f32.mrb[0].mxu0
        %v1432 = vadd.f32 %v1336, %v1431
        %v1433 = vpop.f32.mrb[0].mxu0
        %1434 = vmatprep.mubr.f32.mxu0 0.0
        %1435 = vmatmul.mubr.f32.gmra.mrb[0].mxu0 %v1355
        %v1436 = vpop.f32.mrb[0].mxu0
        %v1437 = vadd.f32 %v1341, %v1436
        %v1438 = vpop.f32.mrb[0].mxu0
        %1439 = vmatprep.mubr.f32.mxu0 0.0
        %1440 = vmatmul.mubr.f32.gmra.mrb[0].mxu0 %v1358
        %v1441 = vpop.f32.mrb[0].mxu0
        %v1442 = vadd.f32 %v1346, %v1441
        %v1443 = vpop.f32.mrb[0].mxu0
        %1444 = vdwg.mxu0
        %vm1445 = vcmp.ge.f32.partialorder %v1427, 0.0
        %vm1446 = vcmp.ge.f32.partialorder %v1432, 0.0
        %vm1447 = vcmp.ge.f32.partialorder %v1437, 0.0
        %vm1448 = vcmp.ge.f32.partialorder %v1442, 0.0
        %v1449 = vstv %s1316
        %v1450 = vmul.f32 %v1449, %v1427
        %v1451 = vmul.f32 %v1449, %v1432
        %v1452 = vmul.f32 %v1449, %v1437
        %v1453 = vmul.f32 %v1449, %v1442
        %v1454 = vsel %vm1445, %v1427, %v1450
        %v1455 = vsel %vm1446, %v1432, %v1451
        %v1456 = vsel %vm1447, %v1437, %v1452
        %v1457 = vsel %vm1448, %v1442, %v1453
        %s1458 = scalar_lea.vmem %s5, 32
        %v1459 = vld [vmem:[%s1458] sm:$0xff]
        %v1460 = vld [vmem:[%s1458 + $0x8] sm:$0xff]
        %v1461 = vld [vmem:[%s1458 + $0x10] sm:$0xff]
        %v1462 = vld [vmem:[%s1458 + $0x18] sm:$0xff]
        %s1463 = scalar_lea.vmem %s6, 32
        %v1464 = vld [vmem:[%s1463] sm:$0xff]
        %v1465 = vld [vmem:[%s1463 + $0x8] sm:$0xff]
        %v1466 = vld [vmem:[%s1463 + $0x10] sm:$0xff]
        %v1467 = vld [vmem:[%s1463 + $0x18] sm:$0xff]
        %v1468 = vadd.f32 %v1454, %v1455
        %v1469 = vadd.f32 %v1468, %v1456
        %v1470 = vadd.f32 %v1469, %v1457
        %v1471 = vrot.slane %v1470, 4
        %v1472 = vadd.f32 %v1470, %v1471
        %v1473 = vrot.slane %v1472, 2
        %v1474 = vadd.f32 %v1472, %v1473
        %v1475 = vrot.slane %v1474, 1
        %v1476 = vadd.f32 %v1474, %v1475
        %v1477 = vmul.f32 %v1454, %v1454
        %v1478 = vmul.f32 %v1455, %v1455
        %v1479 = vmul.f32 %v1456, %v1456
        %v1480 = vmul.f32 %v1457, %v1457
        %v1481 = vadd.f32 %v1477, %v1478
        %v1482 = vadd.f32 %v1481, %v1479
        %v1483 = vadd.f32 %v1482, %v1480
        %v1484 = vrot.slane %v1483, 4
        %v1485 = vadd.f32 %v1483, %v1484
        %v1486 = vrot.slane %v1485, 2
        %v1487 = vadd.f32 %v1485, %v1486
        %v1488 = vrot.slane %v1487, 1
        %v1489 = vadd.f32 %v1487, %v1488
        %v1490 = vsel %vm780, %v1476, %v1489
        %1491 = vrot.lane.b32.xlu0 %v1490, 1
        %v1492 = vpop.permute.xlu0 %1491
        %v1493 = vsel %vm785, %v1492, 0.0
        %v1494 = vadd.f32 %v1490, %v1493
        %1495 = vrot.lane.b32.xlu0 %v1494, 2
        %v1496 = vpop.permute.xlu0 %1495
        %v1497 = vsel %vm791, %v1496, 0.0
        %v1498 = vadd.f32 %v1494, %v1497
        %1499 = vrot.lane.b32.xlu0 %v1498, 4
        %v1500 = vpop.permute.xlu0 %1499
        %v1501 = vsel %vm797, %v1500, 0.0
        %v1502 = vadd.f32 %v1498, %v1501
        %1503 = vrot.lane.b32.xlu0 %v1502, 8
        %v1504 = vpop.permute.xlu0 %1503
        %v1505 = vsel %vm803, %v1504, 0.0
        %v1506 = vadd.f32 %v1502, %v1505
        %1507 = vrot.lane.b32.xlu0 %v1506, 16
        %v1508 = vpop.permute.xlu0 %1507
        %v1509 = vsel %vm809, %v1508, 0.0
        %v1510 = vadd.f32 %v1506, %v1509
        %1511 = vrot.lane.b32.xlu0 %v1510, 32
        %v1512 = vpop.permute.xlu0 %1511
        %v1513 = vsel %vm815, %v1512, 0.0
        %v1514 = vadd.f32 %v1510, %v1513
        %1515 = vrot.lane.b32.xlu0 %v1514, 64
        %v1516 = vpop.permute.xlu0 %1515
        %v1517 = vsel %vm821, %v1516, 0.0
        %v1518 = vadd.f32 %v1514, %v1517
        %v1519 = vmul.f32 %v1518, %v595
        %v1520 = vmul.f32 %v1519, 2.0
        %v1521 = vmul.f32 %v1520, %v1518
        %v1523 = vrot.slane %v1521, 7
        %v1525 = vsub.f32 %v1518, %v1523
        %v1526 = vmul.f32 %v1525, %v595
        %v1527 = vmul.f32 %v1519, %v1519
        %v1529 = vrot.slane %v1527, 7
        %v1531 = vadd.f32 %v1526, %v1529
        %v1532 = vmax.f32 %v1531, 0.0
        %v1533 = vadd.f32 %v1532, 1e-08
        %v1534 = vrsqrt.pop %v1533
        %v1535 = vlaneseq
        %v1536 = vshrl.u32 %v1535, 7
        %v1537 = vsub.s32 0, %v1536
        %v1538 = vrot.slane %v1519, %v1537
        %v1539 = vsub.f32 %v1454, %v1538
        %v1540 = vsub.f32 %v1455, %v1538
        %v1541 = vsub.f32 %v1456, %v1538
        %v1542 = vsub.f32 %v1457, %v1538
        %v1543 = vlaneseq
        %v1544 = vshrl.u32 %v1543, 7
        %v1545 = vsub.s32 1, %v1544
        %v1546 = vrot.slane %v1534, %v1545
        %v1547 = vmul.f32 %v1539, %v1546
        %v1548 = vmul.f32 %v1540, %v1546
        %v1549 = vmul.f32 %v1541, %v1546
        %v1550 = vmul.f32 %v1542, %v1546
        %1552 = vset.pattern.permute.xlu0 0
        %1553 = vperm.xlu0 %1552, %v1459
        %v1554 = vpop.permute.xlu0 %1553
        %1557 = vset.pattern.permute.xlu0 0
        %1558 = vperm.xlu0 %1557, %v1460
        %v1559 = vpop.permute.xlu0 %1558
        %1562 = vset.pattern.permute.xlu0 0
        %1563 = vperm.xlu0 %1562, %v1461
        %v1564 = vpop.permute.xlu0 %1563
        %1567 = vset.pattern.permute.xlu0 0
        %1568 = vperm.xlu0 %1567, %v1462
        %v1569 = vpop.permute.xlu0 %1568
        %v1571 = vmul.f32 %v1547, %v1554
        %v1572 = vmul.f32 %v1548, %v1559
        %v1573 = vmul.f32 %v1549, %v1564
        %v1574 = vmul.f32 %v1550, %v1569
        %1576 = vset.pattern.permute.xlu0 0
        %1577 = vperm.xlu0 %1576, %v1464
        %v1578 = vpop.permute.xlu0 %1577
        %1581 = vset.pattern.permute.xlu0 0
        %1582 = vperm.xlu0 %1581, %v1465
        %v1583 = vpop.permute.xlu0 %1582
        %1586 = vset.pattern.permute.xlu0 0
        %1587 = vperm.xlu0 %1586, %v1466
        %v1588 = vpop.permute.xlu0 %1587
        %1591 = vset.pattern.permute.xlu0 0
        %1592 = vperm.xlu0 %1591, %v1467
        %v1593 = vpop.permute.xlu0 %1592
        %v1595 = vadd.f32 %v1571, %v1578
        %v1596 = vadd.f32 %v1572, %v1583
        %v1597 = vadd.f32 %v1573, %v1588
        %v1598 = vadd.f32 %v1574, %v1593
        %s1599 = scalar_lea.vmem %s7, 32
        %v1600 = vld [vmem:[%s1599] sm:$0xff]
        %v1601 = vld [vmem:[%s1599 + $0x8] sm:$0xff]
        %v1602 = vld [vmem:[%s1599 + $0x10] sm:$0xff]
        %v1603 = vld [vmem:[%s1599 + $0x18] sm:$0xff]
        %1604 = vrot.lane.b32.xlu0 %v1595, 2
        %v1605 = vpop.permute.xlu0 %1604
        %1606 = vrot.lane.b32.xlu0 %v1596, 2
        %v1607 = vpop.permute.xlu0 %1606
        %1608 = vrot.lane.b32.xlu0 %v1597, 2
        %v1609 = vpop.permute.xlu0 %1608
        %1610 = vrot.lane.b32.xlu0 %v1598, 2
        %v1611 = vpop.permute.xlu0 %1610
        %v1612 = vsel %vm791, %v1605, 0.0
        %v1613 = vsel %vm791, %v1607, 0.0
        %v1614 = vsel %vm791, %v1609, 0.0
        %v1615 = vsel %vm791, %v1611, 0.0
        %1616 = vrot.lane.b32.xlu0 %v1595, 126
        %v1617 = vpop.permute.xlu0 %1616
        %1618 = vrot.lane.b32.xlu0 %v1596, 126
        %v1619 = vpop.permute.xlu0 %1618
        %1620 = vrot.lane.b32.xlu0 %v1597, 126
        %v1621 = vpop.permute.xlu0 %1620
        %1622 = vrot.lane.b32.xlu0 %v1598, 126
        %v1623 = vpop.permute.xlu0 %1622
        %v1624 = vsel %vm604, 1, 0
        %vm1625 = vcmp.eq.s32.totalorder %v1624, 1
        %v1626 = vsel %vm1625, %v1617, 0.0
        %v1627 = vsel %vm1625, %v1619, 0.0
        %v1628 = vsel %vm1625, %v1621, 0.0
        %v1629 = vsel %vm1625, %v1623, 0.0
        %1631 = vset.pattern.permute.xlu0 0
        %1632 = vperm.xlu0 %1631, %v1600
        %v1633 = vpop.permute.xlu0 %1632
        %1636 = vset.pattern.permute.xlu0 0
        %1637 = vperm.xlu0 %1636, %v1601
        %v1638 = vpop.permute.xlu0 %1637
        %1641 = vset.pattern.permute.xlu0 0
        %1642 = vperm.xlu0 %1641, %v1602
        %v1643 = vpop.permute.xlu0 %1642
        %1646 = vset.pattern.permute.xlu0 0
        %1647 = vperm.xlu0 %1646, %v1603
        %v1648 = vpop.permute.xlu0 %1647
        %v1650 = vmul.f32 %v1633, %v1612
        %v1651 = vmul.f32 %v1638, %v1613
        %v1652 = vmul.f32 %v1643, %v1614
        %v1653 = vmul.f32 %v1648, %v1615
        %1654 = vset.pattern.permute.xlu0 1
        %1655 = vperm.xlu0 %1654, %v1600
        %v1656 = vpop.permute.xlu0 %1655
        %1658 = vset.pattern.permute.xlu0 1
        %1659 = vperm.xlu0 %1658, %v1601
        %v1660 = vpop.permute.xlu0 %1659
        %1662 = vset.pattern.permute.xlu0 1
        %1663 = vperm.xlu0 %1662, %v1602
        %v1664 = vpop.permute.xlu0 %1663
        %1666 = vset.pattern.permute.xlu0 1
        %1667 = vperm.xlu0 %1666, %v1603
        %v1668 = vpop.permute.xlu0 %1667
        %v1670 = vmul.f32 %v1656, %v1595
        %v1671 = vmul.f32 %v1660, %v1596
        %v1672 = vmul.f32 %v1664, %v1597
        %v1673 = vmul.f32 %v1668, %v1598
        %v1674 = vadd.f32 %v1650, %v1670
        %v1675 = vadd.f32 %v1651, %v1671
        %v1676 = vadd.f32 %v1652, %v1672
        %v1677 = vadd.f32 %v1653, %v1673
        %1678 = vset.pattern.permute.xlu0 2
        %1679 = vperm.xlu0 %1678, %v1600
        %v1680 = vpop.permute.xlu0 %1679
        %1682 = vset.pattern.permute.xlu0 2
        %1683 = vperm.xlu0 %1682, %v1601
        %v1684 = vpop.permute.xlu0 %1683
        %1686 = vset.pattern.permute.xlu0 2
        %1687 = vperm.xlu0 %1686, %v1602
        %v1688 = vpop.permute.xlu0 %1687
        %1690 = vset.pattern.permute.xlu0 2
        %1691 = vperm.xlu0 %1690, %v1603
        %v1692 = vpop.permute.xlu0 %1691
        %v1694 = vmul.f32 %v1680, %v1626
        %v1695 = vmul.f32 %v1684, %v1627
        %v1696 = vmul.f32 %v1688, %v1628
        %v1697 = vmul.f32 %v1692, %v1629
        %v1698 = vadd.f32 %v1674, %v1694
        %v1699 = vadd.f32 %v1675, %v1695
        %v1700 = vadd.f32 %v1676, %v1696
        %v1701 = vadd.f32 %v1677, %v1697
        %s1702 = scalar_lea.vmem %s8, 32
        %v1703 = vld [vmem:[%s1702] sm:$0xff]
        %v1704 = vld [vmem:[%s1702 + $0x8] sm:$0xff]
        %v1705 = vld [vmem:[%s1702 + $0x10] sm:$0xff]
        %v1706 = vld [vmem:[%s1702 + $0x18] sm:$0xff]
        %1708 = vset.pattern.permute.xlu0 0
        %1709 = vperm.xlu0 %1708, %v1703
        %v1710 = vpop.permute.xlu0 %1709
        %1713 = vset.pattern.permute.xlu0 0
        %1714 = vperm.xlu0 %1713, %v1704
        %v1715 = vpop.permute.xlu0 %1714
        %1718 = vset.pattern.permute.xlu0 0
        %1719 = vperm.xlu0 %1718, %v1705
        %v1720 = vpop.permute.xlu0 %1719
        %1723 = vset.pattern.permute.xlu0 0
        %1724 = vperm.xlu0 %1723, %v1706
        %v1725 = vpop.permute.xlu0 %1724
        %v1727 = vadd.f32 %v1698, %v1710
        %v1728 = vadd.f32 %v1699, %v1715
        %v1729 = vadd.f32 %v1700, %v1720
        %v1730 = vadd.f32 %v1701, %v1725
        %vm1731 = vcmp.ge.f32.partialorder %v1727, 0.0
        %vm1732 = vcmp.ge.f32.partialorder %v1728, 0.0
        %vm1733 = vcmp.ge.f32.partialorder %v1729, 0.0
        %vm1734 = vcmp.ge.f32.partialorder %v1730, 0.0
        %v1735 = vstv %s1317
        %v1736 = vmul.f32 %v1735, %v1727
        %v1737 = vmul.f32 %v1735, %v1728
        %v1738 = vmul.f32 %v1735, %v1729
        %v1739 = vmul.f32 %v1735, %v1730
        %v1740 = vsel %vm1731, %v1727, %v1736
        %v1741 = vsel %vm1732, %v1728, %v1737
        %v1742 = vsel %vm1733, %v1729, %v1738
        %v1743 = vsel %vm1734, %v1730, %v1739
        %s1744 = scalar_lea.vmem %s9, 32
        %v1745 = vld [vmem:[%s1744] sm:$0xff]
        %v1746 = vld [vmem:[%s1744 + $0x8] sm:$0xff]
        %v1747 = vld [vmem:[%s1744 + $0x10] sm:$0xff]
        %v1748 = vld [vmem:[%s1744 + $0x18] sm:$0xff]
        %s1749 = scalar_lea.vmem %s10, 32
        %v1750 = vld [vmem:[%s1749] sm:$0xff]
        %v1751 = vld [vmem:[%s1749 + $0x8] sm:$0xff]
        %v1752 = vld [vmem:[%s1749 + $0x10] sm:$0xff]
        %v1753 = vld [vmem:[%s1749 + $0x18] sm:$0xff]
        %v1754 = vadd.f32 %v1740, %v1741
        %v1755 = vadd.f32 %v1754, %v1742
        %v1756 = vadd.f32 %v1755, %v1743
        %v1757 = vrot.slane %v1756, 4
        %v1758 = vadd.f32 %v1756, %v1757
        %v1759 = vrot.slane %v1758, 2
        %v1760 = vadd.f32 %v1758, %v1759
        %v1761 = vrot.slane %v1760, 1
        %v1762 = vadd.f32 %v1760, %v1761
        %v1763 = vmul.f32 %v1740, %v1740
        %v1764 = vmul.f32 %v1741, %v1741
        %v1765 = vmul.f32 %v1742, %v1742
        %v1766 = vmul.f32 %v1743, %v1743
        %v1767 = vadd.f32 %v1763, %v1764
        %v1768 = vadd.f32 %v1767, %v1765
        %v1769 = vadd.f32 %v1768, %v1766
        %v1770 = vrot.slane %v1769, 4
        %v1771 = vadd.f32 %v1769, %v1770
        %v1772 = vrot.slane %v1771, 2
        %v1773 = vadd.f32 %v1771, %v1772
        %v1774 = vrot.slane %v1773, 1
        %v1775 = vadd.f32 %v1773, %v1774
        %v1776 = vsel %vm780, %v1762, %v1775
        %1777 = vrot.lane.b32.xlu0 %v1776, 1
        %v1778 = vpop.permute.xlu0 %1777
        %v1779 = vsel %vm785, %v1778, 0.0
        %v1780 = vadd.f32 %v1776, %v1779
        %1781 = vrot.lane.b32.xlu0 %v1780, 2
        %v1782 = vpop.permute.xlu0 %1781
        %v1783 = vsel %vm791, %v1782, 0.0
        %v1784 = vadd.f32 %v1780, %v1783
        %1785 = vrot.lane.b32.xlu0 %v1784, 4
        %v1786 = vpop.permute.xlu0 %1785
        %v1787 = vsel %vm797, %v1786, 0.0
        %v1788 = vadd.f32 %v1784, %v1787
        %1789 = vrot.lane.b32.xlu0 %v1788, 8
        %v1790 = vpop.permute.xlu0 %1789
        %v1791 = vsel %vm803, %v1790, 0.0
        %v1792 = vadd.f32 %v1788, %v1791
        %1793 = vrot.lane.b32.xlu0 %v1792, 16
        %v1794 = vpop.permute.xlu0 %1793
        %v1795 = vsel %vm809, %v1794, 0.0
        %v1796 = vadd.f32 %v1792, %v1795
        %1797 = vrot.lane.b32.xlu0 %v1796, 32
        %v1798 = vpop.permute.xlu0 %1797
        %v1799 = vsel %vm815, %v1798, 0.0
        %v1800 = vadd.f32 %v1796, %v1799
        %1801 = vrot.lane.b32.xlu0 %v1800, 64
        %v1802 = vpop.permute.xlu0 %1801
        %v1803 = vsel %vm821, %v1802, 0.0
        %v1804 = vadd.f32 %v1800, %v1803
        %v1805 = vmul.f32 %v1804, %v595
        %v1806 = vmul.f32 %v1805, 2.0
        %v1807 = vmul.f32 %v1806, %v1804
        %v1809 = vrot.slane %v1807, 7
        %v1811 = vsub.f32 %v1804, %v1809
        %v1812 = vmul.f32 %v1811, %v595
        %v1813 = vmul.f32 %v1805, %v1805
        %v1815 = vrot.slane %v1813, 7
        %v1817 = vadd.f32 %v1812, %v1815
        %v1818 = vmax.f32 %v1817, 0.0
        %v1819 = vadd.f32 %v1818, 1e-08
        %v1820 = vrsqrt.pop %v1819
        %v1821 = vlaneseq
        %v1822 = vshrl.u32 %v1821, 7
        %v1823 = vsub.s32 0, %v1822
        %v1824 = vrot.slane %v1805, %v1823
        %v1825 = vsub.f32 %v1740, %v1824
        %v1826 = vsub.f32 %v1741, %v1824
        %v1827 = vsub.f32 %v1742, %v1824
        %v1828 = vsub.f32 %v1743, %v1824
        %v1829 = vlaneseq
        %v1830 = vshrl.u32 %v1829, 7
        %v1831 = vsub.s32 1, %v1830
        %v1832 = vrot.slane %v1820, %v1831
        %v1833 = vmul.f32 %v1825, %v1832
        %v1834 = vmul.f32 %v1826, %v1832
        %v1835 = vmul.f32 %v1827, %v1832
        %v1836 = vmul.f32 %v1828, %v1832
        %1838 = vset.pattern.permute.xlu0 0
        %1839 = vperm.xlu0 %1838, %v1745
        %v1840 = vpop.permute.xlu0 %1839
        %1843 = vset.pattern.permute.xlu0 0
        %1844 = vperm.xlu0 %1843, %v1746
        %v1845 = vpop.permute.xlu0 %1844
        %1848 = vset.pattern.permute.xlu0 0
        %1849 = vperm.xlu0 %1848, %v1747
        %v1850 = vpop.permute.xlu0 %1849
        %1853 = vset.pattern.permute.xlu0 0
        %1854 = vperm.xlu0 %1853, %v1748
        %v1855 = vpop.permute.xlu0 %1854
        %v1857 = vmul.f32 %v1833, %v1840
        %v1858 = vmul.f32 %v1834, %v1845
        %v1859 = vmul.f32 %v1835, %v1850
        %v1860 = vmul.f32 %v1836, %v1855
        %1862 = vset.pattern.permute.xlu0 0
        %1863 = vperm.xlu0 %1862, %v1750
        %v1864 = vpop.permute.xlu0 %1863
        %1867 = vset.pattern.permute.xlu0 0
        %1868 = vperm.xlu0 %1867, %v1751
        %v1869 = vpop.permute.xlu0 %1868
        %1872 = vset.pattern.permute.xlu0 0
        %1873 = vperm.xlu0 %1872, %v1752
        %v1874 = vpop.permute.xlu0 %1873
        %1877 = vset.pattern.permute.xlu0 0
        %1878 = vperm.xlu0 %1877, %v1753
        %v1879 = vpop.permute.xlu0 %1878
        %v1881 = vadd.f32 %v1857, %v1864
        %v1882 = vadd.f32 %v1858, %v1869
        %v1883 = vadd.f32 %v1859, %v1874
        %v1884 = vadd.f32 %v1860, %v1879
        %s1885 = scalar_lea.vmem %s11, 32
        %v1886 = vld [vmem:[%s1885] sm:$0xff]
        %v1887 = vld [vmem:[%s1885 + $0x8] sm:$0xff]
        %v1888 = vld [vmem:[%s1885 + $0x10] sm:$0xff]
        %v1889 = vld [vmem:[%s1885 + $0x18] sm:$0xff]
        %s1890 = scalar_lea.vmem %s12, 32
        %v1891 = vld [vmem:[%s1890] sm:$0xff]
        %v1892 = vld [vmem:[%s1890 + $0x8] sm:$0xff]
        %v1893 = vld [vmem:[%s1890 + $0x10] sm:$0xff]
        %v1894 = vld [vmem:[%s1890 + $0x18] sm:$0xff]
        %1896 = vset.pattern.permute.xlu0 0
        %1897 = vperm.xlu0 %1896, %v1891
        %v1898 = vpop.permute.xlu0 %1897
        %1901 = vset.pattern.permute.xlu0 0
        %1902 = vperm.xlu0 %1901, %v1892
        %v1903 = vpop.permute.xlu0 %1902
        %1906 = vset.pattern.permute.xlu0 0
        %1907 = vperm.xlu0 %1906, %v1893
        %v1908 = vpop.permute.xlu0 %1907
        %1911 = vset.pattern.permute.xlu0 0
        %1912 = vperm.xlu0 %1911, %v1894
        %v1913 = vpop.permute.xlu0 %1912
        %v1916 = vsel %vm1214, %v1886, 0
        %v1919 = vsel %vm1214, %v1887, 0
        %v1922 = vsel %vm1214, %v1888, 0
        %v1925 = vsel %vm1214, %v1889, 0
        %1927 = vmatprep.subr.mxu0 0.0
        %1928 = vmatpush1.msra.mxu0 %v1881
        %1929 = vmatprep.subr.mxu0 0.0
        %1930 = vmatpush1.msra.mxu0 %v1882
        %1931 = vmatprep.subr.mxu0 0.0
        %1932 = vmatpush1.msra.mxu0 %v1883
        %1933 = vmatprep.subr.mxu0 0.0
        %1934 = vmatpush1.msra.mxu0 %v1884
        %1935 = vmatprep.subr.mxu0 0.0
        %1936 = vmatpush1.msra.mxu0 0.0
        %1937 = vmatprep.subr.mxu0 0.0
        %1938 = vmatpush1.msra.mxu0 0.0
        %1939 = vmatprep.subr.mxu0 0.0
        %1940 = vmatpush1.msra.mxu0 0.0
        %1941 = vmatprep.subr.mxu0 0.0
        %1942 = vmatpush1.msra.mxu0 0.0
        %1943 = vmatprep.subr.mxu0 0.0
        %1944 = vmatpush1.msra.mxu0 0.0
        %1945 = vmatprep.subr.mxu0 0.0
        %1946 = vmatpush1.msra.mxu0 0.0
        %1947 = vmatprep.subr.mxu0 0.0
        %1948 = vmatpush1.msra.mxu0 0.0
        %1949 = vmatprep.subr.mxu0 0.0
        %1950 = vmatpush1.msra.mxu0 0.0
        %1951 = vmatprep.subr.mxu0 0.0
        %1952 = vmatpush1.msra.mxu0 0.0
        %1953 = vmatprep.subr.mxu0 0.0
        %1954 = vmatpush1.msra.mxu0 0.0
        %1955 = vmatprep.subr.mxu0 0.0
        %1956 = vmatpush1.msra.mxu0 0.0
        %1957 = vmatprep.subr.mxu0 0.0
        %1958 = vmatpush1.msra.mxu0 0.0
        %1959 = vmatprep.subr.mxu0 0.0
        %1960 = vmatpush1.msra.mxu0 0.0
        %1961 = vmatprep.subr.mxu0 0.0
        %1962 = vmatpush1.msra.mxu0 0.0
        %1963 = vmatprep.subr.mxu0 0.0
        %1964 = vmatpush1.msra.mxu0 0.0
        %1965 = vmatprep.subr.mxu0 0.0
        %1966 = vmatpush1.msra.mxu0 0.0
        %1967 = vmatprep.subr.mxu0 0.0
        %1968 = vmatpush1.msra.mxu0 0.0
        %1969 = vmatprep.subr.mxu0 0.0
        %1970 = vmatpush1.msra.mxu0 0.0
        %1971 = vmatprep.subr.mxu0 0.0
        %1972 = vmatpush1.msra.mxu0 0.0
        %1973 = vmatprep.subr.mxu0 0.0
        %1974 = vmatpush1.msra.mxu0 0.0
        %1975 = vmatprep.subr.mxu0 0.0
        %1976 = vmatpush1.msra.mxu0 0.0
        %1977 = vmatprep.subr.mxu0 0.0
        %1978 = vmatpush1.msra.mxu0 0.0
        %1979 = vmatprep.subr.mxu0 0.0
        %1980 = vmatpush1.msra.mxu0 0.0
        %1981 = vmatprep.subr.mxu0 0.0
        %1982 = vmatpush1.msra.mxu0 0.0
        %1983 = vmatprep.subr.mxu0 0.0
        %1984 = vmatpush1.msra.mxu0 0.0
        %1985 = vmatprep.subr.mxu0 0.0
        %1986 = vmatpush1.msra.mxu0 0.0
        %1987 = vmatprep.subr.mxu0 0.0
        %1988 = vmatpush1.msra.mxu0 0.0
        %1989 = vmatprep.subr.mxu0 0.0
        %1990 = vmatpush1.msra.mxu0 0.0
        %1991 = vmatprep.mubr.f32.mxu0 0.0
        %1992 = vmatmul.mubr.f32.gmra.mrb[0].mxu0 %v1916
        %v1993 = vpop.f32.mrb[0].mxu0
        %v1994 = vadd.f32 %v1898, %v1993
        %v1995 = vpop.f32.mrb[0].mxu0
        %1996 = vmatprep.mubr.f32.mxu0 0.0
        %1997 = vmatmul.mubr.f32.gmra.mrb[0].mxu0 %v1919
        %v1998 = vpop.f32.mrb[0].mxu0
        %v1999 = vadd.f32 %v1903, %v1998
        %v2000 = vpop.f32.mrb[0].mxu0
        %2001 = vmatprep.mubr.f32.mxu0 0.0
        %2002 = vmatmul.mubr.f32.gmra.mrb[0].mxu0 %v1922
        %v2003 = vpop.f32.mrb[0].mxu0
        %v2004 = vadd.f32 %v1908, %v2003
        %v2005 = vpop.f32.mrb[0].mxu0
        %2006 = vmatprep.mubr.f32.mxu0 0.0
        %2007 = vmatmul.mubr.f32.gmra.mrb[0].mxu0 %v1925
        %v2008 = vpop.f32.mrb[0].mxu0
        %v2009 = vadd.f32 %v1913, %v2008
        %v2010 = vpop.f32.mrb[0].mxu0
        %2011 = vdwg.mxu0
        %v2012 = vadd.f32 %v1312, %v1994
        %v2013 = vadd.f32 %v1313, %v1999
        %v2014 = vadd.f32 %v1314, %v2004
        %v2015 = vadd.f32 %v1315, %v2009
        %s2016 = sld [smem:[#allocation2 + $0x4]]
        %s2017 = sld [smem:[#allocation2 + $0x5]]
        %s2018 = scalar_lea.vmem %s3, 64
        %v2019 = vld [vmem:[%s2018] sm:$0xff]
        %v2020 = vld [vmem:[%s2018 + $0x8] sm:$0xff]
        %v2021 = vld [vmem:[%s2018 + $0x10] sm:$0xff]
        %v2022 = vld [vmem:[%s2018 + $0x18] sm:$0xff]
        %s2023 = scalar_lea.vmem %s4, 64
        %v2024 = vld [vmem:[%s2023] sm:$0xff]
        %v2025 = vld [vmem:[%s2023 + $0x8] sm:$0xff]
        %v2026 = vld [vmem:[%s2023 + $0x10] sm:$0xff]
        %v2027 = vld [vmem:[%s2023 + $0x18] sm:$0xff]
        %2029 = vset.pattern.permute.xlu0 0
        %2030 = vperm.xlu0 %2029, %v2024
        %v2031 = vpop.permute.xlu0 %2030
        %2034 = vset.pattern.permute.xlu0 0
        %2035 = vperm.xlu0 %2034, %v2025
        %v2036 = vpop.permute.xlu0 %2035
        %2039 = vset.pattern.permute.xlu0 0
        %2040 = vperm.xlu0 %2039, %v2026
        %v2041 = vpop.permute.xlu0 %2040
        %2044 = vset.pattern.permute.xlu0 0
        %2045 = vperm.xlu0 %2044, %v2027
        %v2046 = vpop.permute.xlu0 %2045
        %v2049 = vsel %vm639, %v2019, 0
        %v2052 = vsel %vm639, %v2020, 0
        %v2055 = vsel %vm639, %v2021, 0
        %v2058 = vsel %vm639, %v2022, 0
        %2060 = vmatprep.subr.mxu0 0.0
        %2061 = vmatpush1.msra.mxu0 %v2012
        %2062 = vmatprep.subr.mxu0 0.0
        %2063 = vmatpush1.msra.mxu0 %v2013
        %2064 = vmatprep.subr.mxu0 0.0
        %2065 = vmatpush1.msra.mxu0 0.0
        %2066 = vmatprep.subr.mxu0 0.0
        %2067 = vmatpush1.msra.mxu0 0.0
        %2068 = vmatprep.subr.mxu0 0.0
        %2069 = vmatpush1.msra.mxu0 0.0
        %2070 = vmatprep.subr.mxu0 0.0
        %2071 = vmatpush1.msra.mxu0 0.0
        %2072 = vmatprep.subr.mxu0 0.0
        %2073 = vmatpush1.msra.mxu0 0.0
        %2074 = vmatprep.subr.mxu0 0.0
        %2075 = vmatpush1.msra.mxu0 0.0
        %2076 = vmatprep.subr.mxu0 0.0
        %2077 = vmatpush1.msra.mxu0 0.0
        %2078 = vmatprep.subr.mxu0 0.0
        %2079 = vmatpush1.msra.mxu0 0.0
        %2080 = vmatprep.subr.mxu0 0.0
        %2081 = vmatpush1.msra.mxu0 0.0
        %2082 = vmatprep.subr.mxu0 0.0
        %2083 = vmatpush1.msra.mxu0 0.0
        %2084 = vmatprep.subr.mxu0 0.0
        %2085 = vmatpush1.msra.mxu0 0.0
        %2086 = vmatprep.subr.mxu0 0.0
        %2087 = vmatpush1.msra.mxu0 0.0
        %2088 = vmatprep.subr.mxu0 0.0
        %2089 = vmatpush1.msra.mxu0 0.0
        %2090 = vmatprep.subr.mxu0 0.0
        %2091 = vmatpush1.msra.mxu0 0.0
        %2092 = vmatprep.subr.mxu0 0.0
        %2093 = vmatpush1.msra.mxu0 0.0
        %2094 = vmatprep.subr.mxu0 0.0
        %2095 = vmatpush1.msra.mxu0 0.0
        %2096 = vmatprep.subr.mxu0 0.0
        %2097 = vmatpush1.msra.mxu0 0.0
        %2098 = vmatprep.subr.mxu0 0.0
        %2099 = vmatpush1.msra.mxu0 0.0
        %2100 = vmatprep.subr.mxu0 0.0
        %2101 = vmatpush1.msra.mxu0 0.0
        %2102 = vmatprep.subr.mxu0 0.0
        %2103 = vmatpush1.msra.mxu0 0.0
        %2104 = vmatprep.subr.mxu0 0.0
        %2105 = vmatpush1.msra.mxu0 0.0
        %2106 = vmatprep.subr.mxu0 0.0
        %2107 = vmatpush1.msra.mxu0 0.0
        %2108 = vmatprep.subr.mxu0 0.0
        %2109 = vmatpush1.msra.mxu0 0.0
        %2110 = vmatprep.subr.mxu0 0.0
        %2111 = vmatpush1.msra.mxu0 0.0
        %2112 = vmatprep.subr.mxu0 0.0
        %2113 = vmatpush1.msra.mxu0 0.0
        %2114 = vmatprep.subr.mxu0 0.0
        %2115 = vmatpush1.msra.mxu0 0.0
        %2116 = vmatprep.subr.mxu0 0.0
        %2117 = vmatpush1.msra.mxu0 0.0
        %2118 = vmatprep.subr.mxu0 0.0
        %2119 = vmatpush1.msra.mxu0 0.0
        %2120 = vmatprep.subr.mxu0 0.0
        %2121 = vmatpush1.msra.mxu0 0.0
        %2122 = vmatprep.subr.mxu0 0.0
        %2123 = vmatpush1.msra.mxu0 0.0
        %2124 = vmatprep.mubr.f32.mxu0 0.0
        %2125 = vmatmul.mubr.f32.gmra.mrb[0].mxu0 %v2049
        %v2126 = vpop.f32.mrb[0].mxu0
        %v2127 = vadd.f32 %v2031, %v2126
        %v2128 = vpop.f32.mrb[0].mxu0
        %2129 = vmatprep.mubr.f32.mxu0 0.0
        %2130 = vmatmul.mubr.f32.gmra.mrb[0].mxu0 %v2052
        %v2131 = vpop.f32.mrb[0].mxu0
        %v2132 = vadd.f32 %v2036, %v2131
        %v2133 = vpop.f32.mrb[0].mxu0
        %2134 = vmatprep.mubr.f32.mxu0 0.0
        %2135 = vmatmul.mubr.f32.gmra.mrb[0].mxu0 %v2055
        %v2136 = vpop.f32.mrb[0].mxu0
        %v2137 = vadd.f32 %v2041, %v2136
        %v2138 = vpop.f32.mrb[0].mxu0
        %2139 = vmatprep.mubr.f32.mxu0 0.0
        %2140 = vmatmul.mubr.f32.gmra.mrb[0].mxu0 %v2058
        %v2141 = vpop.f32.mrb[0].mxu0
        %v2142 = vadd.f32 %v2046, %v2141
        %v2143 = vpop.f32.mrb[0].mxu0
        %2144 = vdwg.mxu0
        %vm2145 = vcmp.ge.f32.partialorder %v2127, 0.0
        %vm2146 = vcmp.ge.f32.partialorder %v2132, 0.0
        %vm2147 = vcmp.ge.f32.partialorder %v2137, 0.0
        %vm2148 = vcmp.ge.f32.partialorder %v2142, 0.0
        %v2149 = vstv %s2016
        %v2150 = vmul.f32 %v2149, %v2127
        %v2151 = vmul.f32 %v2149, %v2132
        %v2152 = vmul.f32 %v2149, %v2137
        %v2153 = vmul.f32 %v2149, %v2142
        %v2154 = vsel %vm2145, %v2127, %v2150
        %v2155 = vsel %vm2146, %v2132, %v2151
        %v2156 = vsel %vm2147, %v2137, %v2152
        %v2157 = vsel %vm2148, %v2142, %v2153
        %s2158 = scalar_lea.vmem %s5, 64
        %v2159 = vld [vmem:[%s2158] sm:$0xff]
        %v2160 = vld [vmem:[%s2158 + $0x8] sm:$0xff]
        %v2161 = vld [vmem:[%s2158 + $0x10] sm:$0xff]
        %v2162 = vld [vmem:[%s2158 + $0x18] sm:$0xff]
        %s2163 = scalar_lea.vmem %s6, 64
        %v2164 = vld [vmem:[%s2163] sm:$0xff]
        %v2165 = vld [vmem:[%s2163 + $0x8] sm:$0xff]
        %v2166 = vld [vmem:[%s2163 + $0x10] sm:$0xff]
        %v2167 = vld [vmem:[%s2163 + $0x18] sm:$0xff]
        %v2168 = vadd.f32 %v2154, %v2155
        %v2169 = vadd.f32 %v2168, %v2156
        %v2170 = vadd.f32 %v2169, %v2157
        %v2171 = vrot.slane %v2170, 4
        %v2172 = vadd.f32 %v2170, %v2171
        %v2173 = vrot.slane %v2172, 2
        %v2174 = vadd.f32 %v2172, %v2173
        %v2175 = vrot.slane %v2174, 1
        %v2176 = vadd.f32 %v2174, %v2175
        %v2177 = vmul.f32 %v2154, %v2154
        %v2178 = vmul.f32 %v2155, %v2155
        %v2179 = vmul.f32 %v2156, %v2156
        %v2180 = vmul.f32 %v2157, %v2157
        %v2181 = vadd.f32 %v2177, %v2178
        %v2182 = vadd.f32 %v2181, %v2179
        %v2183 = vadd.f32 %v2182, %v2180
        %v2184 = vrot.slane %v2183, 4
        %v2185 = vadd.f32 %v2183, %v2184
        %v2186 = vrot.slane %v2185, 2
        %v2187 = vadd.f32 %v2185, %v2186
        %v2188 = vrot.slane %v2187, 1
        %v2189 = vadd.f32 %v2187, %v2188
        %v2190 = vsel %vm780, %v2176, %v2189
        %2191 = vrot.lane.b32.xlu0 %v2190, 1
        %v2192 = vpop.permute.xlu0 %2191
        %v2193 = vsel %vm785, %v2192, 0.0
        %v2194 = vadd.f32 %v2190, %v2193
        %2195 = vrot.lane.b32.xlu0 %v2194, 2
        %v2196 = vpop.permute.xlu0 %2195
        %v2197 = vsel %vm791, %v2196, 0.0
        %v2198 = vadd.f32 %v2194, %v2197
        %2199 = vrot.lane.b32.xlu0 %v2198, 4
        %v2200 = vpop.permute.xlu0 %2199
        %v2201 = vsel %vm797, %v2200, 0.0
        %v2202 = vadd.f32 %v2198, %v2201
        %2203 = vrot.lane.b32.xlu0 %v2202, 8
        %v2204 = vpop.permute.xlu0 %2203
        %v2205 = vsel %vm803, %v2204, 0.0
        %v2206 = vadd.f32 %v2202, %v2205
        %2207 = vrot.lane.b32.xlu0 %v2206, 16
        %v2208 = vpop.permute.xlu0 %2207
        %v2209 = vsel %vm809, %v2208, 0.0
        %v2210 = vadd.f32 %v2206, %v2209
        %2211 = vrot.lane.b32.xlu0 %v2210, 32
        %v2212 = vpop.permute.xlu0 %2211
        %v2213 = vsel %vm815, %v2212, 0.0
        %v2214 = vadd.f32 %v2210, %v2213
        %2215 = vrot.lane.b32.xlu0 %v2214, 64
        %v2216 = vpop.permute.xlu0 %2215
        %v2217 = vsel %vm821, %v2216, 0.0
        %v2218 = vadd.f32 %v2214, %v2217
        %v2219 = vmul.f32 %v2218, %v595
        %v2220 = vmul.f32 %v2219, 2.0
        %v2221 = vmul.f32 %v2220, %v2218
        %v2223 = vrot.slane %v2221, 7
        %v2225 = vsub.f32 %v2218, %v2223
        %v2226 = vmul.f32 %v2225, %v595
        %v2227 = vmul.f32 %v2219, %v2219
        %v2229 = vrot.slane %v2227, 7
        %v2231 = vadd.f32 %v2226, %v2229
        %v2232 = vmax.f32 %v2231, 0.0
        %v2233 = vadd.f32 %v2232, 1e-08
        %v2234 = vrsqrt.pop %v2233
        %v2235 = vlaneseq
        %v2236 = vshrl.u32 %v2235, 7
        %v2237 = vsub.s32 0, %v2236
        %v2238 = vrot.slane %v2219, %v2237
        %v2239 = vsub.f32 %v2154, %v2238
        %v2240 = vsub.f32 %v2155, %v2238
        %v2241 = vsub.f32 %v2156, %v2238
        %v2242 = vsub.f32 %v2157, %v2238
        %v2243 = vlaneseq
        %v2244 = vshrl.u32 %v2243, 7
        %v2245 = vsub.s32 1, %v2244
        %v2246 = vrot.slane %v2234, %v2245
        %v2247 = vmul.f32 %v2239, %v2246
        %v2248 = vmul.f32 %v2240, %v2246
        %v2249 = vmul.f32 %v2241, %v2246
        %v2250 = vmul.f32 %v2242, %v2246
        %2252 = vset.pattern.permute.xlu0 0
        %2253 = vperm.xlu0 %2252, %v2159
        %v2254 = vpop.permute.xlu0 %2253
        %2257 = vset.pattern.permute.xlu0 0
        %2258 = vperm.xlu0 %2257, %v2160
        %v2259 = vpop.permute.xlu0 %2258
        %2262 = vset.pattern.permute.xlu0 0
        %2263 = vperm.xlu0 %2262, %v2161
        %v2264 = vpop.permute.xlu0 %2263
        %2267 = vset.pattern.permute.xlu0 0
        %2268 = vperm.xlu0 %2267, %v2162
        %v2269 = vpop.permute.xlu0 %2268
        %v2271 = vmul.f32 %v2247, %v2254
        %v2272 = vmul.f32 %v2248, %v2259
        %v2273 = vmul.f32 %v2249, %v2264
        %v2274 = vmul.f32 %v2250, %v2269
        %2276 = vset.pattern.permute.xlu0 0
        %2277 = vperm.xlu0 %2276, %v2164
        %v2278 = vpop.permute.xlu0 %2277
        %2281 = vset.pattern.permute.xlu0 0
        %2282 = vperm.xlu0 %2281, %v2165
        %v2283 = vpop.permute.xlu0 %2282
        %2286 = vset.pattern.permute.xlu0 0
        %2287 = vperm.xlu0 %2286, %v2166
        %v2288 = vpop.permute.xlu0 %2287
        %2291 = vset.pattern.permute.xlu0 0
        %2292 = vperm.xlu0 %2291, %v2167
        %v2293 = vpop.permute.xlu0 %2292
        %v2295 = vadd.f32 %v2271, %v2278
        %v2296 = vadd.f32 %v2272, %v2283
        %v2297 = vadd.f32 %v2273, %v2288
        %v2298 = vadd.f32 %v2274, %v2293
        %s2299 = scalar_lea.vmem %s7, 64
        %v2300 = vld [vmem:[%s2299] sm:$0xff]
        %v2301 = vld [vmem:[%s2299 + $0x8] sm:$0xff]
        %v2302 = vld [vmem:[%s2299 + $0x10] sm:$0xff]
        %v2303 = vld [vmem:[%s2299 + $0x18] sm:$0xff]
        %2304 = vrot.lane.b32.xlu0 %v2295, 4
        %v2305 = vpop.permute.xlu0 %2304
        %2306 = vrot.lane.b32.xlu0 %v2296, 4
        %v2307 = vpop.permute.xlu0 %2306
        %2308 = vrot.lane.b32.xlu0 %v2297, 4
        %v2309 = vpop.permute.xlu0 %2308
        %2310 = vrot.lane.b32.xlu0 %v2298, 4
        %v2311 = vpop.permute.xlu0 %2310
        %v2312 = vsel %vm797, %v2305, 0.0
        %v2313 = vsel %vm797, %v2307, 0.0
        %v2314 = vsel %vm797, %v2309, 0.0
        %v2315 = vsel %vm797, %v2311, 0.0
        %2316 = vrot.lane.b32.xlu0 %v2295, 124
        %v2317 = vpop.permute.xlu0 %2316
        %2318 = vrot.lane.b32.xlu0 %v2296, 124
        %v2319 = vpop.permute.xlu0 %2318
        %2320 = vrot.lane.b32.xlu0 %v2297, 124
        %v2321 = vpop.permute.xlu0 %2320
        %2322 = vrot.lane.b32.xlu0 %v2298, 124
        %v2323 = vpop.permute.xlu0 %2322
        %v2324 = vsel %vm605, 1, 0
        %vm2325 = vcmp.eq.s32.totalorder %v2324, 1
        %v2326 = vsel %vm2325, %v2317, 0.0
        %v2327 = vsel %vm2325, %v2319, 0.0
        %v2328 = vsel %vm2325, %v2321, 0.0
        %v2329 = vsel %vm2325, %v2323, 0.0
        %2331 = vset.pattern.permute.xlu0 0
        %2332 = vperm.xlu0 %2331, %v2300
        %v2333 = vpop.permute.xlu0 %2332
        %2336 = vset.pattern.permute.xlu0 0
        %2337 = vperm.xlu0 %2336, %v2301
        %v2338 = vpop.permute.xlu0 %2337
        %2341 = vset.pattern.permute.xlu0 0
        %2342 = vperm.xlu0 %2341, %v2302
        %v2343 = vpop.permute.xlu0 %2342
        %2346 = vset.pattern.permute.xlu0 0
        %2347 = vperm.xlu0 %2346, %v2303
        %v2348 = vpop.permute.xlu0 %2347
        %v2350 = vmul.f32 %v2333, %v2312
        %v2351 = vmul.f32 %v2338, %v2313
        %v2352 = vmul.f32 %v2343, %v2314
        %v2353 = vmul.f32 %v2348, %v2315
        %2354 = vset.pattern.permute.xlu0 1
        %2355 = vperm.xlu0 %2354, %v2300
        %v2356 = vpop.permute.xlu0 %2355
        %2358 = vset.pattern.permute.xlu0 1
        %2359 = vperm.xlu0 %2358, %v2301
        %v2360 = vpop.permute.xlu0 %2359
        %2362 = vset.pattern.permute.xlu0 1
        %2363 = vperm.xlu0 %2362, %v2302
        %v2364 = vpop.permute.xlu0 %2363
        %2366 = vset.pattern.permute.xlu0 1
        %2367 = vperm.xlu0 %2366, %v2303
        %v2368 = vpop.permute.xlu0 %2367
        %v2370 = vmul.f32 %v2356, %v2295
        %v2371 = vmul.f32 %v2360, %v2296
        %v2372 = vmul.f32 %v2364, %v2297
        %v2373 = vmul.f32 %v2368, %v2298
        %v2374 = vadd.f32 %v2350, %v2370
        %v2375 = vadd.f32 %v2351, %v2371
        %v2376 = vadd.f32 %v2352, %v2372
        %v2377 = vadd.f32 %v2353, %v2373
        %2378 = vset.pattern.permute.xlu0 2
        %2379 = vperm.xlu0 %2378, %v2300
        %v2380 = vpop.permute.xlu0 %2379
        %2382 = vset.pattern.permute.xlu0 2
        %2383 = vperm.xlu0 %2382, %v2301
        %v2384 = vpop.permute.xlu0 %2383
        %2386 = vset.pattern.permute.xlu0 2
        %2387 = vperm.xlu0 %2386, %v2302
        %v2388 = vpop.permute.xlu0 %2387
        %2390 = vset.pattern.permute.xlu0 2
        %2391 = vperm.xlu0 %2390, %v2303
        %v2392 = vpop.permute.xlu0 %2391
        %v2394 = vmul.f32 %v2380, %v2326
        %v2395 = vmul.f32 %v2384, %v2327
        %v2396 = vmul.f32 %v2388, %v2328
        %v2397 = vmul.f32 %v2392, %v2329
        %v2398 = vadd.f32 %v2374, %v2394
        %v2399 = vadd.f32 %v2375, %v2395
        %v2400 = vadd.f32 %v2376, %v2396
        %v2401 = vadd.f32 %v2377, %v2397
        %s2402 = scalar_lea.vmem %s8, 64
        %v2403 = vld [vmem:[%s2402] sm:$0xff]
        %v2404 = vld [vmem:[%s2402 + $0x8] sm:$0xff]
        %v2405 = vld [vmem:[%s2402 + $0x10] sm:$0xff]
        %v2406 = vld [vmem:[%s2402 + $0x18] sm:$0xff]
        %2408 = vset.pattern.permute.xlu0 0
        %2409 = vperm.xlu0 %2408, %v2403
        %v2410 = vpop.permute.xlu0 %2409
        %2413 = vset.pattern.permute.xlu0 0
        %2414 = vperm.xlu0 %2413, %v2404
        %v2415 = vpop.permute.xlu0 %2414
        %2418 = vset.pattern.permute.xlu0 0
        %2419 = vperm.xlu0 %2418, %v2405
        %v2420 = vpop.permute.xlu0 %2419
        %2423 = vset.pattern.permute.xlu0 0
        %2424 = vperm.xlu0 %2423, %v2406
        %v2425 = vpop.permute.xlu0 %2424
        %v2427 = vadd.f32 %v2398, %v2410
        %v2428 = vadd.f32 %v2399, %v2415
        %v2429 = vadd.f32 %v2400, %v2420
        %v2430 = vadd.f32 %v2401, %v2425
        %vm2431 = vcmp.ge.f32.partialorder %v2427, 0.0
        %vm2432 = vcmp.ge.f32.partialorder %v2428, 0.0
        %vm2433 = vcmp.ge.f32.partialorder %v2429, 0.0
        %vm2434 = vcmp.ge.f32.partialorder %v2430, 0.0
        %v2435 = vstv %s2017
        %v2436 = vmul.f32 %v2435, %v2427
        %v2437 = vmul.f32 %v2435, %v2428
        %v2438 = vmul.f32 %v2435, %v2429
        %v2439 = vmul.f32 %v2435, %v2430
        %v2440 = vsel %vm2431, %v2427, %v2436
        %v2441 = vsel %vm2432, %v2428, %v2437
        %v2442 = vsel %vm2433, %v2429, %v2438
        %v2443 = vsel %vm2434, %v2430, %v2439
        %s2444 = scalar_lea.vmem %s9, 64
        %v2445 = vld [vmem:[%s2444] sm:$0xff]
        %v2446 = vld [vmem:[%s2444 + $0x8] sm:$0xff]
        %v2447 = vld [vmem:[%s2444 + $0x10] sm:$0xff]
        %v2448 = vld [vmem:[%s2444 + $0x18] sm:$0xff]
        %s2449 = scalar_lea.vmem %s10, 64
        %v2450 = vld [vmem:[%s2449] sm:$0xff]
        %v2451 = vld [vmem:[%s2449 + $0x8] sm:$0xff]
        %v2452 = vld [vmem:[%s2449 + $0x10] sm:$0xff]
        %v2453 = vld [vmem:[%s2449 + $0x18] sm:$0xff]
        %v2454 = vadd.f32 %v2440, %v2441
        %v2455 = vadd.f32 %v2454, %v2442
        %v2456 = vadd.f32 %v2455, %v2443
        %v2457 = vrot.slane %v2456, 4
        %v2458 = vadd.f32 %v2456, %v2457
        %v2459 = vrot.slane %v2458, 2
        %v2460 = vadd.f32 %v2458, %v2459
        %v2461 = vrot.slane %v2460, 1
        %v2462 = vadd.f32 %v2460, %v2461
        %v2463 = vmul.f32 %v2440, %v2440
        %v2464 = vmul.f32 %v2441, %v2441
        %v2465 = vmul.f32 %v2442, %v2442
        %v2466 = vmul.f32 %v2443, %v2443
        %v2467 = vadd.f32 %v2463, %v2464
        %v2468 = vadd.f32 %v2467, %v2465
        %v2469 = vadd.f32 %v2468, %v2466
        %v2470 = vrot.slane %v2469, 4
        %v2471 = vadd.f32 %v2469, %v2470
        %v2472 = vrot.slane %v2471, 2
        %v2473 = vadd.f32 %v2471, %v2472
        %v2474 = vrot.slane %v2473, 1
        %v2475 = vadd.f32 %v2473, %v2474
        %v2476 = vsel %vm780, %v2462, %v2475
        %2477 = vrot.lane.b32.xlu0 %v2476, 1
        %v2478 = vpop.permute.xlu0 %2477
        %v2479 = vsel %vm785, %v2478, 0.0
        %v2480 = vadd.f32 %v2476, %v2479
        %2481 = vrot.lane.b32.xlu0 %v2480, 2
        %v2482 = vpop.permute.xlu0 %2481
        %v2483 = vsel %vm791, %v2482, 0.0
        %v2484 = vadd.f32 %v2480, %v2483
        %2485 = vrot.lane.b32.xlu0 %v2484, 4
        %v2486 = vpop.permute.xlu0 %2485
        %v2487 = vsel %vm797, %v2486, 0.0
        %v2488 = vadd.f32 %v2484, %v2487
        %2489 = vrot.lane.b32.xlu0 %v2488, 8
        %v2490 = vpop.permute.xlu0 %2489
        %v2491 = vsel %vm803, %v2490, 0.0
        %v2492 = vadd.f32 %v2488, %v2491
        %2493 = vrot.lane.b32.xlu0 %v2492, 16
        %v2494 = vpop.permute.xlu0 %2493
        %v2495 = vsel %vm809, %v2494, 0.0
        %v2496 = vadd.f32 %v2492, %v2495
        %2497 = vrot.lane.b32.xlu0 %v2496, 32
        %v2498 = vpop.permute.xlu0 %2497
        %v2499 = vsel %vm815, %v2498, 0.0
        %v2500 = vadd.f32 %v2496, %v2499
        %2501 = vrot.lane.b32.xlu0 %v2500, 64
        %v2502 = vpop.permute.xlu0 %2501
        %v2503 = vsel %vm821, %v2502, 0.0
        %v2504 = vadd.f32 %v2500, %v2503
        %v2505 = vmul.f32 %v2504, %v595
        %v2506 = vmul.f32 %v2505, 2.0
        %v2507 = vmul.f32 %v2506, %v2504
        %v2509 = vrot.slane %v2507, 7
        %v2511 = vsub.f32 %v2504, %v2509
        %v2512 = vmul.f32 %v2511, %v595
        %v2513 = vmul.f32 %v2505, %v2505
        %v2515 = vrot.slane %v2513, 7
        %v2517 = vadd.f32 %v2512, %v2515
        %v2518 = vmax.f32 %v2517, 0.0
        %v2519 = vadd.f32 %v2518, 1e-08
        %v2520 = vrsqrt.pop %v2519
        %v2521 = vlaneseq
        %v2522 = vshrl.u32 %v2521, 7
        %v2523 = vsub.s32 0, %v2522
        %v2524 = vrot.slane %v2505, %v2523
        %v2525 = vsub.f32 %v2440, %v2524
        %v2526 = vsub.f32 %v2441, %v2524
        %v2527 = vsub.f32 %v2442, %v2524
        %v2528 = vsub.f32 %v2443, %v2524
        %v2529 = vlaneseq
        %v2530 = vshrl.u32 %v2529, 7
        %v2531 = vsub.s32 1, %v2530
        %v2532 = vrot.slane %v2520, %v2531
        %v2533 = vmul.f32 %v2525, %v2532
        %v2534 = vmul.f32 %v2526, %v2532
        %v2535 = vmul.f32 %v2527, %v2532
        %v2536 = vmul.f32 %v2528, %v2532
        %2538 = vset.pattern.permute.xlu0 0
        %2539 = vperm.xlu0 %2538, %v2445
        %v2540 = vpop.permute.xlu0 %2539
        %2543 = vset.pattern.permute.xlu0 0
        %2544 = vperm.xlu0 %2543, %v2446
        %v2545 = vpop.permute.xlu0 %2544
        %2548 = vset.pattern.permute.xlu0 0
        %2549 = vperm.xlu0 %2548, %v2447
        %v2550 = vpop.permute.xlu0 %2549
        %2553 = vset.pattern.permute.xlu0 0
        %2554 = vperm.xlu0 %2553, %v2448
        %v2555 = vpop.permute.xlu0 %2554
        %v2557 = vmul.f32 %v2533, %v2540
        %v2558 = vmul.f32 %v2534, %v2545
        %v2559 = vmul.f32 %v2535, %v2550
        %v2560 = vmul.f32 %v2536, %v2555
        %2562 = vset.pattern.permute.xlu0 0
        %2563 = vperm.xlu0 %2562, %v2450
        %v2564 = vpop.permute.xlu0 %2563
        %2567 = vset.pattern.permute.xlu0 0
        %2568 = vperm.xlu0 %2567, %v2451
        %v2569 = vpop.permute.xlu0 %2568
        %2572 = vset.pattern.permute.xlu0 0
        %2573 = vperm.xlu0 %2572, %v2452
        %v2574 = vpop.permute.xlu0 %2573
        %2577 = vset.pattern.permute.xlu0 0
        %2578 = vperm.xlu0 %2577, %v2453
        %v2579 = vpop.permute.xlu0 %2578
        %v2581 = vadd.f32 %v2557, %v2564
        %v2582 = vadd.f32 %v2558, %v2569
        %v2583 = vadd.f32 %v2559, %v2574
        %v2584 = vadd.f32 %v2560, %v2579
        %s2585 = scalar_lea.vmem %s11, 64
        %v2586 = vld [vmem:[%s2585] sm:$0xff]
        %v2587 = vld [vmem:[%s2585 + $0x8] sm:$0xff]
        %v2588 = vld [vmem:[%s2585 + $0x10] sm:$0xff]
        %v2589 = vld [vmem:[%s2585 + $0x18] sm:$0xff]
        %s2590 = scalar_lea.vmem %s12, 64
        %v2591 = vld [vmem:[%s2590] sm:$0xff]
        %v2592 = vld [vmem:[%s2590 + $0x8] sm:$0xff]
        %v2593 = vld [vmem:[%s2590 + $0x10] sm:$0xff]
        %v2594 = vld [vmem:[%s2590 + $0x18] sm:$0xff]
        %2596 = vset.pattern.permute.xlu0 0
        %2597 = vperm.xlu0 %2596, %v2591
        %v2598 = vpop.permute.xlu0 %2597
        %2601 = vset.pattern.permute.xlu0 0
        %2602 = vperm.xlu0 %2601, %v2592
        %v2603 = vpop.permute.xlu0 %2602
        %2606 = vset.pattern.permute.xlu0 0
        %2607 = vperm.xlu0 %2606, %v2593
        %v2608 = vpop.permute.xlu0 %2607
        %2611 = vset.pattern.permute.xlu0 0
        %2612 = vperm.xlu0 %2611, %v2594
        %v2613 = vpop.permute.xlu0 %2612
        %v2616 = vsel %vm1214, %v2586, 0
        %v2619 = vsel %vm1214, %v2587, 0
        %v2622 = vsel %vm1214, %v2588, 0
        %v2625 = vsel %vm1214, %v2589, 0
        %2627 = vmatprep.subr.mxu0 0.0
        %2628 = vmatpush1.msra.mxu0 %v2581
        %2629 = vmatprep.subr.mxu0 0.0
        %2630 = vmatpush1.msra.mxu0 %v2582
        %2631 = vmatprep.subr.mxu0 0.0
        %2632 = vmatpush1.msra.mxu0 %v2583
        %2633 = vmatprep.subr.mxu0 0.0
        %2634 = vmatpush1.msra.mxu0 %v2584
        %2635 = vmatprep.subr.mxu0 0.0
        %2636 = vmatpush1.msra.mxu0 0.0
        %2637 = vmatprep.subr.mxu0 0.0
        %2638 = vmatpush1.msra.mxu0 0.0
        %2639 = vmatprep.subr.mxu0 0.0
        %2640 = vmatpush1.msra.mxu0 0.0
        %2641 = vmatprep.subr.mxu0 0.0
        %2642 = vmatpush1.msra.mxu0 0.0
        %2643 = vmatprep.subr.mxu0 0.0
        %2644 = vmatpush1.msra.mxu0 0.0
        %2645 = vmatprep.subr.mxu0 0.0
        %2646 = vmatpush1.msra.mxu0 0.0
        %2647 = vmatprep.subr.mxu0 0.0
        %2648 = vmatpush1.msra.mxu0 0.0
        %2649 = vmatprep.subr.mxu0 0.0
        %2650 = vmatpush1.msra.mxu0 0.0
        %2651 = vmatprep.subr.mxu0 0.0
        %2652 = vmatpush1.msra.mxu0 0.0
        %2653 = vmatprep.subr.mxu0 0.0
        %2654 = vmatpush1.msra.mxu0 0.0
        %2655 = vmatprep.subr.mxu0 0.0
        %2656 = vmatpush1.msra.mxu0 0.0
        %2657 = vmatprep.subr.mxu0 0.0
        %2658 = vmatpush1.msra.mxu0 0.0
        %2659 = vmatprep.subr.mxu0 0.0
        %2660 = vmatpush1.msra.mxu0 0.0
        %2661 = vmatprep.subr.mxu0 0.0
        %2662 = vmatpush1.msra.mxu0 0.0
        %2663 = vmatprep.subr.mxu0 0.0
        %2664 = vmatpush1.msra.mxu0 0.0
        %2665 = vmatprep.subr.mxu0 0.0
        %2666 = vmatpush1.msra.mxu0 0.0
        %2667 = vmatprep.subr.mxu0 0.0
        %2668 = vmatpush1.msra.mxu0 0.0
        %2669 = vmatprep.subr.mxu0 0.0
        %2670 = vmatpush1.msra.mxu0 0.0
        %2671 = vmatprep.subr.mxu0 0.0
        %2672 = vmatpush1.msra.mxu0 0.0
        %2673 = vmatprep.subr.mxu0 0.0
        %2674 = vmatpush1.msra.mxu0 0.0
        %2675 = vmatprep.subr.mxu0 0.0
        %2676 = vmatpush1.msra.mxu0 0.0
        %2677 = vmatprep.subr.mxu0 0.0
        %2678 = vmatpush1.msra.mxu0 0.0
        %2679 = vmatprep.subr.mxu0 0.0
        %2680 = vmatpush1.msra.mxu0 0.0
        %2681 = vmatprep.subr.mxu0 0.0
        %2682 = vmatpush1.msra.mxu0 0.0
        %2683 = vmatprep.subr.mxu0 0.0
        %2684 = vmatpush1.msra.mxu0 0.0
        %2685 = vmatprep.subr.mxu0 0.0
        %2686 = vmatpush1.msra.mxu0 0.0
        %2687 = vmatprep.subr.mxu0 0.0
        %2688 = vmatpush1.msra.mxu0 0.0
        %2689 = vmatprep.subr.mxu0 0.0
        %2690 = vmatpush1.msra.mxu0 0.0
        %2691 = vmatprep.mubr.f32.mxu0 0.0
        %2692 = vmatmul.mubr.f32.gmra.mrb[0].mxu0 %v2616
        %v2693 = vpop.f32.mrb[0].mxu0
        %v2694 = vadd.f32 %v2598, %v2693
        %v2695 = vpop.f32.mrb[0].mxu0
        %2696 = vmatprep.mubr.f32.mxu0 0.0
        %2697 = vmatmul.mubr.f32.gmra.mrb[0].mxu0 %v2619
        %v2698 = vpop.f32.mrb[0].mxu0
        %v2699 = vadd.f32 %v2603, %v2698
        %v2700 = vpop.f32.mrb[0].mxu0
        %2701 = vmatprep.mubr.f32.mxu0 0.0
        %2702 = vmatmul.mubr.f32.gmra.mrb[0].mxu0 %v2622
        %v2703 = vpop.f32.mrb[0].mxu0
        %v2704 = vadd.f32 %v2608, %v2703
        %v2705 = vpop.f32.mrb[0].mxu0
        %2706 = vmatprep.mubr.f32.mxu0 0.0
        %2707 = vmatmul.mubr.f32.gmra.mrb[0].mxu0 %v2625
        %v2708 = vpop.f32.mrb[0].mxu0
        %v2709 = vadd.f32 %v2613, %v2708
        %v2710 = vpop.f32.mrb[0].mxu0
        %2711 = vdwg.mxu0
        %v2712 = vadd.f32 %v2012, %v2694
        %v2713 = vadd.f32 %v2013, %v2699
        %v2714 = vadd.f32 %v2014, %v2704
        %v2715 = vadd.f32 %v2015, %v2709
        %s2716 = sld [smem:[#allocation2 + $0x6]]
        %s2717 = sld [smem:[#allocation2 + $0x7]]
        %s2718 = scalar_lea.vmem %s3, 96
        %v2719 = vld [vmem:[%s2718] sm:$0xff]
        %v2720 = vld [vmem:[%s2718 + $0x8] sm:$0xff]
        %v2721 = vld [vmem:[%s2718 + $0x10] sm:$0xff]
        %v2722 = vld [vmem:[%s2718 + $0x18] sm:$0xff]
        %s2723 = scalar_lea.vmem %s4, 96
        %v2724 = vld [vmem:[%s2723] sm:$0xff]
        %v2725 = vld [vmem:[%s2723 + $0x8] sm:$0xff]
        %v2726 = vld [vmem:[%s2723 + $0x10] sm:$0xff]
        %v2727 = vld [vmem:[%s2723 + $0x18] sm:$0xff]
        %2729 = vset.pattern.permute.xlu0 0
        %2730 = vperm.xlu0 %2729, %v2724
        %v2731 = vpop.permute.xlu0 %2730
        %2734 = vset.pattern.permute.xlu0 0
        %2735 = vperm.xlu0 %2734, %v2725
        %v2736 = vpop.permute.xlu0 %2735
        %2739 = vset.pattern.permute.xlu0 0
        %2740 = vperm.xlu0 %2739, %v2726
        %v2741 = vpop.permute.xlu0 %2740
        %2744 = vset.pattern.permute.xlu0 0
        %2745 = vperm.xlu0 %2744, %v2727
        %v2746 = vpop.permute.xlu0 %2745
        %v2749 = vsel %vm639, %v2719, 0
        %v2752 = vsel %vm639, %v2720, 0
        %v2755 = vsel %vm639, %v2721, 0
        %v2758 = vsel %vm639, %v2722, 0
        %2760 = vmatprep.subr.mxu0 0.0
        %2761 = vmatpush1.msra.mxu0 %v2712
        %2762 = vmatprep.subr.mxu0 0.0
        %2763 = vmatpush1.msra.mxu0 %v2713
        %2764 = vmatprep.subr.mxu0 0.0
        %2765 = vmatpush1.msra.mxu0 0.0
        %2766 = vmatprep.subr.mxu0 0.0
        %2767 = vmatpush1.msra.mxu0 0.0
        %2768 = vmatprep.subr.mxu0 0.0
        %2769 = vmatpush1.msra.mxu0 0.0
        %2770 = vmatprep.subr.mxu0 0.0
        %2771 = vmatpush1.msra.mxu0 0.0
        %2772 = vmatprep.subr.mxu0 0.0
        %2773 = vmatpush1.msra.mxu0 0.0
        %2774 = vmatprep.subr.mxu0 0.0
        %2775 = vmatpush1.msra.mxu0 0.0
        %2776 = vmatprep.subr.mxu0 0.0
        %2777 = vmatpush1.msra.mxu0 0.0
        %2778 = vmatprep.subr.mxu0 0.0
        %2779 = vmatpush1.msra.mxu0 0.0
        %2780 = vmatprep.subr.mxu0 0.0
        %2781 = vmatpush1.msra.mxu0 0.0
        %2782 = vmatprep.subr.mxu0 0.0
        %2783 = vmatpush1.msra.mxu0 0.0
        %2784 = vmatprep.subr.mxu0 0.0
        %2785 = vmatpush1.msra.mxu0 0.0
        %2786 = vmatprep.subr.mxu0 0.0
        %2787 = vmatpush1.msra.mxu0 0.0
        %2788 = vmatprep.subr.mxu0 0.0
        %2789 = vmatpush1.msra.mxu0 0.0
        %2790 = vmatprep.subr.mxu0 0.0
        %2791 = vmatpush1.msra.mxu0 0.0
        %2792 = vmatprep.subr.mxu0 0.0
        %2793 = vmatpush1.msra.mxu0 0.0
        %2794 = vmatprep.subr.mxu0 0.0
        %2795 = vmatpush1.msra.mxu0 0.0
        %2796 = vmatprep.subr.mxu0 0.0
        %2797 = vmatpush1.msra.mxu0 0.0
        %2798 = vmatprep.subr.mxu0 0.0
        %2799 = vmatpush1.msra.mxu0 0.0
        %2800 = vmatprep.subr.mxu0 0.0
        %2801 = vmatpush1.msra.mxu0 0.0
        %2802 = vmatprep.subr.mxu0 0.0
        %2803 = vmatpush1.msra.mxu0 0.0
        %2804 = vmatprep.subr.mxu0 0.0
        %2805 = vmatpush1.msra.mxu0 0.0
        %2806 = vmatprep.subr.mxu0 0.0
        %2807 = vmatpush1.msra.mxu0 0.0
        %2808 = vmatprep.subr.mxu0 0.0
        %2809 = vmatpush1.msra.mxu0 0.0
        %2810 = vmatprep.subr.mxu0 0.0
        %2811 = vmatpush1.msra.mxu0 0.0
        %2812 = vmatprep.subr.mxu0 0.0
        %2813 = vmatpush1.msra.mxu0 0.0
        %2814 = vmatprep.subr.mxu0 0.0
        %2815 = vmatpush1.msra.mxu0 0.0
        %2816 = vmatprep.subr.mxu0 0.0
        %2817 = vmatpush1.msra.mxu0 0.0
        %2818 = vmatprep.subr.mxu0 0.0
        %2819 = vmatpush1.msra.mxu0 0.0
        %2820 = vmatprep.subr.mxu0 0.0
        %2821 = vmatpush1.msra.mxu0 0.0
        %2822 = vmatprep.subr.mxu0 0.0
        %2823 = vmatpush1.msra.mxu0 0.0
        %2824 = vmatprep.mubr.f32.mxu0 0.0
        %2825 = vmatmul.mubr.f32.gmra.mrb[0].mxu0 %v2749
        %v2826 = vpop.f32.mrb[0].mxu0
        %v2827 = vadd.f32 %v2731, %v2826
        %v2828 = vpop.f32.mrb[0].mxu0
        %2829 = vmatprep.mubr.f32.mxu0 0.0
        %2830 = vmatmul.mubr.f32.gmra.mrb[0].mxu0 %v2752
        %v2831 = vpop.f32.mrb[0].mxu0
        %v2832 = vadd.f32 %v2736, %v2831
        %v2833 = vpop.f32.mrb[0].mxu0
        %2834 = vmatprep.mubr.f32.mxu0 0.0
        %2835 = vmatmul.mubr.f32.gmra.mrb[0].mxu0 %v2755
        %v2836 = vpop.f32.mrb[0].mxu0
        %v2837 = vadd.f32 %v2741, %v2836
        %v2838 = vpop.f32.mrb[0].mxu0
        %2839 = vmatprep.mubr.f32.mxu0 0.0
        %2840 = vmatmul.mubr.f32.gmra.mrb[0].mxu0 %v2758
        %v2841 = vpop.f32.mrb[0].mxu0
        %v2842 = vadd.f32 %v2746, %v2841
        %v2843 = vpop.f32.mrb[0].mxu0
        %2844 = vdwg.mxu0
        %vm2845 = vcmp.ge.f32.partialorder %v2827, 0.0
        %vm2846 = vcmp.ge.f32.partialorder %v2832, 0.0
        %vm2847 = vcmp.ge.f32.partialorder %v2837, 0.0
        %vm2848 = vcmp.ge.f32.partialorder %v2842, 0.0
        %v2849 = vstv %s2716
        %v2850 = vmul.f32 %v2849, %v2827
        %v2851 = vmul.f32 %v2849, %v2832
        %v2852 = vmul.f32 %v2849, %v2837
        %v2853 = vmul.f32 %v2849, %v2842
        %v2854 = vsel %vm2845, %v2827, %v2850
        %v2855 = vsel %vm2846, %v2832, %v2851
        %v2856 = vsel %vm2847, %v2837, %v2852
        %v2857 = vsel %vm2848, %v2842, %v2853
        %s2858 = scalar_lea.vmem %s5, 96
        %v2859 = vld [vmem:[%s2858] sm:$0xff]
        %v2860 = vld [vmem:[%s2858 + $0x8] sm:$0xff]
        %v2861 = vld [vmem:[%s2858 + $0x10] sm:$0xff]
        %v2862 = vld [vmem:[%s2858 + $0x18] sm:$0xff]
        %s2863 = scalar_lea.vmem %s6, 96
        %v2864 = vld [vmem:[%s2863] sm:$0xff]
        %v2865 = vld [vmem:[%s2863 + $0x8] sm:$0xff]
        %v2866 = vld [vmem:[%s2863 + $0x10] sm:$0xff]
        %v2867 = vld [vmem:[%s2863 + $0x18] sm:$0xff]
        %v2868 = vadd.f32 %v2854, %v2855
        %v2869 = vadd.f32 %v2868, %v2856
        %v2870 = vadd.f32 %v2869, %v2857
        %v2871 = vrot.slane %v2870, 4
        %v2872 = vadd.f32 %v2870, %v2871
        %v2873 = vrot.slane %v2872, 2
        %v2874 = vadd.f32 %v2872, %v2873
        %v2875 = vrot.slane %v2874, 1
        %v2876 = vadd.f32 %v2874, %v2875
        %v2877 = vmul.f32 %v2854, %v2854
        %v2878 = vmul.f32 %v2855, %v2855
        %v2879 = vmul.f32 %v2856, %v2856
        %v2880 = vmul.f32 %v2857, %v2857
        %v2881 = vadd.f32 %v2877, %v2878
        %v2882 = vadd.f32 %v2881, %v2879
        %v2883 = vadd.f32 %v2882, %v2880
        %v2884 = vrot.slane %v2883, 4
        %v2885 = vadd.f32 %v2883, %v2884
        %v2886 = vrot.slane %v2885, 2
        %v2887 = vadd.f32 %v2885, %v2886
        %v2888 = vrot.slane %v2887, 1
        %v2889 = vadd.f32 %v2887, %v2888
        %v2890 = vsel %vm780, %v2876, %v2889
        %2891 = vrot.lane.b32.xlu0 %v2890, 1
        %v2892 = vpop.permute.xlu0 %2891
        %v2893 = vsel %vm785, %v2892, 0.0
        %v2894 = vadd.f32 %v2890, %v2893
        %2895 = vrot.lane.b32.xlu0 %v2894, 2
        %v2896 = vpop.permute.xlu0 %2895
        %v2897 = vsel %vm791, %v2896, 0.0
        %v2898 = vadd.f32 %v2894, %v2897
        %2899 = vrot.lane.b32.xlu0 %v2898, 4
        %v2900 = vpop.permute.xlu0 %2899
        %v2901 = vsel %vm797, %v2900, 0.0
        %v2902 = vadd.f32 %v2898, %v2901
        %2903 = vrot.lane.b32.xlu0 %v2902, 8
        %v2904 = vpop.permute.xlu0 %2903
        %v2905 = vsel %vm803, %v2904, 0.0
        %v2906 = vadd.f32 %v2902, %v2905
        %2907 = vrot.lane.b32.xlu0 %v2906, 16
        %v2908 = vpop.permute.xlu0 %2907
        %v2909 = vsel %vm809, %v2908, 0.0
        %v2910 = vadd.f32 %v2906, %v2909
        %2911 = vrot.lane.b32.xlu0 %v2910, 32
        %v2912 = vpop.permute.xlu0 %2911
        %v2913 = vsel %vm815, %v2912, 0.0
        %v2914 = vadd.f32 %v2910, %v2913
        %2915 = vrot.lane.b32.xlu0 %v2914, 64
        %v2916 = vpop.permute.xlu0 %2915
        %v2917 = vsel %vm821, %v2916, 0.0
        %v2918 = vadd.f32 %v2914, %v2917
        %v2919 = vmul.f32 %v2918, %v595
        %v2920 = vmul.f32 %v2919, 2.0
        %v2921 = vmul.f32 %v2920, %v2918
        %v2923 = vrot.slane %v2921, 7
        %v2925 = vsub.f32 %v2918, %v2923
        %v2926 = vmul.f32 %v2925, %v595
        %v2927 = vmul.f32 %v2919, %v2919
        %v2929 = vrot.slane %v2927, 7
        %v2931 = vadd.f32 %v2926, %v2929
        %v2932 = vmax.f32 %v2931, 0.0
        %v2933 = vadd.f32 %v2932, 1e-08
        %v2934 = vrsqrt.pop %v2933
        %v2935 = vlaneseq
        %v2936 = vshrl.u32 %v2935, 7
        %v2937 = vsub.s32 0, %v2936
        %v2938 = vrot.slane %v2919, %v2937
        %v2939 = vsub.f32 %v2854, %v2938
        %v2940 = vsub.f32 %v2855, %v2938
        %v2941 = vsub.f32 %v2856, %v2938
        %v2942 = vsub.f32 %v2857, %v2938
        %v2943 = vlaneseq
        %v2944 = vshrl.u32 %v2943, 7
        %v2945 = vsub.s32 1, %v2944
        %v2946 = vrot.slane %v2934, %v2945
        %v2947 = vmul.f32 %v2939, %v2946
        %v2948 = vmul.f32 %v2940, %v2946
        %v2949 = vmul.f32 %v2941, %v2946
        %v2950 = vmul.f32 %v2942, %v2946
        %2952 = vset.pattern.permute.xlu0 0
        %2953 = vperm.xlu0 %2952, %v2859
        %v2954 = vpop.permute.xlu0 %2953
        %2957 = vset.pattern.permute.xlu0 0
        %2958 = vperm.xlu0 %2957, %v2860
        %v2959 = vpop.permute.xlu0 %2958
        %2962 = vset.pattern.permute.xlu0 0
        %2963 = vperm.xlu0 %2962, %v2861
        %v2964 = vpop.permute.xlu0 %2963
        %2967 = vset.pattern.permute.xlu0 0
        %2968 = vperm.xlu0 %2967, %v2862
        %v2969 = vpop.permute.xlu0 %2968
        %v2971 = vmul.f32 %v2947, %v2954
        %v2972 = vmul.f32 %v2948, %v2959
        %v2973 = vmul.f32 %v2949, %v2964
        %v2974 = vmul.f32 %v2950, %v2969
        %2976 = vset.pattern.permute.xlu0 0
        %2977 = vperm.xlu0 %2976, %v2864
        %v2978 = vpop.permute.xlu0 %2977
        %2981 = vset.pattern.permute.xlu0 0
        %2982 = vperm.xlu0 %2981, %v2865
        %v2983 = vpop.permute.xlu0 %2982
        %2986 = vset.pattern.permute.xlu0 0
        %2987 = vperm.xlu0 %2986, %v2866
        %v2988 = vpop.permute.xlu0 %2987
        %2991 = vset.pattern.permute.xlu0 0
        %2992 = vperm.xlu0 %2991, %v2867
        %v2993 = vpop.permute.xlu0 %2992
        %v2995 = vadd.f32 %v2971, %v2978
        %v2996 = vadd.f32 %v2972, %v2983
        %v2997 = vadd.f32 %v2973, %v2988
        %v2998 = vadd.f32 %v2974, %v2993
        %s2999 = scalar_lea.vmem %s7, 96
        %v3000 = vld [vmem:[%s2999] sm:$0xff]
        %v3001 = vld [vmem:[%s2999 + $0x8] sm:$0xff]
        %v3002 = vld [vmem:[%s2999 + $0x10] sm:$0xff]
        %v3003 = vld [vmem:[%s2999 + $0x18] sm:$0xff]
        %3004 = vrot.lane.b32.xlu0 %v2995, 1
        %v3005 = vpop.permute.xlu0 %3004
        %3006 = vrot.lane.b32.xlu0 %v2996, 1
        %v3007 = vpop.permute.xlu0 %3006
        %3008 = vrot.lane.b32.xlu0 %v2997, 1
        %v3009 = vpop.permute.xlu0 %3008
        %3010 = vrot.lane.b32.xlu0 %v2998, 1
        %v3011 = vpop.permute.xlu0 %3010
        %v3012 = vsel %vm785, %v3005, 0.0
        %v3013 = vsel %vm785, %v3007, 0.0
        %v3014 = vsel %vm785, %v3009, 0.0
        %v3015 = vsel %vm785, %v3011, 0.0
        %3016 = vrot.lane.b32.xlu0 %v2995, 127
        %v3017 = vpop.permute.xlu0 %3016
        %3018 = vrot.lane.b32.xlu0 %v2996, 127
        %v3019 = vpop.permute.xlu0 %3018
        %3020 = vrot.lane.b32.xlu0 %v2997, 127
        %v3021 = vpop.permute.xlu0 %3020
        %3022 = vrot.lane.b32.xlu0 %v2998, 127
        %v3023 = vpop.permute.xlu0 %3022
        %v3024 = vsel %vm929, %v3017, 0.0
        %v3025 = vsel %vm929, %v3019, 0.0
        %v3026 = vsel %vm929, %v3021, 0.0
        %v3027 = vsel %vm929, %v3023, 0.0
        %3029 = vset.pattern.permute.xlu0 0
        %3030 = vperm.xlu0 %3029, %v3000
        %v3031 = vpop.permute.xlu0 %3030
        %3034 = vset.pattern.permute.xlu0 0
        %3035 = vperm.xlu0 %3034, %v3001
        %v3036 = vpop.permute.xlu0 %3035
        %3039 = vset.pattern.permute.xlu0 0
        %3040 = vperm.xlu0 %3039, %v3002
        %v3041 = vpop.permute.xlu0 %3040
        %3044 = vset.pattern.permute.xlu0 0
        %3045 = vperm.xlu0 %3044, %v3003
        %v3046 = vpop.permute.xlu0 %3045
        %v3048 = vmul.f32 %v3031, %v3012
        %v3049 = vmul.f32 %v3036, %v3013
        %v3050 = vmul.f32 %v3041, %v3014
        %v3051 = vmul.f32 %v3046, %v3015
        %3052 = vset.pattern.permute.xlu0 1
        %3053 = vperm.xlu0 %3052, %v3000
        %v3054 = vpop.permute.xlu0 %3053
        %3056 = vset.pattern.permute.xlu0 1
        %3057 = vperm.xlu0 %3056, %v3001
        %v3058 = vpop.permute.xlu0 %3057
        %3060 = vset.pattern.permute.xlu0 1
        %3061 = vperm.xlu0 %3060, %v3002
        %v3062 = vpop.permute.xlu0 %3061
        %3064 = vset.pattern.permute.xlu0 1
        %3065 = vperm.xlu0 %3064, %v3003
        %v3066 = vpop.permute.xlu0 %3065
        %v3068 = vmul.f32 %v3054, %v2995
        %v3069 = vmul.f32 %v3058, %v2996
        %v3070 = vmul.f32 %v3062, %v2997
        %v3071 = vmul.f32 %v3066, %v2998
        %v3072 = vadd.f32 %v3048, %v3068
        %v3073 = vadd.f32 %v3049, %v3069
        %v3074 = vadd.f32 %v3050, %v3070
        %v3075 = vadd.f32 %v3051, %v3071
        %3076 = vset.pattern.permute.xlu0 2
        %3077 = vperm.xlu0 %3076, %v3000
        %v3078 = vpop.permute.xlu0 %3077
        %3080 = vset.pattern.permute.xlu0 2
        %3081 = vperm.xlu0 %3080, %v3001
        %v3082 = vpop.permute.xlu0 %3081
        %3084 = vset.pattern.permute.xlu0 2
        %3085 = vperm.xlu0 %3084, %v3002
        %v3086 = vpop.permute.xlu0 %3085
        %3088 = vset.pattern.permute.xlu0 2
        %3089 = vperm.xlu0 %3088, %v3003
        %v3090 = vpop.permute.xlu0 %3089
        %v3092 = vmul.f32 %v3078, %v3024
        %v3093 = vmul.f32 %v3082, %v3025
        %v3094 = vmul.f32 %v3086, %v3026
        %v3095 = vmul.f32 %v3090, %v3027
        %v3096 = vadd.f32 %v3072, %v3092
        %v3097 = vadd.f32 %v3073, %v3093
        %v3098 = vadd.f32 %v3074, %v3094
        %v3099 = vadd.f32 %v3075, %v3095
        %s3100 = scalar_lea.vmem %s8, 96
        %v3101 = vld [vmem:[%s3100] sm:$0xff]
        %v3102 = vld [vmem:[%s3100 + $0x8] sm:$0xff]
        %v3103 = vld [vmem:[%s3100 + $0x10] sm:$0xff]
        %v3104 = vld [vmem:[%s3100 + $0x18] sm:$0xff]
        %3106 = vset.pattern.permute.xlu0 0
        %3107 = vperm.xlu0 %3106, %v3101
        %v3108 = vpop.permute.xlu0 %3107
        %3111 = vset.pattern.permute.xlu0 0
        %3112 = vperm.xlu0 %3111, %v3102
        %v3113 = vpop.permute.xlu0 %3112
        %3116 = vset.pattern.permute.xlu0 0
        %3117 = vperm.xlu0 %3116, %v3103
        %v3118 = vpop.permute.xlu0 %3117
        %3121 = vset.pattern.permute.xlu0 0
        %3122 = vperm.xlu0 %3121, %v3104
        %v3123 = vpop.permute.xlu0 %3122
        %v3125 = vadd.f32 %v3096, %v3108
        %v3126 = vadd.f32 %v3097, %v3113
        %v3127 = vadd.f32 %v3098, %v3118
        %v3128 = vadd.f32 %v3099, %v3123
        %vm3129 = vcmp.ge.f32.partialorder %v3125, 0.0
        %vm3130 = vcmp.ge.f32.partialorder %v3126, 0.0
        %vm3131 = vcmp.ge.f32.partialorder %v3127, 0.0
        %vm3132 = vcmp.ge.f32.partialorder %v3128, 0.0
        %v3133 = vstv %s2717
        %v3134 = vmul.f32 %v3133, %v3125
        %v3135 = vmul.f32 %v3133, %v3126
        %v3136 = vmul.f32 %v3133, %v3127
        %v3137 = vmul.f32 %v3133, %v3128
        %v3138 = vsel %vm3129, %v3125, %v3134
        %v3139 = vsel %vm3130, %v3126, %v3135
        %v3140 = vsel %vm3131, %v3127, %v3136
        %v3141 = vsel %vm3132, %v3128, %v3137
        %s3142 = scalar_lea.vmem %s9, 96
        %v3143 = vld [vmem:[%s3142] sm:$0xff]
        %v3144 = vld [vmem:[%s3142 + $0x8] sm:$0xff]
        %v3145 = vld [vmem:[%s3142 + $0x10] sm:$0xff]
        %v3146 = vld [vmem:[%s3142 + $0x18] sm:$0xff]
        %s3147 = scalar_lea.vmem %s10, 96
        %v3148 = vld [vmem:[%s3147] sm:$0xff]
        %v3149 = vld [vmem:[%s3147 + $0x8] sm:$0xff]
        %v3150 = vld [vmem:[%s3147 + $0x10] sm:$0xff]
        %v3151 = vld [vmem:[%s3147 + $0x18] sm:$0xff]
        %v3152 = vadd.f32 %v3138, %v3139
        %v3153 = vadd.f32 %v3152, %v3140
        %v3154 = vadd.f32 %v3153, %v3141
        %v3155 = vrot.slane %v3154, 4
        %v3156 = vadd.f32 %v3154, %v3155
        %v3157 = vrot.slane %v3156, 2
        %v3158 = vadd.f32 %v3156, %v3157
        %v3159 = vrot.slane %v3158, 1
        %v3160 = vadd.f32 %v3158, %v3159
        %v3161 = vmul.f32 %v3138, %v3138
        %v3162 = vmul.f32 %v3139, %v3139
        %v3163 = vmul.f32 %v3140, %v3140
        %v3164 = vmul.f32 %v3141, %v3141
        %v3165 = vadd.f32 %v3161, %v3162
        %v3166 = vadd.f32 %v3165, %v3163
        %v3167 = vadd.f32 %v3166, %v3164
        %v3168 = vrot.slane %v3167, 4
        %v3169 = vadd.f32 %v3167, %v3168
        %v3170 = vrot.slane %v3169, 2
        %v3171 = vadd.f32 %v3169, %v3170
        %v3172 = vrot.slane %v3171, 1
        %v3173 = vadd.f32 %v3171, %v3172
        %v3174 = vsel %vm780, %v3160, %v3173
        %3175 = vrot.lane.b32.xlu0 %v3174, 1
        %v3176 = vpop.permute.xlu0 %3175
        %v3177 = vsel %vm785, %v3176, 0.0
        %v3178 = vadd.f32 %v3174, %v3177
        %3179 = vrot.lane.b32.xlu0 %v3178, 2
        %v3180 = vpop.permute.xlu0 %3179
        %v3181 = vsel %vm791, %v3180, 0.0
        %v3182 = vadd.f32 %v3178, %v3181
        %3183 = vrot.lane.b32.xlu0 %v3182, 4
        %v3184 = vpop.permute.xlu0 %3183
        %v3185 = vsel %vm797, %v3184, 0.0
        %v3186 = vadd.f32 %v3182, %v3185
        %3187 = vrot.lane.b32.xlu0 %v3186, 8
        %v3188 = vpop.permute.xlu0 %3187
        %v3189 = vsel %vm803, %v3188, 0.0
        %v3190 = vadd.f32 %v3186, %v3189
        %3191 = vrot.lane.b32.xlu0 %v3190, 16
        %v3192 = vpop.permute.xlu0 %3191
        %v3193 = vsel %vm809, %v3192, 0.0
        %v3194 = vadd.f32 %v3190, %v3193
        %3195 = vrot.lane.b32.xlu0 %v3194, 32
        %v3196 = vpop.permute.xlu0 %3195
        %v3197 = vsel %vm815, %v3196, 0.0
        %v3198 = vadd.f32 %v3194, %v3197
        %3199 = vrot.lane.b32.xlu0 %v3198, 64
        %v3200 = vpop.permute.xlu0 %3199
        %v3201 = vsel %vm821, %v3200, 0.0
        %v3202 = vadd.f32 %v3198, %v3201
        %v3203 = vmul.f32 %v3202, %v595
        %v3204 = vmul.f32 %v3203, 2.0
        %v3205 = vmul.f32 %v3204, %v3202
        %v3207 = vrot.slane %v3205, 7
        %v3209 = vsub.f32 %v3202, %v3207
        %v3210 = vmul.f32 %v3209, %v595
        %v3211 = vmul.f32 %v3203, %v3203
        %v3213 = vrot.slane %v3211, 7
        %v3215 = vadd.f32 %v3210, %v3213
        %v3216 = vmax.f32 %v3215, 0.0
        %v3217 = vadd.f32 %v3216, 1e-08
        %v3218 = vrsqrt.pop %v3217
        %v3219 = vlaneseq
        %v3220 = vshrl.u32 %v3219, 7
        %v3221 = vsub.s32 0, %v3220
        %v3222 = vrot.slane %v3203, %v3221
        %v3223 = vsub.f32 %v3138, %v3222
        %v3224 = vsub.f32 %v3139, %v3222
        %v3225 = vsub.f32 %v3140, %v3222
        %v3226 = vsub.f32 %v3141, %v3222
        %v3227 = vlaneseq
        %v3228 = vshrl.u32 %v3227, 7
        %v3229 = vsub.s32 1, %v3228
        %v3230 = vrot.slane %v3218, %v3229
        %v3231 = vmul.f32 %v3223, %v3230
        %v3232 = vmul.f32 %v3224, %v3230
        %v3233 = vmul.f32 %v3225, %v3230
        %v3234 = vmul.f32 %v3226, %v3230
        %3236 = vset.pattern.permute.xlu0 0
        %3237 = vperm.xlu0 %3236, %v3143
        %v3238 = vpop.permute.xlu0 %3237
        %3241 = vset.pattern.permute.xlu0 0
        %3242 = vperm.xlu0 %3241, %v3144
        %v3243 = vpop.permute.xlu0 %3242
        %3246 = vset.pattern.permute.xlu0 0
        %3247 = vperm.xlu0 %3246, %v3145
        %v3248 = vpop.permute.xlu0 %3247
        %3251 = vset.pattern.permute.xlu0 0
        %3252 = vperm.xlu0 %3251, %v3146
        %v3253 = vpop.permute.xlu0 %3252
        %v3255 = vmul.f32 %v3231, %v3238
        %v3256 = vmul.f32 %v3232, %v3243
        %v3257 = vmul.f32 %v3233, %v3248
        %v3258 = vmul.f32 %v3234, %v3253
        %3260 = vset.pattern.permute.xlu0 0
        %3261 = vperm.xlu0 %3260, %v3148
        %v3262 = vpop.permute.xlu0 %3261
        %3265 = vset.pattern.permute.xlu0 0
        %3266 = vperm.xlu0 %3265, %v3149
        %v3267 = vpop.permute.xlu0 %3266
        %3270 = vset.pattern.permute.xlu0 0
        %3271 = vperm.xlu0 %3270, %v3150
        %v3272 = vpop.permute.xlu0 %3271
        %3275 = vset.pattern.permute.xlu0 0
        %3276 = vperm.xlu0 %3275, %v3151
        %v3277 = vpop.permute.xlu0 %3276
        %v3279 = vadd.f32 %v3255, %v3262
        %v3280 = vadd.f32 %v3256, %v3267
        %v3281 = vadd.f32 %v3257, %v3272
        %v3282 = vadd.f32 %v3258, %v3277
        %s3283 = scalar_lea.vmem %s11, 96
        %v3284 = vld [vmem:[%s3283] sm:$0xff]
        %v3285 = vld [vmem:[%s3283 + $0x8] sm:$0xff]
        %v3286 = vld [vmem:[%s3283 + $0x10] sm:$0xff]
        %v3287 = vld [vmem:[%s3283 + $0x18] sm:$0xff]
        %s3288 = scalar_lea.vmem %s12, 96
        %v3289 = vld [vmem:[%s3288] sm:$0xff]
        %v3290 = vld [vmem:[%s3288 + $0x8] sm:$0xff]
        %v3291 = vld [vmem:[%s3288 + $0x10] sm:$0xff]
        %v3292 = vld [vmem:[%s3288 + $0x18] sm:$0xff]
        %3294 = vset.pattern.permute.xlu0 0
        %3295 = vperm.xlu0 %3294, %v3289
        %v3296 = vpop.permute.xlu0 %3295
        %3299 = vset.pattern.permute.xlu0 0
        %3300 = vperm.xlu0 %3299, %v3290
        %v3301 = vpop.permute.xlu0 %3300
        %3304 = vset.pattern.permute.xlu0 0
        %3305 = vperm.xlu0 %3304, %v3291
        %v3306 = vpop.permute.xlu0 %3305
        %3309 = vset.pattern.permute.xlu0 0
        %3310 = vperm.xlu0 %3309, %v3292
        %v3311 = vpop.permute.xlu0 %3310
        %v3314 = vsel %vm1214, %v3284, 0
        %v3317 = vsel %vm1214, %v3285, 0
        %v3320 = vsel %vm1214, %v3286, 0
        %v3323 = vsel %vm1214, %v3287, 0
        %3325 = vmatprep.subr.mxu0 0.0
        %3326 = vmatpush1.msra.mxu0 %v3279
        %3327 = vmatprep.subr.mxu0 0.0
        %3328 = vmatpush1.msra.mxu0 %v3280
        %3329 = vmatprep.subr.mxu0 0.0
        %3330 = vmatpush1.msra.mxu0 %v3281
        %3331 = vmatprep.subr.mxu0 0.0
        %3332 = vmatpush1.msra.mxu0 %v3282
        %3333 = vmatprep.subr.mxu0 0.0
        %3334 = vmatpush1.msra.mxu0 0.0
        %3335 = vmatprep.subr.mxu0 0.0
        %3336 = vmatpush1.msra.mxu0 0.0
        %3337 = vmatprep.subr.mxu0 0.0
        %3338 = vmatpush1.msra.mxu0 0.0
        %3339 = vmatprep.subr.mxu0 0.0
        %3340 = vmatpush1.msra.mxu0 0.0
        %3341 = vmatprep.subr.mxu0 0.0
        %3342 = vmatpush1.msra.mxu0 0.0
        %3343 = vmatprep.subr.mxu0 0.0
        %3344 = vmatpush1.msra.mxu0 0.0
        %3345 = vmatprep.subr.mxu0 0.0
        %3346 = vmatpush1.msra.mxu0 0.0
        %3347 = vmatprep.subr.mxu0 0.0
        %3348 = vmatpush1.msra.mxu0 0.0
        %3349 = vmatprep.subr.mxu0 0.0
        %3350 = vmatpush1.msra.mxu0 0.0
        %3351 = vmatprep.subr.mxu0 0.0
        %3352 = vmatpush1.msra.mxu0 0.0
        %3353 = vmatprep.subr.mxu0 0.0
        %3354 = vmatpush1.msra.mxu0 0.0
        %3355 = vmatprep.subr.mxu0 0.0
        %3356 = vmatpush1.msra.mxu0 0.0
        %3357 = vmatprep.subr.mxu0 0.0
        %3358 = vmatpush1.msra.mxu0 0.0
        %3359 = vmatprep.subr.mxu0 0.0
        %3360 = vmatpush1.msra.mxu0 0.0
        %3361 = vmatprep.subr.mxu0 0.0
        %3362 = vmatpush1.msra.mxu0 0.0
        %3363 = vmatprep.subr.mxu0 0.0
        %3364 = vmatpush1.msra.mxu0 0.0
        %3365 = vmatprep.subr.mxu0 0.0
        %3366 = vmatpush1.msra.mxu0 0.0
        %3367 = vmatprep.subr.mxu0 0.0
        %3368 = vmatpush1.msra.mxu0 0.0
        %3369 = vmatprep.subr.mxu0 0.0
        %3370 = vmatpush1.msra.mxu0 0.0
        %3371 = vmatprep.subr.mxu0 0.0
        %3372 = vmatpush1.msra.mxu0 0.0
        %3373 = vmatprep.subr.mxu0 0.0
        %3374 = vmatpush1.msra.mxu0 0.0
        %3375 = vmatprep.subr.mxu0 0.0
        %3376 = vmatpush1.msra.mxu0 0.0
        %3377 = vmatprep.subr.mxu0 0.0
        %3378 = vmatpush1.msra.mxu0 0.0
        %3379 = vmatprep.subr.mxu0 0.0
        %3380 = vmatpush1.msra.mxu0 0.0
        %3381 = vmatprep.subr.mxu0 0.0
        %3382 = vmatpush1.msra.mxu0 0.0
        %3383 = vmatprep.subr.mxu0 0.0
        %3384 = vmatpush1.msra.mxu0 0.0
        %3385 = vmatprep.subr.mxu0 0.0
        %3386 = vmatpush1.msra.mxu0 0.0
        %3387 = vmatprep.subr.mxu0 0.0
        %3388 = vmatpush1.msra.mxu0 0.0
        %3389 = vmatprep.mubr.f32.mxu0 0.0
        %3390 = vmatmul.mubr.f32.gmra.mrb[0].mxu0 %v3314
        %v3391 = vpop.f32.mrb[0].mxu0
        %v3392 = vadd.f32 %v3296, %v3391
        %v3393 = vpop.f32.mrb[0].mxu0
        %3394 = vmatprep.mubr.f32.mxu0 0.0
        %3395 = vmatmul.mubr.f32.gmra.mrb[0].mxu0 %v3317
        %v3396 = vpop.f32.mrb[0].mxu0
        %v3397 = vadd.f32 %v3301, %v3396
        %v3398 = vpop.f32.mrb[0].mxu0
        %3399 = vmatprep.mubr.f32.mxu0 0.0
        %3400 = vmatmul.mubr.f32.gmra.mrb[0].mxu0 %v3320
        %v3401 = vpop.f32.mrb[0].mxu0
        %v3402 = vadd.f32 %v3306, %v3401
        %v3403 = vpop.f32.mrb[0].mxu0
        %3404 = vmatprep.mubr.f32.mxu0 0.0
        %3405 = vmatmul.mubr.f32.gmra.mrb[0].mxu0 %v3323
        %v3406 = vpop.f32.mrb[0].mxu0
        %v3407 = vadd.f32 %v3311, %v3406
        %v3408 = vpop.f32.mrb[0].mxu0
        %3409 = vdwg.mxu0
        %v3410 = vadd.f32 %v2712, %v3392
        %v3411 = vadd.f32 %v2713, %v3397
        %v3412 = vadd.f32 %v2714, %v3402
        %v3413 = vadd.f32 %v2715, %v3407
        %s3414 = sld [smem:[#allocation2 + $0x8]]
        %s3415 = sld [smem:[#allocation2 + $0x9]]
        %s3416 = scalar_lea.vmem %s3, 128
        %v3417 = vld [vmem:[%s3416] sm:$0xff]
        %v3418 = vld [vmem:[%s3416 + $0x8] sm:$0xff]
        %v3419 = vld [vmem:[%s3416 + $0x10] sm:$0xff]
        %v3420 = vld [vmem:[%s3416 + $0x18] sm:$0xff]
        %s3421 = scalar_lea.vmem %s4, 128
        %v3422 = vld [vmem:[%s3421] sm:$0xff]
        %v3423 = vld [vmem:[%s3421 + $0x8] sm:$0xff]
        %v3424 = vld [vmem:[%s3421 + $0x10] sm:$0xff]
        %v3425 = vld [vmem:[%s3421 + $0x18] sm:$0xff]
        %3427 = vset.pattern.permute.xlu0 0
        %3428 = vperm.xlu0 %3427, %v3422
        %v3429 = vpop.permute.xlu0 %3428
        %3432 = vset.pattern.permute.xlu0 0
        %3433 = vperm.xlu0 %3432, %v3423
        %v3434 = vpop.permute.xlu0 %3433
        %3437 = vset.pattern.permute.xlu0 0
        %3438 = vperm.xlu0 %3437, %v3424
        %v3439 = vpop.permute.xlu0 %3438
        %3442 = vset.pattern.permute.xlu0 0
        %3443 = vperm.xlu0 %3442, %v3425
        %v3444 = vpop.permute.xlu0 %3443
        %v3447 = vsel %vm639, %v3417, 0
        %v3450 = vsel %vm639, %v3418, 0
        %v3453 = vsel %vm639, %v3419, 0
        %v3456 = vsel %vm639, %v3420, 0
        %3458 = vmatprep.subr.mxu0 0.0
        %3459 = vmatpush1.msra.mxu0 %v3410
        %3460 = vmatprep.subr.mxu0 0.0
        %3461 = vmatpush1.msra.mxu0 %v3411
        %3462 = vmatprep.subr.mxu0 0.0
        %3463 = vmatpush1.msra.mxu0 0.0
        %3464 = vmatprep.subr.mxu0 0.0
        %3465 = vmatpush1.msra.mxu0 0.0
        %3466 = vmatprep.subr.mxu0 0.0
        %3467 = vmatpush1.msra.mxu0 0.0
        %3468 = vmatprep.subr.mxu0 0.0
        %3469 = vmatpush1.msra.mxu0 0.0
        %3470 = vmatprep.subr.mxu0 0.0
        %3471 = vmatpush1.msra.mxu0 0.0
        %3472 = vmatprep.subr.mxu0 0.0
        %3473 = vmatpush1.msra.mxu0 0.0
        %3474 = vmatprep.subr.mxu0 0.0
        %3475 = vmatpush1.msra.mxu0 0.0
        %3476 = vmatprep.subr.mxu0 0.0
        %3477 = vmatpush1.msra.mxu0 0.0
        %3478 = vmatprep.subr.mxu0 0.0
        %3479 = vmatpush1.msra.mxu0 0.0
        %3480 = vmatprep.subr.mxu0 0.0
        %3481 = vmatpush1.msra.mxu0 0.0
        %3482 = vmatprep.subr.mxu0 0.0
        %3483 = vmatpush1.msra.mxu0 0.0
        %3484 = vmatprep.subr.mxu0 0.0
        %3485 = vmatpush1.msra.mxu0 0.0
        %3486 = vmatprep.subr.mxu0 0.0
        %3487 = vmatpush1.msra.mxu0 0.0
        %3488 = vmatprep.subr.mxu0 0.0
        %3489 = vmatpush1.msra.mxu0 0.0
        %3490 = vmatprep.subr.mxu0 0.0
        %3491 = vmatpush1.msra.mxu0 0.0
        %3492 = vmatprep.subr.mxu0 0.0
        %3493 = vmatpush1.msra.mxu0 0.0
        %3494 = vmatprep.subr.mxu0 0.0
        %3495 = vmatpush1.msra.mxu0 0.0
        %3496 = vmatprep.subr.mxu0 0.0
        %3497 = vmatpush1.msra.mxu0 0.0
        %3498 = vmatprep.subr.mxu0 0.0
        %3499 = vmatpush1.msra.mxu0 0.0
        %3500 = vmatprep.subr.mxu0 0.0
        %3501 = vmatpush1.msra.mxu0 0.0
        %3502 = vmatprep.subr.mxu0 0.0
        %3503 = vmatpush1.msra.mxu0 0.0
        %3504 = vmatprep.subr.mxu0 0.0
        %3505 = vmatpush1.msra.mxu0 0.0
        %3506 = vmatprep.subr.mxu0 0.0
        %3507 = vmatpush1.msra.mxu0 0.0
        %3508 = vmatprep.subr.mxu0 0.0
        %3509 = vmatpush1.msra.mxu0 0.0
        %3510 = vmatprep.subr.mxu0 0.0
        %3511 = vmatpush1.msra.mxu0 0.0
        %3512 = vmatprep.subr.mxu0 0.0
        %3513 = vmatpush1.msra.mxu0 0.0
        %3514 = vmatprep.subr.mxu0 0.0
        %3515 = vmatpush1.msra.mxu0 0.0
        %3516 = vmatprep.subr.mxu0 0.0
        %3517 = vmatpush1.msra.mxu0 0.0
        %3518 = vmatprep.subr.mxu0 0.0
        %3519 = vmatpush1.msra.mxu0 0.0
        %3520 = vmatprep.subr.mxu0 0.0
        %3521 = vmatpush1.msra.mxu0 0.0
        %3522 = vmatprep.mubr.f32.mxu0 0.0
        %3523 = vmatmul.mubr.f32.gmra.mrb[0].mxu0 %v3447
        %v3524 = vpop.f32.mrb[0].mxu0
        %v3525 = vadd.f32 %v3429, %v3524
        %v3526 = vpop.f32.mrb[0].mxu0
        %3527 = vmatprep.mubr.f32.mxu0 0.0
        %3528 = vmatmul.mubr.f32.gmra.mrb[0].mxu0 %v3450
        %v3529 = vpop.f32.mrb[0].mxu0
        %v3530 = vadd.f32 %v3434, %v3529
        %v3531 = vpop.f32.mrb[0].mxu0
        %3532 = vmatprep.mubr.f32.mxu0 0.0
        %3533 = vmatmul.mubr.f32.gmra.mrb[0].mxu0 %v3453
        %v3534 = vpop.f32.mrb[0].mxu0
        %v3535 = vadd.f32 %v3439, %v3534
        %v3536 = vpop.f32.mrb[0].mxu0
        %3537 = vmatprep.mubr.f32.mxu0 0.0
        %3538 = vmatmul.mubr.f32.gmra.mrb[0].mxu0 %v3456
        %v3539 = vpop.f32.mrb[0].mxu0
        %v3540 = vadd.f32 %v3444, %v3539
        %v3541 = vpop.f32.mrb[0].mxu0
        %3542 = vdwg.mxu0
        %vm3543 = vcmp.ge.f32.partialorder %v3525, 0.0
        %vm3544 = vcmp.ge.f32.partialorder %v3530, 0.0
        %vm3545 = vcmp.ge.f32.partialorder %v3535, 0.0
        %vm3546 = vcmp.ge.f32.partialorder %v3540, 0.0
        %v3547 = vstv %s3414
        %v3548 = vmul.f32 %v3547, %v3525
        %v3549 = vmul.f32 %v3547, %v3530
        %v3550 = vmul.f32 %v3547, %v3535
        %v3551 = vmul.f32 %v3547, %v3540
        %v3552 = vsel %vm3543, %v3525, %v3548
        %v3553 = vsel %vm3544, %v3530, %v3549
        %v3554 = vsel %vm3545, %v3535, %v3550
        %v3555 = vsel %vm3546, %v3540, %v3551
        %s3556 = scalar_lea.vmem %s5, 128
        %v3557 = vld [vmem:[%s3556] sm:$0xff]
        %v3558 = vld [vmem:[%s3556 + $0x8] sm:$0xff]
        %v3559 = vld [vmem:[%s3556 + $0x10] sm:$0xff]
        %v3560 = vld [vmem:[%s3556 + $0x18] sm:$0xff]
        %s3561 = scalar_lea.vmem %s6, 128
        %v3562 = vld [vmem:[%s3561] sm:$0xff]
        %v3563 = vld [vmem:[%s3561 + $0x8] sm:$0xff]
        %v3564 = vld [vmem:[%s3561 + $0x10] sm:$0xff]
        %v3565 = vld [vmem:[%s3561 + $0x18] sm:$0xff]
        %v3566 = vadd.f32 %v3552, %v3553
        %v3567 = vadd.f32 %v3566, %v3554
        %v3568 = vadd.f32 %v3567, %v3555
        %v3569 = vrot.slane %v3568, 4
        %v3570 = vadd.f32 %v3568, %v3569
        %v3571 = vrot.slane %v3570, 2
        %v3572 = vadd.f32 %v3570, %v3571
        %v3573 = vrot.slane %v3572, 1
        %v3574 = vadd.f32 %v3572, %v3573
        %v3575 = vmul.f32 %v3552, %v3552
        %v3576 = vmul.f32 %v3553, %v3553
        %v3577 = vmul.f32 %v3554, %v3554
        %v3578 = vmul.f32 %v3555, %v3555
        %v3579 = vadd.f32 %v3575, %v3576
        %v3580 = vadd.f32 %v3579, %v3577
        %v3581 = vadd.f32 %v3580, %v3578
        %v3582 = vrot.slane %v3581, 4
        %v3583 = vadd.f32 %v3581, %v3582
        %v3584 = vrot.slane %v3583, 2
        %v3585 = vadd.f32 %v3583, %v3584
        %v3586 = vrot.slane %v3585, 1
        %v3587 = vadd.f32 %v3585, %v3586
        %v3588 = vsel %vm780, %v3574, %v3587
        %3589 = vrot.lane.b32.xlu0 %v3588, 1
        %v3590 = vpop.permute.xlu0 %3589
        %v3591 = vsel %vm785, %v3590, 0.0
        %v3592 = vadd.f32 %v3588, %v3591
        %3593 = vrot.lane.b32.xlu0 %v3592, 2
        %v3594 = vpop.permute.xlu0 %3593
        %v3595 = vsel %vm791, %v3594, 0.0
        %v3596 = vadd.f32 %v3592, %v3595
        %3597 = vrot.lane.b32.xlu0 %v3596, 4
        %v3598 = vpop.permute.xlu0 %3597
        %v3599 = vsel %vm797, %v3598, 0.0
        %v3600 = vadd.f32 %v3596, %v3599
        %3601 = vrot.lane.b32.xlu0 %v3600, 8
        %v3602 = vpop.permute.xlu0 %3601
        %v3603 = vsel %vm803, %v3602, 0.0
        %v3604 = vadd.f32 %v3600, %v3603
        %3605 = vrot.lane.b32.xlu0 %v3604, 16
        %v3606 = vpop.permute.xlu0 %3605
        %v3607 = vsel %vm809, %v3606, 0.0
        %v3608 = vadd.f32 %v3604, %v3607
        %3609 = vrot.lane.b32.xlu0 %v3608, 32
        %v3610 = vpop.permute.xlu0 %3609
        %v3611 = vsel %vm815, %v3610, 0.0
        %v3612 = vadd.f32 %v3608, %v3611
        %3613 = vrot.lane.b32.xlu0 %v3612, 64
        %v3614 = vpop.permute.xlu0 %3613
        %v3615 = vsel %vm821, %v3614, 0.0
        %v3616 = vadd.f32 %v3612, %v3615
        %v3617 = vmul.f32 %v3616, %v595
        %v3618 = vmul.f32 %v3617, 2.0
        %v3619 = vmul.f32 %v3618, %v3616
        %v3621 = vrot.slane %v3619, 7
        %v3623 = vsub.f32 %v3616, %v3621
        %v3624 = vmul.f32 %v3623, %v595
        %v3625 = vmul.f32 %v3617, %v3617
        %v3627 = vrot.slane %v3625, 7
        %v3629 = vadd.f32 %v3624, %v3627
        %v3630 = vmax.f32 %v3629, 0.0
        %v3631 = vadd.f32 %v3630, 1e-08
        %v3632 = vrsqrt.pop %v3631
        %v3633 = vlaneseq
        %v3634 = vshrl.u32 %v3633, 7
        %v3635 = vsub.s32 0, %v3634
        %v3636 = vrot.slane %v3617, %v3635
        %v3637 = vsub.f32 %v3552, %v3636
        %v3638 = vsub.f32 %v3553, %v3636
        %v3639 = vsub.f32 %v3554, %v3636
        %v3640 = vsub.f32 %v3555, %v3636
        %v3641 = vlaneseq
        %v3642 = vshrl.u32 %v3641, 7
        %v3643 = vsub.s32 1, %v3642
        %v3644 = vrot.slane %v3632, %v3643
        %v3645 = vmul.f32 %v3637, %v3644
        %v3646 = vmul.f32 %v3638, %v3644
        %v3647 = vmul.f32 %v3639, %v3644
        %v3648 = vmul.f32 %v3640, %v3644
        %3650 = vset.pattern.permute.xlu0 0
        %3651 = vperm.xlu0 %3650, %v3557
        %v3652 = vpop.permute.xlu0 %3651
        %3655 = vset.pattern.permute.xlu0 0
        %3656 = vperm.xlu0 %3655, %v3558
        %v3657 = vpop.permute.xlu0 %3656
        %3660 = vset.pattern.permute.xlu0 0
        %3661 = vperm.xlu0 %3660, %v3559
        %v3662 = vpop.permute.xlu0 %3661
        %3665 = vset.pattern.permute.xlu0 0
        %3666 = vperm.xlu0 %3665, %v3560
        %v3667 = vpop.permute.xlu0 %3666
        %v3669 = vmul.f32 %v3645, %v3652
        %v3670 = vmul.f32 %v3646, %v3657
        %v3671 = vmul.f32 %v3647, %v3662
        %v3672 = vmul.f32 %v3648, %v3667
        %3674 = vset.pattern.permute.xlu0 0
        %3675 = vperm.xlu0 %3674, %v3562
        %v3676 = vpop.permute.xlu0 %3675
        %3679 = vset.pattern.permute.xlu0 0
        %3680 = vperm.xlu0 %3679, %v3563
        %v3681 = vpop.permute.xlu0 %3680
        %3684 = vset.pattern.permute.xlu0 0
        %3685 = vperm.xlu0 %3684, %v3564
        %v3686 = vpop.permute.xlu0 %3685
        %3689 = vset.pattern.permute.xlu0 0
        %3690 = vperm.xlu0 %3689, %v3565
        %v3691 = vpop.permute.xlu0 %3690
        %v3693 = vadd.f32 %v3669, %v3676
        %v3694 = vadd.f32 %v3670, %v3681
        %v3695 = vadd.f32 %v3671, %v3686
        %v3696 = vadd.f32 %v3672, %v3691
        %s3697 = scalar_lea.vmem %s7, 128
        %v3698 = vld [vmem:[%s3697] sm:$0xff]
        %v3699 = vld [vmem:[%s3697 + $0x8] sm:$0xff]
        %v3700 = vld [vmem:[%s3697 + $0x10] sm:$0xff]
        %v3701 = vld [vmem:[%s3697 + $0x18] sm:$0xff]
        %3702 = vrot.lane.b32.xlu0 %v3693, 2
        %v3703 = vpop.permute.xlu0 %3702
        %3704 = vrot.lane.b32.xlu0 %v3694, 2
        %v3705 = vpop.permute.xlu0 %3704
        %3706 = vrot.lane.b32.xlu0 %v3695, 2
        %v3707 = vpop.permute.xlu0 %3706
        %3708 = vrot.lane.b32.xlu0 %v3696, 2
        %v3709 = vpop.permute.xlu0 %3708
        %v3710 = vsel %vm791, %v3703, 0.0
        %v3711 = vsel %vm791, %v3705, 0.0
        %v3712 = vsel %vm791, %v3707, 0.0
        %v3713 = vsel %vm791, %v3709, 0.0
        %3714 = vrot.lane.b32.xlu0 %v3693, 126
        %v3715 = vpop.permute.xlu0 %3714
        %3716 = vrot.lane.b32.xlu0 %v3694, 126
        %v3717 = vpop.permute.xlu0 %3716
        %3718 = vrot.lane.b32.xlu0 %v3695, 126
        %v3719 = vpop.permute.xlu0 %3718
        %3720 = vrot.lane.b32.xlu0 %v3696, 126
        %v3721 = vpop.permute.xlu0 %3720
        %v3722 = vsel %vm1625, %v3715, 0.0
        %v3723 = vsel %vm1625, %v3717, 0.0
        %v3724 = vsel %vm1625, %v3719, 0.0
        %v3725 = vsel %vm1625, %v3721, 0.0
        %3727 = vset.pattern.permute.xlu0 0
        %3728 = vperm.xlu0 %3727, %v3698
        %v3729 = vpop.permute.xlu0 %3728
        %3732 = vset.pattern.permute.xlu0 0
        %3733 = vperm.xlu0 %3732, %v3699
        %v3734 = vpop.permute.xlu0 %3733
        %3737 = vset.pattern.permute.xlu0 0
        %3738 = vperm.xlu0 %3737, %v3700
        %v3739 = vpop.permute.xlu0 %3738
        %3742 = vset.pattern.permute.xlu0 0
        %3743 = vperm.xlu0 %3742, %v3701
        %v3744 = vpop.permute.xlu0 %3743
        %v3746 = vmul.f32 %v3729, %v3710
        %v3747 = vmul.f32 %v3734, %v3711
        %v3748 = vmul.f32 %v3739, %v3712
        %v3749 = vmul.f32 %v3744, %v3713
        %3750 = vset.pattern.permute.xlu0 1
        %3751 = vperm.xlu0 %3750, %v3698
        %v3752 = vpop.permute.xlu0 %3751
        %3754 = vset.pattern.permute.xlu0 1
        %3755 = vperm.xlu0 %3754, %v3699
        %v3756 = vpop.permute.xlu0 %3755
        %3758 = vset.pattern.permute.xlu0 1
        %3759 = vperm.xlu0 %3758, %v3700
        %v3760 = vpop.permute.xlu0 %3759
        %3762 = vset.pattern.permute.xlu0 1
        %3763 = vperm.xlu0 %3762, %v3701
        %v3764 = vpop.permute.xlu0 %3763
        %v3766 = vmul.f32 %v3752, %v3693
        %v3767 = vmul.f32 %v3756, %v3694
        %v3768 = vmul.f32 %v3760, %v3695
        %v3769 = vmul.f32 %v3764, %v3696
        %v3770 = vadd.f32 %v3746, %v3766
        %v3771 = vadd.f32 %v3747, %v3767
        %v3772 = vadd.f32 %v3748, %v3768
        %v3773 = vadd.f32 %v3749, %v3769
        %3774 = vset.pattern.permute.xlu0 2
        %3775 = vperm.xlu0 %3774, %v3698
        %v3776 = vpop.permute.xlu0 %3775
        %3778 = vset.pattern.permute.xlu0 2
        %3779 = vperm.xlu0 %3778, %v3699
        %v3780 = vpop.permute.xlu0 %3779
        %3782 = vset.pattern.permute.xlu0 2
        %3783 = vperm.xlu0 %3782, %v3700
        %v3784 = vpop.permute.xlu0 %3783
        %3786 = vset.pattern.permute.xlu0 2
        %3787 = vperm.xlu0 %3786, %v3701
        %v3788 = vpop.permute.xlu0 %3787
        %v3790 = vmul.f32 %v3776, %v3722
        %v3791 = vmul.f32 %v3780, %v3723
        %v3792 = vmul.f32 %v3784, %v3724
        %v3793 = vmul.f32 %v3788, %v3725
        %v3794 = vadd.f32 %v3770, %v3790
        %v3795 = vadd.f32 %v3771, %v3791
        %v3796 = vadd.f32 %v3772, %v3792
        %v3797 = vadd.f32 %v3773, %v3793
        %s3798 = scalar_lea.vmem %s8, 128
        %v3799 = vld [vmem:[%s3798] sm:$0xff]
        %v3800 = vld [vmem:[%s3798 + $0x8] sm:$0xff]
        %v3801 = vld [vmem:[%s3798 + $0x10] sm:$0xff]
        %v3802 = vld [vmem:[%s3798 + $0x18] sm:$0xff]
        %3804 = vset.pattern.permute.xlu0 0
        %3805 = vperm.xlu0 %3804, %v3799
        %v3806 = vpop.permute.xlu0 %3805
        %3809 = vset.pattern.permute.xlu0 0
        %3810 = vperm.xlu0 %3809, %v3800
        %v3811 = vpop.permute.xlu0 %3810
        %3814 = vset.pattern.permute.xlu0 0
        %3815 = vperm.xlu0 %3814, %v3801
        %v3816 = vpop.permute.xlu0 %3815
        %3819 = vset.pattern.permute.xlu0 0
        %3820 = vperm.xlu0 %3819, %v3802
        %v3821 = vpop.permute.xlu0 %3820
        %v3823 = vadd.f32 %v3794, %v3806
        %v3824 = vadd.f32 %v3795, %v3811
        %v3825 = vadd.f32 %v3796, %v3816
        %v3826 = vadd.f32 %v3797, %v3821
        %vm3827 = vcmp.ge.f32.partialorder %v3823, 0.0
        %vm3828 = vcmp.ge.f32.partialorder %v3824, 0.0
        %vm3829 = vcmp.ge.f32.partialorder %v3825, 0.0
        %vm3830 = vcmp.ge.f32.partialorder %v3826, 0.0
        %v3831 = vstv %s3415
        %v3832 = vmul.f32 %v3831, %v3823
        %v3833 = vmul.f32 %v3831, %v3824
        %v3834 = vmul.f32 %v3831, %v3825
        %v3835 = vmul.f32 %v3831, %v3826
        %v3836 = vsel %vm3827, %v3823, %v3832
        %v3837 = vsel %vm3828, %v3824, %v3833
        %v3838 = vsel %vm3829, %v3825, %v3834
        %v3839 = vsel %vm3830, %v3826, %v3835
        %s3840 = scalar_lea.vmem %s9, 128
        %v3841 = vld [vmem:[%s3840] sm:$0xff]
        %v3842 = vld [vmem:[%s3840 + $0x8] sm:$0xff]
        %v3843 = vld [vmem:[%s3840 + $0x10] sm:$0xff]
        %v3844 = vld [vmem:[%s3840 + $0x18] sm:$0xff]
        %s3845 = scalar_lea.vmem %s10, 128
        %v3846 = vld [vmem:[%s3845] sm:$0xff]
        %v3847 = vld [vmem:[%s3845 + $0x8] sm:$0xff]
        %v3848 = vld [vmem:[%s3845 + $0x10] sm:$0xff]
        %v3849 = vld [vmem:[%s3845 + $0x18] sm:$0xff]
        %v3850 = vadd.f32 %v3836, %v3837
        %v3851 = vadd.f32 %v3850, %v3838
        %v3852 = vadd.f32 %v3851, %v3839
        %v3853 = vrot.slane %v3852, 4
        %v3854 = vadd.f32 %v3852, %v3853
        %v3855 = vrot.slane %v3854, 2
        %v3856 = vadd.f32 %v3854, %v3855
        %v3857 = vrot.slane %v3856, 1
        %v3858 = vadd.f32 %v3856, %v3857
        %v3859 = vmul.f32 %v3836, %v3836
        %v3860 = vmul.f32 %v3837, %v3837
        %v3861 = vmul.f32 %v3838, %v3838
        %v3862 = vmul.f32 %v3839, %v3839
        %v3863 = vadd.f32 %v3859, %v3860
        %v3864 = vadd.f32 %v3863, %v3861
        %v3865 = vadd.f32 %v3864, %v3862
        %v3866 = vrot.slane %v3865, 4
        %v3867 = vadd.f32 %v3865, %v3866
        %v3868 = vrot.slane %v3867, 2
        %v3869 = vadd.f32 %v3867, %v3868
        %v3870 = vrot.slane %v3869, 1
        %v3871 = vadd.f32 %v3869, %v3870
        %v3872 = vsel %vm780, %v3858, %v3871
        %3873 = vrot.lane.b32.xlu0 %v3872, 1
        %v3874 = vpop.permute.xlu0 %3873
        %v3875 = vsel %vm785, %v3874, 0.0
        %v3876 = vadd.f32 %v3872, %v3875
        %3877 = vrot.lane.b32.xlu0 %v3876, 2
        %v3878 = vpop.permute.xlu0 %3877
        %v3879 = vsel %vm791, %v3878, 0.0
        %v3880 = vadd.f32 %v3876, %v3879
        %3881 = vrot.lane.b32.xlu0 %v3880, 4
        %v3882 = vpop.permute.xlu0 %3881
        %v3883 = vsel %vm797, %v3882, 0.0
        %v3884 = vadd.f32 %v3880, %v3883
        %3885 = vrot.lane.b32.xlu0 %v3884, 8
        %v3886 = vpop.permute.xlu0 %3885
        %v3887 = vsel %vm803, %v3886, 0.0
        %v3888 = vadd.f32 %v3884, %v3887
        %3889 = vrot.lane.b32.xlu0 %v3888, 16
        %v3890 = vpop.permute.xlu0 %3889
        %v3891 = vsel %vm809, %v3890, 0.0
        %v3892 = vadd.f32 %v3888, %v3891
        %3893 = vrot.lane.b32.xlu0 %v3892, 32
        %v3894 = vpop.permute.xlu0 %3893
        %v3895 = vsel %vm815, %v3894, 0.0
        %v3896 = vadd.f32 %v3892, %v3895
        %3897 = vrot.lane.b32.xlu0 %v3896, 64
        %v3898 = vpop.permute.xlu0 %3897
        %v3899 = vsel %vm821, %v3898, 0.0
        %v3900 = vadd.f32 %v3896, %v3899
        %v3901 = vmul.f32 %v3900, %v595
        %v3902 = vmul.f32 %v3901, 2.0
        %v3903 = vmul.f32 %v3902, %v3900
        %v3905 = vrot.slane %v3903, 7
        %v3907 = vsub.f32 %v3900, %v3905
        %v3908 = vmul.f32 %v3907, %v595
        %v3909 = vmul.f32 %v3901, %v3901
        %v3911 = vrot.slane %v3909, 7
        %v3913 = vadd.f32 %v3908, %v3911
        %v3914 = vmax.f32 %v3913, 0.0
        %v3915 = vadd.f32 %v3914, 1e-08
        %v3916 = vrsqrt.pop %v3915
        %v3917 = vlaneseq
        %v3918 = vshrl.u32 %v3917, 7
        %v3919 = vsub.s32 0, %v3918
        %v3920 = vrot.slane %v3901, %v3919
        %v3921 = vsub.f32 %v3836, %v3920
        %v3922 = vsub.f32 %v3837, %v3920
        %v3923 = vsub.f32 %v3838, %v3920
        %v3924 = vsub.f32 %v3839, %v3920
        %v3925 = vlaneseq
        %v3926 = vshrl.u32 %v3925, 7
        %v3927 = vsub.s32 1, %v3926
        %v3928 = vrot.slane %v3916, %v3927
        %v3929 = vmul.f32 %v3921, %v3928
        %v3930 = vmul.f32 %v3922, %v3928
        %v3931 = vmul.f32 %v3923, %v3928
        %v3932 = vmul.f32 %v3924, %v3928
        %3934 = vset.pattern.permute.xlu0 0
        %3935 = vperm.xlu0 %3934, %v3841
        %v3936 = vpop.permute.xlu0 %3935
        %3939 = vset.pattern.permute.xlu0 0
        %3940 = vperm.xlu0 %3939, %v3842
        %v3941 = vpop.permute.xlu0 %3940
        %3944 = vset.pattern.permute.xlu0 0
        %3945 = vperm.xlu0 %3944, %v3843
        %v3946 = vpop.permute.xlu0 %3945
        %3949 = vset.pattern.permute.xlu0 0
        %3950 = vperm.xlu0 %3949, %v3844
        %v3951 = vpop.permute.xlu0 %3950
        %v3953 = vmul.f32 %v3929, %v3936
        %v3954 = vmul.f32 %v3930, %v3941
        %v3955 = vmul.f32 %v3931, %v3946
        %v3956 = vmul.f32 %v3932, %v3951
        %3958 = vset.pattern.permute.xlu0 0
        %3959 = vperm.xlu0 %3958, %v3846
        %v3960 = vpop.permute.xlu0 %3959
        %3963 = vset.pattern.permute.xlu0 0
        %3964 = vperm.xlu0 %3963, %v3847
        %v3965 = vpop.permute.xlu0 %3964
        %3968 = vset.pattern.permute.xlu0 0
        %3969 = vperm.xlu0 %3968, %v3848
        %v3970 = vpop.permute.xlu0 %3969
        %3973 = vset.pattern.permute.xlu0 0
        %3974 = vperm.xlu0 %3973, %v3849
        %v3975 = vpop.permute.xlu0 %3974
        %v3977 = vadd.f32 %v3953, %v3960
        %v3978 = vadd.f32 %v3954, %v3965
        %v3979 = vadd.f32 %v3955, %v3970
        %v3980 = vadd.f32 %v3956, %v3975
        %s3981 = scalar_lea.vmem %s11, 128
        %v3982 = vld [vmem:[%s3981] sm:$0xff]
        %v3983 = vld [vmem:[%s3981 + $0x8] sm:$0xff]
        %v3984 = vld [vmem:[%s3981 + $0x10] sm:$0xff]
        %v3985 = vld [vmem:[%s3981 + $0x18] sm:$0xff]
        %s3986 = scalar_lea.vmem %s12, 128
        %v3987 = vld [vmem:[%s3986] sm:$0xff]
        %v3988 = vld [vmem:[%s3986 + $0x8] sm:$0xff]
        %v3989 = vld [vmem:[%s3986 + $0x10] sm:$0xff]
        %v3990 = vld [vmem:[%s3986 + $0x18] sm:$0xff]
        %3992 = vset.pattern.permute.xlu0 0
        %3993 = vperm.xlu0 %3992, %v3987
        %v3994 = vpop.permute.xlu0 %3993
        %3997 = vset.pattern.permute.xlu0 0
        %3998 = vperm.xlu0 %3997, %v3988
        %v3999 = vpop.permute.xlu0 %3998
        %4002 = vset.pattern.permute.xlu0 0
        %4003 = vperm.xlu0 %4002, %v3989
        %v4004 = vpop.permute.xlu0 %4003
        %4007 = vset.pattern.permute.xlu0 0
        %4008 = vperm.xlu0 %4007, %v3990
        %v4009 = vpop.permute.xlu0 %4008
        %v4012 = vsel %vm1214, %v3982, 0
        %v4015 = vsel %vm1214, %v3983, 0
        %v4018 = vsel %vm1214, %v3984, 0
        %v4021 = vsel %vm1214, %v3985, 0
        %4023 = vmatprep.subr.mxu0 0.0
        %4024 = vmatpush1.msra.mxu0 %v3977
        %4025 = vmatprep.subr.mxu0 0.0
        %4026 = vmatpush1.msra.mxu0 %v3978
        %4027 = vmatprep.subr.mxu0 0.0
        %4028 = vmatpush1.msra.mxu0 %v3979
        %4029 = vmatprep.subr.mxu0 0.0
        %4030 = vmatpush1.msra.mxu0 %v3980
        %4031 = vmatprep.subr.mxu0 0.0
        %4032 = vmatpush1.msra.mxu0 0.0
        %4033 = vmatprep.subr.mxu0 0.0
        %4034 = vmatpush1.msra.mxu0 0.0
        %4035 = vmatprep.subr.mxu0 0.0
        %4036 = vmatpush1.msra.mxu0 0.0
        %4037 = vmatprep.subr.mxu0 0.0
        %4038 = vmatpush1.msra.mxu0 0.0
        %4039 = vmatprep.subr.mxu0 0.0
        %4040 = vmatpush1.msra.mxu0 0.0
        %4041 = vmatprep.subr.mxu0 0.0
        %4042 = vmatpush1.msra.mxu0 0.0
        %4043 = vmatprep.subr.mxu0 0.0
        %4044 = vmatpush1.msra.mxu0 0.0
        %4045 = vmatprep.subr.mxu0 0.0
        %4046 = vmatpush1.msra.mxu0 0.0
        %4047 = vmatprep.subr.mxu0 0.0
        %4048 = vmatpush1.msra.mxu0 0.0
        %4049 = vmatprep.subr.mxu0 0.0
        %4050 = vmatpush1.msra.mxu0 0.0
        %4051 = vmatprep.subr.mxu0 0.0
        %4052 = vmatpush1.msra.mxu0 0.0
        %4053 = vmatprep.subr.mxu0 0.0
        %4054 = vmatpush1.msra.mxu0 0.0
        %4055 = vmatprep.subr.mxu0 0.0
        %4056 = vmatpush1.msra.mxu0 0.0
        %4057 = vmatprep.subr.mxu0 0.0
        %4058 = vmatpush1.msra.mxu0 0.0
        %4059 = vmatprep.subr.mxu0 0.0
        %4060 = vmatpush1.msra.mxu0 0.0
        %4061 = vmatprep.subr.mxu0 0.0
        %4062 = vmatpush1.msra.mxu0 0.0
        %4063 = vmatprep.subr.mxu0 0.0
        %4064 = vmatpush1.msra.mxu0 0.0
        %4065 = vmatprep.subr.mxu0 0.0
        %4066 = vmatpush1.msra.mxu0 0.0
        %4067 = vmatprep.subr.mxu0 0.0
        %4068 = vmatpush1.msra.mxu0 0.0
        %4069 = vmatprep.subr.mxu0 0.0
        %4070 = vmatpush1.msra.mxu0 0.0
        %4071 = vmatprep.subr.mxu0 0.0
        %4072 = vmatpush1.msra.mxu0 0.0
        %4073 = vmatprep.subr.mxu0 0.0
        %4074 = vmatpush1.msra.mxu0 0.0
        %4075 = vmatprep.subr.mxu0 0.0
        %4076 = vmatpush1.msra.mxu0 0.0
        %4077 = vmatprep.subr.mxu0 0.0
        %4078 = vmatpush1.msra.mxu0 0.0
        %4079 = vmatprep.subr.mxu0 0.0
        %4080 = vmatpush1.msra.mxu0 0.0
        %4081 = vmatprep.subr.mxu0 0.0
        %4082 = vmatpush1.msra.mxu0 0.0
        %4083 = vmatprep.subr.mxu0 0.0
        %4084 = vmatpush1.msra.mxu0 0.0
        %4085 = vmatprep.subr.mxu0 0.0
        %4086 = vmatpush1.msra.mxu0 0.0
        %4087 = vmatprep.mubr.f32.mxu0 0.0
        %4088 = vmatmul.mubr.f32.gmra.mrb[0].mxu0 %v4012
        %v4089 = vpop.f32.mrb[0].mxu0
        %v4090 = vadd.f32 %v3994, %v4089
        %v4091 = vpop.f32.mrb[0].mxu0
        %4092 = vmatprep.mubr.f32.mxu0 0.0
        %4093 = vmatmul.mubr.f32.gmra.mrb[0].mxu0 %v4015
        %v4094 = vpop.f32.mrb[0].mxu0
        %v4095 = vadd.f32 %v3999, %v4094
        %v4096 = vpop.f32.mrb[0].mxu0
        %4097 = vmatprep.mubr.f32.mxu0 0.0
        %4098 = vmatmul.mubr.f32.gmra.mrb[0].mxu0 %v4018
        %v4099 = vpop.f32.mrb[0].mxu0
        %v4100 = vadd.f32 %v4004, %v4099
        %v4101 = vpop.f32.mrb[0].mxu0
        %4102 = vmatprep.mubr.f32.mxu0 0.0
        %4103 = vmatmul.mubr.f32.gmra.mrb[0].mxu0 %v4021
        %v4104 = vpop.f32.mrb[0].mxu0
        %v4105 = vadd.f32 %v4009, %v4104
        %v4106 = vpop.f32.mrb[0].mxu0
        %4107 = vdwg.mxu0
        %v4108 = vadd.f32 %v3410, %v4090
        %v4109 = vadd.f32 %v3411, %v4095
        %v4110 = vadd.f32 %v3412, %v4100
        %v4111 = vadd.f32 %v3413, %v4105
        %s4112 = sld [smem:[#allocation2 + $0xa]]
        %s4113 = sld [smem:[#allocation2 + $0xb]]
        %s4114 = scalar_lea.vmem %s3, 160
        %v4115 = vld [vmem:[%s4114] sm:$0xff]
        %v4116 = vld [vmem:[%s4114 + $0x8] sm:$0xff]
        %v4117 = vld [vmem:[%s4114 + $0x10] sm:$0xff]
        %v4118 = vld [vmem:[%s4114 + $0x18] sm:$0xff]
        %s4119 = scalar_lea.vmem %s4, 160
        %v4120 = vld [vmem:[%s4119] sm:$0xff]
        %v4121 = vld [vmem:[%s4119 + $0x8] sm:$0xff]
        %v4122 = vld [vmem:[%s4119 + $0x10] sm:$0xff]
        %v4123 = vld [vmem:[%s4119 + $0x18] sm:$0xff]
        %4125 = vset.pattern.permute.xlu0 0
        %4126 = vperm.xlu0 %4125, %v4120
        %v4127 = vpop.permute.xlu0 %4126
        %4130 = vset.pattern.permute.xlu0 0
        %4131 = vperm.xlu0 %4130, %v4121
        %v4132 = vpop.permute.xlu0 %4131
        %4135 = vset.pattern.permute.xlu0 0
        %4136 = vperm.xlu0 %4135, %v4122
        %v4137 = vpop.permute.xlu0 %4136
        %4140 = vset.pattern.permute.xlu0 0
        %4141 = vperm.xlu0 %4140, %v4123
        %v4142 = vpop.permute.xlu0 %4141
        %v4145 = vsel %vm639, %v4115, 0
        %v4148 = vsel %vm639, %v4116, 0
        %v4151 = vsel %vm639, %v4117, 0
        %v4154 = vsel %vm639, %v4118, 0
        %4156 = vmatprep.subr.mxu0 0.0
        %4157 = vmatpush1.msra.mxu0 %v4108
        %4158 = vmatprep.subr.mxu0 0.0
        %4159 = vmatpush1.msra.mxu0 %v4109
        %4160 = vmatprep.subr.mxu0 0.0
        %4161 = vmatpush1.msra.mxu0 0.0
        %4162 = vmatprep.subr.mxu0 0.0
        %4163 = vmatpush1.msra.mxu0 0.0
        %4164 = vmatprep.subr.mxu0 0.0
        %4165 = vmatpush1.msra.mxu0 0.0
        %4166 = vmatprep.subr.mxu0 0.0
        %4167 = vmatpush1.msra.mxu0 0.0
        %4168 = vmatprep.subr.mxu0 0.0
        %4169 = vmatpush1.msra.mxu0 0.0
        %4170 = vmatprep.subr.mxu0 0.0
        %4171 = vmatpush1.msra.mxu0 0.0
        %4172 = vmatprep.subr.mxu0 0.0
        %4173 = vmatpush1.msra.mxu0 0.0
        %4174 = vmatprep.subr.mxu0 0.0
        %4175 = vmatpush1.msra.mxu0 0.0
        %4176 = vmatprep.subr.mxu0 0.0
        %4177 = vmatpush1.msra.mxu0 0.0
        %4178 = vmatprep.subr.mxu0 0.0
        %4179 = vmatpush1.msra.mxu0 0.0
        %4180 = vmatprep.subr.mxu0 0.0
        %4181 = vmatpush1.msra.mxu0 0.0
        %4182 = vmatprep.subr.mxu0 0.0
        %4183 = vmatpush1.msra.mxu0 0.0
        %4184 = vmatprep.subr.mxu0 0.0
        %4185 = vmatpush1.msra.mxu0 0.0
        %4186 = vmatprep.subr.mxu0 0.0
        %4187 = vmatpush1.msra.mxu0 0.0
        %4188 = vmatprep.subr.mxu0 0.0
        %4189 = vmatpush1.msra.mxu0 0.0
        %4190 = vmatprep.subr.mxu0 0.0
        %4191 = vmatpush1.msra.mxu0 0.0
        %4192 = vmatprep.subr.mxu0 0.0
        %4193 = vmatpush1.msra.mxu0 0.0
        %4194 = vmatprep.subr.mxu0 0.0
        %4195 = vmatpush1.msra.mxu0 0.0
        %4196 = vmatprep.subr.mxu0 0.0
        %4197 = vmatpush1.msra.mxu0 0.0
        %4198 = vmatprep.subr.mxu0 0.0
        %4199 = vmatpush1.msra.mxu0 0.0
        %4200 = vmatprep.subr.mxu0 0.0
        %4201 = vmatpush1.msra.mxu0 0.0
        %4202 = vmatprep.subr.mxu0 0.0
        %4203 = vmatpush1.msra.mxu0 0.0
        %4204 = vmatprep.subr.mxu0 0.0
        %4205 = vmatpush1.msra.mxu0 0.0
        %4206 = vmatprep.subr.mxu0 0.0
        %4207 = vmatpush1.msra.mxu0 0.0
        %4208 = vmatprep.subr.mxu0 0.0
        %4209 = vmatpush1.msra.mxu0 0.0
        %4210 = vmatprep.subr.mxu0 0.0
        %4211 = vmatpush1.msra.mxu0 0.0
        %4212 = vmatprep.subr.mxu0 0.0
        %4213 = vmatpush1.msra.mxu0 0.0
        %4214 = vmatprep.subr.mxu0 0.0
        %4215 = vmatpush1.msra.mxu0 0.0
        %4216 = vmatprep.subr.mxu0 0.0
        %4217 = vmatpush1.msra.mxu0 0.0
        %4218 = vmatprep.subr.mxu0 0.0
        %4219 = vmatpush1.msra.mxu0 0.0
        %4220 = vmatprep.mubr.f32.mxu0 0.0
        %4221 = vmatmul.mubr.f32.gmra.mrb[0].mxu0 %v4145
        %v4222 = vpop.f32.mrb[0].mxu0
        %v4223 = vadd.f32 %v4127, %v4222
        %v4224 = vpop.f32.mrb[0].mxu0
        %4225 = vmatprep.mubr.f32.mxu0 0.0
        %4226 = vmatmul.mubr.f32.gmra.mrb[0].mxu0 %v4148
        %v4227 = vpop.f32.mrb[0].mxu0
        %v4228 = vadd.f32 %v4132, %v4227
        %v4229 = vpop.f32.mrb[0].mxu0
        %4230 = vmatprep.mubr.f32.mxu0 0.0
        %4231 = vmatmul.mubr.f32.gmra.mrb[0].mxu0 %v4151
        %v4232 = vpop.f32.mrb[0].mxu0
        %v4233 = vadd.f32 %v4137, %v4232
        %v4234 = vpop.f32.mrb[0].mxu0
        %4235 = vmatprep.mubr.f32.mxu0 0.0
        %4236 = vmatmul.mubr.f32.gmra.mrb[0].mxu0 %v4154
        %v4237 = vpop.f32.mrb[0].mxu0
        %v4238 = vadd.f32 %v4142, %v4237
        %v4239 = vpop.f32.mrb[0].mxu0
        %4240 = vdwg.mxu0
        %vm4241 = vcmp.ge.f32.partialorder %v4223, 0.0
        %vm4242 = vcmp.ge.f32.partialorder %v4228, 0.0
        %vm4243 = vcmp.ge.f32.partialorder %v4233, 0.0
        %vm4244 = vcmp.ge.f32.partialorder %v4238, 0.0
        %v4245 = vstv %s4112
        %v4246 = vmul.f32 %v4245, %v4223
        %v4247 = vmul.f32 %v4245, %v4228
        %v4248 = vmul.f32 %v4245, %v4233
        %v4249 = vmul.f32 %v4245, %v4238
        %v4250 = vsel %vm4241, %v4223, %v4246
        %v4251 = vsel %vm4242, %v4228, %v4247
        %v4252 = vsel %vm4243, %v4233, %v4248
        %v4253 = vsel %vm4244, %v4238, %v4249
        %s4254 = scalar_lea.vmem %s5, 160
        %v4255 = vld [vmem:[%s4254] sm:$0xff]
        %v4256 = vld [vmem:[%s4254 + $0x8] sm:$0xff]
        %v4257 = vld [vmem:[%s4254 + $0x10] sm:$0xff]
        %v4258 = vld [vmem:[%s4254 + $0x18] sm:$0xff]
        %s4259 = scalar_lea.vmem %s6, 160
        %v4260 = vld [vmem:[%s4259] sm:$0xff]
        %v4261 = vld [vmem:[%s4259 + $0x8] sm:$0xff]
        %v4262 = vld [vmem:[%s4259 + $0x10] sm:$0xff]
        %v4263 = vld [vmem:[%s4259 + $0x18] sm:$0xff]
        %v4264 = vadd.f32 %v4250, %v4251
        %v4265 = vadd.f32 %v4264, %v4252
        %v4266 = vadd.f32 %v4265, %v4253
        %v4267 = vrot.slane %v4266, 4
        %v4268 = vadd.f32 %v4266, %v4267
        %v4269 = vrot.slane %v4268, 2
        %v4270 = vadd.f32 %v4268, %v4269
        %v4271 = vrot.slane %v4270, 1
        %v4272 = vadd.f32 %v4270, %v4271
        %v4273 = vmul.f32 %v4250, %v4250
        %v4274 = vmul.f32 %v4251, %v4251
        %v4275 = vmul.f32 %v4252, %v4252
        %v4276 = vmul.f32 %v4253, %v4253
        %v4277 = vadd.f32 %v4273, %v4274
        %v4278 = vadd.f32 %v4277, %v4275
        %v4279 = vadd.f32 %v4278, %v4276
        %v4280 = vrot.slane %v4279, 4
        %v4281 = vadd.f32 %v4279, %v4280
        %v4282 = vrot.slane %v4281, 2
        %v4283 = vadd.f32 %v4281, %v4282
        %v4284 = vrot.slane %v4283, 1
        %v4285 = vadd.f32 %v4283, %v4284
        %v4286 = vsel %vm780, %v4272, %v4285
        %4287 = vrot.lane.b32.xlu0 %v4286, 1
        %v4288 = vpop.permute.xlu0 %4287
        %v4289 = vsel %vm785, %v4288, 0.0
        %v4290 = vadd.f32 %v4286, %v4289
        %4291 = vrot.lane.b32.xlu0 %v4290, 2
        %v4292 = vpop.permute.xlu0 %4291
        %v4293 = vsel %vm791, %v4292, 0.0
        %v4294 = vadd.f32 %v4290, %v4293
        %4295 = vrot.lane.b32.xlu0 %v4294, 4
        %v4296 = vpop.permute.xlu0 %4295
        %v4297 = vsel %vm797, %v4296, 0.0
        %v4298 = vadd.f32 %v4294, %v4297
        %4299 = vrot.lane.b32.xlu0 %v4298, 8
        %v4300 = vpop.permute.xlu0 %4299
        %v4301 = vsel %vm803, %v4300, 0.0
        %v4302 = vadd.f32 %v4298, %v4301
        %4303 = vrot.lane.b32.xlu0 %v4302, 16
        %v4304 = vpop.permute.xlu0 %4303
        %v4305 = vsel %vm809, %v4304, 0.0
        %v4306 = vadd.f32 %v4302, %v4305
        %4307 = vrot.lane.b32.xlu0 %v4306, 32
        %v4308 = vpop.permute.xlu0 %4307
        %v4309 = vsel %vm815, %v4308, 0.0
        %v4310 = vadd.f32 %v4306, %v4309
        %4311 = vrot.lane.b32.xlu0 %v4310, 64
        %v4312 = vpop.permute.xlu0 %4311
        %v4313 = vsel %vm821, %v4312, 0.0
        %v4314 = vadd.f32 %v4310, %v4313
        %v4315 = vmul.f32 %v4314, %v595
        %v4316 = vmul.f32 %v4315, 2.0
        %v4317 = vmul.f32 %v4316, %v4314
        %v4319 = vrot.slane %v4317, 7
        %v4321 = vsub.f32 %v4314, %v4319
        %v4322 = vmul.f32 %v4321, %v595
        %v4323 = vmul.f32 %v4315, %v4315
        %v4325 = vrot.slane %v4323, 7
        %v4327 = vadd.f32 %v4322, %v4325
        %v4328 = vmax.f32 %v4327, 0.0
        %v4329 = vadd.f32 %v4328, 1e-08
        %v4330 = vrsqrt.pop %v4329
        %v4331 = vlaneseq
        %v4332 = vshrl.u32 %v4331, 7
        %v4333 = vsub.s32 0, %v4332
        %v4334 = vrot.slane %v4315, %v4333
        %v4335 = vsub.f32 %v4250, %v4334
        %v4336 = vsub.f32 %v4251, %v4334
        %v4337 = vsub.f32 %v4252, %v4334
        %v4338 = vsub.f32 %v4253, %v4334
        %v4339 = vlaneseq
        %v4340 = vshrl.u32 %v4339, 7
        %v4341 = vsub.s32 1, %v4340
        %v4342 = vrot.slane %v4330, %v4341
        %v4343 = vmul.f32 %v4335, %v4342
        %v4344 = vmul.f32 %v4336, %v4342
        %v4345 = vmul.f32 %v4337, %v4342
        %v4346 = vmul.f32 %v4338, %v4342
        %4348 = vset.pattern.permute.xlu0 0
        %4349 = vperm.xlu0 %4348, %v4255
        %v4350 = vpop.permute.xlu0 %4349
        %4353 = vset.pattern.permute.xlu0 0
        %4354 = vperm.xlu0 %4353, %v4256
        %v4355 = vpop.permute.xlu0 %4354
        %4358 = vset.pattern.permute.xlu0 0
        %4359 = vperm.xlu0 %4358, %v4257
        %v4360 = vpop.permute.xlu0 %4359
        %4363 = vset.pattern.permute.xlu0 0
        %4364 = vperm.xlu0 %4363, %v4258
        %v4365 = vpop.permute.xlu0 %4364
        %v4367 = vmul.f32 %v4343, %v4350
        %v4368 = vmul.f32 %v4344, %v4355
        %v4369 = vmul.f32 %v4345, %v4360
        %v4370 = vmul.f32 %v4346, %v4365
        %4372 = vset.pattern.permute.xlu0 0
        %4373 = vperm.xlu0 %4372, %v4260
        %v4374 = vpop.permute.xlu0 %4373
        %4377 = vset.pattern.permute.xlu0 0
        %4378 = vperm.xlu0 %4377, %v4261
        %v4379 = vpop.permute.xlu0 %4378
        %4382 = vset.pattern.permute.xlu0 0
        %4383 = vperm.xlu0 %4382, %v4262
        %v4384 = vpop.permute.xlu0 %4383
        %4387 = vset.pattern.permute.xlu0 0
        %4388 = vperm.xlu0 %4387, %v4263
        %v4389 = vpop.permute.xlu0 %4388
        %v4391 = vadd.f32 %v4367, %v4374
        %v4392 = vadd.f32 %v4368, %v4379
        %v4393 = vadd.f32 %v4369, %v4384
        %v4394 = vadd.f32 %v4370, %v4389
        %s4395 = scalar_lea.vmem %s7, 160
        %v4396 = vld [vmem:[%s4395] sm:$0xff]
        %v4397 = vld [vmem:[%s4395 + $0x8] sm:$0xff]
        %v4398 = vld [vmem:[%s4395 + $0x10] sm:$0xff]
        %v4399 = vld [vmem:[%s4395 + $0x18] sm:$0xff]
        %4400 = vrot.lane.b32.xlu0 %v4391, 4
        %v4401 = vpop.permute.xlu0 %4400
        %4402 = vrot.lane.b32.xlu0 %v4392, 4
        %v4403 = vpop.permute.xlu0 %4402
        %4404 = vrot.lane.b32.xlu0 %v4393, 4
        %v4405 = vpop.permute.xlu0 %4404
        %4406 = vrot.lane.b32.xlu0 %v4394, 4
        %v4407 = vpop.permute.xlu0 %4406
        %v4408 = vsel %vm797, %v4401, 0.0
        %v4409 = vsel %vm797, %v4403, 0.0
        %v4410 = vsel %vm797, %v4405, 0.0
        %v4411 = vsel %vm797, %v4407, 0.0
        %4412 = vrot.lane.b32.xlu0 %v4391, 124
        %v4413 = vpop.permute.xlu0 %4412
        %4414 = vrot.lane.b32.xlu0 %v4392, 124
        %v4415 = vpop.permute.xlu0 %4414
        %4416 = vrot.lane.b32.xlu0 %v4393, 124
        %v4417 = vpop.permute.xlu0 %4416
        %4418 = vrot.lane.b32.xlu0 %v4394, 124
        %v4419 = vpop.permute.xlu0 %4418
        %v4420 = vsel %vm2325, %v4413, 0.0
        %v4421 = vsel %vm2325, %v4415, 0.0
        %v4422 = vsel %vm2325, %v4417, 0.0
        %v4423 = vsel %vm2325, %v4419, 0.0
        %4425 = vset.pattern.permute.xlu0 0
        %4426 = vperm.xlu0 %4425, %v4396
        %v4427 = vpop.permute.xlu0 %4426
        %4430 = vset.pattern.permute.xlu0 0
        %4431 = vperm.xlu0 %4430, %v4397
        %v4432 = vpop.permute.xlu0 %4431
        %4435 = vset.pattern.permute.xlu0 0
        %4436 = vperm.xlu0 %4435, %v4398
        %v4437 = vpop.permute.xlu0 %4436
        %4440 = vset.pattern.permute.xlu0 0
        %4441 = vperm.xlu0 %4440, %v4399
        %v4442 = vpop.permute.xlu0 %4441
        %v4444 = vmul.f32 %v4427, %v4408
        %v4445 = vmul.f32 %v4432, %v4409
        %v4446 = vmul.f32 %v4437, %v4410
        %v4447 = vmul.f32 %v4442, %v4411
        %4448 = vset.pattern.permute.xlu0 1
        %4449 = vperm.xlu0 %4448, %v4396
        %v4450 = vpop.permute.xlu0 %4449
        %4452 = vset.pattern.permute.xlu0 1
        %4453 = vperm.xlu0 %4452, %v4397
        %v4454 = vpop.permute.xlu0 %4453
        %4456 = vset.pattern.permute.xlu0 1
        %4457 = vperm.xlu0 %4456, %v4398
        %v4458 = vpop.permute.xlu0 %4457
        %4460 = vset.pattern.permute.xlu0 1
        %4461 = vperm.xlu0 %4460, %v4399
        %v4462 = vpop.permute.xlu0 %4461
        %v4464 = vmul.f32 %v4450, %v4391
        %v4465 = vmul.f32 %v4454, %v4392
        %v4466 = vmul.f32 %v4458, %v4393
        %v4467 = vmul.f32 %v4462, %v4394
        %v4468 = vadd.f32 %v4444, %v4464
        %v4469 = vadd.f32 %v4445, %v4465
        %v4470 = vadd.f32 %v4446, %v4466
        %v4471 = vadd.f32 %v4447, %v4467
        %4472 = vset.pattern.permute.xlu0 2
        %4473 = vperm.xlu0 %4472, %v4396
        %v4474 = vpop.permute.xlu0 %4473
        %4476 = vset.pattern.permute.xlu0 2
        %4477 = vperm.xlu0 %4476, %v4397
        %v4478 = vpop.permute.xlu0 %4477
        %4480 = vset.pattern.permute.xlu0 2
        %4481 = vperm.xlu0 %4480, %v4398
        %v4482 = vpop.permute.xlu0 %4481
        %4484 = vset.pattern.permute.xlu0 2
        %4485 = vperm.xlu0 %4484, %v4399
        %v4486 = vpop.permute.xlu0 %4485
        %v4488 = vmul.f32 %v4474, %v4420
        %v4489 = vmul.f32 %v4478, %v4421
        %v4490 = vmul.f32 %v4482, %v4422
        %v4491 = vmul.f32 %v4486, %v4423
        %v4492 = vadd.f32 %v4468, %v4488
        %v4493 = vadd.f32 %v4469, %v4489
        %v4494 = vadd.f32 %v4470, %v4490
        %v4495 = vadd.f32 %v4471, %v4491
        %s4496 = scalar_lea.vmem %s8, 160
        %v4497 = vld [vmem:[%s4496] sm:$0xff]
        %v4498 = vld [vmem:[%s4496 + $0x8] sm:$0xff]
        %v4499 = vld [vmem:[%s4496 + $0x10] sm:$0xff]
        %v4500 = vld [vmem:[%s4496 + $0x18] sm:$0xff]
        %4502 = vset.pattern.permute.xlu0 0
        %4503 = vperm.xlu0 %4502, %v4497
        %v4504 = vpop.permute.xlu0 %4503
        %4507 = vset.pattern.permute.xlu0 0
        %4508 = vperm.xlu0 %4507, %v4498
        %v4509 = vpop.permute.xlu0 %4508
        %4512 = vset.pattern.permute.xlu0 0
        %4513 = vperm.xlu0 %4512, %v4499
        %v4514 = vpop.permute.xlu0 %4513
        %4517 = vset.pattern.permute.xlu0 0
        %4518 = vperm.xlu0 %4517, %v4500
        %v4519 = vpop.permute.xlu0 %4518
        %v4521 = vadd.f32 %v4492, %v4504
        %v4522 = vadd.f32 %v4493, %v4509
        %v4523 = vadd.f32 %v4494, %v4514
        %v4524 = vadd.f32 %v4495, %v4519
        %vm4525 = vcmp.ge.f32.partialorder %v4521, 0.0
        %vm4526 = vcmp.ge.f32.partialorder %v4522, 0.0
        %vm4527 = vcmp.ge.f32.partialorder %v4523, 0.0
        %vm4528 = vcmp.ge.f32.partialorder %v4524, 0.0
        %v4529 = vstv %s4113
        %v4530 = vmul.f32 %v4529, %v4521
        %v4531 = vmul.f32 %v4529, %v4522
        %v4532 = vmul.f32 %v4529, %v4523
        %v4533 = vmul.f32 %v4529, %v4524
        %v4534 = vsel %vm4525, %v4521, %v4530
        %v4535 = vsel %vm4526, %v4522, %v4531
        %v4536 = vsel %vm4527, %v4523, %v4532
        %v4537 = vsel %vm4528, %v4524, %v4533
        %s4538 = scalar_lea.vmem %s9, 160
        %v4539 = vld [vmem:[%s4538] sm:$0xff]
        %v4540 = vld [vmem:[%s4538 + $0x8] sm:$0xff]
        %v4541 = vld [vmem:[%s4538 + $0x10] sm:$0xff]
        %v4542 = vld [vmem:[%s4538 + $0x18] sm:$0xff]
        %s4543 = scalar_lea.vmem %s10, 160
        %v4544 = vld [vmem:[%s4543] sm:$0xff]
        %v4545 = vld [vmem:[%s4543 + $0x8] sm:$0xff]
        %v4546 = vld [vmem:[%s4543 + $0x10] sm:$0xff]
        %v4547 = vld [vmem:[%s4543 + $0x18] sm:$0xff]
        %v4548 = vadd.f32 %v4534, %v4535
        %v4549 = vadd.f32 %v4548, %v4536
        %v4550 = vadd.f32 %v4549, %v4537
        %v4551 = vrot.slane %v4550, 4
        %v4552 = vadd.f32 %v4550, %v4551
        %v4553 = vrot.slane %v4552, 2
        %v4554 = vadd.f32 %v4552, %v4553
        %v4555 = vrot.slane %v4554, 1
        %v4556 = vadd.f32 %v4554, %v4555
        %v4557 = vmul.f32 %v4534, %v4534
        %v4558 = vmul.f32 %v4535, %v4535
        %v4559 = vmul.f32 %v4536, %v4536
        %v4560 = vmul.f32 %v4537, %v4537
        %v4561 = vadd.f32 %v4557, %v4558
        %v4562 = vadd.f32 %v4561, %v4559
        %v4563 = vadd.f32 %v4562, %v4560
        %v4564 = vrot.slane %v4563, 4
        %v4565 = vadd.f32 %v4563, %v4564
        %v4566 = vrot.slane %v4565, 2
        %v4567 = vadd.f32 %v4565, %v4566
        %v4568 = vrot.slane %v4567, 1
        %v4569 = vadd.f32 %v4567, %v4568
        %v4570 = vsel %vm780, %v4556, %v4569
        %4571 = vrot.lane.b32.xlu0 %v4570, 1
        %v4572 = vpop.permute.xlu0 %4571
        %v4573 = vsel %vm785, %v4572, 0.0
        %v4574 = vadd.f32 %v4570, %v4573
        %4575 = vrot.lane.b32.xlu0 %v4574, 2
        %v4576 = vpop.permute.xlu0 %4575
        %v4577 = vsel %vm791, %v4576, 0.0
        %v4578 = vadd.f32 %v4574, %v4577
        %4579 = vrot.lane.b32.xlu0 %v4578, 4
        %v4580 = vpop.permute.xlu0 %4579
        %v4581 = vsel %vm797, %v4580, 0.0
        %v4582 = vadd.f32 %v4578, %v4581
        %4583 = vrot.lane.b32.xlu0 %v4582, 8
        %v4584 = vpop.permute.xlu0 %4583
        %v4585 = vsel %vm803, %v4584, 0.0
        %v4586 = vadd.f32 %v4582, %v4585
        %4587 = vrot.lane.b32.xlu0 %v4586, 16
        %v4588 = vpop.permute.xlu0 %4587
        %v4589 = vsel %vm809, %v4588, 0.0
        %v4590 = vadd.f32 %v4586, %v4589
        %4591 = vrot.lane.b32.xlu0 %v4590, 32
        %v4592 = vpop.permute.xlu0 %4591
        %v4593 = vsel %vm815, %v4592, 0.0
        %v4594 = vadd.f32 %v4590, %v4593
        %4595 = vrot.lane.b32.xlu0 %v4594, 64
        %v4596 = vpop.permute.xlu0 %4595
        %v4597 = vsel %vm821, %v4596, 0.0
        %v4598 = vadd.f32 %v4594, %v4597
        %v4599 = vmul.f32 %v4598, %v595
        %v4600 = vmul.f32 %v4599, 2.0
        %v4601 = vmul.f32 %v4600, %v4598
        %v4603 = vrot.slane %v4601, 7
        %v4605 = vsub.f32 %v4598, %v4603
        %v4606 = vmul.f32 %v4605, %v595
        %v4607 = vmul.f32 %v4599, %v4599
        %v4609 = vrot.slane %v4607, 7
        %v4611 = vadd.f32 %v4606, %v4609
        %v4612 = vmax.f32 %v4611, 0.0
        %v4613 = vadd.f32 %v4612, 1e-08
        %v4614 = vrsqrt.pop %v4613
        %v4615 = vlaneseq
        %v4616 = vshrl.u32 %v4615, 7
        %v4617 = vsub.s32 0, %v4616
        %v4618 = vrot.slane %v4599, %v4617
        %v4619 = vsub.f32 %v4534, %v4618
        %v4620 = vsub.f32 %v4535, %v4618
        %v4621 = vsub.f32 %v4536, %v4618
        %v4622 = vsub.f32 %v4537, %v4618
        %v4623 = vlaneseq
        %v4624 = vshrl.u32 %v4623, 7
        %v4625 = vsub.s32 1, %v4624
        %v4626 = vrot.slane %v4614, %v4625
        %v4627 = vmul.f32 %v4619, %v4626
        %v4628 = vmul.f32 %v4620, %v4626
        %v4629 = vmul.f32 %v4621, %v4626
        %v4630 = vmul.f32 %v4622, %v4626
        %4632 = vset.pattern.permute.xlu0 0
        %4633 = vperm.xlu0 %4632, %v4539
        %v4634 = vpop.permute.xlu0 %4633
        %4637 = vset.pattern.permute.xlu0 0
        %4638 = vperm.xlu0 %4637, %v4540
        %v4639 = vpop.permute.xlu0 %4638
        %4642 = vset.pattern.permute.xlu0 0
        %4643 = vperm.xlu0 %4642, %v4541
        %v4644 = vpop.permute.xlu0 %4643
        %4647 = vset.pattern.permute.xlu0 0
        %4648 = vperm.xlu0 %4647, %v4542
        %v4649 = vpop.permute.xlu0 %4648
        %v4651 = vmul.f32 %v4627, %v4634
        %v4652 = vmul.f32 %v4628, %v4639
        %v4653 = vmul.f32 %v4629, %v4644
        %v4654 = vmul.f32 %v4630, %v4649
        %4656 = vset.pattern.permute.xlu0 0
        %4657 = vperm.xlu0 %4656, %v4544
        %v4658 = vpop.permute.xlu0 %4657
        %4661 = vset.pattern.permute.xlu0 0
        %4662 = vperm.xlu0 %4661, %v4545
        %v4663 = vpop.permute.xlu0 %4662
        %4666 = vset.pattern.permute.xlu0 0
        %4667 = vperm.xlu0 %4666, %v4546
        %v4668 = vpop.permute.xlu0 %4667
        %4671 = vset.pattern.permute.xlu0 0
        %4672 = vperm.xlu0 %4671, %v4547
        %v4673 = vpop.permute.xlu0 %4672
        %v4675 = vadd.f32 %v4651, %v4658
        %v4676 = vadd.f32 %v4652, %v4663
        %v4677 = vadd.f32 %v4653, %v4668
        %v4678 = vadd.f32 %v4654, %v4673
        %s4679 = scalar_lea.vmem %s11, 160
        %v4680 = vld [vmem:[%s4679] sm:$0xff]
        %v4681 = vld [vmem:[%s4679 + $0x8] sm:$0xff]
        %v4682 = vld [vmem:[%s4679 + $0x10] sm:$0xff]
        %v4683 = vld [vmem:[%s4679 + $0x18] sm:$0xff]
        %s4684 = scalar_lea.vmem %s12, 160
        %v4685 = vld [vmem:[%s4684] sm:$0xff]
        %v4686 = vld [vmem:[%s4684 + $0x8] sm:$0xff]
        %v4687 = vld [vmem:[%s4684 + $0x10] sm:$0xff]
        %v4688 = vld [vmem:[%s4684 + $0x18] sm:$0xff]
        %4690 = vset.pattern.permute.xlu0 0
        %4691 = vperm.xlu0 %4690, %v4685
        %v4692 = vpop.permute.xlu0 %4691
        %4695 = vset.pattern.permute.xlu0 0
        %4696 = vperm.xlu0 %4695, %v4686
        %v4697 = vpop.permute.xlu0 %4696
        %4700 = vset.pattern.permute.xlu0 0
        %4701 = vperm.xlu0 %4700, %v4687
        %v4702 = vpop.permute.xlu0 %4701
        %4705 = vset.pattern.permute.xlu0 0
        %4706 = vperm.xlu0 %4705, %v4688
        %v4707 = vpop.permute.xlu0 %4706
        %v4710 = vsel %vm1214, %v4680, 0
        %v4713 = vsel %vm1214, %v4681, 0
        %v4716 = vsel %vm1214, %v4682, 0
        %v4719 = vsel %vm1214, %v4683, 0
        %4721 = vmatprep.subr.mxu0 0.0
        %4722 = vmatpush1.msra.mxu0 %v4675
        %4723 = vmatprep.subr.mxu0 0.0
        %4724 = vmatpush1.msra.mxu0 %v4676
        %4725 = vmatprep.subr.mxu0 0.0
        %4726 = vmatpush1.msra.mxu0 %v4677
        %4727 = vmatprep.subr.mxu0 0.0
        %4728 = vmatpush1.msra.mxu0 %v4678
        %4729 = vmatprep.subr.mxu0 0.0
        %4730 = vmatpush1.msra.mxu0 0.0
        %4731 = vmatprep.subr.mxu0 0.0
        %4732 = vmatpush1.msra.mxu0 0.0
        %4733 = vmatprep.subr.mxu0 0.0
        %4734 = vmatpush1.msra.mxu0 0.0
        %4735 = vmatprep.subr.mxu0 0.0
        %4736 = vmatpush1.msra.mxu0 0.0
        %4737 = vmatprep.subr.mxu0 0.0
        %4738 = vmatpush1.msra.mxu0 0.0
        %4739 = vmatprep.subr.mxu0 0.0
        %4740 = vmatpush1.msra.mxu0 0.0
        %4741 = vmatprep.subr.mxu0 0.0
        %4742 = vmatpush1.msra.mxu0 0.0
        %4743 = vmatprep.subr.mxu0 0.0
        %4744 = vmatpush1.msra.mxu0 0.0
        %4745 = vmatprep.subr.mxu0 0.0
        %4746 = vmatpush1.msra.mxu0 0.0
        %4747 = vmatprep.subr.mxu0 0.0
        %4748 = vmatpush1.msra.mxu0 0.0
        %4749 = vmatprep.subr.mxu0 0.0
        %4750 = vmatpush1.msra.mxu0 0.0
        %4751 = vmatprep.subr.mxu0 0.0
        %4752 = vmatpush1.msra.mxu0 0.0
        %4753 = vmatprep.subr.mxu0 0.0
        %4754 = vmatpush1.msra.mxu0 0.0
        %4755 = vmatprep.subr.mxu0 0.0
        %4756 = vmatpush1.msra.mxu0 0.0
        %4757 = vmatprep.subr.mxu0 0.0
        %4758 = vmatpush1.msra.mxu0 0.0
        %4759 = vmatprep.subr.mxu0 0.0
        %4760 = vmatpush1.msra.mxu0 0.0
        %4761 = vmatprep.subr.mxu0 0.0
        %4762 = vmatpush1.msra.mxu0 0.0
        %4763 = vmatprep.subr.mxu0 0.0
        %4764 = vmatpush1.msra.mxu0 0.0
        %4765 = vmatprep.subr.mxu0 0.0
        %4766 = vmatpush1.msra.mxu0 0.0
        %4767 = vmatprep.subr.mxu0 0.0
        %4768 = vmatpush1.msra.mxu0 0.0
        %4769 = vmatprep.subr.mxu0 0.0
        %4770 = vmatpush1.msra.mxu0 0.0
        %4771 = vmatprep.subr.mxu0 0.0
        %4772 = vmatpush1.msra.mxu0 0.0
        %4773 = vmatprep.subr.mxu0 0.0
        %4774 = vmatpush1.msra.mxu0 0.0
        %4775 = vmatprep.subr.mxu0 0.0
        %4776 = vmatpush1.msra.mxu0 0.0
        %4777 = vmatprep.subr.mxu0 0.0
        %4778 = vmatpush1.msra.mxu0 0.0
        %4779 = vmatprep.subr.mxu0 0.0
        %4780 = vmatpush1.msra.mxu0 0.0
        %4781 = vmatprep.subr.mxu0 0.0
        %4782 = vmatpush1.msra.mxu0 0.0
        %4783 = vmatprep.subr.mxu0 0.0
        %4784 = vmatpush1.msra.mxu0 0.0
        %4785 = vmatprep.mubr.f32.mxu0 0.0
        %4786 = vmatmul.mubr.f32.gmra.mrb[0].mxu0 %v4710
        %v4787 = vpop.f32.mrb[0].mxu0
        %v4788 = vadd.f32 %v4692, %v4787
        %v4789 = vpop.f32.mrb[0].mxu0
        %4790 = vmatprep.mubr.f32.mxu0 0.0
        %4791 = vmatmul.mubr.f32.gmra.mrb[0].mxu0 %v4713
        %v4792 = vpop.f32.mrb[0].mxu0
        %v4793 = vadd.f32 %v4697, %v4792
        %v4794 = vpop.f32.mrb[0].mxu0
        %4795 = vmatprep.mubr.f32.mxu0 0.0
        %4796 = vmatmul.mubr.f32.gmra.mrb[0].mxu0 %v4716
        %v4797 = vpop.f32.mrb[0].mxu0
        %v4798 = vadd.f32 %v4702, %v4797
        %v4799 = vpop.f32.mrb[0].mxu0
        %4800 = vmatprep.mubr.f32.mxu0 0.0
        %4801 = vmatmul.mubr.f32.gmra.mrb[0].mxu0 %v4719
        %v4802 = vpop.f32.mrb[0].mxu0
        %v4803 = vadd.f32 %v4707, %v4802
        %v4804 = vpop.f32.mrb[0].mxu0
        %4805 = vdwg.mxu0
        %v4806 = vadd.f32 %v4108, %v4788
        %v4807 = vadd.f32 %v4109, %v4793
        %v4808 = vadd.f32 %v4110, %v4798
        %v4809 = vadd.f32 %v4111, %v4803
        %s4810 = sld [smem:[#allocation2 + $0xc]]
        %s4811 = sld [smem:[#allocation2 + $0xd]]
        %s4812 = scalar_lea.vmem %s3, 192
        %v4813 = vld [vmem:[%s4812] sm:$0xff]
        %v4814 = vld [vmem:[%s4812 + $0x8] sm:$0xff]
        %v4815 = vld [vmem:[%s4812 + $0x10] sm:$0xff]
        %v4816 = vld [vmem:[%s4812 + $0x18] sm:$0xff]
        %s4817 = scalar_lea.vmem %s4, 192
        %v4818 = vld [vmem:[%s4817] sm:$0xff]
        %v4819 = vld [vmem:[%s4817 + $0x8] sm:$0xff]
        %v4820 = vld [vmem:[%s4817 + $0x10] sm:$0xff]
        %v4821 = vld [vmem:[%s4817 + $0x18] sm:$0xff]
        %4823 = vset.pattern.permute.xlu0 0
        %4824 = vperm.xlu0 %4823, %v4818
        %v4825 = vpop.permute.xlu0 %4824
        %4828 = vset.pattern.permute.xlu0 0
        %4829 = vperm.xlu0 %4828, %v4819
        %v4830 = vpop.permute.xlu0 %4829
        %4833 = vset.pattern.permute.xlu0 0
        %4834 = vperm.xlu0 %4833, %v4820
        %v4835 = vpop.permute.xlu0 %4834
        %4838 = vset.pattern.permute.xlu0 0
        %4839 = vperm.xlu0 %4838, %v4821
        %v4840 = vpop.permute.xlu0 %4839
        %v4843 = vsel %vm639, %v4813, 0
        %v4846 = vsel %vm639, %v4814, 0
        %v4849 = vsel %vm639, %v4815, 0
        %v4852 = vsel %vm639, %v4816, 0
        %4854 = vmatprep.subr.mxu0 0.0
        %4855 = vmatpush1.msra.mxu0 %v4806
        %4856 = vmatprep.subr.mxu0 0.0
        %4857 = vmatpush1.msra.mxu0 %v4807
        %4858 = vmatprep.subr.mxu0 0.0
        %4859 = vmatpush1.msra.mxu0 0.0
        %4860 = vmatprep.subr.mxu0 0.0
        %4861 = vmatpush1.msra.mxu0 0.0
        %4862 = vmatprep.subr.mxu0 0.0
        %4863 = vmatpush1.msra.mxu0 0.0
        %4864 = vmatprep.subr.mxu0 0.0
        %4865 = vmatpush1.msra.mxu0 0.0
        %4866 = vmatprep.subr.mxu0 0.0
        %4867 = vmatpush1.msra.mxu0 0.0
        %4868 = vmatprep.subr.mxu0 0.0
        %4869 = vmatpush1.msra.mxu0 0.0
        %4870 = vmatprep.subr.mxu0 0.0
        %4871 = vmatpush1.msra.mxu0 0.0
        %4872 = vmatprep.subr.mxu0 0.0
        %4873 = vmatpush1.msra.mxu0 0.0
        %4874 = vmatprep.subr.mxu0 0.0
        %4875 = vmatpush1.msra.mxu0 0.0
        %4876 = vmatprep.subr.mxu0 0.0
        %4877 = vmatpush1.msra.mxu0 0.0
        %4878 = vmatprep.subr.mxu0 0.0
        %4879 = vmatpush1.msra.mxu0 0.0
        %4880 = vmatprep.subr.mxu0 0.0
        %4881 = vmatpush1.msra.mxu0 0.0
        %4882 = vmatprep.subr.mxu0 0.0
        %4883 = vmatpush1.msra.mxu0 0.0
        %4884 = vmatprep.subr.mxu0 0.0
        %4885 = vmatpush1.msra.mxu0 0.0
        %4886 = vmatprep.subr.mxu0 0.0
        %4887 = vmatpush1.msra.mxu0 0.0
        %4888 = vmatprep.subr.mxu0 0.0
        %4889 = vmatpush1.msra.mxu0 0.0
        %4890 = vmatprep.subr.mxu0 0.0
        %4891 = vmatpush1.msra.mxu0 0.0
        %4892 = vmatprep.subr.mxu0 0.0
        %4893 = vmatpush1.msra.mxu0 0.0
        %4894 = vmatprep.subr.mxu0 0.0
        %4895 = vmatpush1.msra.mxu0 0.0
        %4896 = vmatprep.subr.mxu0 0.0
        %4897 = vmatpush1.msra.mxu0 0.0
        %4898 = vmatprep.subr.mxu0 0.0
        %4899 = vmatpush1.msra.mxu0 0.0
        %4900 = vmatprep.subr.mxu0 0.0
        %4901 = vmatpush1.msra.mxu0 0.0
        %4902 = vmatprep.subr.mxu0 0.0
        %4903 = vmatpush1.msra.mxu0 0.0
        %4904 = vmatprep.subr.mxu0 0.0
        %4905 = vmatpush1.msra.mxu0 0.0
        %4906 = vmatprep.subr.mxu0 0.0
        %4907 = vmatpush1.msra.mxu0 0.0
        %4908 = vmatprep.subr.mxu0 0.0
        %4909 = vmatpush1.msra.mxu0 0.0
        %4910 = vmatprep.subr.mxu0 0.0
        %4911 = vmatpush1.msra.mxu0 0.0
        %4912 = vmatprep.subr.mxu0 0.0
        %4913 = vmatpush1.msra.mxu0 0.0
        %4914 = vmatprep.subr.mxu0 0.0
        %4915 = vmatpush1.msra.mxu0 0.0
        %4916 = vmatprep.subr.mxu0 0.0
        %4917 = vmatpush1.msra.mxu0 0.0
        %4918 = vmatprep.mubr.f32.mxu0 0.0
        %4919 = vmatmul.mubr.f32.gmra.mrb[0].mxu0 %v4843
        %v4920 = vpop.f32.mrb[0].mxu0
        %v4921 = vadd.f32 %v4825, %v4920
        %v4922 = vpop.f32.mrb[0].mxu0
        %4923 = vmatprep.mubr.f32.mxu0 0.0
        %4924 = vmatmul.mubr.f32.gmra.mrb[0].mxu0 %v4846
        %v4925 = vpop.f32.mrb[0].mxu0
        %v4926 = vadd.f32 %v4830, %v4925
        %v4927 = vpop.f32.mrb[0].mxu0
        %4928 = vmatprep.mubr.f32.mxu0 0.0
        %4929 = vmatmul.mubr.f32.gmra.mrb[0].mxu0 %v4849
        %v4930 = vpop.f32.mrb[0].mxu0
        %v4931 = vadd.f32 %v4835, %v4930
        %v4932 = vpop.f32.mrb[0].mxu0
        %4933 = vmatprep.mubr.f32.mxu0 0.0
        %4934 = vmatmul.mubr.f32.gmra.mrb[0].mxu0 %v4852
        %v4935 = vpop.f32.mrb[0].mxu0
        %v4936 = vadd.f32 %v4840, %v4935
        %v4937 = vpop.f32.mrb[0].mxu0
        %4938 = vdwg.mxu0
        %vm4939 = vcmp.ge.f32.partialorder %v4921, 0.0
        %vm4940 = vcmp.ge.f32.partialorder %v4926, 0.0
        %vm4941 = vcmp.ge.f32.partialorder %v4931, 0.0
        %vm4942 = vcmp.ge.f32.partialorder %v4936, 0.0
        %v4943 = vstv %s4810
        %v4944 = vmul.f32 %v4943, %v4921
        %v4945 = vmul.f32 %v4943, %v4926
        %v4946 = vmul.f32 %v4943, %v4931
        %v4947 = vmul.f32 %v4943, %v4936
        %v4948 = vsel %vm4939, %v4921, %v4944
        %v4949 = vsel %vm4940, %v4926, %v4945
        %v4950 = vsel %vm4941, %v4931, %v4946
        %v4951 = vsel %vm4942, %v4936, %v4947
        %s4952 = scalar_lea.vmem %s5, 192
        %v4953 = vld [vmem:[%s4952] sm:$0xff]
        %v4954 = vld [vmem:[%s4952 + $0x8] sm:$0xff]
        %v4955 = vld [vmem:[%s4952 + $0x10] sm:$0xff]
        %v4956 = vld [vmem:[%s4952 + $0x18] sm:$0xff]
        %s4957 = scalar_lea.vmem %s6, 192
        %v4958 = vld [vmem:[%s4957] sm:$0xff]
        %v4959 = vld [vmem:[%s4957 + $0x8] sm:$0xff]
        %v4960 = vld [vmem:[%s4957 + $0x10] sm:$0xff]
        %v4961 = vld [vmem:[%s4957 + $0x18] sm:$0xff]
        %v4962 = vadd.f32 %v4948, %v4949
        %v4963 = vadd.f32 %v4962, %v4950
        %v4964 = vadd.f32 %v4963, %v4951
        %v4965 = vrot.slane %v4964, 4
        %v4966 = vadd.f32 %v4964, %v4965
        %v4967 = vrot.slane %v4966, 2
        %v4968 = vadd.f32 %v4966, %v4967
        %v4969 = vrot.slane %v4968, 1
        %v4970 = vadd.f32 %v4968, %v4969
        %v4971 = vmul.f32 %v4948, %v4948
        %v4972 = vmul.f32 %v4949, %v4949
        %v4973 = vmul.f32 %v4950, %v4950
        %v4974 = vmul.f32 %v4951, %v4951
        %v4975 = vadd.f32 %v4971, %v4972
        %v4976 = vadd.f32 %v4975, %v4973
        %v4977 = vadd.f32 %v4976, %v4974
        %v4978 = vrot.slane %v4977, 4
        %v4979 = vadd.f32 %v4977, %v4978
        %v4980 = vrot.slane %v4979, 2
        %v4981 = vadd.f32 %v4979, %v4980
        %v4982 = vrot.slane %v4981, 1
        %v4983 = vadd.f32 %v4981, %v4982
        %v4984 = vsel %vm780, %v4970, %v4983
        %4985 = vrot.lane.b32.xlu0 %v4984, 1
        %v4986 = vpop.permute.xlu0 %4985
        %v4987 = vsel %vm785, %v4986, 0.0
        %v4988 = vadd.f32 %v4984, %v4987
        %4989 = vrot.lane.b32.xlu0 %v4988, 2
        %v4990 = vpop.permute.xlu0 %4989
        %v4991 = vsel %vm791, %v4990, 0.0
        %v4992 = vadd.f32 %v4988, %v4991
        %4993 = vrot.lane.b32.xlu0 %v4992, 4
        %v4994 = vpop.permute.xlu0 %4993
        %v4995 = vsel %vm797, %v4994, 0.0
        %v4996 = vadd.f32 %v4992, %v4995
        %4997 = vrot.lane.b32.xlu0 %v4996, 8
        %v4998 = vpop.permute.xlu0 %4997
        %v4999 = vsel %vm803, %v4998, 0.0
        %v5000 = vadd.f32 %v4996, %v4999
        %5001 = vrot.lane.b32.xlu0 %v5000, 16
        %v5002 = vpop.permute.xlu0 %5001
        %v5003 = vsel %vm809, %v5002, 0.0
        %v5004 = vadd.f32 %v5000, %v5003
        %5005 = vrot.lane.b32.xlu0 %v5004, 32
        %v5006 = vpop.permute.xlu0 %5005
        %v5007 = vsel %vm815, %v5006, 0.0
        %v5008 = vadd.f32 %v5004, %v5007
        %5009 = vrot.lane.b32.xlu0 %v5008, 64
        %v5010 = vpop.permute.xlu0 %5009
        %v5011 = vsel %vm821, %v5010, 0.0
        %v5012 = vadd.f32 %v5008, %v5011
        %v5013 = vmul.f32 %v5012, %v595
        %v5014 = vmul.f32 %v5013, 2.0
        %v5015 = vmul.f32 %v5014, %v5012
        %v5017 = vrot.slane %v5015, 7
        %v5019 = vsub.f32 %v5012, %v5017
        %v5020 = vmul.f32 %v5019, %v595
        %v5021 = vmul.f32 %v5013, %v5013
        %v5023 = vrot.slane %v5021, 7
        %v5025 = vadd.f32 %v5020, %v5023
        %v5026 = vmax.f32 %v5025, 0.0
        %v5027 = vadd.f32 %v5026, 1e-08
        %v5028 = vrsqrt.pop %v5027
        %v5029 = vlaneseq
        %v5030 = vshrl.u32 %v5029, 7
        %v5031 = vsub.s32 0, %v5030
        %v5032 = vrot.slane %v5013, %v5031
        %v5033 = vsub.f32 %v4948, %v5032
        %v5034 = vsub.f32 %v4949, %v5032
        %v5035 = vsub.f32 %v4950, %v5032
        %v5036 = vsub.f32 %v4951, %v5032
        %v5037 = vlaneseq
        %v5038 = vshrl.u32 %v5037, 7
        %v5039 = vsub.s32 1, %v5038
        %v5040 = vrot.slane %v5028, %v5039
        %v5041 = vmul.f32 %v5033, %v5040
        %v5042 = vmul.f32 %v5034, %v5040
        %v5043 = vmul.f32 %v5035, %v5040
        %v5044 = vmul.f32 %v5036, %v5040
        %5046 = vset.pattern.permute.xlu0 0
        %5047 = vperm.xlu0 %5046, %v4953
        %v5048 = vpop.permute.xlu0 %5047
        %5051 = vset.pattern.permute.xlu0 0
        %5052 = vperm.xlu0 %5051, %v4954
        %v5053 = vpop.permute.xlu0 %5052
        %5056 = vset.pattern.permute.xlu0 0
        %5057 = vperm.xlu0 %5056, %v4955
        %v5058 = vpop.permute.xlu0 %5057
        %5061 = vset.pattern.permute.xlu0 0
        %5062 = vperm.xlu0 %5061, %v4956
        %v5063 = vpop.permute.xlu0 %5062
        %v5065 = vmul.f32 %v5041, %v5048
        %v5066 = vmul.f32 %v5042, %v5053
        %v5067 = vmul.f32 %v5043, %v5058
        %v5068 = vmul.f32 %v5044, %v5063
        %5070 = vset.pattern.permute.xlu0 0
        %5071 = vperm.xlu0 %5070, %v4958
        %v5072 = vpop.permute.xlu0 %5071
        %5075 = vset.pattern.permute.xlu0 0
        %5076 = vperm.xlu0 %5075, %v4959
        %v5077 = vpop.permute.xlu0 %5076
        %5080 = vset.pattern.permute.xlu0 0
        %5081 = vperm.xlu0 %5080, %v4960
        %v5082 = vpop.permute.xlu0 %5081
        %5085 = vset.pattern.permute.xlu0 0
        %5086 = vperm.xlu0 %5085, %v4961
        %v5087 = vpop.permute.xlu0 %5086
        %v5089 = vadd.f32 %v5065, %v5072
        %v5090 = vadd.f32 %v5066, %v5077
        %v5091 = vadd.f32 %v5067, %v5082
        %v5092 = vadd.f32 %v5068, %v5087
        %s5093 = scalar_lea.vmem %s7, 192
        %v5094 = vld [vmem:[%s5093] sm:$0xff]
        %v5095 = vld [vmem:[%s5093 + $0x8] sm:$0xff]
        %v5096 = vld [vmem:[%s5093 + $0x10] sm:$0xff]
        %v5097 = vld [vmem:[%s5093 + $0x18] sm:$0xff]
        %5098 = vrot.lane.b32.xlu0 %v5089, 1
        %v5099 = vpop.permute.xlu0 %5098
        %5100 = vrot.lane.b32.xlu0 %v5090, 1
        %v5101 = vpop.permute.xlu0 %5100
        %5102 = vrot.lane.b32.xlu0 %v5091, 1
        %v5103 = vpop.permute.xlu0 %5102
        %5104 = vrot.lane.b32.xlu0 %v5092, 1
        %v5105 = vpop.permute.xlu0 %5104
        %v5106 = vsel %vm785, %v5099, 0.0
        %v5107 = vsel %vm785, %v5101, 0.0
        %v5108 = vsel %vm785, %v5103, 0.0
        %v5109 = vsel %vm785, %v5105, 0.0
        %5110 = vrot.lane.b32.xlu0 %v5089, 127
        %v5111 = vpop.permute.xlu0 %5110
        %5112 = vrot.lane.b32.xlu0 %v5090, 127
        %v5113 = vpop.permute.xlu0 %5112
        %5114 = vrot.lane.b32.xlu0 %v5091, 127
        %v5115 = vpop.permute.xlu0 %5114
        %5116 = vrot.lane.b32.xlu0 %v5092, 127
        %v5117 = vpop.permute.xlu0 %5116
        %v5118 = vsel %vm929, %v5111, 0.0
        %v5119 = vsel %vm929, %v5113, 0.0
        %v5120 = vsel %vm929, %v5115, 0.0
        %v5121 = vsel %vm929, %v5117, 0.0
        %5123 = vset.pattern.permute.xlu0 0
        %5124 = vperm.xlu0 %5123, %v5094
        %v5125 = vpop.permute.xlu0 %5124
        %5128 = vset.pattern.permute.xlu0 0
        %5129 = vperm.xlu0 %5128, %v5095
        %v5130 = vpop.permute.xlu0 %5129
        %5133 = vset.pattern.permute.xlu0 0
        %5134 = vperm.xlu0 %5133, %v5096
        %v5135 = vpop.permute.xlu0 %5134
        %5138 = vset.pattern.permute.xlu0 0
        %5139 = vperm.xlu0 %5138, %v5097
        %v5140 = vpop.permute.xlu0 %5139
        %v5142 = vmul.f32 %v5125, %v5106
        %v5143 = vmul.f32 %v5130, %v5107
        %v5144 = vmul.f32 %v5135, %v5108
        %v5145 = vmul.f32 %v5140, %v5109
        %5146 = vset.pattern.permute.xlu0 1
        %5147 = vperm.xlu0 %5146, %v5094
        %v5148 = vpop.permute.xlu0 %5147
        %5150 = vset.pattern.permute.xlu0 1
        %5151 = vperm.xlu0 %5150, %v5095
        %v5152 = vpop.permute.xlu0 %5151
        %5154 = vset.pattern.permute.xlu0 1
        %5155 = vperm.xlu0 %5154, %v5096
        %v5156 = vpop.permute.xlu0 %5155
        %5158 = vset.pattern.permute.xlu0 1
        %5159 = vperm.xlu0 %5158, %v5097
        %v5160 = vpop.permute.xlu0 %5159
        %v5162 = vmul.f32 %v5148, %v5089
        %v5163 = vmul.f32 %v5152, %v5090
        %v5164 = vmul.f32 %v5156, %v5091
        %v5165 = vmul.f32 %v5160, %v5092
        %v5166 = vadd.f32 %v5142, %v5162
        %v5167 = vadd.f32 %v5143, %v5163
        %v5168 = vadd.f32 %v5144, %v5164
        %v5169 = vadd.f32 %v5145, %v5165
        %5170 = vset.pattern.permute.xlu0 2
        %5171 = vperm.xlu0 %5170, %v5094
        %v5172 = vpop.permute.xlu0 %5171
        %5174 = vset.pattern.permute.xlu0 2
        %5175 = vperm.xlu0 %5174, %v5095
        %v5176 = vpop.permute.xlu0 %5175
        %5178 = vset.pattern.permute.xlu0 2
        %5179 = vperm.xlu0 %5178, %v5096
        %v5180 = vpop.permute.xlu0 %5179
        %5182 = vset.pattern.permute.xlu0 2
        %5183 = vperm.xlu0 %5182, %v5097
        %v5184 = vpop.permute.xlu0 %5183
        %v5186 = vmul.f32 %v5172, %v5118
        %v5187 = vmul.f32 %v5176, %v5119
        %v5188 = vmul.f32 %v5180, %v5120
        %v5189 = vmul.f32 %v5184, %v5121
        %v5190 = vadd.f32 %v5166, %v5186
        %v5191 = vadd.f32 %v5167, %v5187
        %v5192 = vadd.f32 %v5168, %v5188
        %v5193 = vadd.f32 %v5169, %v5189
        %s5194 = scalar_lea.vmem %s8, 192
        %v5195 = vld [vmem:[%s5194] sm:$0xff]
        %v5196 = vld [vmem:[%s5194 + $0x8] sm:$0xff]
        %v5197 = vld [vmem:[%s5194 + $0x10] sm:$0xff]
        %v5198 = vld [vmem:[%s5194 + $0x18] sm:$0xff]
        %5200 = vset.pattern.permute.xlu0 0
        %5201 = vperm.xlu0 %5200, %v5195
        %v5202 = vpop.permute.xlu0 %5201
        %5205 = vset.pattern.permute.xlu0 0
        %5206 = vperm.xlu0 %5205, %v5196
        %v5207 = vpop.permute.xlu0 %5206
        %5210 = vset.pattern.permute.xlu0 0
        %5211 = vperm.xlu0 %5210, %v5197
        %v5212 = vpop.permute.xlu0 %5211
        %5215 = vset.pattern.permute.xlu0 0
        %5216 = vperm.xlu0 %5215, %v5198
        %v5217 = vpop.permute.xlu0 %5216
        %v5219 = vadd.f32 %v5190, %v5202
        %v5220 = vadd.f32 %v5191, %v5207
        %v5221 = vadd.f32 %v5192, %v5212
        %v5222 = vadd.f32 %v5193, %v5217
        %vm5223 = vcmp.ge.f32.partialorder %v5219, 0.0
        %vm5224 = vcmp.ge.f32.partialorder %v5220, 0.0
        %vm5225 = vcmp.ge.f32.partialorder %v5221, 0.0
        %vm5226 = vcmp.ge.f32.partialorder %v5222, 0.0
        %v5227 = vstv %s4811
        %v5228 = vmul.f32 %v5227, %v5219
        %v5229 = vmul.f32 %v5227, %v5220
        %v5230 = vmul.f32 %v5227, %v5221
        %v5231 = vmul.f32 %v5227, %v5222
        %v5232 = vsel %vm5223, %v5219, %v5228
        %v5233 = vsel %vm5224, %v5220, %v5229
        %v5234 = vsel %vm5225, %v5221, %v5230
        %v5235 = vsel %vm5226, %v5222, %v5231
        %s5236 = scalar_lea.vmem %s9, 192
        %v5237 = vld [vmem:[%s5236] sm:$0xff]
        %v5238 = vld [vmem:[%s5236 + $0x8] sm:$0xff]
        %v5239 = vld [vmem:[%s5236 + $0x10] sm:$0xff]
        %v5240 = vld [vmem:[%s5236 + $0x18] sm:$0xff]
        %s5241 = scalar_lea.vmem %s10, 192
        %v5242 = vld [vmem:[%s5241] sm:$0xff]
        %v5243 = vld [vmem:[%s5241 + $0x8] sm:$0xff]
        %v5244 = vld [vmem:[%s5241 + $0x10] sm:$0xff]
        %v5245 = vld [vmem:[%s5241 + $0x18] sm:$0xff]
        %v5246 = vadd.f32 %v5232, %v5233
        %v5247 = vadd.f32 %v5246, %v5234
        %v5248 = vadd.f32 %v5247, %v5235
        %v5249 = vrot.slane %v5248, 4
        %v5250 = vadd.f32 %v5248, %v5249
        %v5251 = vrot.slane %v5250, 2
        %v5252 = vadd.f32 %v5250, %v5251
        %v5253 = vrot.slane %v5252, 1
        %v5254 = vadd.f32 %v5252, %v5253
        %v5255 = vmul.f32 %v5232, %v5232
        %v5256 = vmul.f32 %v5233, %v5233
        %v5257 = vmul.f32 %v5234, %v5234
        %v5258 = vmul.f32 %v5235, %v5235
        %v5259 = vadd.f32 %v5255, %v5256
        %v5260 = vadd.f32 %v5259, %v5257
        %v5261 = vadd.f32 %v5260, %v5258
        %v5262 = vrot.slane %v5261, 4
        %v5263 = vadd.f32 %v5261, %v5262
        %v5264 = vrot.slane %v5263, 2
        %v5265 = vadd.f32 %v5263, %v5264
        %v5266 = vrot.slane %v5265, 1
        %v5267 = vadd.f32 %v5265, %v5266
        %v5268 = vsel %vm780, %v5254, %v5267
        %5269 = vrot.lane.b32.xlu0 %v5268, 1
        %v5270 = vpop.permute.xlu0 %5269
        %v5271 = vsel %vm785, %v5270, 0.0
        %v5272 = vadd.f32 %v5268, %v5271
        %5273 = vrot.lane.b32.xlu0 %v5272, 2
        %v5274 = vpop.permute.xlu0 %5273
        %v5275 = vsel %vm791, %v5274, 0.0
        %v5276 = vadd.f32 %v5272, %v5275
        %5277 = vrot.lane.b32.xlu0 %v5276, 4
        %v5278 = vpop.permute.xlu0 %5277
        %v5279 = vsel %vm797, %v5278, 0.0
        %v5280 = vadd.f32 %v5276, %v5279
        %5281 = vrot.lane.b32.xlu0 %v5280, 8
        %v5282 = vpop.permute.xlu0 %5281
        %v5283 = vsel %vm803, %v5282, 0.0
        %v5284 = vadd.f32 %v5280, %v5283
        %5285 = vrot.lane.b32.xlu0 %v5284, 16
        %v5286 = vpop.permute.xlu0 %5285
        %v5287 = vsel %vm809, %v5286, 0.0
        %v5288 = vadd.f32 %v5284, %v5287
        %5289 = vrot.lane.b32.xlu0 %v5288, 32
        %v5290 = vpop.permute.xlu0 %5289
        %v5291 = vsel %vm815, %v5290, 0.0
        %v5292 = vadd.f32 %v5288, %v5291
        %5293 = vrot.lane.b32.xlu0 %v5292, 64
        %v5294 = vpop.permute.xlu0 %5293
        %v5295 = vsel %vm821, %v5294, 0.0
        %v5296 = vadd.f32 %v5292, %v5295
        %v5297 = vmul.f32 %v5296, %v595
        %v5298 = vmul.f32 %v5297, 2.0
        %v5299 = vmul.f32 %v5298, %v5296
        %v5301 = vrot.slane %v5299, 7
        %v5303 = vsub.f32 %v5296, %v5301
        %v5304 = vmul.f32 %v5303, %v595
        %v5305 = vmul.f32 %v5297, %v5297
        %v5307 = vrot.slane %v5305, 7
        %v5309 = vadd.f32 %v5304, %v5307
        %v5310 = vmax.f32 %v5309, 0.0
        %v5311 = vadd.f32 %v5310, 1e-08
        %v5312 = vrsqrt.pop %v5311
        %v5313 = vlaneseq
        %v5314 = vshrl.u32 %v5313, 7
        %v5315 = vsub.s32 0, %v5314
        %v5316 = vrot.slane %v5297, %v5315
        %v5317 = vsub.f32 %v5232, %v5316
        %v5318 = vsub.f32 %v5233, %v5316
        %v5319 = vsub.f32 %v5234, %v5316
        %v5320 = vsub.f32 %v5235, %v5316
        %v5321 = vlaneseq
        %v5322 = vshrl.u32 %v5321, 7
        %v5323 = vsub.s32 1, %v5322
        %v5324 = vrot.slane %v5312, %v5323
        %v5325 = vmul.f32 %v5317, %v5324
        %v5326 = vmul.f32 %v5318, %v5324
        %v5327 = vmul.f32 %v5319, %v5324
        %v5328 = vmul.f32 %v5320, %v5324
        %5330 = vset.pattern.permute.xlu0 0
        %5331 = vperm.xlu0 %5330, %v5237
        %v5332 = vpop.permute.xlu0 %5331
        %5335 = vset.pattern.permute.xlu0 0
        %5336 = vperm.xlu0 %5335, %v5238
        %v5337 = vpop.permute.xlu0 %5336
        %5340 = vset.pattern.permute.xlu0 0
        %5341 = vperm.xlu0 %5340, %v5239
        %v5342 = vpop.permute.xlu0 %5341
        %5345 = vset.pattern.permute.xlu0 0
        %5346 = vperm.xlu0 %5345, %v5240
        %v5347 = vpop.permute.xlu0 %5346
        %v5349 = vmul.f32 %v5325, %v5332
        %v5350 = vmul.f32 %v5326, %v5337
        %v5351 = vmul.f32 %v5327, %v5342
        %v5352 = vmul.f32 %v5328, %v5347
        %5354 = vset.pattern.permute.xlu0 0
        %5355 = vperm.xlu0 %5354, %v5242
        %v5356 = vpop.permute.xlu0 %5355
        %5359 = vset.pattern.permute.xlu0 0
        %5360 = vperm.xlu0 %5359, %v5243
        %v5361 = vpop.permute.xlu0 %5360
        %5364 = vset.pattern.permute.xlu0 0
        %5365 = vperm.xlu0 %5364, %v5244
        %v5366 = vpop.permute.xlu0 %5365
        %5369 = vset.pattern.permute.xlu0 0
        %5370 = vperm.xlu0 %5369, %v5245
        %v5371 = vpop.permute.xlu0 %5370
        %v5373 = vadd.f32 %v5349, %v5356
        %v5374 = vadd.f32 %v5350, %v5361
        %v5375 = vadd.f32 %v5351, %v5366
        %v5376 = vadd.f32 %v5352, %v5371
        %s5377 = scalar_lea.vmem %s11, 192
        %v5378 = vld [vmem:[%s5377] sm:$0xff]
        %v5379 = vld [vmem:[%s5377 + $0x8] sm:$0xff]
        %v5380 = vld [vmem:[%s5377 + $0x10] sm:$0xff]
        %v5381 = vld [vmem:[%s5377 + $0x18] sm:$0xff]
        %s5382 = scalar_lea.vmem %s12, 192
        %v5383 = vld [vmem:[%s5382] sm:$0xff]
        %v5384 = vld [vmem:[%s5382 + $0x8] sm:$0xff]
        %v5385 = vld [vmem:[%s5382 + $0x10] sm:$0xff]
        %v5386 = vld [vmem:[%s5382 + $0x18] sm:$0xff]
        %5388 = vset.pattern.permute.xlu0 0
        %5389 = vperm.xlu0 %5388, %v5383
        %v5390 = vpop.permute.xlu0 %5389
        %5393 = vset.pattern.permute.xlu0 0
        %5394 = vperm.xlu0 %5393, %v5384
        %v5395 = vpop.permute.xlu0 %5394
        %5398 = vset.pattern.permute.xlu0 0
        %5399 = vperm.xlu0 %5398, %v5385
        %v5400 = vpop.permute.xlu0 %5399
        %5403 = vset.pattern.permute.xlu0 0
        %5404 = vperm.xlu0 %5403, %v5386
        %v5405 = vpop.permute.xlu0 %5404
        %v5408 = vsel %vm1214, %v5378, 0
        %v5411 = vsel %vm1214, %v5379, 0
        %v5414 = vsel %vm1214, %v5380, 0
        %v5417 = vsel %vm1214, %v5381, 0
        %5419 = vmatprep.subr.mxu0 0.0
        %5420 = vmatpush1.msra.mxu0 %v5373
        %5421 = vmatprep.subr.mxu0 0.0
        %5422 = vmatpush1.msra.mxu0 %v5374
        %5423 = vmatprep.subr.mxu0 0.0
        %5424 = vmatpush1.msra.mxu0 %v5375
        %5425 = vmatprep.subr.mxu0 0.0
        %5426 = vmatpush1.msra.mxu0 %v5376
        %5427 = vmatprep.subr.mxu0 0.0
        %5428 = vmatpush1.msra.mxu0 0.0
        %5429 = vmatprep.subr.mxu0 0.0
        %5430 = vmatpush1.msra.mxu0 0.0
        %5431 = vmatprep.subr.mxu0 0.0
        %5432 = vmatpush1.msra.mxu0 0.0
        %5433 = vmatprep.subr.mxu0 0.0
        %5434 = vmatpush1.msra.mxu0 0.0
        %5435 = vmatprep.subr.mxu0 0.0
        %5436 = vmatpush1.msra.mxu0 0.0
        %5437 = vmatprep.subr.mxu0 0.0
        %5438 = vmatpush1.msra.mxu0 0.0
        %5439 = vmatprep.subr.mxu0 0.0
        %5440 = vmatpush1.msra.mxu0 0.0
        %5441 = vmatprep.subr.mxu0 0.0
        %5442 = vmatpush1.msra.mxu0 0.0
        %5443 = vmatprep.subr.mxu0 0.0
        %5444 = vmatpush1.msra.mxu0 0.0
        %5445 = vmatprep.subr.mxu0 0.0
        %5446 = vmatpush1.msra.mxu0 0.0
        %5447 = vmatprep.subr.mxu0 0.0
        %5448 = vmatpush1.msra.mxu0 0.0
        %5449 = vmatprep.subr.mxu0 0.0
        %5450 = vmatpush1.msra.mxu0 0.0
        %5451 = vmatprep.subr.mxu0 0.0
        %5452 = vmatpush1.msra.mxu0 0.0
        %5453 = vmatprep.subr.mxu0 0.0
        %5454 = vmatpush1.msra.mxu0 0.0
        %5455 = vmatprep.subr.mxu0 0.0
        %5456 = vmatpush1.msra.mxu0 0.0
        %5457 = vmatprep.subr.mxu0 0.0
        %5458 = vmatpush1.msra.mxu0 0.0
        %5459 = vmatprep.subr.mxu0 0.0
        %5460 = vmatpush1.msra.mxu0 0.0
        %5461 = vmatprep.subr.mxu0 0.0
        %5462 = vmatpush1.msra.mxu0 0.0
        %5463 = vmatprep.subr.mxu0 0.0
        %5464 = vmatpush1.msra.mxu0 0.0
        %5465 = vmatprep.subr.mxu0 0.0
        %5466 = vmatpush1.msra.mxu0 0.0
        %5467 = vmatprep.subr.mxu0 0.0
        %5468 = vmatpush1.msra.mxu0 0.0
        %5469 = vmatprep.subr.mxu0 0.0
        %5470 = vmatpush1.msra.mxu0 0.0
        %5471 = vmatprep.subr.mxu0 0.0
        %5472 = vmatpush1.msra.mxu0 0.0
        %5473 = vmatprep.subr.mxu0 0.0
        %5474 = vmatpush1.msra.mxu0 0.0
        %5475 = vmatprep.subr.mxu0 0.0
        %5476 = vmatpush1.msra.mxu0 0.0
        %5477 = vmatprep.subr.mxu0 0.0
        %5478 = vmatpush1.msra.mxu0 0.0
        %5479 = vmatprep.subr.mxu0 0.0
        %5480 = vmatpush1.msra.mxu0 0.0
        %5481 = vmatprep.subr.mxu0 0.0
        %5482 = vmatpush1.msra.mxu0 0.0
        %5483 = vmatprep.mubr.f32.mxu0 0.0
        %5484 = vmatmul.mubr.f32.gmra.mrb[0].mxu0 %v5408
        %v5485 = vpop.f32.mrb[0].mxu0
        %v5486 = vadd.f32 %v5390, %v5485
        %v5487 = vpop.f32.mrb[0].mxu0
        %5488 = vmatprep.mubr.f32.mxu0 0.0
        %5489 = vmatmul.mubr.f32.gmra.mrb[0].mxu0 %v5411
        %v5490 = vpop.f32.mrb[0].mxu0
        %v5491 = vadd.f32 %v5395, %v5490
        %v5492 = vpop.f32.mrb[0].mxu0
        %5493 = vmatprep.mubr.f32.mxu0 0.0
        %5494 = vmatmul.mubr.f32.gmra.mrb[0].mxu0 %v5414
        %v5495 = vpop.f32.mrb[0].mxu0
        %v5496 = vadd.f32 %v5400, %v5495
        %v5497 = vpop.f32.mrb[0].mxu0
        %5498 = vmatprep.mubr.f32.mxu0 0.0
        %5499 = vmatmul.mubr.f32.gmra.mrb[0].mxu0 %v5417
        %v5500 = vpop.f32.mrb[0].mxu0
        %v5501 = vadd.f32 %v5405, %v5500
        %v5502 = vpop.f32.mrb[0].mxu0
        %5503 = vdwg.mxu0
        %v5504 = vadd.f32 %v4806, %v5486
        %v5505 = vadd.f32 %v4807, %v5491
        %v5506 = vadd.f32 %v4808, %v5496
        %v5507 = vadd.f32 %v4809, %v5501
        %s5508 = sld [smem:[#allocation2 + $0xe]]
        %s5509 = sld [smem:[#allocation2 + $0xf]]
        %s5510 = scalar_lea.vmem %s3, 224
        %v5511 = vld [vmem:[%s5510] sm:$0xff]
        %v5512 = vld [vmem:[%s5510 + $0x8] sm:$0xff]
        %v5513 = vld [vmem:[%s5510 + $0x10] sm:$0xff]
        %v5514 = vld [vmem:[%s5510 + $0x18] sm:$0xff]
        %s5515 = scalar_lea.vmem %s4, 224
        %v5516 = vld [vmem:[%s5515] sm:$0xff]
        %v5517 = vld [vmem:[%s5515 + $0x8] sm:$0xff]
        %v5518 = vld [vmem:[%s5515 + $0x10] sm:$0xff]
        %v5519 = vld [vmem:[%s5515 + $0x18] sm:$0xff]
        %5521 = vset.pattern.permute.xlu0 0
        %5522 = vperm.xlu0 %5521, %v5516
        %v5523 = vpop.permute.xlu0 %5522
        %5526 = vset.pattern.permute.xlu0 0
        %5527 = vperm.xlu0 %5526, %v5517
        %v5528 = vpop.permute.xlu0 %5527
        %5531 = vset.pattern.permute.xlu0 0
        %5532 = vperm.xlu0 %5531, %v5518
        %v5533 = vpop.permute.xlu0 %5532
        %5536 = vset.pattern.permute.xlu0 0
        %5537 = vperm.xlu0 %5536, %v5519
        %v5538 = vpop.permute.xlu0 %5537
        %v5541 = vsel %vm639, %v5511, 0
        %v5544 = vsel %vm639, %v5512, 0
        %v5547 = vsel %vm639, %v5513, 0
        %v5550 = vsel %vm639, %v5514, 0
        %5552 = vmatprep.subr.mxu0 0.0
        %5553 = vmatpush1.msra.mxu0 %v5504
        %5554 = vmatprep.subr.mxu0 0.0
        %5555 = vmatpush1.msra.mxu0 %v5505
        %5556 = vmatprep.subr.mxu0 0.0
        %5557 = vmatpush1.msra.mxu0 0.0
        %5558 = vmatprep.subr.mxu0 0.0
        %5559 = vmatpush1.msra.mxu0 0.0
        %5560 = vmatprep.subr.mxu0 0.0
        %5561 = vmatpush1.msra.mxu0 0.0
        %5562 = vmatprep.subr.mxu0 0.0
        %5563 = vmatpush1.msra.mxu0 0.0
        %5564 = vmatprep.subr.mxu0 0.0
        %5565 = vmatpush1.msra.mxu0 0.0
        %5566 = vmatprep.subr.mxu0 0.0
        %5567 = vmatpush1.msra.mxu0 0.0
        %5568 = vmatprep.subr.mxu0 0.0
        %5569 = vmatpush1.msra.mxu0 0.0
        %5570 = vmatprep.subr.mxu0 0.0
        %5571 = vmatpush1.msra.mxu0 0.0
        %5572 = vmatprep.subr.mxu0 0.0
        %5573 = vmatpush1.msra.mxu0 0.0
        %5574 = vmatprep.subr.mxu0 0.0
        %5575 = vmatpush1.msra.mxu0 0.0
        %5576 = vmatprep.subr.mxu0 0.0
        %5577 = vmatpush1.msra.mxu0 0.0
        %5578 = vmatprep.subr.mxu0 0.0
        %5579 = vmatpush1.msra.mxu0 0.0
        %5580 = vmatprep.subr.mxu0 0.0
        %5581 = vmatpush1.msra.mxu0 0.0
        %5582 = vmatprep.subr.mxu0 0.0
        %5583 = vmatpush1.msra.mxu0 0.0
        %5584 = vmatprep.subr.mxu0 0.0
        %5585 = vmatpush1.msra.mxu0 0.0
        %5586 = vmatprep.subr.mxu0 0.0
        %5587 = vmatpush1.msra.mxu0 0.0
        %5588 = vmatprep.subr.mxu0 0.0
        %5589 = vmatpush1.msra.mxu0 0.0
        %5590 = vmatprep.subr.mxu0 0.0
        %5591 = vmatpush1.msra.mxu0 0.0
        %5592 = vmatprep.subr.mxu0 0.0
        %5593 = vmatpush1.msra.mxu0 0.0
        %5594 = vmatprep.subr.mxu0 0.0
        %5595 = vmatpush1.msra.mxu0 0.0
        %5596 = vmatprep.subr.mxu0 0.0
        %5597 = vmatpush1.msra.mxu0 0.0
        %5598 = vmatprep.subr.mxu0 0.0
        %5599 = vmatpush1.msra.mxu0 0.0
        %5600 = vmatprep.subr.mxu0 0.0
        %5601 = vmatpush1.msra.mxu0 0.0
        %5602 = vmatprep.subr.mxu0 0.0
        %5603 = vmatpush1.msra.mxu0 0.0
        %5604 = vmatprep.subr.mxu0 0.0
        %5605 = vmatpush1.msra.mxu0 0.0
        %5606 = vmatprep.subr.mxu0 0.0
        %5607 = vmatpush1.msra.mxu0 0.0
        %5608 = vmatprep.subr.mxu0 0.0
        %5609 = vmatpush1.msra.mxu0 0.0
        %5610 = vmatprep.subr.mxu0 0.0
        %5611 = vmatpush1.msra.mxu0 0.0
        %5612 = vmatprep.subr.mxu0 0.0
        %5613 = vmatpush1.msra.mxu0 0.0
        %5614 = vmatprep.subr.mxu0 0.0
        %5615 = vmatpush1.msra.mxu0 0.0
        %5616 = vmatprep.mubr.f32.mxu0 0.0
        %5617 = vmatmul.mubr.f32.gmra.mrb[0].mxu0 %v5541
        %v5618 = vpop.f32.mrb[0].mxu0
        %v5619 = vadd.f32 %v5523, %v5618
        %v5620 = vpop.f32.mrb[0].mxu0
        %5621 = vmatprep.mubr.f32.mxu0 0.0
        %5622 = vmatmul.mubr.f32.gmra.mrb[0].mxu0 %v5544
        %v5623 = vpop.f32.mrb[0].mxu0
        %v5624 = vadd.f32 %v5528, %v5623
        %v5625 = vpop.f32.mrb[0].mxu0
        %5626 = vmatprep.mubr.f32.mxu0 0.0
        %5627 = vmatmul.mubr.f32.gmra.mrb[0].mxu0 %v5547
        %v5628 = vpop.f32.mrb[0].mxu0
        %v5629 = vadd.f32 %v5533, %v5628
        %v5630 = vpop.f32.mrb[0].mxu0
        %5631 = vmatprep.mubr.f32.mxu0 0.0
        %5632 = vmatmul.mubr.f32.gmra.mrb[0].mxu0 %v5550
        %v5633 = vpop.f32.mrb[0].mxu0
        %v5634 = vadd.f32 %v5538, %v5633
        %v5635 = vpop.f32.mrb[0].mxu0
        %5636 = vdwg.mxu0
        %vm5637 = vcmp.ge.f32.partialorder %v5619, 0.0
        %vm5638 = vcmp.ge.f32.partialorder %v5624, 0.0
        %vm5639 = vcmp.ge.f32.partialorder %v5629, 0.0
        %vm5640 = vcmp.ge.f32.partialorder %v5634, 0.0
        %v5641 = vstv %s5508
        %v5642 = vmul.f32 %v5641, %v5619
        %v5643 = vmul.f32 %v5641, %v5624
        %v5644 = vmul.f32 %v5641, %v5629
        %v5645 = vmul.f32 %v5641, %v5634
        %v5646 = vsel %vm5637, %v5619, %v5642
        %v5647 = vsel %vm5638, %v5624, %v5643
        %v5648 = vsel %vm5639, %v5629, %v5644
        %v5649 = vsel %vm5640, %v5634, %v5645
        %s5650 = scalar_lea.vmem %s5, 224
        %v5651 = vld [vmem:[%s5650] sm:$0xff]
        %v5652 = vld [vmem:[%s5650 + $0x8] sm:$0xff]
        %v5653 = vld [vmem:[%s5650 + $0x10] sm:$0xff]
        %v5654 = vld [vmem:[%s5650 + $0x18] sm:$0xff]
        %s5655 = scalar_lea.vmem %s6, 224
        %v5656 = vld [vmem:[%s5655] sm:$0xff]
        %v5657 = vld [vmem:[%s5655 + $0x8] sm:$0xff]
        %v5658 = vld [vmem:[%s5655 + $0x10] sm:$0xff]
        %v5659 = vld [vmem:[%s5655 + $0x18] sm:$0xff]
        %v5660 = vadd.f32 %v5646, %v5647
        %v5661 = vadd.f32 %v5660, %v5648
        %v5662 = vadd.f32 %v5661, %v5649
        %v5663 = vrot.slane %v5662, 4
        %v5664 = vadd.f32 %v5662, %v5663
        %v5665 = vrot.slane %v5664, 2
        %v5666 = vadd.f32 %v5664, %v5665
        %v5667 = vrot.slane %v5666, 1
        %v5668 = vadd.f32 %v5666, %v5667
        %v5669 = vmul.f32 %v5646, %v5646
        %v5670 = vmul.f32 %v5647, %v5647
        %v5671 = vmul.f32 %v5648, %v5648
        %v5672 = vmul.f32 %v5649, %v5649
        %v5673 = vadd.f32 %v5669, %v5670
        %v5674 = vadd.f32 %v5673, %v5671
        %v5675 = vadd.f32 %v5674, %v5672
        %v5676 = vrot.slane %v5675, 4
        %v5677 = vadd.f32 %v5675, %v5676
        %v5678 = vrot.slane %v5677, 2
        %v5679 = vadd.f32 %v5677, %v5678
        %v5680 = vrot.slane %v5679, 1
        %v5681 = vadd.f32 %v5679, %v5680
        %v5682 = vsel %vm780, %v5668, %v5681
        %5683 = vrot.lane.b32.xlu0 %v5682, 1
        %v5684 = vpop.permute.xlu0 %5683
        %v5685 = vsel %vm785, %v5684, 0.0
        %v5686 = vadd.f32 %v5682, %v5685
        %5687 = vrot.lane.b32.xlu0 %v5686, 2
        %v5688 = vpop.permute.xlu0 %5687
        %v5689 = vsel %vm791, %v5688, 0.0
        %v5690 = vadd.f32 %v5686, %v5689
        %5691 = vrot.lane.b32.xlu0 %v5690, 4
        %v5692 = vpop.permute.xlu0 %5691
        %v5693 = vsel %vm797, %v5692, 0.0
        %v5694 = vadd.f32 %v5690, %v5693
        %5695 = vrot.lane.b32.xlu0 %v5694, 8
        %v5696 = vpop.permute.xlu0 %5695
        %v5697 = vsel %vm803, %v5696, 0.0
        %v5698 = vadd.f32 %v5694, %v5697
        %5699 = vrot.lane.b32.xlu0 %v5698, 16
        %v5700 = vpop.permute.xlu0 %5699
        %v5701 = vsel %vm809, %v5700, 0.0
        %v5702 = vadd.f32 %v5698, %v5701
        %5703 = vrot.lane.b32.xlu0 %v5702, 32
        %v5704 = vpop.permute.xlu0 %5703
        %v5705 = vsel %vm815, %v5704, 0.0
        %v5706 = vadd.f32 %v5702, %v5705
        %5707 = vrot.lane.b32.xlu0 %v5706, 64
        %v5708 = vpop.permute.xlu0 %5707
        %v5709 = vsel %vm821, %v5708, 0.0
        %v5710 = vadd.f32 %v5706, %v5709
        %v5711 = vmul.f32 %v5710, %v595
        %v5712 = vmul.f32 %v5711, 2.0
        %v5713 = vmul.f32 %v5712, %v5710
        %v5715 = vrot.slane %v5713, 7
        %v5717 = vsub.f32 %v5710, %v5715
        %v5718 = vmul.f32 %v5717, %v595
        %v5719 = vmul.f32 %v5711, %v5711
        %v5721 = vrot.slane %v5719, 7
        %v5723 = vadd.f32 %v5718, %v5721
        %v5724 = vmax.f32 %v5723, 0.0
        %v5725 = vadd.f32 %v5724, 1e-08
        %v5726 = vrsqrt.pop %v5725
        %v5727 = vlaneseq
        %v5728 = vshrl.u32 %v5727, 7
        %v5729 = vsub.s32 0, %v5728
        %v5730 = vrot.slane %v5711, %v5729
        %v5731 = vsub.f32 %v5646, %v5730
        %v5732 = vsub.f32 %v5647, %v5730
        %v5733 = vsub.f32 %v5648, %v5730
        %v5734 = vsub.f32 %v5649, %v5730
        %v5735 = vlaneseq
        %v5736 = vshrl.u32 %v5735, 7
        %v5737 = vsub.s32 1, %v5736
        %v5738 = vrot.slane %v5726, %v5737
        %v5739 = vmul.f32 %v5731, %v5738
        %v5740 = vmul.f32 %v5732, %v5738
        %v5741 = vmul.f32 %v5733, %v5738
        %v5742 = vmul.f32 %v5734, %v5738
        %5744 = vset.pattern.permute.xlu0 0
        %5745 = vperm.xlu0 %5744, %v5651
        %v5746 = vpop.permute.xlu0 %5745
        %5749 = vset.pattern.permute.xlu0 0
        %5750 = vperm.xlu0 %5749, %v5652
        %v5751 = vpop.permute.xlu0 %5750
        %5754 = vset.pattern.permute.xlu0 0
        %5755 = vperm.xlu0 %5754, %v5653
        %v5756 = vpop.permute.xlu0 %5755
        %5759 = vset.pattern.permute.xlu0 0
        %5760 = vperm.xlu0 %5759, %v5654
        %v5761 = vpop.permute.xlu0 %5760
        %v5763 = vmul.f32 %v5739, %v5746
        %v5764 = vmul.f32 %v5740, %v5751
        %v5765 = vmul.f32 %v5741, %v5756
        %v5766 = vmul.f32 %v5742, %v5761
        %5768 = vset.pattern.permute.xlu0 0
        %5769 = vperm.xlu0 %5768, %v5656
        %v5770 = vpop.permute.xlu0 %5769
        %5773 = vset.pattern.permute.xlu0 0
        %5774 = vperm.xlu0 %5773, %v5657
        %v5775 = vpop.permute.xlu0 %5774
        %5778 = vset.pattern.permute.xlu0 0
        %5779 = vperm.xlu0 %5778, %v5658
        %v5780 = vpop.permute.xlu0 %5779
        %5783 = vset.pattern.permute.xlu0 0
        %5784 = vperm.xlu0 %5783, %v5659
        %v5785 = vpop.permute.xlu0 %5784
        %v5787 = vadd.f32 %v5763, %v5770
        %v5788 = vadd.f32 %v5764, %v5775
        %v5789 = vadd.f32 %v5765, %v5780
        %v5790 = vadd.f32 %v5766, %v5785
        %s5791 = scalar_lea.vmem %s7, 224
        %v5792 = vld [vmem:[%s5791] sm:$0xff]
        %v5793 = vld [vmem:[%s5791 + $0x8] sm:$0xff]
        %v5794 = vld [vmem:[%s5791 + $0x10] sm:$0xff]
        %v5795 = vld [vmem:[%s5791 + $0x18] sm:$0xff]
        %5796 = vrot.lane.b32.xlu0 %v5787, 2
        %v5797 = vpop.permute.xlu0 %5796
        %5798 = vrot.lane.b32.xlu0 %v5788, 2
        %v5799 = vpop.permute.xlu0 %5798
        %5800 = vrot.lane.b32.xlu0 %v5789, 2
        %v5801 = vpop.permute.xlu0 %5800
        %5802 = vrot.lane.b32.xlu0 %v5790, 2
        %v5803 = vpop.permute.xlu0 %5802
        %v5804 = vsel %vm791, %v5797, 0.0
        %v5805 = vsel %vm791, %v5799, 0.0
        %v5806 = vsel %vm791, %v5801, 0.0
        %v5807 = vsel %vm791, %v5803, 0.0
        %5808 = vrot.lane.b32.xlu0 %v5787, 126
        %v5809 = vpop.permute.xlu0 %5808
        %5810 = vrot.lane.b32.xlu0 %v5788, 126
        %v5811 = vpop.permute.xlu0 %5810
        %5812 = vrot.lane.b32.xlu0 %v5789, 126
        %v5813 = vpop.permute.xlu0 %5812
        %5814 = vrot.lane.b32.xlu0 %v5790, 126
        %v5815 = vpop.permute.xlu0 %5814
        %v5816 = vsel %vm1625, %v5809, 0.0
        %v5817 = vsel %vm1625, %v5811, 0.0
        %v5818 = vsel %vm1625, %v5813, 0.0
        %v5819 = vsel %vm1625, %v5815, 0.0
        %5821 = vset.pattern.permute.xlu0 0
        %5822 = vperm.xlu0 %5821, %v5792
        %v5823 = vpop.permute.xlu0 %5822
        %5826 = vset.pattern.permute.xlu0 0
        %5827 = vperm.xlu0 %5826, %v5793
        %v5828 = vpop.permute.xlu0 %5827
        %5831 = vset.pattern.permute.xlu0 0
        %5832 = vperm.xlu0 %5831, %v5794
        %v5833 = vpop.permute.xlu0 %5832
        %5836 = vset.pattern.permute.xlu0 0
        %5837 = vperm.xlu0 %5836, %v5795
        %v5838 = vpop.permute.xlu0 %5837
        %v5840 = vmul.f32 %v5823, %v5804
        %v5841 = vmul.f32 %v5828, %v5805
        %v5842 = vmul.f32 %v5833, %v5806
        %v5843 = vmul.f32 %v5838, %v5807
        %5844 = vset.pattern.permute.xlu0 1
        %5845 = vperm.xlu0 %5844, %v5792
        %v5846 = vpop.permute.xlu0 %5845
        %5848 = vset.pattern.permute.xlu0 1
        %5849 = vperm.xlu0 %5848, %v5793
        %v5850 = vpop.permute.xlu0 %5849
        %5852 = vset.pattern.permute.xlu0 1
        %5853 = vperm.xlu0 %5852, %v5794
        %v5854 = vpop.permute.xlu0 %5853
        %5856 = vset.pattern.permute.xlu0 1
        %5857 = vperm.xlu0 %5856, %v5795
        %v5858 = vpop.permute.xlu0 %5857
        %v5860 = vmul.f32 %v5846, %v5787
        %v5861 = vmul.f32 %v5850, %v5788
        %v5862 = vmul.f32 %v5854, %v5789
        %v5863 = vmul.f32 %v5858, %v5790
        %v5864 = vadd.f32 %v5840, %v5860
        %v5865 = vadd.f32 %v5841, %v5861
        %v5866 = vadd.f32 %v5842, %v5862
        %v5867 = vadd.f32 %v5843, %v5863
        %5868 = vset.pattern.permute.xlu0 2
        %5869 = vperm.xlu0 %5868, %v5792
        %v5870 = vpop.permute.xlu0 %5869
        %5872 = vset.pattern.permute.xlu0 2
        %5873 = vperm.xlu0 %5872, %v5793
        %v5874 = vpop.permute.xlu0 %5873
        %5876 = vset.pattern.permute.xlu0 2
        %5877 = vperm.xlu0 %5876, %v5794
        %v5878 = vpop.permute.xlu0 %5877
        %5880 = vset.pattern.permute.xlu0 2
        %5881 = vperm.xlu0 %5880, %v5795
        %v5882 = vpop.permute.xlu0 %5881
        %v5884 = vmul.f32 %v5870, %v5816
        %v5885 = vmul.f32 %v5874, %v5817
        %v5886 = vmul.f32 %v5878, %v5818
        %v5887 = vmul.f32 %v5882, %v5819
        %v5888 = vadd.f32 %v5864, %v5884
        %v5889 = vadd.f32 %v5865, %v5885
        %v5890 = vadd.f32 %v5866, %v5886
        %v5891 = vadd.f32 %v5867, %v5887
        %s5892 = scalar_lea.vmem %s8, 224
        %v5893 = vld [vmem:[%s5892] sm:$0xff]
        %v5894 = vld [vmem:[%s5892 + $0x8] sm:$0xff]
        %v5895 = vld [vmem:[%s5892 + $0x10] sm:$0xff]
        %v5896 = vld [vmem:[%s5892 + $0x18] sm:$0xff]
        %5898 = vset.pattern.permute.xlu0 0
        %5899 = vperm.xlu0 %5898, %v5893
        %v5900 = vpop.permute.xlu0 %5899
        %5903 = vset.pattern.permute.xlu0 0
        %5904 = vperm.xlu0 %5903, %v5894
        %v5905 = vpop.permute.xlu0 %5904
        %5908 = vset.pattern.permute.xlu0 0
        %5909 = vperm.xlu0 %5908, %v5895
        %v5910 = vpop.permute.xlu0 %5909
        %5913 = vset.pattern.permute.xlu0 0
        %5914 = vperm.xlu0 %5913, %v5896
        %v5915 = vpop.permute.xlu0 %5914
        %v5917 = vadd.f32 %v5888, %v5900
        %v5918 = vadd.f32 %v5889, %v5905
        %v5919 = vadd.f32 %v5890, %v5910
        %v5920 = vadd.f32 %v5891, %v5915
        %vm5921 = vcmp.ge.f32.partialorder %v5917, 0.0
        %vm5922 = vcmp.ge.f32.partialorder %v5918, 0.0
        %vm5923 = vcmp.ge.f32.partialorder %v5919, 0.0
        %vm5924 = vcmp.ge.f32.partialorder %v5920, 0.0
        %v5925 = vstv %s5509
        %v5926 = vmul.f32 %v5925, %v5917
        %v5927 = vmul.f32 %v5925, %v5918
        %v5928 = vmul.f32 %v5925, %v5919
        %v5929 = vmul.f32 %v5925, %v5920
        %v5930 = vsel %vm5921, %v5917, %v5926
        %v5931 = vsel %vm5922, %v5918, %v5927
        %v5932 = vsel %vm5923, %v5919, %v5928
        %v5933 = vsel %vm5924, %v5920, %v5929
        %s5934 = scalar_lea.vmem %s9, 224
        %v5935 = vld [vmem:[%s5934] sm:$0xff]
        %v5936 = vld [vmem:[%s5934 + $0x8] sm:$0xff]
        %v5937 = vld [vmem:[%s5934 + $0x10] sm:$0xff]
        %v5938 = vld [vmem:[%s5934 + $0x18] sm:$0xff]
        %s5939 = scalar_lea.vmem %s10, 224
        %v5940 = vld [vmem:[%s5939] sm:$0xff]
        %v5941 = vld [vmem:[%s5939 + $0x8] sm:$0xff]
        %v5942 = vld [vmem:[%s5939 + $0x10] sm:$0xff]
        %v5943 = vld [vmem:[%s5939 + $0x18] sm:$0xff]
        %v5944 = vadd.f32 %v5930, %v5931
        %v5945 = vadd.f32 %v5944, %v5932
        %v5946 = vadd.f32 %v5945, %v5933
        %v5947 = vrot.slane %v5946, 4
        %v5948 = vadd.f32 %v5946, %v5947
        %v5949 = vrot.slane %v5948, 2
        %v5950 = vadd.f32 %v5948, %v5949
        %v5951 = vrot.slane %v5950, 1
        %v5952 = vadd.f32 %v5950, %v5951
        %v5953 = vmul.f32 %v5930, %v5930
        %v5954 = vmul.f32 %v5931, %v5931
        %v5955 = vmul.f32 %v5932, %v5932
        %v5956 = vmul.f32 %v5933, %v5933
        %v5957 = vadd.f32 %v5953, %v5954
        %v5958 = vadd.f32 %v5957, %v5955
        %v5959 = vadd.f32 %v5958, %v5956
        %v5960 = vrot.slane %v5959, 4
        %v5961 = vadd.f32 %v5959, %v5960
        %v5962 = vrot.slane %v5961, 2
        %v5963 = vadd.f32 %v5961, %v5962
        %v5964 = vrot.slane %v5963, 1
        %v5965 = vadd.f32 %v5963, %v5964
        %v5966 = vsel %vm780, %v5952, %v5965
        %5967 = vrot.lane.b32.xlu0 %v5966, 1
        %v5968 = vpop.permute.xlu0 %5967
        %v5969 = vsel %vm785, %v5968, 0.0
        %v5970 = vadd.f32 %v5966, %v5969
        %5971 = vrot.lane.b32.xlu0 %v5970, 2
        %v5972 = vpop.permute.xlu0 %5971
        %v5973 = vsel %vm791, %v5972, 0.0
        %v5974 = vadd.f32 %v5970, %v5973
        %5975 = vrot.lane.b32.xlu0 %v5974, 4
        %v5976 = vpop.permute.xlu0 %5975
        %v5977 = vsel %vm797, %v5976, 0.0
        %v5978 = vadd.f32 %v5974, %v5977
        %5979 = vrot.lane.b32.xlu0 %v5978, 8
        %v5980 = vpop.permute.xlu0 %5979
        %v5981 = vsel %vm803, %v5980, 0.0
        %v5982 = vadd.f32 %v5978, %v5981
        %5983 = vrot.lane.b32.xlu0 %v5982, 16
        %v5984 = vpop.permute.xlu0 %5983
        %v5985 = vsel %vm809, %v5984, 0.0
        %v5986 = vadd.f32 %v5982, %v5985
        %5987 = vrot.lane.b32.xlu0 %v5986, 32
        %v5988 = vpop.permute.xlu0 %5987
        %v5989 = vsel %vm815, %v5988, 0.0
        %v5990 = vadd.f32 %v5986, %v5989
        %5991 = vrot.lane.b32.xlu0 %v5990, 64
        %v5992 = vpop.permute.xlu0 %5991
        %v5993 = vsel %vm821, %v5992, 0.0
        %v5994 = vadd.f32 %v5990, %v5993
        %v5995 = vmul.f32 %v5994, %v595
        %v5996 = vmul.f32 %v5995, 2.0
        %v5997 = vmul.f32 %v5996, %v5994
        %v5999 = vrot.slane %v5997, 7
        %v6001 = vsub.f32 %v5994, %v5999
        %v6002 = vmul.f32 %v6001, %v595
        %v6003 = vmul.f32 %v5995, %v5995
        %v6005 = vrot.slane %v6003, 7
        %v6007 = vadd.f32 %v6002, %v6005
        %v6008 = vmax.f32 %v6007, 0.0
        %v6009 = vadd.f32 %v6008, 1e-08
        %v6010 = vrsqrt.pop %v6009
        %v6011 = vlaneseq
        %v6012 = vshrl.u32 %v6011, 7
        %v6013 = vsub.s32 0, %v6012
        %v6014 = vrot.slane %v5995, %v6013
        %v6015 = vsub.f32 %v5930, %v6014
        %v6016 = vsub.f32 %v5931, %v6014
        %v6017 = vsub.f32 %v5932, %v6014
        %v6018 = vsub.f32 %v5933, %v6014
        %v6019 = vlaneseq
        %v6020 = vshrl.u32 %v6019, 7
        %v6021 = vsub.s32 1, %v6020
        %v6022 = vrot.slane %v6010, %v6021
        %v6023 = vmul.f32 %v6015, %v6022
        %v6024 = vmul.f32 %v6016, %v6022
        %v6025 = vmul.f32 %v6017, %v6022
        %v6026 = vmul.f32 %v6018, %v6022
        %6028 = vset.pattern.permute.xlu0 0
        %6029 = vperm.xlu0 %6028, %v5935
        %v6030 = vpop.permute.xlu0 %6029
        %6033 = vset.pattern.permute.xlu0 0
        %6034 = vperm.xlu0 %6033, %v5936
        %v6035 = vpop.permute.xlu0 %6034
        %6038 = vset.pattern.permute.xlu0 0
        %6039 = vperm.xlu0 %6038, %v5937
        %v6040 = vpop.permute.xlu0 %6039
        %6043 = vset.pattern.permute.xlu0 0
        %6044 = vperm.xlu0 %6043, %v5938
        %v6045 = vpop.permute.xlu0 %6044
        %v6047 = vmul.f32 %v6023, %v6030
        %v6048 = vmul.f32 %v6024, %v6035
        %v6049 = vmul.f32 %v6025, %v6040
        %v6050 = vmul.f32 %v6026, %v6045
        %6052 = vset.pattern.permute.xlu0 0
        %6053 = vperm.xlu0 %6052, %v5940
        %v6054 = vpop.permute.xlu0 %6053
        %6057 = vset.pattern.permute.xlu0 0
        %6058 = vperm.xlu0 %6057, %v5941
        %v6059 = vpop.permute.xlu0 %6058
        %6062 = vset.pattern.permute.xlu0 0
        %6063 = vperm.xlu0 %6062, %v5942
        %v6064 = vpop.permute.xlu0 %6063
        %6067 = vset.pattern.permute.xlu0 0
        %6068 = vperm.xlu0 %6067, %v5943
        %v6069 = vpop.permute.xlu0 %6068
        %v6071 = vadd.f32 %v6047, %v6054
        %v6072 = vadd.f32 %v6048, %v6059
        %v6073 = vadd.f32 %v6049, %v6064
        %v6074 = vadd.f32 %v6050, %v6069
        %s6075 = scalar_lea.vmem %s11, 224
        %v6076 = vld [vmem:[%s6075] sm:$0xff]
        %v6077 = vld [vmem:[%s6075 + $0x8] sm:$0xff]
        %v6078 = vld [vmem:[%s6075 + $0x10] sm:$0xff]
        %v6079 = vld [vmem:[%s6075 + $0x18] sm:$0xff]
        %s6080 = scalar_lea.vmem %s12, 224
        %v6081 = vld [vmem:[%s6080] sm:$0xff]
        %v6082 = vld [vmem:[%s6080 + $0x8] sm:$0xff]
        %v6083 = vld [vmem:[%s6080 + $0x10] sm:$0xff]
        %v6084 = vld [vmem:[%s6080 + $0x18] sm:$0xff]
        %6086 = vset.pattern.permute.xlu0 0
        %6087 = vperm.xlu0 %6086, %v6081
        %v6088 = vpop.permute.xlu0 %6087
        %6091 = vset.pattern.permute.xlu0 0
        %6092 = vperm.xlu0 %6091, %v6082
        %v6093 = vpop.permute.xlu0 %6092
        %6096 = vset.pattern.permute.xlu0 0
        %6097 = vperm.xlu0 %6096, %v6083
        %v6098 = vpop.permute.xlu0 %6097
        %6101 = vset.pattern.permute.xlu0 0
        %6102 = vperm.xlu0 %6101, %v6084
        %v6103 = vpop.permute.xlu0 %6102
        %v6106 = vsel %vm1214, %v6076, 0
        %v6109 = vsel %vm1214, %v6077, 0
        %v6112 = vsel %vm1214, %v6078, 0
        %v6115 = vsel %vm1214, %v6079, 0
        %6117 = vmatprep.subr.mxu0 0.0
        %6118 = vmatpush1.msra.mxu0 %v6071
        %6119 = vmatprep.subr.mxu0 0.0
        %6120 = vmatpush1.msra.mxu0 %v6072
        %6121 = vmatprep.subr.mxu0 0.0
        %6122 = vmatpush1.msra.mxu0 %v6073
        %6123 = vmatprep.subr.mxu0 0.0
        %6124 = vmatpush1.msra.mxu0 %v6074
        %6125 = vmatprep.subr.mxu0 0.0
        %6126 = vmatpush1.msra.mxu0 0.0
        %6127 = vmatprep.subr.mxu0 0.0
        %6128 = vmatpush1.msra.mxu0 0.0
        %6129 = vmatprep.subr.mxu0 0.0
        %6130 = vmatpush1.msra.mxu0 0.0
        %6131 = vmatprep.subr.mxu0 0.0
        %6132 = vmatpush1.msra.mxu0 0.0
        %6133 = vmatprep.subr.mxu0 0.0
        %6134 = vmatpush1.msra.mxu0 0.0
        %6135 = vmatprep.subr.mxu0 0.0
        %6136 = vmatpush1.msra.mxu0 0.0
        %6137 = vmatprep.subr.mxu0 0.0
        %6138 = vmatpush1.msra.mxu0 0.0
        %6139 = vmatprep.subr.mxu0 0.0
        %6140 = vmatpush1.msra.mxu0 0.0
        %6141 = vmatprep.subr.mxu0 0.0
        %6142 = vmatpush1.msra.mxu0 0.0
        %6143 = vmatprep.subr.mxu0 0.0
        %6144 = vmatpush1.msra.mxu0 0.0
        %6145 = vmatprep.subr.mxu0 0.0
        %6146 = vmatpush1.msra.mxu0 0.0
        %6147 = vmatprep.subr.mxu0 0.0
        %6148 = vmatpush1.msra.mxu0 0.0
        %6149 = vmatprep.subr.mxu0 0.0
        %6150 = vmatpush1.msra.mxu0 0.0
        %6151 = vmatprep.subr.mxu0 0.0
        %6152 = vmatpush1.msra.mxu0 0.0
        %6153 = vmatprep.subr.mxu0 0.0
        %6154 = vmatpush1.msra.mxu0 0.0
        %6155 = vmatprep.subr.mxu0 0.0
        %6156 = vmatpush1.msra.mxu0 0.0
        %6157 = vmatprep.subr.mxu0 0.0
        %6158 = vmatpush1.msra.mxu0 0.0
        %6159 = vmatprep.subr.mxu0 0.0
        %6160 = vmatpush1.msra.mxu0 0.0
        %6161 = vmatprep.subr.mxu0 0.0
        %6162 = vmatpush1.msra.mxu0 0.0
        %6163 = vmatprep.subr.mxu0 0.0
        %6164 = vmatpush1.msra.mxu0 0.0
        %6165 = vmatprep.subr.mxu0 0.0
        %6166 = vmatpush1.msra.mxu0 0.0
        %6167 = vmatprep.subr.mxu0 0.0
        %6168 = vmatpush1.msra.mxu0 0.0
        %6169 = vmatprep.subr.mxu0 0.0
        %6170 = vmatpush1.msra.mxu0 0.0
        %6171 = vmatprep.subr.mxu0 0.0
        %6172 = vmatpush1.msra.mxu0 0.0
        %6173 = vmatprep.subr.mxu0 0.0
        %6174 = vmatpush1.msra.mxu0 0.0
        %6175 = vmatprep.subr.mxu0 0.0
        %6176 = vmatpush1.msra.mxu0 0.0
        %6177 = vmatprep.subr.mxu0 0.0
        %6178 = vmatpush1.msra.mxu0 0.0
        %6179 = vmatprep.subr.mxu0 0.0
        %6180 = vmatpush1.msra.mxu0 0.0
        %6181 = vmatprep.mubr.f32.mxu0 0.0
        %6182 = vmatmul.mubr.f32.gmra.mrb[0].mxu0 %v6106
        %v6183 = vpop.f32.mrb[0].mxu0
        %v6184 = vadd.f32 %v6088, %v6183
        %v6185 = vpop.f32.mrb[0].mxu0
        %6186 = vmatprep.mubr.f32.mxu0 0.0
        %6187 = vmatmul.mubr.f32.gmra.mrb[0].mxu0 %v6109
        %v6188 = vpop.f32.mrb[0].mxu0
        %v6189 = vadd.f32 %v6093, %v6188
        %v6190 = vpop.f32.mrb[0].mxu0
        %6191 = vmatprep.mubr.f32.mxu0 0.0
        %6192 = vmatmul.mubr.f32.gmra.mrb[0].mxu0 %v6112
        %v6193 = vpop.f32.mrb[0].mxu0
        %v6194 = vadd.f32 %v6098, %v6193
        %v6195 = vpop.f32.mrb[0].mxu0
        %6196 = vmatprep.mubr.f32.mxu0 0.0
        %6197 = vmatmul.mubr.f32.gmra.mrb[0].mxu0 %v6115
        %v6198 = vpop.f32.mrb[0].mxu0
        %v6199 = vadd.f32 %v6103, %v6198
        %v6200 = vpop.f32.mrb[0].mxu0
        %6201 = vdwg.mxu0
        %v6202 = vadd.f32 %v5504, %v6184
        %v6203 = vadd.f32 %v5505, %v6189
        %v6204 = vadd.f32 %v5506, %v6194
        %v6205 = vadd.f32 %v5507, %v6199
        %v6206 = vld [vmem:[%s13] sm:$0xff]
        %v6207 = vld [vmem:[%s13 + $0x8] sm:$0xff]
        %v6208 = vld [vmem:[%s14] sm:$0xff]
        %v6209 = vld [vmem:[%s14 + $0x8] sm:$0xff]
        %vm6210 = vcmask 64512
        %v6212 = vsel %vm6210, %v6208, 0
        %v6215 = vsel %vm6210, %v6209, 0
        %6217 = vmatprep.subr.mxu0 0.0
        %6218 = vmatpush1.msra.mxu0 %v608
        %6219 = vmatprep.subr.mxu0 0.0
        %6220 = vmatpush1.msra.mxu0 0.0
        %6221 = vmatprep.subr.mxu0 0.0
        %6222 = vmatpush1.msra.mxu0 0.0
        %6223 = vmatprep.subr.mxu0 0.0
        %6224 = vmatpush1.msra.mxu0 0.0
        %6225 = vmatprep.subr.mxu0 0.0
        %6226 = vmatpush1.msra.mxu0 0.0
        %6227 = vmatprep.subr.mxu0 0.0
        %6228 = vmatpush1.msra.mxu0 0.0
        %6229 = vmatprep.subr.mxu0 0.0
        %6230 = vmatpush1.msra.mxu0 0.0
        %6231 = vmatprep.subr.mxu0 0.0
        %6232 = vmatpush1.msra.mxu0 0.0
        %6233 = vmatprep.subr.mxu0 0.0
        %6234 = vmatpush1.msra.mxu0 0.0
        %6235 = vmatprep.subr.mxu0 0.0
        %6236 = vmatpush1.msra.mxu0 0.0
        %6237 = vmatprep.subr.mxu0 0.0
        %6238 = vmatpush1.msra.mxu0 0.0
        %6239 = vmatprep.subr.mxu0 0.0
        %6240 = vmatpush1.msra.mxu0 0.0
        %6241 = vmatprep.subr.mxu0 0.0
        %6242 = vmatpush1.msra.mxu0 0.0
        %6243 = vmatprep.subr.mxu0 0.0
        %6244 = vmatpush1.msra.mxu0 0.0
        %6245 = vmatprep.subr.mxu0 0.0
        %6246 = vmatpush1.msra.mxu0 0.0
        %6247 = vmatprep.subr.mxu0 0.0
        %6248 = vmatpush1.msra.mxu0 0.0
        %6249 = vmatprep.subr.mxu0 0.0
        %6250 = vmatpush1.msra.mxu0 0.0
        %6251 = vmatprep.subr.mxu0 0.0
        %6252 = vmatpush1.msra.mxu0 0.0
        %6253 = vmatprep.subr.mxu0 0.0
        %6254 = vmatpush1.msra.mxu0 0.0
        %6255 = vmatprep.subr.mxu0 0.0
        %6256 = vmatpush1.msra.mxu0 0.0
        %6257 = vmatprep.subr.mxu0 0.0
        %6258 = vmatpush1.msra.mxu0 0.0
        %6259 = vmatprep.subr.mxu0 0.0
        %6260 = vmatpush1.msra.mxu0 0.0
        %6261 = vmatprep.subr.mxu0 0.0
        %6262 = vmatpush1.msra.mxu0 0.0
        %6263 = vmatprep.subr.mxu0 0.0
        %6264 = vmatpush1.msra.mxu0 0.0
        %6265 = vmatprep.subr.mxu0 0.0
        %6266 = vmatpush1.msra.mxu0 0.0
        %6267 = vmatprep.subr.mxu0 0.0
        %6268 = vmatpush1.msra.mxu0 0.0
        %6269 = vmatprep.subr.mxu0 0.0
        %6270 = vmatpush1.msra.mxu0 0.0
        %6271 = vmatprep.subr.mxu0 0.0
        %6272 = vmatpush1.msra.mxu0 0.0
        %6273 = vmatprep.subr.mxu0 0.0
        %6274 = vmatpush1.msra.mxu0 0.0
        %6275 = vmatprep.subr.mxu0 0.0
        %6276 = vmatpush1.msra.mxu0 0.0
        %6277 = vmatprep.subr.mxu0 0.0
        %6278 = vmatpush1.msra.mxu0 0.0
        %6279 = vmatprep.subr.mxu0 0.0
        %6280 = vmatpush1.msra.mxu0 0.0
        %6281 = vmatprep.mubr.f32.mxu0 0.0
        %6282 = vmatmul.mubr.f32.gmra.mrb[0].mxu0 %v6212
        %v6283 = vpop.f32.mrb[0].mxu0
        %v6284 = vadd.f32 0.0, %v6283
        %v6285 = vpop.f32.mrb[0].mxu0
        %6286 = vmatprep.mubr.f32.mxu0 0.0
        %6287 = vmatmul.mubr.f32.gmra.mrb[0].mxu0 %v6215
        %v6288 = vpop.f32.mrb[0].mxu0
        %v6289 = vadd.f32 0.0, %v6288
        %v6290 = vpop.f32.mrb[0].mxu0
        %6291 = vdwg.mxu0
        %v6293 = vsel %vm639, %v6206, 0
        %v6296 = vsel %vm639, %v6207, 0
        %6298 = vmatprep.subr.mxu0 0.0
        %6299 = vmatpush1.msra.mxu0 %v6202
        %6300 = vmatprep.subr.mxu0 0.0
        %6301 = vmatpush1.msra.mxu0 %v6203
        %6302 = vmatprep.subr.mxu0 0.0
        %6303 = vmatpush1.msra.mxu0 0.0
        %6304 = vmatprep.subr.mxu0 0.0
        %6305 = vmatpush1.msra.mxu0 0.0
        %6306 = vmatprep.subr.mxu0 0.0
        %6307 = vmatpush1.msra.mxu0 0.0
        %6308 = vmatprep.subr.mxu0 0.0
        %6309 = vmatpush1.msra.mxu0 0.0
        %6310 = vmatprep.subr.mxu0 0.0
        %6311 = vmatpush1.msra.mxu0 0.0
        %6312 = vmatprep.subr.mxu0 0.0
        %6313 = vmatpush1.msra.mxu0 0.0
        %6314 = vmatprep.subr.mxu0 0.0
        %6315 = vmatpush1.msra.mxu0 0.0
        %6316 = vmatprep.subr.mxu0 0.0
        %6317 = vmatpush1.msra.mxu0 0.0
        %6318 = vmatprep.subr.mxu0 0.0
        %6319 = vmatpush1.msra.mxu0 0.0
        %6320 = vmatprep.subr.mxu0 0.0
        %6321 = vmatpush1.msra.mxu0 0.0
        %6322 = vmatprep.subr.mxu0 0.0
        %6323 = vmatpush1.msra.mxu0 0.0
        %6324 = vmatprep.subr.mxu0 0.0
        %6325 = vmatpush1.msra.mxu0 0.0
        %6326 = vmatprep.subr.mxu0 0.0
        %6327 = vmatpush1.msra.mxu0 0.0
        %6328 = vmatprep.subr.mxu0 0.0
        %6329 = vmatpush1.msra.mxu0 0.0
        %6330 = vmatprep.subr.mxu0 0.0
        %6331 = vmatpush1.msra.mxu0 0.0
        %6332 = vmatprep.subr.mxu0 0.0
        %6333 = vmatpush1.msra.mxu0 0.0
        %6334 = vmatprep.subr.mxu0 0.0
        %6335 = vmatpush1.msra.mxu0 0.0
        %6336 = vmatprep.subr.mxu0 0.0
        %6337 = vmatpush1.msra.mxu0 0.0
        %6338 = vmatprep.subr.mxu0 0.0
        %6339 = vmatpush1.msra.mxu0 0.0
        %6340 = vmatprep.subr.mxu0 0.0
        %6341 = vmatpush1.msra.mxu0 0.0
        %6342 = vmatprep.subr.mxu0 0.0
        %6343 = vmatpush1.msra.mxu0 0.0
        %6344 = vmatprep.subr.mxu0 0.0
        %6345 = vmatpush1.msra.mxu0 0.0
        %6346 = vmatprep.subr.mxu0 0.0
        %6347 = vmatpush1.msra.mxu0 0.0
        %6348 = vmatprep.subr.mxu0 0.0
        %6349 = vmatpush1.msra.mxu0 0.0
        %6350 = vmatprep.subr.mxu0 0.0
        %6351 = vmatpush1.msra.mxu0 0.0
        %6352 = vmatprep.subr.mxu0 0.0
        %6353 = vmatpush1.msra.mxu0 0.0
        %6354 = vmatprep.subr.mxu0 0.0
        %6355 = vmatpush1.msra.mxu0 0.0
        %6356 = vmatprep.subr.mxu0 0.0
        %6357 = vmatpush1.msra.mxu0 0.0
        %6358 = vmatprep.subr.mxu0 0.0
        %6359 = vmatpush1.msra.mxu0 0.0
        %6360 = vmatprep.subr.mxu0 0.0
        %6361 = vmatpush1.msra.mxu0 0.0
        %6362 = vmatprep.mubr.f32.mxu0 0.0
        %6363 = vmatmul.mubr.f32.gmra.mrb[0].mxu0 %v6293
        %v6364 = vpop.f32.mrb[0].mxu0
        %v6365 = vadd.f32 %v6284, %v6364
        %v6366 = vpop.f32.mrb[0].mxu0
        %6367 = vmatprep.mubr.f32.mxu0 0.0
        %6368 = vmatmul.mubr.f32.gmra.mrb[0].mxu0 %v6296
        %v6369 = vpop.f32.mrb[0].mxu0
        %v6370 = vadd.f32 %v6289, %v6369
        %v6371 = vpop.f32.mrb[0].mxu0
        %6372 = vdwg.mxu0
        %v6373 = vld [vmem:[%s15] sm:$0xff]
        %v6374 = vld [vmem:[%s15 + $0x8] sm:$0xff]
        %6376 = vset.pattern.permute.xlu0 0
        %6377 = vperm.xlu0 %6376, %v6373
        %v6378 = vpop.permute.xlu0 %6377
        %6381 = vset.pattern.permute.xlu0 0
        %6382 = vperm.xlu0 %6381, %v6374
        %v6383 = vpop.permute.xlu0 %6382
        %v6385 = vadd.f32 %v6365, %v6378
        %v6386 = vadd.f32 %v6370, %v6383
        %s6387 = sld [smem:[#allocation2 + $0x10]]
        %s6388 = sld [smem:[#allocation2 + $0x11]]
        %s6389 = scalar_lea.vmem %s3, 256
        %v6390 = vld [vmem:[%s6389] sm:$0xff]
        %v6391 = vld [vmem:[%s6389 + $0x8] sm:$0xff]
        %v6392 = vld [vmem:[%s6389 + $0x10] sm:$0xff]
        %v6393 = vld [vmem:[%s6389 + $0x18] sm:$0xff]
        %s6394 = scalar_lea.vmem %s4, 256
        %v6395 = vld [vmem:[%s6394] sm:$0xff]
        %v6396 = vld [vmem:[%s6394 + $0x8] sm:$0xff]
        %v6397 = vld [vmem:[%s6394 + $0x10] sm:$0xff]
        %v6398 = vld [vmem:[%s6394 + $0x18] sm:$0xff]
        %6400 = vset.pattern.permute.xlu0 0
        %6401 = vperm.xlu0 %6400, %v6395
        %v6402 = vpop.permute.xlu0 %6401
        %6405 = vset.pattern.permute.xlu0 0
        %6406 = vperm.xlu0 %6405, %v6396
        %v6407 = vpop.permute.xlu0 %6406
        %6410 = vset.pattern.permute.xlu0 0
        %6411 = vperm.xlu0 %6410, %v6397
        %v6412 = vpop.permute.xlu0 %6411
        %6415 = vset.pattern.permute.xlu0 0
        %6416 = vperm.xlu0 %6415, %v6398
        %v6417 = vpop.permute.xlu0 %6416
        %v6420 = vsel %vm639, %v6390, 0
        %v6423 = vsel %vm639, %v6391, 0
        %v6426 = vsel %vm639, %v6392, 0
        %v6429 = vsel %vm639, %v6393, 0
        %6431 = vmatprep.subr.mxu0 0.0
        %6432 = vmatpush1.msra.mxu0 %v6385
        %6433 = vmatprep.subr.mxu0 0.0
        %6434 = vmatpush1.msra.mxu0 %v6386
        %6435 = vmatprep.subr.mxu0 0.0
        %6436 = vmatpush1.msra.mxu0 0.0
        %6437 = vmatprep.subr.mxu0 0.0
        %6438 = vmatpush1.msra.mxu0 0.0
        %6439 = vmatprep.subr.mxu0 0.0
        %6440 = vmatpush1.msra.mxu0 0.0
        %6441 = vmatprep.subr.mxu0 0.0
        %6442 = vmatpush1.msra.mxu0 0.0
        %6443 = vmatprep.subr.mxu0 0.0
        %6444 = vmatpush1.msra.mxu0 0.0
        %6445 = vmatprep.subr.mxu0 0.0
        %6446 = vmatpush1.msra.mxu0 0.0
        %6447 = vmatprep.subr.mxu0 0.0
        %6448 = vmatpush1.msra.mxu0 0.0
        %6449 = vmatprep.subr.mxu0 0.0
        %6450 = vmatpush1.msra.mxu0 0.0
        %6451 = vmatprep.subr.mxu0 0.0
        %6452 = vmatpush1.msra.mxu0 0.0
        %6453 = vmatprep.subr.mxu0 0.0
        %6454 = vmatpush1.msra.mxu0 0.0
        %6455 = vmatprep.subr.mxu0 0.0
        %6456 = vmatpush1.msra.mxu0 0.0
        %6457 = vmatprep.subr.mxu0 0.0
        %6458 = vmatpush1.msra.mxu0 0.0
        %6459 = vmatprep.subr.mxu0 0.0
        %6460 = vmatpush1.msra.mxu0 0.0
        %6461 = vmatprep.subr.mxu0 0.0
        %6462 = vmatpush1.msra.mxu0 0.0
        %6463 = vmatprep.subr.mxu0 0.0
        %6464 = vmatpush1.msra.mxu0 0.0
        %6465 = vmatprep.subr.mxu0 0.0
        %6466 = vmatpush1.msra.mxu0 0.0
        %6467 = vmatprep.subr.mxu0 0.0
        %6468 = vmatpush1.msra.mxu0 0.0
        %6469 = vmatprep.subr.mxu0 0.0
        %6470 = vmatpush1.msra.mxu0 0.0
        %6471 = vmatprep.subr.mxu0 0.0
        %6472 = vmatpush1.msra.mxu0 0.0
        %6473 = vmatprep.subr.mxu0 0.0
        %6474 = vmatpush1.msra.mxu0 0.0
        %6475 = vmatprep.subr.mxu0 0.0
        %6476 = vmatpush1.msra.mxu0 0.0
        %6477 = vmatprep.subr.mxu0 0.0
        %6478 = vmatpush1.msra.mxu0 0.0
        %6479 = vmatprep.subr.mxu0 0.0
        %6480 = vmatpush1.msra.mxu0 0.0
        %6481 = vmatprep.subr.mxu0 0.0
        %6482 = vmatpush1.msra.mxu0 0.0
        %6483 = vmatprep.subr.mxu0 0.0
        %6484 = vmatpush1.msra.mxu0 0.0
        %6485 = vmatprep.subr.mxu0 0.0
        %6486 = vmatpush1.msra.mxu0 0.0
        %6487 = vmatprep.subr.mxu0 0.0
        %6488 = vmatpush1.msra.mxu0 0.0
        %6489 = vmatprep.subr.mxu0 0.0
        %6490 = vmatpush1.msra.mxu0 0.0
        %6491 = vmatprep.subr.mxu0 0.0
        %6492 = vmatpush1.msra.mxu0 0.0
        %6493 = vmatprep.subr.mxu0 0.0
        %6494 = vmatpush1.msra.mxu0 0.0
        %6495 = vmatprep.mubr.f32.mxu0 0.0
        %6496 = vmatmul.mubr.f32.gmra.mrb[0].mxu0 %v6420
        %v6497 = vpop.f32.mrb[0].mxu0
        %v6498 = vadd.f32 %v6402, %v6497
        %v6499 = vpop.f32.mrb[0].mxu0
        %6500 = vmatprep.mubr.f32.mxu0 0.0
        %6501 = vmatmul.mubr.f32.gmra.mrb[0].mxu0 %v6423
        %v6502 = vpop.f32.mrb[0].mxu0
        %v6503 = vadd.f32 %v6407, %v6502
        %v6504 = vpop.f32.mrb[0].mxu0
        %6505 = vmatprep.mubr.f32.mxu0 0.0
        %6506 = vmatmul.mubr.f32.gmra.mrb[0].mxu0 %v6426
        %v6507 = vpop.f32.mrb[0].mxu0
        %v6508 = vadd.f32 %v6412, %v6507
        %v6509 = vpop.f32.mrb[0].mxu0
        %6510 = vmatprep.mubr.f32.mxu0 0.0
        %6511 = vmatmul.mubr.f32.gmra.mrb[0].mxu0 %v6429
        %v6512 = vpop.f32.mrb[0].mxu0
        %v6513 = vadd.f32 %v6417, %v6512
        %v6514 = vpop.f32.mrb[0].mxu0
        %6515 = vdwg.mxu0
        %vm6516 = vcmp.ge.f32.partialorder %v6498, 0.0
        %vm6517 = vcmp.ge.f32.partialorder %v6503, 0.0
        %vm6518 = vcmp.ge.f32.partialorder %v6508, 0.0
        %vm6519 = vcmp.ge.f32.partialorder %v6513, 0.0
        %v6520 = vstv %s6387
        %v6521 = vmul.f32 %v6520, %v6498
        %v6522 = vmul.f32 %v6520, %v6503
        %v6523 = vmul.f32 %v6520, %v6508
        %v6524 = vmul.f32 %v6520, %v6513
        %v6525 = vsel %vm6516, %v6498, %v6521
        %v6526 = vsel %vm6517, %v6503, %v6522
        %v6527 = vsel %vm6518, %v6508, %v6523
        %v6528 = vsel %vm6519, %v6513, %v6524
        %s6529 = scalar_lea.vmem %s5, 256
        %v6530 = vld [vmem:[%s6529] sm:$0xff]
        %v6531 = vld [vmem:[%s6529 + $0x8] sm:$0xff]
        %v6532 = vld [vmem:[%s6529 + $0x10] sm:$0xff]
        %v6533 = vld [vmem:[%s6529 + $0x18] sm:$0xff]
        %s6534 = scalar_lea.vmem %s6, 256
        %v6535 = vld [vmem:[%s6534] sm:$0xff]
        %v6536 = vld [vmem:[%s6534 + $0x8] sm:$0xff]
        %v6537 = vld [vmem:[%s6534 + $0x10] sm:$0xff]
        %v6538 = vld [vmem:[%s6534 + $0x18] sm:$0xff]
        %v6539 = vadd.f32 %v6525, %v6526
        %v6540 = vadd.f32 %v6539, %v6527
        %v6541 = vadd.f32 %v6540, %v6528
        %v6542 = vrot.slane %v6541, 4
        %v6543 = vadd.f32 %v6541, %v6542
        %v6544 = vrot.slane %v6543, 2
        %v6545 = vadd.f32 %v6543, %v6544
        %v6546 = vrot.slane %v6545, 1
        %v6547 = vadd.f32 %v6545, %v6546
        %v6548 = vmul.f32 %v6525, %v6525
        %v6549 = vmul.f32 %v6526, %v6526
        %v6550 = vmul.f32 %v6527, %v6527
        %v6551 = vmul.f32 %v6528, %v6528
        %v6552 = vadd.f32 %v6548, %v6549
        %v6553 = vadd.f32 %v6552, %v6550
        %v6554 = vadd.f32 %v6553, %v6551
        %v6555 = vrot.slane %v6554, 4
        %v6556 = vadd.f32 %v6554, %v6555
        %v6557 = vrot.slane %v6556, 2
        %v6558 = vadd.f32 %v6556, %v6557
        %v6559 = vrot.slane %v6558, 1
        %v6560 = vadd.f32 %v6558, %v6559
        %v6561 = vsel %vm780, %v6547, %v6560
        %6562 = vrot.lane.b32.xlu0 %v6561, 1
        %v6563 = vpop.permute.xlu0 %6562
        %v6564 = vsel %vm785, %v6563, 0.0
        %v6565 = vadd.f32 %v6561, %v6564
        %6566 = vrot.lane.b32.xlu0 %v6565, 2
        %v6567 = vpop.permute.xlu0 %6566
        %v6568 = vsel %vm791, %v6567, 0.0
        %v6569 = vadd.f32 %v6565, %v6568
        %6570 = vrot.lane.b32.xlu0 %v6569, 4
        %v6571 = vpop.permute.xlu0 %6570
        %v6572 = vsel %vm797, %v6571, 0.0
        %v6573 = vadd.f32 %v6569, %v6572
        %6574 = vrot.lane.b32.xlu0 %v6573, 8
        %v6575 = vpop.permute.xlu0 %6574
        %v6576 = vsel %vm803, %v6575, 0.0
        %v6577 = vadd.f32 %v6573, %v6576
        %6578 = vrot.lane.b32.xlu0 %v6577, 16
        %v6579 = vpop.permute.xlu0 %6578
        %v6580 = vsel %vm809, %v6579, 0.0
        %v6581 = vadd.f32 %v6577, %v6580
        %6582 = vrot.lane.b32.xlu0 %v6581, 32
        %v6583 = vpop.permute.xlu0 %6582
        %v6584 = vsel %vm815, %v6583, 0.0
        %v6585 = vadd.f32 %v6581, %v6584
        %6586 = vrot.lane.b32.xlu0 %v6585, 64
        %v6587 = vpop.permute.xlu0 %6586
        %v6588 = vsel %vm821, %v6587, 0.0
        %v6589 = vadd.f32 %v6585, %v6588
        %v6590 = vmul.f32 %v6589, %v595
        %v6591 = vmul.f32 %v6590, 2.0
        %v6592 = vmul.f32 %v6591, %v6589
        %v6594 = vrot.slane %v6592, 7
        %v6596 = vsub.f32 %v6589, %v6594
        %v6597 = vmul.f32 %v6596, %v595
        %v6598 = vmul.f32 %v6590, %v6590
        %v6600 = vrot.slane %v6598, 7
        %v6602 = vadd.f32 %v6597, %v6600
        %v6603 = vmax.f32 %v6602, 0.0
        %v6604 = vadd.f32 %v6603, 1e-08
        %v6605 = vrsqrt.pop %v6604
        %v6606 = vlaneseq
        %v6607 = vshrl.u32 %v6606, 7
        %v6608 = vsub.s32 0, %v6607
        %v6609 = vrot.slane %v6590, %v6608
        %v6610 = vsub.f32 %v6525, %v6609
        %v6611 = vsub.f32 %v6526, %v6609
        %v6612 = vsub.f32 %v6527, %v6609
        %v6613 = vsub.f32 %v6528, %v6609
        %v6614 = vlaneseq
        %v6615 = vshrl.u32 %v6614, 7
        %v6616 = vsub.s32 1, %v6615
        %v6617 = vrot.slane %v6605, %v6616
        %v6618 = vmul.f32 %v6610, %v6617
        %v6619 = vmul.f32 %v6611, %v6617
        %v6620 = vmul.f32 %v6612, %v6617
        %v6621 = vmul.f32 %v6613, %v6617
        %6623 = vset.pattern.permute.xlu0 0
        %6624 = vperm.xlu0 %6623, %v6530
        %v6625 = vpop.permute.xlu0 %6624
        %6628 = vset.pattern.permute.xlu0 0
        %6629 = vperm.xlu0 %6628, %v6531
        %v6630 = vpop.permute.xlu0 %6629
        %6633 = vset.pattern.permute.xlu0 0
        %6634 = vperm.xlu0 %6633, %v6532
        %v6635 = vpop.permute.xlu0 %6634
        %6638 = vset.pattern.permute.xlu0 0
        %6639 = vperm.xlu0 %6638, %v6533
        %v6640 = vpop.permute.xlu0 %6639
        %v6642 = vmul.f32 %v6618, %v6625
        %v6643 = vmul.f32 %v6619, %v6630
        %v6644 = vmul.f32 %v6620, %v6635
        %v6645 = vmul.f32 %v6621, %v6640
        %6647 = vset.pattern.permute.xlu0 0
        %6648 = vperm.xlu0 %6647, %v6535
        %v6649 = vpop.permute.xlu0 %6648
        %6652 = vset.pattern.permute.xlu0 0
        %6653 = vperm.xlu0 %6652, %v6536
        %v6654 = vpop.permute.xlu0 %6653
        %6657 = vset.pattern.permute.xlu0 0
        %6658 = vperm.xlu0 %6657, %v6537
        %v6659 = vpop.permute.xlu0 %6658
        %6662 = vset.pattern.permute.xlu0 0
        %6663 = vperm.xlu0 %6662, %v6538
        %v6664 = vpop.permute.xlu0 %6663
        %v6666 = vadd.f32 %v6642, %v6649
        %v6667 = vadd.f32 %v6643, %v6654
        %v6668 = vadd.f32 %v6644, %v6659
        %v6669 = vadd.f32 %v6645, %v6664
        %s6670 = scalar_lea.vmem %s7, 256
        %v6671 = vld [vmem:[%s6670] sm:$0xff]
        %v6672 = vld [vmem:[%s6670 + $0x8] sm:$0xff]
        %v6673 = vld [vmem:[%s6670 + $0x10] sm:$0xff]
        %v6674 = vld [vmem:[%s6670 + $0x18] sm:$0xff]
        %6675 = vrot.lane.b32.xlu0 %v6666, 4
        %v6676 = vpop.permute.xlu0 %6675
        %6677 = vrot.lane.b32.xlu0 %v6667, 4
        %v6678 = vpop.permute.xlu0 %6677
        %6679 = vrot.lane.b32.xlu0 %v6668, 4
        %v6680 = vpop.permute.xlu0 %6679
        %6681 = vrot.lane.b32.xlu0 %v6669, 4
        %v6682 = vpop.permute.xlu0 %6681
        %v6683 = vsel %vm797, %v6676, 0.0
        %v6684 = vsel %vm797, %v6678, 0.0
        %v6685 = vsel %vm797, %v6680, 0.0
        %v6686 = vsel %vm797, %v6682, 0.0
        %6687 = vrot.lane.b32.xlu0 %v6666, 124
        %v6688 = vpop.permute.xlu0 %6687
        %6689 = vrot.lane.b32.xlu0 %v6667, 124
        %v6690 = vpop.permute.xlu0 %6689
        %6691 = vrot.lane.b32.xlu0 %v6668, 124
        %v6692 = vpop.permute.xlu0 %6691
        %6693 = vrot.lane.b32.xlu0 %v6669, 124
        %v6694 = vpop.permute.xlu0 %6693
        %v6695 = vsel %vm2325, %v6688, 0.0
        %v6696 = vsel %vm2325, %v6690, 0.0
        %v6697 = vsel %vm2325, %v6692, 0.0
        %v6698 = vsel %vm2325, %v6694, 0.0
        %6700 = vset.pattern.permute.xlu0 0
        %6701 = vperm.xlu0 %6700, %v6671
        %v6702 = vpop.permute.xlu0 %6701
        %6705 = vset.pattern.permute.xlu0 0
        %6706 = vperm.xlu0 %6705, %v6672
        %v6707 = vpop.permute.xlu0 %6706
        %6710 = vset.pattern.permute.xlu0 0
        %6711 = vperm.xlu0 %6710, %v6673
        %v6712 = vpop.permute.xlu0 %6711
        %6715 = vset.pattern.permute.xlu0 0
        %6716 = vperm.xlu0 %6715, %v6674
        %v6717 = vpop.permute.xlu0 %6716
        %v6719 = vmul.f32 %v6702, %v6683
        %v6720 = vmul.f32 %v6707, %v6684
        %v6721 = vmul.f32 %v6712, %v6685
        %v6722 = vmul.f32 %v6717, %v6686
        %6723 = vset.pattern.permute.xlu0 1
        %6724 = vperm.xlu0 %6723, %v6671
        %v6725 = vpop.permute.xlu0 %6724
        %6727 = vset.pattern.permute.xlu0 1
        %6728 = vperm.xlu0 %6727, %v6672
        %v6729 = vpop.permute.xlu0 %6728
        %6731 = vset.pattern.permute.xlu0 1
        %6732 = vperm.xlu0 %6731, %v6673
        %v6733 = vpop.permute.xlu0 %6732
        %6735 = vset.pattern.permute.xlu0 1
        %6736 = vperm.xlu0 %6735, %v6674
        %v6737 = vpop.permute.xlu0 %6736
        %v6739 = vmul.f32 %v6725, %v6666
        %v6740 = vmul.f32 %v6729, %v6667
        %v6741 = vmul.f32 %v6733, %v6668
        %v6742 = vmul.f32 %v6737, %v6669
        %v6743 = vadd.f32 %v6719, %v6739
        %v6744 = vadd.f32 %v6720, %v6740
        %v6745 = vadd.f32 %v6721, %v6741
        %v6746 = vadd.f32 %v6722, %v6742
        %6747 = vset.pattern.permute.xlu0 2
        %6748 = vperm.xlu0 %6747, %v6671
        %v6749 = vpop.permute.xlu0 %6748
        %6751 = vset.pattern.permute.xlu0 2
        %6752 = vperm.xlu0 %6751, %v6672
        %v6753 = vpop.permute.xlu0 %6752
        %6755 = vset.pattern.permute.xlu0 2
        %6756 = vperm.xlu0 %6755, %v6673
        %v6757 = vpop.permute.xlu0 %6756
        %6759 = vset.pattern.permute.xlu0 2
        %6760 = vperm.xlu0 %6759, %v6674
        %v6761 = vpop.permute.xlu0 %6760
        %v6763 = vmul.f32 %v6749, %v6695
        %v6764 = vmul.f32 %v6753, %v6696
        %v6765 = vmul.f32 %v6757, %v6697
        %v6766 = vmul.f32 %v6761, %v6698
        %v6767 = vadd.f32 %v6743, %v6763
        %v6768 = vadd.f32 %v6744, %v6764
        %v6769 = vadd.f32 %v6745, %v6765
        %v6770 = vadd.f32 %v6746, %v6766
        %s6771 = scalar_lea.vmem %s8, 256
        %v6772 = vld [vmem:[%s6771] sm:$0xff]
        %v6773 = vld [vmem:[%s6771 + $0x8] sm:$0xff]
        %v6774 = vld [vmem:[%s6771 + $0x10] sm:$0xff]
        %v6775 = vld [vmem:[%s6771 + $0x18] sm:$0xff]
        %6777 = vset.pattern.permute.xlu0 0
        %6778 = vperm.xlu0 %6777, %v6772
        %v6779 = vpop.permute.xlu0 %6778
        %6782 = vset.pattern.permute.xlu0 0
        %6783 = vperm.xlu0 %6782, %v6773
        %v6784 = vpop.permute.xlu0 %6783
        %6787 = vset.pattern.permute.xlu0 0
        %6788 = vperm.xlu0 %6787, %v6774
        %v6789 = vpop.permute.xlu0 %6788
        %6792 = vset.pattern.permute.xlu0 0
        %6793 = vperm.xlu0 %6792, %v6775
        %v6794 = vpop.permute.xlu0 %6793
        %v6796 = vadd.f32 %v6767, %v6779
        %v6797 = vadd.f32 %v6768, %v6784
        %v6798 = vadd.f32 %v6769, %v6789
        %v6799 = vadd.f32 %v6770, %v6794
        %vm6800 = vcmp.ge.f32.partialorder %v6796, 0.0
        %vm6801 = vcmp.ge.f32.partialorder %v6797, 0.0
        %vm6802 = vcmp.ge.f32.partialorder %v6798, 0.0
        %vm6803 = vcmp.ge.f32.partialorder %v6799, 0.0
        %v6804 = vstv %s6388
        %v6805 = vmul.f32 %v6804, %v6796
        %v6806 = vmul.f32 %v6804, %v6797
        %v6807 = vmul.f32 %v6804, %v6798
        %v6808 = vmul.f32 %v6804, %v6799
        %v6809 = vsel %vm6800, %v6796, %v6805
        %v6810 = vsel %vm6801, %v6797, %v6806
        %v6811 = vsel %vm6802, %v6798, %v6807
        %v6812 = vsel %vm6803, %v6799, %v6808
        %s6813 = scalar_lea.vmem %s9, 256
        %v6814 = vld [vmem:[%s6813] sm:$0xff]
        %v6815 = vld [vmem:[%s6813 + $0x8] sm:$0xff]
        %v6816 = vld [vmem:[%s6813 + $0x10] sm:$0xff]
        %v6817 = vld [vmem:[%s6813 + $0x18] sm:$0xff]
        %s6818 = scalar_lea.vmem %s10, 256
        %v6819 = vld [vmem:[%s6818] sm:$0xff]
        %v6820 = vld [vmem:[%s6818 + $0x8] sm:$0xff]
        %v6821 = vld [vmem:[%s6818 + $0x10] sm:$0xff]
        %v6822 = vld [vmem:[%s6818 + $0x18] sm:$0xff]
        %v6823 = vadd.f32 %v6809, %v6810
        %v6824 = vadd.f32 %v6823, %v6811
        %v6825 = vadd.f32 %v6824, %v6812
        %v6826 = vrot.slane %v6825, 4
        %v6827 = vadd.f32 %v6825, %v6826
        %v6828 = vrot.slane %v6827, 2
        %v6829 = vadd.f32 %v6827, %v6828
        %v6830 = vrot.slane %v6829, 1
        %v6831 = vadd.f32 %v6829, %v6830
        %v6832 = vmul.f32 %v6809, %v6809
        %v6833 = vmul.f32 %v6810, %v6810
        %v6834 = vmul.f32 %v6811, %v6811
        %v6835 = vmul.f32 %v6812, %v6812
        %v6836 = vadd.f32 %v6832, %v6833
        %v6837 = vadd.f32 %v6836, %v6834
        %v6838 = vadd.f32 %v6837, %v6835
        %v6839 = vrot.slane %v6838, 4
        %v6840 = vadd.f32 %v6838, %v6839
        %v6841 = vrot.slane %v6840, 2
        %v6842 = vadd.f32 %v6840, %v6841
        %v6843 = vrot.slane %v6842, 1
        %v6844 = vadd.f32 %v6842, %v6843
        %v6845 = vsel %vm780, %v6831, %v6844
        %6846 = vrot.lane.b32.xlu0 %v6845, 1
        %v6847 = vpop.permute.xlu0 %6846
        %v6848 = vsel %vm785, %v6847, 0.0
        %v6849 = vadd.f32 %v6845, %v6848
        %6850 = vrot.lane.b32.xlu0 %v6849, 2
        %v6851 = vpop.permute.xlu0 %6850
        %v6852 = vsel %vm791, %v6851, 0.0
        %v6853 = vadd.f32 %v6849, %v6852
        %6854 = vrot.lane.b32.xlu0 %v6853, 4
        %v6855 = vpop.permute.xlu0 %6854
        %v6856 = vsel %vm797, %v6855, 0.0
        %v6857 = vadd.f32 %v6853, %v6856
        %6858 = vrot.lane.b32.xlu0 %v6857, 8
        %v6859 = vpop.permute.xlu0 %6858
        %v6860 = vsel %vm803, %v6859, 0.0
        %v6861 = vadd.f32 %v6857, %v6860
        %6862 = vrot.lane.b32.xlu0 %v6861, 16
        %v6863 = vpop.permute.xlu0 %6862
        %v6864 = vsel %vm809, %v6863, 0.0
        %v6865 = vadd.f32 %v6861, %v6864
        %6866 = vrot.lane.b32.xlu0 %v6865, 32
        %v6867 = vpop.permute.xlu0 %6866
        %v6868 = vsel %vm815, %v6867, 0.0
        %v6869 = vadd.f32 %v6865, %v6868
        %6870 = vrot.lane.b32.xlu0 %v6869, 64
        %v6871 = vpop.permute.xlu0 %6870
        %v6872 = vsel %vm821, %v6871, 0.0
        %v6873 = vadd.f32 %v6869, %v6872
        %v6874 = vmul.f32 %v6873, %v595
        %v6875 = vmul.f32 %v6874, 2.0
        %v6876 = vmul.f32 %v6875, %v6873
        %v6878 = vrot.slane %v6876, 7
        %v6880 = vsub.f32 %v6873, %v6878
        %v6881 = vmul.f32 %v6880, %v595
        %v6882 = vmul.f32 %v6874, %v6874
        %v6884 = vrot.slane %v6882, 7
        %v6886 = vadd.f32 %v6881, %v6884
        %v6887 = vmax.f32 %v6886, 0.0
        %v6888 = vadd.f32 %v6887, 1e-08
        %v6889 = vrsqrt.pop %v6888
        %v6890 = vlaneseq
        %v6891 = vshrl.u32 %v6890, 7
        %v6892 = vsub.s32 0, %v6891
        %v6893 = vrot.slane %v6874, %v6892
        %v6894 = vsub.f32 %v6809, %v6893
        %v6895 = vsub.f32 %v6810, %v6893
        %v6896 = vsub.f32 %v6811, %v6893
        %v6897 = vsub.f32 %v6812, %v6893
        %v6898 = vlaneseq
        %v6899 = vshrl.u32 %v6898, 7
        %v6900 = vsub.s32 1, %v6899
        %v6901 = vrot.slane %v6889, %v6900
        %v6902 = vmul.f32 %v6894, %v6901
        %v6903 = vmul.f32 %v6895, %v6901
        %v6904 = vmul.f32 %v6896, %v6901
        %v6905 = vmul.f32 %v6897, %v6901
        %6907 = vset.pattern.permute.xlu0 0
        %6908 = vperm.xlu0 %6907, %v6814
        %v6909 = vpop.permute.xlu0 %6908
        %6912 = vset.pattern.permute.xlu0 0
        %6913 = vperm.xlu0 %6912, %v6815
        %v6914 = vpop.permute.xlu0 %6913
        %6917 = vset.pattern.permute.xlu0 0
        %6918 = vperm.xlu0 %6917, %v6816
        %v6919 = vpop.permute.xlu0 %6918
        %6922 = vset.pattern.permute.xlu0 0
        %6923 = vperm.xlu0 %6922, %v6817
        %v6924 = vpop.permute.xlu0 %6923
        %v6926 = vmul.f32 %v6902, %v6909
        %v6927 = vmul.f32 %v6903, %v6914
        %v6928 = vmul.f32 %v6904, %v6919
        %v6929 = vmul.f32 %v6905, %v6924
        %6931 = vset.pattern.permute.xlu0 0
        %6932 = vperm.xlu0 %6931, %v6819
        %v6933 = vpop.permute.xlu0 %6932
        %6936 = vset.pattern.permute.xlu0 0
        %6937 = vperm.xlu0 %6936, %v6820
        %v6938 = vpop.permute.xlu0 %6937
        %6941 = vset.pattern.permute.xlu0 0
        %6942 = vperm.xlu0 %6941, %v6821
        %v6943 = vpop.permute.xlu0 %6942
        %6946 = vset.pattern.permute.xlu0 0
        %6947 = vperm.xlu0 %6946, %v6822
        %v6948 = vpop.permute.xlu0 %6947
        %v6950 = vadd.f32 %v6926, %v6933
        %v6951 = vadd.f32 %v6927, %v6938
        %v6952 = vadd.f32 %v6928, %v6943
        %v6953 = vadd.f32 %v6929, %v6948
        %s6954 = scalar_lea.vmem %s11, 256
        %v6955 = vld [vmem:[%s6954] sm:$0xff]
        %v6956 = vld [vmem:[%s6954 + $0x8] sm:$0xff]
        %v6957 = vld [vmem:[%s6954 + $0x10] sm:$0xff]
        %v6958 = vld [vmem:[%s6954 + $0x18] sm:$0xff]
        %s6959 = scalar_lea.vmem %s12, 256
        %v6960 = vld [vmem:[%s6959] sm:$0xff]
        %v6961 = vld [vmem:[%s6959 + $0x8] sm:$0xff]
        %v6962 = vld [vmem:[%s6959 + $0x10] sm:$0xff]
        %v6963 = vld [vmem:[%s6959 + $0x18] sm:$0xff]
        %6965 = vset.pattern.permute.xlu0 0
        %6966 = vperm.xlu0 %6965, %v6960
        %v6967 = vpop.permute.xlu0 %6966
        %6970 = vset.pattern.permute.xlu0 0
        %6971 = vperm.xlu0 %6970, %v6961
        %v6972 = vpop.permute.xlu0 %6971
        %6975 = vset.pattern.permute.xlu0 0
        %6976 = vperm.xlu0 %6975, %v6962
        %v6977 = vpop.permute.xlu0 %6976
        %6980 = vset.pattern.permute.xlu0 0
        %6981 = vperm.xlu0 %6980, %v6963
        %v6982 = vpop.permute.xlu0 %6981
        %v6985 = vsel %vm1214, %v6955, 0
        %v6988 = vsel %vm1214, %v6956, 0
        %v6991 = vsel %vm1214, %v6957, 0
        %v6994 = vsel %vm1214, %v6958, 0
        %6996 = vmatprep.subr.mxu0 0.0
        %6997 = vmatpush1.msra.mxu0 %v6950
        %6998 = vmatprep.subr.mxu0 0.0
        %6999 = vmatpush1.msra.mxu0 %v6951
        %7000 = vmatprep.subr.mxu0 0.0
        %7001 = vmatpush1.msra.mxu0 %v6952
        %7002 = vmatprep.subr.mxu0 0.0
        %7003 = vmatpush1.msra.mxu0 %v6953
        %7004 = vmatprep.subr.mxu0 0.0
        %7005 = vmatpush1.msra.mxu0 0.0
        %7006 = vmatprep.subr.mxu0 0.0
        %7007 = vmatpush1.msra.mxu0 0.0
        %7008 = vmatprep.subr.mxu0 0.0
        %7009 = vmatpush1.msra.mxu0 0.0
        %7010 = vmatprep.subr.mxu0 0.0
        %7011 = vmatpush1.msra.mxu0 0.0
        %7012 = vmatprep.subr.mxu0 0.0
        %7013 = vmatpush1.msra.mxu0 0.0
        %7014 = vmatprep.subr.mxu0 0.0
        %7015 = vmatpush1.msra.mxu0 0.0
        %7016 = vmatprep.subr.mxu0 0.0
        %7017 = vmatpush1.msra.mxu0 0.0
        %7018 = vmatprep.subr.mxu0 0.0
        %7019 = vmatpush1.msra.mxu0 0.0
        %7020 = vmatprep.subr.mxu0 0.0
        %7021 = vmatpush1.msra.mxu0 0.0
        %7022 = vmatprep.subr.mxu0 0.0
        %7023 = vmatpush1.msra.mxu0 0.0
        %7024 = vmatprep.subr.mxu0 0.0
        %7025 = vmatpush1.msra.mxu0 0.0
        %7026 = vmatprep.subr.mxu0 0.0
        %7027 = vmatpush1.msra.mxu0 0.0
        %7028 = vmatprep.subr.mxu0 0.0
        %7029 = vmatpush1.msra.mxu0 0.0
        %7030 = vmatprep.subr.mxu0 0.0
        %7031 = vmatpush1.msra.mxu0 0.0
        %7032 = vmatprep.subr.mxu0 0.0
        %7033 = vmatpush1.msra.mxu0 0.0
        %7034 = vmatprep.subr.mxu0 0.0
        %7035 = vmatpush1.msra.mxu0 0.0
        %7036 = vmatprep.subr.mxu0 0.0
        %7037 = vmatpush1.msra.mxu0 0.0
        %7038 = vmatprep.subr.mxu0 0.0
        %7039 = vmatpush1.msra.mxu0 0.0
        %7040 = vmatprep.subr.mxu0 0.0
        %7041 = vmatpush1.msra.mxu0 0.0
        %7042 = vmatprep.subr.mxu0 0.0
        %7043 = vmatpush1.msra.mxu0 0.0
        %7044 = vmatprep.subr.mxu0 0.0
        %7045 = vmatpush1.msra.mxu0 0.0
        %7046 = vmatprep.subr.mxu0 0.0
        %7047 = vmatpush1.msra.mxu0 0.0
        %7048 = vmatprep.subr.mxu0 0.0
        %7049 = vmatpush1.msra.mxu0 0.0
        %7050 = vmatprep.subr.mxu0 0.0
        %7051 = vmatpush1.msra.mxu0 0.0
        %7052 = vmatprep.subr.mxu0 0.0
        %7053 = vmatpush1.msra.mxu0 0.0
        %7054 = vmatprep.subr.mxu0 0.0
        %7055 = vmatpush1.msra.mxu0 0.0
        %7056 = vmatprep.subr.mxu0 0.0
        %7057 = vmatpush1.msra.mxu0 0.0
        %7058 = vmatprep.subr.mxu0 0.0
        %7059 = vmatpush1.msra.mxu0 0.0
        %7060 = vmatprep.mubr.f32.mxu0 0.0
        %7061 = vmatmul.mubr.f32.gmra.mrb[0].mxu0 %v6985
        %v7062 = vpop.f32.mrb[0].mxu0
        %v7063 = vadd.f32 %v6967, %v7062
        %v7064 = vpop.f32.mrb[0].mxu0
        %7065 = vmatprep.mubr.f32.mxu0 0.0
        %7066 = vmatmul.mubr.f32.gmra.mrb[0].mxu0 %v6988
        %v7067 = vpop.f32.mrb[0].mxu0
        %v7068 = vadd.f32 %v6972, %v7067
        %v7069 = vpop.f32.mrb[0].mxu0
        %7070 = vmatprep.mubr.f32.mxu0 0.0
        %7071 = vmatmul.mubr.f32.gmra.mrb[0].mxu0 %v6991
        %v7072 = vpop.f32.mrb[0].mxu0
        %v7073 = vadd.f32 %v6977, %v7072
        %v7074 = vpop.f32.mrb[0].mxu0
        %7075 = vmatprep.mubr.f32.mxu0 0.0
        %7076 = vmatmul.mubr.f32.gmra.mrb[0].mxu0 %v6994
        %v7077 = vpop.f32.mrb[0].mxu0
        %v7078 = vadd.f32 %v6982, %v7077
        %v7079 = vpop.f32.mrb[0].mxu0
        %7080 = vdwg.mxu0
        %v7081 = vadd.f32 %v6385, %v7063
        %v7082 = vadd.f32 %v6386, %v7068
        %v7083 = vadd.f32 %v6204, %v7073
        %v7084 = vadd.f32 %v6205, %v7078
        %7085 = vst [vmem:[%s572] sm:$0xff] %v7081
        %7086 = vst [vmem:[%s572 + $0x8] sm:$0xff] %v7082
        %7087 = vst [vmem:[%s579] sm:$0xff] %v7083
        %7088 = vst [vmem:[%s579 + $0x8] sm:$0xff] %v7084
        %s7089 = sand.u32 %s390, 1
        %s7090 = scalar_lea.sflag [#allocation3], %s7089
        %s7091 = sand.u32 %s390, 1
        %s7092 = smul.addr %s7091, 16
        %s7093 = scalar_lea.vmem [#allocation5], %s7092
        %s7094 = sand.u32 %s416, 1
        %s7095 = scalar_lea.sflag [#allocation7], %s7094
        %s7096 = sand.u32 %s416, 1
        %s7097 = smul.addr %s7096, 16
        %s7098 = scalar_lea.vmem [#allocation6], %s7097
        // Predicated region
        $region89: #{tpu_custom_call.1} parent=83 // pred_check
          %p7099 = pneg %p400
        $region90: #{tpu_custom_call.1} parent=83 // pred_check_branch
          %7101 = sbr.rel (%p7099) target = $region92
        $region91: #{tpu_custom_call.1} parent=83 // pred_region
          %s7103 = ssub.s32 256, 256
          %7104 = vsyncadd %s7090, %s7103
          %s7105 = smul.addr %s36, 2
          %s7106 = smul.addr %s7105, 128
          %s7107 = scalar_lea.hbm %s16, %s7106
          %s7108 = sshll.u32 %s7093, 4
          %s7109 = int_to_ptr.vmem [resolvable:$true] %s7108
          %7114 = dma.vmem_to_hbm [thread:$0]  %s7109, 256, %s7107, %s7090, 128, 128, 8
        $region92: #{tpu_custom_call.1} parent=83 // pred_fallthru
          _
        // Predicated region
        $region93: #{tpu_custom_call.1} parent=83 // pred_check
          %p7115 = pneg %p426
        $region94: #{tpu_custom_call.1} parent=83 // pred_check_branch
          %7117 = sbr.rel (%p7115) target = $region96
        $region95: #{tpu_custom_call.1} parent=83 // pred_region
          %s7119 = ssub.s32 256, 256
          %7120 = vsyncadd %s7095, %s7119
          %s7121 = smul.addr %s36, 2
          %s7122 = smul.addr %s7121, 128
          %s7123 = scalar_lea.hbm %s17, %s7122
          %s7124 = sshll.u32 %s7098, 4
          %s7125 = int_to_ptr.vmem [resolvable:$true] %s7124
          %7130 = dma.vmem_to_hbm [thread:$0]  %s7125, 256, %s7123, %s7095, 128, 128, 8
        $region96: #{tpu_custom_call.1} parent=83 // pred_fallthru
          _
      $region84: #{tpu_custom_call.1} parent=5 // pred_fallthru
        _
      %p7131 = scmp.le.s32.totalorder 2, %s31
      // Predicated region
      $region97: #{tpu_custom_call.1} parent=5 // pred_check
        %p7132 = pneg %p7131
      $region98: #{tpu_custom_call.1} parent=5 // pred_check_branch
        %7134 = sbr.rel (%p7132) target = $region100
      $region99: #{tpu_custom_call.1} parent=5 // pred_region
        %s7135 = ssub.s32 %s31, 2
        // Predicated region
        $region101: #{tpu_custom_call.1} parent=99 // pred_check
          %p7136 = pneg %p406
        $region102: #{tpu_custom_call.1} parent=99 // pred_check_branch
          %7138 = sbr.rel (%p7136) target = $region104
        $region103: #{tpu_custom_call.1} parent=99 // pred_region
          %s7139 = sand.u32 %s391, 1
          %s7140 = scalar_lea.sflag [#allocation3], %s7139
          %s7141 = sand.u32 %s391, 1
          %s7142 = smul.addr %s7141, 16
          %s7143 = scalar_lea.vmem [#allocation5], %s7142
          %7144 = dma.done %s7140, 256
        $region104: #{tpu_custom_call.1} parent=99 // pred_fallthru
          _
        // Predicated region
        $region105: #{tpu_custom_call.1} parent=99 // pred_check
          %p7145 = pneg %p432
        $region106: #{tpu_custom_call.1} parent=99 // pred_check_branch
          %7147 = sbr.rel (%p7145) target = $region108
        $region107: #{tpu_custom_call.1} parent=99 // pred_region
          %s7148 = sand.u32 %s417, 1
          %s7149 = scalar_lea.sflag [#allocation7], %s7148
          %s7150 = sand.u32 %s417, 1
          %s7151 = smul.addr %s7150, 16
          %s7152 = scalar_lea.vmem [#allocation6], %s7151
          %7153 = dma.done %s7149, 256
        $region108: #{tpu_custom_call.1} parent=99 // pred_fallthru
          _
      $region100: #{tpu_custom_call.1} parent=5 // pred_fallthru
        _
    $region6: #{tpu_custom_call.1} parent=1 // loop_footer
      %s35 = sadd.s32 1, %s31
    $region7: #{tpu_custom_call.1} parent=1 // loop_footer_branch
      %30 = sbr.rel target = $region3
    $region8: #{tpu_custom_call.1} parent=1 // loop_exit
      _
    %7154 = vsyncpa [#allocation3], 1
    %s7155 = scalar_lea.sflag [#allocation3], 1
    %7156 = vsyncpa %s7155, 1
    %7157 = vsyncpa [#allocation7], 1
    %s7158 = scalar_lea.sflag [#allocation7], 1
    %7159 = vsyncpa %s7158, 1
    %7160 = vsyncpa [#allocation4], 1
    %s7161 = scalar_lea.sflag [#allocation4], 1
    %7162 = vsyncpa %s7161, 1

</llo_original>
